<compile_context>
chip_gen: v7x
topology: tpu7x:2x2x1
jax: 0.10.0
libtpu: 0.0.40
codegen_flags: <defaults>
</compile_context>

<pallas_src>
import functools
import math

import numpy as np

import jax
import jax.numpy as jnp
from jax.experimental import pallas as pl
from jax.experimental.pallas import tpu as pltpu

EPS = 1e-5  # PyTorch BatchNorm2d default


# ---------------------------------------------------------------------------
# Fused kernel: [conv3x3 + ReLU + BN] x4  ->  shared conv1x1 + BN,
# both modalities in one body.  Activations are (C, NHW), NHW on the lane axis.
# ---------------------------------------------------------------------------
def _fused_kernel(maskf_ref, x_ref,
                  w1_ref, cb1_ref, g1_ref, bb1_ref,
                  w2_ref, cb2_ref, g2_ref, bb2_ref,
                  w3_ref, cb3_ref, g3_ref, bb3_ref,
                  w4_ref, cb4_ref, g4_ref, bb4_ref,
                  w5_ref, cb5_ref, g5_ref, bb5_ref,
                  o_ref,
                  pad1_ref, imr1_ref, pad2_ref, imr2_ref,
                  *, W, pad, cp):
    nhw = x_ref.shape[-1]

    # Zero all scratches once.  Required for correctness: masking is a multiply
    # (0 * NaN = NaN), and unused im2row rows feed the dot through zero weight
    # columns — both must see exact zeros, never stale VMEM.
    pad1_ref[...] = jnp.zeros_like(pad1_ref)
    pad2_ref[...] = jnp.zeros_like(pad2_ref)
    imr1_ref[...] = jnp.zeros_like(imr1_ref)
    imr2_ref[...] = jnp.zeros_like(imr2_ref)

    def conv3x3_relu(x, w_flat, b, pad_ref, imr_ref):
        # x: (Cin, NHW) value; w_flat: (Cout, 9*CP) channel-padded flat weight.
        cin = x.shape[0]
        # Stage the activation once at an aligned lane offset.
        pad_ref[:cin, pad:pad + nhw] = x
        # im2row staging: 9 shifted views, masked at store time with a
        # pre-broadcast mask (no in-kernel broadcasts).
        for t in range(9):
            dy, dx = t // 3 - 1, t % 3 - 1
            off = dy * W + dx
            r0 = t * cp
            imr_ref[r0:r0 + cin, :] = (
                pad_ref[:cin, pad + off: pad + off + nhw]
                * maskf_ref[r0:r0 + cin, :])
        # ONE MXU dot per layer; bias added in the epilogue; ReLU fused.
        y = jnp.dot(w_flat, imr_ref[...],
                    preferred_element_type=jnp.float32) + b
        return jnp.maximum(y, 0.0)

    def bn(x, gamma, beta):
        # Training-mode BN over the NHW lanes (biased variance), one pass:
        # y = x*a + b with a = gamma*rsqrt(var+eps), b = beta - mean*a.
        inv_n = 1.0 / x.shape[-1]
        mean = jnp.sum(x, axis=-1, keepdims=True) * inv_n
        ex2 = jnp.sum(x * x, axis=-1, keepdims=True) * inv_n
        var = ex2 - mean * mean
        a = jax.lax.rsqrt(var + EPS) * gamma
        return x * a + (beta - mean * a)

    x1 = x_ref[0]                                            # (C_img, NHW)
    x2 = x_ref[1]
    layer_refs = ((w1_ref, cb1_ref, g1_ref, bb1_ref),
                  (w2_ref, cb2_ref, g2_ref, bb2_ref),
                  (w3_ref, cb3_ref, g3_ref, bb3_ref),
                  (w4_ref, cb4_ref, g4_ref, bb4_ref))
    # Layer-interleave the two independent modality chains (separate scratches
    # keep them dependency-free so the scheduler can overlap them).
    for w_ref, cb_ref, g_ref, bb_ref in layer_refs:
        x1 = bn(conv3x3_relu(x1, w_ref[0], cb_ref[0], pad1_ref, imr1_ref),
                g_ref[0], bb_ref[0])
        x2 = bn(conv3x3_relu(x2, w_ref[1], cb_ref[1], pad2_ref, imr2_ref),
                g_ref[1], bb_ref[1])

    # Shared conv5 (1x1) == plain matmul (no ReLU), then shared bn5.
    w5 = w5_ref[...]
    cb5 = cb5_ref[...]
    x1 = bn(jnp.dot(w5, x1, preferred_element_type=jnp.float32) + cb5,
            g5_ref[...], bb5_ref[...])
    x2 = bn(jnp.dot(w5, x2, preferred_element_type=jnp.float32) + cb5,
            g5_ref[...], bb5_ref[...])

    o_ref[0] = x1                                            # (C_final, NHW)
    o_ref[1] = x2


# ---------------------------------------------------------------------------
# Host-side helpers
# ---------------------------------------------------------------------------
def _make_tap_masks(N, H, W):
    """(9, N*H*W) float mask: 1 where the shifted tap stays inside the image."""
    p = np.arange(N * H * W)
    h = (p // W) % H
    w = p % W
    m = np.zeros((9, N * H * W), np.float32)
    for t in range(9):
        dy, dx = t // 3 - 1, t % 3 - 1
        m[t] = ((h + dy >= 0) & (h + dy < H) & (w + dx >= 0) & (w + dx < W))
    return m


def _full_spec(a):
    zeros = (0,) * a.ndim
    return pl.BlockSpec(a.shape, lambda i, z=zeros: z)


def model_forward(packed, x_mod1, x_mod2):
    """packed: pack_params() output. Inputs/outputs are NCHW."""
    N, c_img, H, W = x_mod1.shape
    NHW = N * H * W
    c_final = packed["w5"].shape[0]
    CP = packed["w1"].shape[2] // 9          # channel-padded width per tap

    def to_flat(x):  # NCHW -> (C, N*H*W), lane-dense
        return jnp.transpose(x.astype(jnp.float32), (1, 0, 2, 3)).reshape(-1, NHW)

    xs = jnp.stack([to_flat(x_mod1), to_flat(x_mod2)], axis=0)   # (2, C_img, NHW)

    # Pre-broadcast tap masks to the im2row row layout (9*CP, NHW): row
    # t*CP + c carries mask_t — no broadcasts needed inside the kernel.
    maskf = jnp.asarray(np.repeat(_make_tap_masks(N, H, W), CP, axis=0))

    args = [maskf, xs]
    in_specs = [_full_spec(maskf), _full_spec(xs)]
    for l in range(1, 5):
        for name in ("w", "cb", "g", "bb"):
            a = packed[f"{name}{l}"]
            args.append(a)
            in_specs.append(_full_spec(a))
    for name in ("w", "cb", "g", "bb"):
        a = packed[f"{name}5"]
        args.append(a)
        in_specs.append(_full_spec(a))

    PAD = 128  # aligned lane border for the in-kernel shift scratch (>= W+1)
    out = pl.pallas_call(
        functools.partial(_fused_kernel, W=W, pad=PAD, cp=CP),
        out_shape=jax.ShapeDtypeStruct((2, c_final, NHW), jnp.float32),
        grid=(1,),                                   # single fused grid step
        in_specs=in_specs,
        out_specs=pl.BlockSpec((2, c_final, NHW), lambda i: (0, 0, 0)),
        scratch_shapes=[
            pltpu.VMEM((CP, NHW + 2 * PAD), jnp.float32),   # pad stage, mod 1
            pltpu.VMEM((9 * CP, NHW), jnp.float32),         # im2row,    mod 1
            pltpu.VMEM((CP, NHW + 2 * PAD), jnp.float32),   # pad stage, mod 2
            pltpu.VMEM((9 * CP, NHW), jnp.float32),         # im2row,    mod 2
        ],
        compiler_params=pltpu.CompilerParams(dimension_semantics=("arbitrary",)),
    )(*args)

    # (2, Cf, N*H*W) -> two NCHW tensors
    y = jnp.transpose(out.reshape(2, c_final, N, H, W), (0, 2, 1, 3, 4))
    return y[0], y[1]


# ---------------------------------------------------------------------------
# Parameters (mirrors the PyTorch __init__: kaiming_uniform_ a=0, conv bias
# 0.01, BN weight 1, BN bias 0.001)
# ---------------------------------------------------------------------------
def make_params(key, num_img_channels, n_feat_mid, n_feat_final):
    dims = [(num_img_channels, n_feat_mid),
            (n_feat_mid, 2 * n_feat_mid),
            (2 * n_feat_mid, 2 * n_feat_mid),
            (2 * n_feat_mid, n_feat_mid)]
    keys = jax.random.split(key, 9)
    raw = {"m1": {}, "m2": {}, "shared": {}}
    ki = 0
    for mod in ("m1", "m2"):
        for l, (cin, cout) in enumerate(dims, start=1):
            bound = math.sqrt(6.0 / (cin * 9))       # kaiming_uniform_, a=0
            raw[mod][f"w{l}"] = jax.random.uniform(
                keys[ki], (cout, cin, 3, 3), jnp.float32, -bound, bound)
            raw[mod][f"cb{l}"] = jnp.full((cout,), 0.01, jnp.float32)
            raw[mod][f"g{l}"] = jnp.ones((cout,), jnp.float32)
            raw[mod][f"bb{l}"] = jnp.full((cout,), 0.001, jnp.float32)
            ki += 1
    bound = math.sqrt(6.0 / n_feat_mid)
    raw["shared"]["w5"] = jax.random.uniform(
        keys[ki], (n_feat_final, n_feat_mid, 1, 1), jnp.float32, -bound, bound)
    raw["shared"]["cb5"] = jnp.full((n_feat_final,), 0.01, jnp.float32)
    raw["shared"]["g5"] = jnp.ones((n_feat_final,), jnp.float32)
    raw["shared"]["bb5"] = jnp.full((n_feat_final,), 0.001, jnp.float32)
    return raw


def pack_params(raw, num_img_channels, n_feat_mid):
    """Re-layout torch-style params for the fused kernel.

    Conv weights become channel-padded flat (Cout, 9*CP) matrices matching the
    im2row row layout (column index = tap*CP + in_channel); padded columns are
    zero so unused / never-written im2row rows contribute exactly 0.
    """
    c_max_in = max(num_img_channels, n_feat_mid, 2 * n_feat_mid)
    CP = ((c_max_in + 7) // 8) * 8            # sublane-aligned channel pad

    p = {}
    for l in range(1, 5):
        ws = []
        for mod in ("m1", "m2"):
            w = raw[mod][f"w{l}"]                                  # (O, I, 3, 3)
            O, I = w.shape[0], w.shape[1]
            wt = jnp.transpose(w, (2, 3, 0, 1)).reshape(9, O, I)   # (9, O, I)
            wt = jnp.pad(wt, ((0, 0), (0, 0), (0, CP - I)))        # (9, O, CP)
            ws.append(jnp.transpose(wt, (1, 0, 2)).reshape(O, 9 * CP))
        p[f"w{l}"] = jnp.stack(ws, axis=0)                         # (2, O, 9*CP)
        for name in ("cb", "g", "bb"):
            p[f"{name}{l}"] = jnp.stack(
                [raw[mod][f"{name}{l}"] for mod in ("m1", "m2")], axis=0)[:, :, None]
    w5 = raw["shared"]["w5"]
    p["w5"] = w5.reshape(w5.shape[0], w5.shape[1])                 # (Cf, Cm)
    for name in ("cb", "g", "bb"):
        p[f"{name}5"] = raw["shared"][f"{name}5"][:, None]         # (Cf, 1)
    return p


# ---------------------------------------------------------------------------
# Pure-JAX reference (correctness self-check)
# ---------------------------------------------------------------------------
def _reference_forward(raw, x1, x2):
    def conv(x, w, b):
        y = jax.lax.conv_general_dilated(
            x, w, window_strides=(1, 1), padding="SAME",
            dimension_numbers=("NCHW", "OIHW", "NCHW"),
            precision=jax.lax.Precision.HIGHEST)
        return y + b[None, :, None, None]

    def bn(x, g, be):
        mean = jnp.mean(x, axis=(0, 2, 3), keepdims=True)
        var = jnp.mean(jnp.square(x - mean), axis=(0, 2, 3), keepdims=True)
        return ((x - mean) * jax.lax.rsqrt(var + EPS) * g[None, :, None, None]
                + be[None, :, None, None])

    def branch(x, p, sh):
        for l in range(1, 5):
            x = bn(jax.nn.relu(conv(x, p[f"w{l}"], p[f"cb{l}"])),
                   p[f"g{l}"], p[f"bb{l}"])
        x = conv(x, sh["w5"], sh["cb5"])          # no ReLU after conv5
        x = bn(x, sh["g5"], sh["bb5"])
        return x

    return (branch(x1, raw["m1"], raw["shared"]),
            branch(x2, raw["m2"], raw["shared"]))


# ---------------------------------------------------------------------------
if __name__ == "__main__":
    key = jax.random.PRNGKey(0)
    k_params, k_x1, k_x2 = jax.random.split(key, 3)

    N, C_IMG, H, W = 2, 4, 16, 16
    N_FEAT_MID, N_FEAT_FINAL = 8, 3

    raw_params = make_params(k_params, C_IMG, N_FEAT_MID, N_FEAT_FINAL)
    packed = pack_params(raw_params, C_IMG, N_FEAT_MID)

    x_mod1 = jax.random.normal(k_x1, (N, C_IMG, H, W), jnp.float32)
    x_mod2 = jax.random.normal(k_x2, (N, C_IMG, H, W), jnp.float32)

    fwd = jax.jit(functools.partial(model_forward, packed))
    y1, y2 = fwd(x_mod1, x_mod2)
    jax.block_until_ready((y1, y2))

    assert y1.shape == (N, N_FEAT_FINAL, H, W)
    assert y2.shape == (N, N_FEAT_FINAL, H, W)
    assert jnp.all(jnp.isfinite(y1)) and jnp.all(jnp.isfinite(y2))

    # Self-check against a pure-JAX reference (training-mode BN, like a fresh
    # PyTorch forward(); NOT eval-mode running stats).
    r1, r2 = _reference_forward(raw_params, x_mod1, x_mod2)
    err = max(float(jnp.max(jnp.abs(y1 - r1))), float(jnp.max(jnp.abs(y2 - r2))))
    assert err < 5e-2, f"mismatch vs reference: max abs err = {err}"

    print("KERNEL_OK")
</pallas_src>

<mosaic_0001>
module attributes {stable_mosaic.version = 11 : i64} {
  func.func @_fused_kernel(%arg0: i32, %arg1: memref<144x512xf32, #tpu.memory_space<vmem>>, %arg2: memref<2x4x512xf32, #tpu.memory_space<vmem>>, %arg3: memref<2x8x144xf32, #tpu.memory_space<vmem>>, %arg4: memref<2x8x1xf32, #tpu.memory_space<vmem>>, %arg5: memref<2x8x1xf32, #tpu.memory_space<vmem>>, %arg6: memref<2x8x1xf32, #tpu.memory_space<vmem>>, %arg7: memref<2x16x144xf32, #tpu.memory_space<vmem>>, %arg8: memref<2x16x1xf32, #tpu.memory_space<vmem>>, %arg9: memref<2x16x1xf32, #tpu.memory_space<vmem>>, %arg10: memref<2x16x1xf32, #tpu.memory_space<vmem>>, %arg11: memref<2x16x144xf32, #tpu.memory_space<vmem>>, %arg12: memref<2x16x1xf32, #tpu.memory_space<vmem>>, %arg13: memref<2x16x1xf32, #tpu.memory_space<vmem>>, %arg14: memref<2x16x1xf32, #tpu.memory_space<vmem>>, %arg15: memref<2x8x144xf32, #tpu.memory_space<vmem>>, %arg16: memref<2x8x1xf32, #tpu.memory_space<vmem>>, %arg17: memref<2x8x1xf32, #tpu.memory_space<vmem>>, %arg18: memref<2x8x1xf32, #tpu.memory_space<vmem>>, %arg19: memref<3x8xf32, #tpu.memory_space<vmem>>, %arg20: memref<3x1xf32, #tpu.memory_space<vmem>>, %arg21: memref<3x1xf32, #tpu.memory_space<vmem>>, %arg22: memref<3x1xf32, #tpu.memory_space<vmem>>, %arg23: memref<2x3x512xf32, #tpu.memory_space<vmem>>, %arg24: memref<16x768xf32, #tpu.memory_space<vmem>>, %arg25: memref<144x512xf32, #tpu.memory_space<vmem>>, %arg26: memref<16x768xf32, #tpu.memory_space<vmem>>, %arg27: memref<144x512xf32, #tpu.memory_space<vmem>>) attributes {dimension_semantics = [#tpu.dimension_semantics<arbitrary>], iteration_bounds = array<i64: 1>, scalar_prefetch = 0 : i64, scratch_operands = 4 : i64, tpu.core_type = #tpu.core_type<tc>, window_params = [{pipeline_mode = #tpu.pipeline_mode<synchronous>, transform_indices = @transform_0, window_bounds = array<i64: 144, 512>}, {pipeline_mode = #tpu.pipeline_mode<synchronous>, transform_indices = @transform_1, window_bounds = array<i64: 2, 4, 512>}, {pipeline_mode = #tpu.pipeline_mode<synchronous>, transform_indices = @transform_2, window_bounds = array<i64: 2, 8, 144>}, {pipeline_mode = #tpu.pipeline_mode<synchronous>, transform_indices = @transform_3, window_bounds = array<i64: 2, 8, 1>}, {pipeline_mode = #tpu.pipeline_mode<synchronous>, transform_indices = @transform_4, window_bounds = array<i64: 2, 8, 1>}, {pipeline_mode = #tpu.pipeline_mode<synchronous>, transform_indices = @transform_5, window_bounds = array<i64: 2, 8, 1>}, {pipeline_mode = #tpu.pipeline_mode<synchronous>, transform_indices = @transform_6, window_bounds = array<i64: 2, 16, 144>}, {pipeline_mode = #tpu.pipeline_mode<synchronous>, transform_indices = @transform_7, window_bounds = array<i64: 2, 16, 1>}, {pipeline_mode = #tpu.pipeline_mode<synchronous>, transform_indices = @transform_8, window_bounds = array<i64: 2, 16, 1>}, {pipeline_mode = #tpu.pipeline_mode<synchronous>, transform_indices = @transform_9, window_bounds = array<i64: 2, 16, 1>}, {pipeline_mode = #tpu.pipeline_mode<synchronous>, transform_indices = @transform_10, window_bounds = array<i64: 2, 16, 144>}, {pipeline_mode = #tpu.pipeline_mode<synchronous>, transform_indices = @transform_11, window_bounds = array<i64: 2, 16, 1>}, {pipeline_mode = #tpu.pipeline_mode<synchronous>, transform_indices = @transform_12, window_bounds = array<i64: 2, 16, 1>}, {pipeline_mode = #tpu.pipeline_mode<synchronous>, transform_indices = @transform_13, window_bounds = array<i64: 2, 16, 1>}, {pipeline_mode = #tpu.pipeline_mode<synchronous>, transform_indices = @transform_14, window_bounds = array<i64: 2, 8, 144>}, {pipeline_mode = #tpu.pipeline_mode<synchronous>, transform_indices = @transform_15, window_bounds = array<i64: 2, 8, 1>}, {pipeline_mode = #tpu.pipeline_mode<synchronous>, transform_indices = @transform_16, window_bounds = array<i64: 2, 8, 1>}, {pipeline_mode = #tpu.pipeline_mode<synchronous>, transform_indices = @transform_17, window_bounds = array<i64: 2, 8, 1>}, {pipeline_mode = #tpu.pipeline_mode<synchronous>, transform_indices = @transform_18, window_bounds = array<i64: 3, 8>}, {pipeline_mode = #tpu.pipeline_mode<synchronous>, transform_indices = @transform_19, window_bounds = array<i64: 3, 1>}, {pipeline_mode = #tpu.pipeline_mode<synchronous>, transform_indices = @transform_20, window_bounds = array<i64: 3, 1>}, {pipeline_mode = #tpu.pipeline_mode<synchronous>, transform_indices = @transform_21, window_bounds = array<i64: 3, 1>}, {pipeline_mode = #tpu.pipeline_mode<synchronous>, transform_indices = @transform_22, window_bounds = array<i64: 2, 3, 512>}]} {
    %cst = arith.constant 0.000000e+00 : f32
    %0 = vector.broadcast %cst : f32 to vector<16x768xf32>
    %c0 = arith.constant 0 : index
    %c0_0 = arith.constant 0 : index
    %1 = vector.load %arg24[%c0, %c0_0] : memref<16x768xf32, #tpu.memory_space<vmem>>, vector<16x768xf32>
    tpu.vector_store %arg24[%c0, %c0_0], %0 {strides = array<i32>} : memref<16x768xf32, #tpu.memory_space<vmem>>, vector<16x768xf32>,
    %cst_1 = arith.constant 0.000000e+00 : f32
    %2 = vector.broadcast %cst_1 : f32 to vector<16x768xf32>
    %c0_2 = arith.constant 0 : index
    %c0_3 = arith.constant 0 : index
    %3 = vector.load %arg26[%c0_2, %c0_3] : memref<16x768xf32, #tpu.memory_space<vmem>>, vector<16x768xf32>
    tpu.vector_store %arg26[%c0_2, %c0_3], %2 {strides = array<i32>} : memref<16x768xf32, #tpu.memory_space<vmem>>, vector<16x768xf32>,
    %cst_4 = arith.constant 0.000000e+00 : f32
    %4 = vector.broadcast %cst_4 : f32 to vector<144x512xf32>
    %c0_5 = arith.constant 0 : index
    %c0_6 = arith.constant 0 : index
    %5 = vector.load %arg25[%c0_5, %c0_6] : memref<144x512xf32, #tpu.memory_space<vmem>>, vector<144x512xf32>
    tpu.vector_store %arg25[%c0_5, %c0_6], %4 {strides = array<i32>} : memref<144x512xf32, #tpu.memory_space<vmem>>, vector<144x512xf32>,
    %cst_7 = arith.constant 0.000000e+00 : f32
    %6 = vector.broadcast %cst_7 : f32 to vector<144x512xf32>
    %c0_8 = arith.constant 0 : index
    %c0_9 = arith.constant 0 : index
    %7 = vector.load %arg27[%c0_8, %c0_9] : memref<144x512xf32, #tpu.memory_space<vmem>>, vector<144x512xf32>
    tpu.vector_store %arg27[%c0_8, %c0_9], %6 {strides = array<i32>} : memref<144x512xf32, #tpu.memory_space<vmem>>, vector<144x512xf32>,
    %c0_10 = arith.constant 0 : index
    %c0_11 = arith.constant 0 : index
    %c0_12 = arith.constant 0 : index
    %8 = vector.load %arg2[%c0_10, %c0_11, %c0_12] : memref<2x4x512xf32, #tpu.memory_space<vmem>>, vector<1x4x512xf32>
    %9 = vector.shape_cast %8 : vector<1x4x512xf32> to vector<4x512xf32>
    %c1 = arith.constant 1 : index
    %c0_13 = arith.constant 0 : index
    %c0_14 = arith.constant 0 : index
    %10 = vector.load %arg2[%c1, %c0_13, %c0_14] : memref<2x4x512xf32, #tpu.memory_space<vmem>>, vector<1x4x512xf32>
    %11 = vector.shape_cast %10 : vector<1x4x512xf32> to vector<4x512xf32>
    %c0_15 = arith.constant 0 : index
    %c0_16 = arith.constant 0 : index
    %c0_17 = arith.constant 0 : index
    %12 = vector.load %arg3[%c0_15, %c0_16, %c0_17] : memref<2x8x144xf32, #tpu.memory_space<vmem>>, vector<1x8x144xf32>
    %13 = vector.shape_cast %12 : vector<1x8x144xf32> to vector<8x144xf32>
    %c0_18 = arith.constant 0 : index
    %c0_19 = arith.constant 0 : index
    %c0_20 = arith.constant 0 : index
    %14 = vector.load %arg4[%c0_18, %c0_19, %c0_20] : memref<2x8x1xf32, #tpu.memory_space<vmem>>, vector<1x8x1xf32>
    %15 = vector.shape_cast %14 : vector<1x8x1xf32> to vector<8x1xf32>
    %c0_21 = arith.constant 0 : index
    %c128 = arith.constant 128 : index
    %16 = vector.load %arg24[%c0_21, %c128] : memref<16x768xf32, #tpu.memory_space<vmem>>, vector<4x512xf32>
    tpu.vector_store %arg24[%c0_21, %c128], %9 {strides = array<i32>} : memref<16x768xf32, #tpu.memory_space<vmem>>, vector<4x512xf32>,
    %c0_22 = arith.constant 0 : index
    %c111 = arith.constant 111 : index
    %17 = vector.load %arg24[%c0_22, %c111] : memref<16x768xf32, #tpu.memory_space<vmem>>, vector<4x512xf32>
    %c0_23 = arith.constant 0 : index
    %c0_24 = arith.constant 0 : index
    %18 = vector.load %arg1[%c0_23, %c0_24] : memref<144x512xf32, #tpu.memory_space<vmem>>, vector<4x512xf32>
    %19 = arith.mulf %17, %18 : vector<4x512xf32>
    %c0_25 = arith.constant 0 : index
    %c0_26 = arith.constant 0 : index
    %20 = vector.load %arg25[%c0_25, %c0_26] : memref<144x512xf32, #tpu.memory_space<vmem>>, vector<4x512xf32>
    tpu.vector_store %arg25[%c0_25, %c0_26], %19 {strides = array<i32>} : memref<144x512xf32, #tpu.memory_space<vmem>>, vector<4x512xf32>,
    %c0_27 = arith.constant 0 : index
    %c112 = arith.constant 112 : index
    %21 = vector.load %arg24[%c0_27, %c112] : memref<16x768xf32, #tpu.memory_space<vmem>>, vector<4x512xf32>
    %c16 = arith.constant 16 : index
    %c0_28 = arith.constant 0 : index
    %22 = vector.load %arg1[%c16, %c0_28] : memref<144x512xf32, #tpu.memory_space<vmem>>, vector<4x512xf32>
    %23 = arith.mulf %21, %22 : vector<4x512xf32>
    %c16_29 = arith.constant 16 : index
    %c0_30 = arith.constant 0 : index
    %24 = vector.load %arg25[%c16_29, %c0_30] : memref<144x512xf32, #tpu.memory_space<vmem>>, vector<4x512xf32>
    tpu.vector_store %arg25[%c16_29, %c0_30], %23 {strides = array<i32>} : memref<144x512xf32, #tpu.memory_space<vmem>>, vector<4x512xf32>,
    %c0_31 = arith.constant 0 : index
    %c113 = arith.constant 113 : index
    %25 = vector.load %arg24[%c0_31, %c113] : memref<16x768xf32, #tpu.memory_space<vmem>>, vector<4x512xf32>
    %c32 = arith.constant 32 : index
    %c0_32 = arith.constant 0 : index
    %26 = vector.load %arg1[%c32, %c0_32] : memref<144x512xf32, #tpu.memory_space<vmem>>, vector<4x512xf32>
    %27 = arith.mulf %25, %26 : vector<4x512xf32>
    %c32_33 = arith.constant 32 : index
    %c0_34 = arith.constant 0 : index
    %28 = vector.load %arg25[%c32_33, %c0_34] : memref<144x512xf32, #tpu.memory_space<vmem>>, vector<4x512xf32>
    tpu.vector_store %arg25[%c32_33, %c0_34], %27 {strides = array<i32>} : memref<144x512xf32, #tpu.memory_space<vmem>>, vector<4x512xf32>,
    %c0_35 = arith.constant 0 : index
    %c127 = arith.constant 127 : index
    %29 = vector.load %arg24[%c0_35, %c127] : memref<16x768xf32, #tpu.memory_space<vmem>>, vector<4x512xf32>
    %c48 = arith.constant 48 : index
    %c0_36 = arith.constant 0 : index
    %30 = vector.load %arg1[%c48, %c0_36] : memref<144x512xf32, #tpu.memory_space<vmem>>, vector<4x512xf32>
    %31 = arith.mulf %29, %30 : vector<4x512xf32>
    %c48_37 = arith.constant 48 : index
    %c0_38 = arith.constant 0 : index
    %32 = vector.load %arg25[%c48_37, %c0_38] : memref<144x512xf32, #tpu.memory_space<vmem>>, vector<4x512xf32>
    tpu.vector_store %arg25[%c48_37, %c0_38], %31 {strides = array<i32>} : memref<144x512xf32, #tpu.memory_space<vmem>>, vector<4x512xf32>,
    %c0_39 = arith.constant 0 : index
    %c128_40 = arith.constant 128 : index
    %33 = vector.load %arg24[%c0_39, %c128_40] : memref<16x768xf32, #tpu.memory_space<vmem>>, vector<4x512xf32>
    %c64 = arith.constant 64 : index
    %c0_41 = arith.constant 0 : index
    %34 = vector.load %arg1[%c64, %c0_41] : memref<144x512xf32, #tpu.memory_space<vmem>>, vector<4x512xf32>
    %35 = arith.mulf %33, %34 : vector<4x512xf32>
    %c64_42 = arith.constant 64 : index
    %c0_43 = arith.constant 0 : index
    %36 = vector.load %arg25[%c64_42, %c0_43] : memref<144x512xf32, #tpu.memory_space<vmem>>, vector<4x512xf32>
    tpu.vector_store %arg25[%c64_42, %c0_43], %35 {strides = array<i32>} : memref<144x512xf32, #tpu.memory_space<vmem>>, vector<4x512xf32>,
    %c0_44 = arith.constant 0 : index
    %c129 = arith.constant 129 : index
    %37 = vector.load %arg24[%c0_44, %c129] : memref<16x768xf32, #tpu.memory_space<vmem>>, vector<4x512xf32>
    %c80 = arith.constant 80 : index
    %c0_45 = arith.constant 0 : index
    %38 = vector.load %arg1[%c80, %c0_45] : memref<144x512xf32, #tpu.memory_space<vmem>>, vector<4x512xf32>
    %39 = arith.mulf %37, %38 : vector<4x512xf32>
    %c80_46 = arith.constant 80 : index
    %c0_47 = arith.constant 0 : index
    %40 = vector.load %arg25[%c80_46, %c0_47] : memref<144x512xf32, #tpu.memory_space<vmem>>, vector<4x512xf32>
    tpu.vector_store %arg25[%c80_46, %c0_47], %39 {strides = array<i32>} : memref<144x512xf32, #tpu.memory_space<vmem>>, vector<4x512xf32>,
    %c0_48 = arith.constant 0 : index
    %c143 = arith.constant 143 : index
    %41 = vector.load %arg24[%c0_48, %c143] : memref<16x768xf32, #tpu.memory_space<vmem>>, vector<4x512xf32>
    %c96 = arith.constant 96 : index
    %c0_49 = arith.constant 0 : index
    %42 = vector.load %arg1[%c96, %c0_49] : memref<144x512xf32, #tpu.memory_space<vmem>>, vector<4x512xf32>
    %43 = arith.mulf %41, %42 : vector<4x512xf32>
    %c96_50 = arith.constant 96 : index
    %c0_51 = arith.constant 0 : index
    %44 = vector.load %arg25[%c96_50, %c0_51] : memref<144x512xf32, #tpu.memory_space<vmem>>, vector<4x512xf32>
    tpu.vector_store %arg25[%c96_50, %c0_51], %43 {strides = array<i32>} : memref<144x512xf32, #tpu.memory_space<vmem>>, vector<4x512xf32>,
    %c0_52 = arith.constant 0 : index
    %c144 = arith.constant 144 : index
    %45 = vector.load %arg24[%c0_52, %c144] : memref<16x768xf32, #tpu.memory_space<vmem>>, vector<4x512xf32>
    %c112_53 = arith.constant 112 : index
    %c0_54 = arith.constant 0 : index
    %46 = vector.load %arg1[%c112_53, %c0_54] : memref<144x512xf32, #tpu.memory_space<vmem>>, vector<4x512xf32>
    %47 = arith.mulf %45, %46 : vector<4x512xf32>
    %c112_55 = arith.constant 112 : index
    %c0_56 = arith.constant 0 : index
    %48 = vector.load %arg25[%c112_55, %c0_56] : memref<144x512xf32, #tpu.memory_space<vmem>>, vector<4x512xf32>
    tpu.vector_store %arg25[%c112_55, %c0_56], %47 {strides = array<i32>} : memref<144x512xf32, #tpu.memory_space<vmem>>, vector<4x512xf32>,
    %c0_57 = arith.constant 0 : index
    %c145 = arith.constant 145 : index
    %49 = vector.load %arg24[%c0_57, %c145] : memref<16x768xf32, #tpu.memory_space<vmem>>, vector<4x512xf32>
    %c128_58 = arith.constant 128 : index
    %c0_59 = arith.constant 0 : index
    %50 = vector.load %arg1[%c128_58, %c0_59] : memref<144x512xf32, #tpu.memory_space<vmem>>, vector<4x512xf32>
    %51 = arith.mulf %49, %50 : vector<4x512xf32>
    %c128_60 = arith.constant 128 : index
    %c0_61 = arith.constant 0 : index
    %52 = vector.load %arg25[%c128_60, %c0_61] : memref<144x512xf32, #tpu.memory_space<vmem>>, vector<4x512xf32>
    tpu.vector_store %arg25[%c128_60, %c0_61], %51 {strides = array<i32>} : memref<144x512xf32, #tpu.memory_space<vmem>>, vector<4x512xf32>,
    %c0_62 = arith.constant 0 : index
    %c0_63 = arith.constant 0 : index
    %53 = vector.load %arg25[%c0_62, %c0_63] : memref<144x512xf32, #tpu.memory_space<vmem>>, vector<144x512xf32>
    %cst_64 = arith.constant dense<0.000000e+00> : vector<8x512xf32>
    %54 = tpu.matmul %13, %53, %cst_64 {dimension_numbers = #tpu.dot_dimension_numbers<[1], [0], [0], [1], [0, 0, 1, 1], [], []>} : vector<8x144xf32>, vector<144x512xf32>, vector<8x512xf32> -> vector<8x512xf32>
    %55 = vector.broadcast %15 : vector<8x1xf32> to vector<8x512xf32>
    %56 = arith.addf %54, %55 : vector<8x512xf32>
    %cst_65 = arith.constant 0.000000e+00 : f32
    %57 = vector.broadcast %cst_65 : f32 to vector<8x512xf32>
    %58 = arith.maximumf %56, %57 : vector<8x512xf32>
    %c0_66 = arith.constant 0 : index
    %c0_67 = arith.constant 0 : index
    %c0_68 = arith.constant 0 : index
    %59 = vector.load %arg5[%c0_66, %c0_67, %c0_68] : memref<2x8x1xf32, #tpu.memory_space<vmem>>, vector<1x8x1xf32>
    %60 = vector.shape_cast %59 : vector<1x8x1xf32> to vector<8x1xf32>
    %c0_69 = arith.constant 0 : index
    %c0_70 = arith.constant 0 : index
    %c0_71 = arith.constant 0 : index
    %61 = vector.load %arg6[%c0_69, %c0_70, %c0_71] : memref<2x8x1xf32, #tpu.memory_space<vmem>>, vector<1x8x1xf32>
    %62 = vector.shape_cast %61 : vector<1x8x1xf32> to vector<8x1xf32>
    %cst_72 = arith.constant dense<0.000000e+00> : vector<8xf32>
    %63 = vector.multi_reduction <add>, %58, %cst_72 [1] : vector<8x512xf32> to vector<8xf32>
    %64 = vector.shape_cast %63 : vector<8xf32> to vector<8x1xf32>
    %cst_73 = arith.constant 0.001953125 : f32
    %65 = vector.broadcast %cst_73 : f32 to vector<8x1xf32>
    %66 = arith.mulf %64, %65 : vector<8x1xf32>
    %67 = arith.mulf %58, %58 : vector<8x512xf32>
    %cst_74 = arith.constant dense<0.000000e+00> : vector<8xf32>
    %68 = vector.multi_reduction <add>, %67, %cst_74 [1] : vector<8x512xf32> to vector<8xf32>
    %69 = vector.shape_cast %68 : vector<8xf32> to vector<8x1xf32>
    %cst_75 = arith.constant 0.001953125 : f32
    %70 = vector.broadcast %cst_75 : f32 to vector<8x1xf32>
    %71 = arith.mulf %69, %70 : vector<8x1xf32>
    %72 = arith.mulf %66, %66 : vector<8x1xf32>
    %73 = arith.subf %71, %72 : vector<8x1xf32>
    %cst_76 = arith.constant 9.99999974E-6 : f32
    %74 = vector.broadcast %cst_76 : f32 to vector<8x1xf32>
    %75 = arith.addf %73, %74 : vector<8x1xf32>
    %76 = math.rsqrt %75 : vector<8x1xf32>
    %77 = arith.mulf %76, %60 : vector<8x1xf32>
    %78 = vector.broadcast %77 : vector<8x1xf32> to vector<8x512xf32>
    %79 = arith.mulf %58, %78 : vector<8x512xf32>
    %80 = arith.mulf %66, %77 : vector<8x1xf32>
    %81 = arith.subf %62, %80 : vector<8x1xf32>
    %82 = vector.broadcast %81 : vector<8x1xf32> to vector<8x512xf32>
    %83 = arith.addf %79, %82 : vector<8x512xf32>
    %c1_77 = arith.constant 1 : index
    %c0_78 = arith.constant 0 : index
    %c0_79 = arith.constant 0 : index
    %84 = vector.load %arg3[%c1_77, %c0_78, %c0_79] : memref<2x8x144xf32, #tpu.memory_space<vmem>>, vector<1x8x144xf32>
    %85 = vector.shape_cast %84 : vector<1x8x144xf32> to vector<8x144xf32>
    %c1_80 = arith.constant 1 : index
    %c0_81 = arith.constant 0 : index
    %c0_82 = arith.constant 0 : index
    %86 = vector.load %arg4[%c1_80, %c0_81, %c0_82] : memref<2x8x1xf32, #tpu.memory_space<vmem>>, vector<1x8x1xf32>
    %87 = vector.shape_cast %86 : vector<1x8x1xf32> to vector<8x1xf32>
    %c0_83 = arith.constant 0 : index
    %c128_84 = arith.constant 128 : index
    %88 = vector.load %arg26[%c0_83, %c128_84] : memref<16x768xf32, #tpu.memory_space<vmem>>, vector<4x512xf32>
    tpu.vector_store %arg26[%c0_83, %c128_84], %11 {strides = array<i32>} : memref<16x768xf32, #tpu.memory_space<vmem>>, vector<4x512xf32>,
    %c0_85 = arith.constant 0 : index
    %c111_86 = arith.constant 111 : index
    %89 = vector.load %arg26[%c0_85, %c111_86] : memref<16x768xf32, #tpu.memory_space<vmem>>, vector<4x512xf32>
    %c0_87 = arith.constant 0 : index
    %c0_88 = arith.constant 0 : index
    %90 = vector.load %arg1[%c0_87, %c0_88] : memref<144x512xf32, #tpu.memory_space<vmem>>, vector<4x512xf32>
    %91 = arith.mulf %89, %90 : vector<4x512xf32>
    %c0_89 = arith.constant 0 : index
    %c0_90 = arith.constant 0 : index
    %92 = vector.load %arg27[%c0_89, %c0_90] : memref<144x512xf32, #tpu.memory_space<vmem>>, vector<4x512xf32>
    tpu.vector_store %arg27[%c0_89, %c0_90], %91 {strides = array<i32>} : memref<144x512xf32, #tpu.memory_space<vmem>>, vector<4x512xf32>,
    %c0_91 = arith.constant 0 : index
    %c112_92 = arith.constant 112 : index
    %93 = vector.load %arg26[%c0_91, %c112_92] : memref<16x768xf32, #tpu.memory_space<vmem>>, vector<4x512xf32>
    %c16_93 = arith.constant 16 : index
    %c0_94 = arith.constant 0 : index
    %94 = vector.load %arg1[%c16_93, %c0_94] : memref<144x512xf32, #tpu.memory_space<vmem>>, vector<4x512xf32>
    %95 = arith.mulf %93, %94 : vector<4x512xf32>
    %c16_95 = arith.constant 16 : index
    %c0_96 = arith.constant 0 : index
    %96 = vector.load %arg27[%c16_95, %c0_96] : memref<144x512xf32, #tpu.memory_space<vmem>>, vector<4x512xf32>
    tpu.vector_store %arg27[%c16_95, %c0_96], %95 {strides = array<i32>} : memref<144x512xf32, #tpu.memory_space<vmem>>, vector<4x512xf32>,
    %c0_97 = arith.constant 0 : index
    %c113_98 = arith.constant 113 : index
    %97 = vector.load %arg26[%c0_97, %c113_98] : memref<16x768xf32, #tpu.memory_space<vmem>>, vector<4x512xf32>
    %c32_99 = arith.constant 32 : index
    %c0_100 = arith.constant 0 : index
    %98 = vector.load %arg1[%c32_99, %c0_100] : memref<144x512xf32, #tpu.memory_space<vmem>>, vector<4x512xf32>
    %99 = arith.mulf %97, %98 : vector<4x512xf32>
    %c32_101 = arith.constant 32 : index
    %c0_102 = arith.constant 0 : index
    %100 = vector.load %arg27[%c32_101, %c0_102] : memref<144x512xf32, #tpu.memory_space<vmem>>, vector<4x512xf32>
    tpu.vector_store %arg27[%c32_101, %c0_102], %99 {strides = array<i32>} : memref<144x512xf32, #tpu.memory_space<vmem>>, vector<4x512xf32>,
    %c0_103 = arith.constant 0 : index
    %c127_104 = arith.constant 127 : index
    %101 = vector.load %arg26[%c0_103, %c127_104] : memref<16x768xf32, #tpu.memory_space<vmem>>, vector<4x512xf32>
    %c48_105 = arith.constant 48 : index
    %c0_106 = arith.constant 0 : index
    %102 = vector.load %arg1[%c48_105, %c0_106] : memref<144x512xf32, #tpu.memory_space<vmem>>, vector<4x512xf32>
    %103 = arith.mulf %101, %102 : vector<4x512xf32>
    %c48_107 = arith.constant 48 : index
    %c0_108 = arith.constant 0 : index
    %104 = vector.load %arg27[%c48_107, %c0_108] : memref<144x512xf32, #tpu.memory_space<vmem>>, vector<4x512xf32>
    tpu.vector_store %arg27[%c48_107, %c0_108], %103 {strides = array<i32>} : memref<144x512xf32, #tpu.memory_space<vmem>>, vector<4x512xf32>,
    %c0_109 = arith.constant 0 : index
    %c128_110 = arith.constant 128 : index
    %105 = vector.load %arg26[%c0_109, %c128_110] : memref<16x768xf32, #tpu.memory_space<vmem>>, vector<4x512xf32>
    %c64_111 = arith.constant 64 : index
    %c0_112 = arith.constant 0 : index
    %106 = vector.load %arg1[%c64_111, %c0_112] : memref<144x512xf32, #tpu.memory_space<vmem>>, vector<4x512xf32>
    %107 = arith.mulf %105, %106 : vector<4x512xf32>
    %c64_113 = arith.constant 64 : index
    %c0_114 = arith.constant 0 : index
    %108 = vector.load %arg27[%c64_113, %c0_114] : memref<144x512xf32, #tpu.memory_space<vmem>>, vector<4x512xf32>
    tpu.vector_store %arg27[%c64_113, %c0_114], %107 {strides = array<i32>} : memref<144x512xf32, #tpu.memory_space<vmem>>, vector<4x512xf32>,
    %c0_115 = arith.constant 0 : index
    %c129_116 = arith.constant 129 : index
    %109 = vector.load %arg26[%c0_115, %c129_116] : memref<16x768xf32, #tpu.memory_space<vmem>>, vector<4x512xf32>
    %c80_117 = arith.constant 80 : index
    %c0_118 = arith.constant 0 : index
    %110 = vector.load %arg1[%c80_117, %c0_118] : memref<144x512xf32, #tpu.memory_space<vmem>>, vector<4x512xf32>
    %111 = arith.mulf %109, %110 : vector<4x512xf32>
    %c80_119 = arith.constant 80 : index
    %c0_120 = arith.constant 0 : index
    %112 = vector.load %arg27[%c80_119, %c0_120] : memref<144x512xf32, #tpu.memory_space<vmem>>, vector<4x512xf32>
    tpu.vector_store %arg27[%c80_119, %c0_120], %111 {strides = array<i32>} : memref<144x512xf32, #tpu.memory_space<vmem>>, vector<4x512xf32>,
    %c0_121 = arith.constant 0 : index
    %c143_122 = arith.constant 143 : index
    %113 = vector.load %arg26[%c0_121, %c143_122] : memref<16x768xf32, #tpu.memory_space<vmem>>, vector<4x512xf32>
    %c96_123 = arith.constant 96 : index
    %c0_124 = arith.constant 0 : index
    %114 = vector.load %arg1[%c96_123, %c0_124] : memref<144x512xf32, #tpu.memory_space<vmem>>, vector<4x512xf32>
    %115 = arith.mulf %113, %114 : vector<4x512xf32>
    %c96_125 = arith.constant 96 : index
    %c0_126 = arith.constant 0 : index
    %116 = vector.load %arg27[%c96_125, %c0_126] : memref<144x512xf32, #tpu.memory_space<vmem>>, vector<4x512xf32>
    tpu.vector_store %arg27[%c96_125, %c0_126], %115 {strides = array<i32>} : memref<144x512xf32, #tpu.memory_space<vmem>>, vector<4x512xf32>,
    %c0_127 = arith.constant 0 : index
    %c144_128 = arith.constant 144 : index
    %117 = vector.load %arg26[%c0_127, %c144_128] : memref<16x768xf32, #tpu.memory_space<vmem>>, vector<4x512xf32>
    %c112_129 = arith.constant 112 : index
    %c0_130 = arith.constant 0 : index
    %118 = vector.load %arg1[%c112_129, %c0_130] : memref<144x512xf32, #tpu.memory_space<vmem>>, vector<4x512xf32>
    %119 = arith.mulf %117, %118 : vector<4x512xf32>
    %c112_131 = arith.constant 112 : index
    %c0_132 = arith.constant 0 : index
    %120 = vector.load %arg27[%c112_131, %c0_132] : memref<144x512xf32, #tpu.memory_space<vmem>>, vector<4x512xf32>
    tpu.vector_store %arg27[%c112_131, %c0_132], %119 {strides = array<i32>} : memref<144x512xf32, #tpu.memory_space<vmem>>, vector<4x512xf32>,
    %c0_133 = arith.constant 0 : index
    %c145_134 = arith.constant 145 : index
    %121 = vector.load %arg26[%c0_133, %c145_134] : memref<16x768xf32, #tpu.memory_space<vmem>>, vector<4x512xf32>
    %c128_135 = arith.constant 128 : index
    %c0_136 = arith.constant 0 : index
    %122 = vector.load %arg1[%c128_135, %c0_136] : memref<144x512xf32, #tpu.memory_space<vmem>>, vector<4x512xf32>
    %123 = arith.mulf %121, %122 : vector<4x512xf32>
    %c128_137 = arith.constant 128 : index
    %c0_138 = arith.constant 0 : index
    %124 = vector.load %arg27[%c128_137, %c0_138] : memref<144x512xf32, #tpu.memory_space<vmem>>, vector<4x512xf32>
    tpu.vector_store %arg27[%c128_137, %c0_138], %123 {strides = array<i32>} : memref<144x512xf32, #tpu.memory_space<vmem>>, vector<4x512xf32>,
    %c0_139 = arith.constant 0 : index
    %c0_140 = arith.constant 0 : index
    %125 = vector.load %arg27[%c0_139, %c0_140] : memref<144x512xf32, #tpu.memory_space<vmem>>, vector<144x512xf32>
    %cst_141 = arith.constant dense<0.000000e+00> : vector<8x512xf32>
    %126 = tpu.matmul %85, %125, %cst_141 {dimension_numbers = #tpu.dot_dimension_numbers<[1], [0], [0], [1], [0, 0, 1, 1], [], []>} : vector<8x144xf32>, vector<144x512xf32>, vector<8x512xf32> -> vector<8x512xf32>
    %127 = vector.broadcast %87 : vector<8x1xf32> to vector<8x512xf32>
    %128 = arith.addf %126, %127 : vector<8x512xf32>
    %cst_142 = arith.constant 0.000000e+00 : f32
    %129 = vector.broadcast %cst_142 : f32 to vector<8x512xf32>
    %130 = arith.maximumf %128, %129 : vector<8x512xf32>
    %c1_143 = arith.constant 1 : index
    %c0_144 = arith.constant 0 : index
    %c0_145 = arith.constant 0 : index
    %131 = vector.load %arg5[%c1_143, %c0_144, %c0_145] : memref<2x8x1xf32, #tpu.memory_space<vmem>>, vector<1x8x1xf32>
    %132 = vector.shape_cast %131 : vector<1x8x1xf32> to vector<8x1xf32>
    %c1_146 = arith.constant 1 : index
    %c0_147 = arith.constant 0 : index
    %c0_148 = arith.constant 0 : index
    %133 = vector.load %arg6[%c1_146, %c0_147, %c0_148] : memref<2x8x1xf32, #tpu.memory_space<vmem>>, vector<1x8x1xf32>
    %134 = vector.shape_cast %133 : vector<1x8x1xf32> to vector<8x1xf32>
    %cst_149 = arith.constant dense<0.000000e+00> : vector<8xf32>
    %135 = vector.multi_reduction <add>, %130, %cst_149 [1] : vector<8x512xf32> to vector<8xf32>
    %136 = vector.shape_cast %135 : vector<8xf32> to vector<8x1xf32>
    %cst_150 = arith.constant 0.001953125 : f32
    %137 = vector.broadcast %cst_150 : f32 to vector<8x1xf32>
    %138 = arith.mulf %136, %137 : vector<8x1xf32>
    %139 = arith.mulf %130, %130 : vector<8x512xf32>
    %cst_151 = arith.constant dense<0.000000e+00> : vector<8xf32>
    %140 = vector.multi_reduction <add>, %139, %cst_151 [1] : vector<8x512xf32> to vector<8xf32>
    %141 = vector.shape_cast %140 : vector<8xf32> to vector<8x1xf32>
    %cst_152 = arith.constant 0.001953125 : f32
    %142 = vector.broadcast %cst_152 : f32 to vector<8x1xf32>
    %143 = arith.mulf %141, %142 : vector<8x1xf32>
    %144 = arith.mulf %138, %138 : vector<8x1xf32>
    %145 = arith.subf %143, %144 : vector<8x1xf32>
    %cst_153 = arith.constant 9.99999974E-6 : f32
    %146 = vector.broadcast %cst_153 : f32 to vector<8x1xf32>
    %147 = arith.addf %145, %146 : vector<8x1xf32>
    %148 = math.rsqrt %147 : vector<8x1xf32>
    %149 = arith.mulf %148, %132 : vector<8x1xf32>
    %150 = vector.broadcast %149 : vector<8x1xf32> to vector<8x512xf32>
    %151 = arith.mulf %130, %150 : vector<8x512xf32>
    %152 = arith.mulf %138, %149 : vector<8x1xf32>
    %153 = arith.subf %134, %152 : vector<8x1xf32>
    %154 = vector.broadcast %153 : vector<8x1xf32> to vector<8x512xf32>
    %155 = arith.addf %151, %154 : vector<8x512xf32>
    %c0_154 = arith.constant 0 : index
    %c0_155 = arith.constant 0 : index
    %c0_156 = arith.constant 0 : index
    %156 = vector.load %arg7[%c0_154, %c0_155, %c0_156] : memref<2x16x144xf32, #tpu.memory_space<vmem>>, vector<1x16x144xf32>
    %157 = vector.shape_cast %156 : vector<1x16x144xf32> to vector<16x144xf32>
    %c0_157 = arith.constant 0 : index
    %c0_158 = arith.constant 0 : index
    %c0_159 = arith.constant 0 : index
    %158 = vector.load %arg8[%c0_157, %c0_158, %c0_159] : memref<2x16x1xf32, #tpu.memory_space<vmem>>, vector<1x16x1xf32>
    %159 = vector.shape_cast %158 : vector<1x16x1xf32> to vector<16x1xf32>
    %c0_160 = arith.constant 0 : index
    %c128_161 = arith.constant 128 : index
    %160 = vector.load %arg24[%c0_160, %c128_161] : memref<16x768xf32, #tpu.memory_space<vmem>>, vector<8x512xf32>
    tpu.vector_store %arg24[%c0_160, %c128_161], %83 {strides = array<i32>} : memref<16x768xf32, #tpu.memory_space<vmem>>, vector<8x512xf32>,
    %c0_162 = arith.constant 0 : index
    %c111_163 = arith.constant 111 : index
    %161 = vector.load %arg24[%c0_162, %c111_163] : memref<16x768xf32, #tpu.memory_space<vmem>>, vector<8x512xf32>
    %c0_164 = arith.constant 0 : index
    %c0_165 = arith.constant 0 : index
    %162 = vector.load %arg1[%c0_164, %c0_165] : memref<144x512xf32, #tpu.memory_space<vmem>>, vector<8x512xf32>
    %163 = arith.mulf %161, %162 : vector<8x512xf32>
    %c0_166 = arith.constant 0 : index
    %c0_167 = arith.constant 0 : index
    %164 = vector.load %arg25[%c0_166, %c0_167] : memref<144x512xf32, #tpu.memory_space<vmem>>, vector<8x512xf32>
    tpu.vector_store %arg25[%c0_166, %c0_167], %163 {strides = array<i32>} : memref<144x512xf32, #tpu.memory_space<vmem>>, vector<8x512xf32>,
    %c0_168 = arith.constant 0 : index
    %c112_169 = arith.constant 112 : index
    %165 = vector.load %arg24[%c0_168, %c112_169] : memref<16x768xf32, #tpu.memory_space<vmem>>, vector<8x512xf32>
    %c16_170 = arith.constant 16 : index
    %c0_171 = arith.constant 0 : index
    %166 = vector.load %arg1[%c16_170, %c0_171] : memref<144x512xf32, #tpu.memory_space<vmem>>, vector<8x512xf32>
    %167 = arith.mulf %165, %166 : vector<8x512xf32>
    %c16_172 = arith.constant 16 : index
    %c0_173 = arith.constant 0 : index
    %168 = vector.load %arg25[%c16_172, %c0_173] : memref<144x512xf32, #tpu.memory_space<vmem>>, vector<8x512xf32>
    tpu.vector_store %arg25[%c16_172, %c0_173], %167 {strides = array<i32>} : memref<144x512xf32, #tpu.memory_space<vmem>>, vector<8x512xf32>,
    %c0_174 = arith.constant 0 : index
    %c113_175 = arith.constant 113 : index
    %169 = vector.load %arg24[%c0_174, %c113_175] : memref<16x768xf32, #tpu.memory_space<vmem>>, vector<8x512xf32>
    %c32_176 = arith.constant 32 : index
    %c0_177 = arith.constant 0 : index
    %170 = vector.load %arg1[%c32_176, %c0_177] : memref<144x512xf32, #tpu.memory_space<vmem>>, vector<8x512xf32>
    %171 = arith.mulf %169, %170 : vector<8x512xf32>
    %c32_178 = arith.constant 32 : index
    %c0_179 = arith.constant 0 : index
    %172 = vector.load %arg25[%c32_178, %c0_179] : memref<144x512xf32, #tpu.memory_space<vmem>>, vector<8x512xf32>
    tpu.vector_store %arg25[%c32_178, %c0_179], %171 {strides = array<i32>} : memref<144x512xf32, #tpu.memory_space<vmem>>, vector<8x512xf32>,
    %c0_180 = arith.constant 0 : index
    %c127_181 = arith.constant 127 : index
    %173 = vector.load %arg24[%c0_180, %c127_181] : memref<16x768xf32, #tpu.memory_space<vmem>>, vector<8x512xf32>
    %c48_182 = arith.constant 48 : index
    %c0_183 = arith.constant 0 : index
    %174 = vector.load %arg1[%c48_182, %c0_183] : memref<144x512xf32, #tpu.memory_space<vmem>>, vector<8x512xf32>
    %175 = arith.mulf %173, %174 : vector<8x512xf32>
    %c48_184 = arith.constant 48 : index
    %c0_185 = arith.constant 0 : index
    %176 = vector.load %arg25[%c48_184, %c0_185] : memref<144x512xf32, #tpu.memory_space<vmem>>, vector<8x512xf32>
    tpu.vector_store %arg25[%c48_184, %c0_185], %175 {strides = array<i32>} : memref<144x512xf32, #tpu.memory_space<vmem>>, vector<8x512xf32>,
    %c0_186 = arith.constant 0 : index
    %c128_187 = arith.constant 128 : index
    %177 = vector.load %arg24[%c0_186, %c128_187] : memref<16x768xf32, #tpu.memory_space<vmem>>, vector<8x512xf32>
    %c64_188 = arith.constant 64 : index
    %c0_189 = arith.constant 0 : index
    %178 = vector.load %arg1[%c64_188, %c0_189] : memref<144x512xf32, #tpu.memory_space<vmem>>, vector<8x512xf32>
    %179 = arith.mulf %177, %178 : vector<8x512xf32>
    %c64_190 = arith.constant 64 : index
    %c0_191 = arith.constant 0 : index
    %180 = vector.load %arg25[%c64_190, %c0_191] : memref<144x512xf32, #tpu.memory_space<vmem>>, vector<8x512xf32>
    tpu.vector_store %arg25[%c64_190, %c0_191], %179 {strides = array<i32>} : memref<144x512xf32, #tpu.memory_space<vmem>>, vector<8x512xf32>,
    %c0_192 = arith.constant 0 : index
    %c129_193 = arith.constant 129 : index
    %181 = vector.load %arg24[%c0_192, %c129_193] : memref<16x768xf32, #tpu.memory_space<vmem>>, vector<8x512xf32>
    %c80_194 = arith.constant 80 : index
    %c0_195 = arith.constant 0 : index
    %182 = vector.load %arg1[%c80_194, %c0_195] : memref<144x512xf32, #tpu.memory_space<vmem>>, vector<8x512xf32>
    %183 = arith.mulf %181, %182 : vector<8x512xf32>
    %c80_196 = arith.constant 80 : index
    %c0_197 = arith.constant 0 : index
    %184 = vector.load %arg25[%c80_196, %c0_197] : memref<144x512xf32, #tpu.memory_space<vmem>>, vector<8x512xf32>
    tpu.vector_store %arg25[%c80_196, %c0_197], %183 {strides = array<i32>} : memref<144x512xf32, #tpu.memory_space<vmem>>, vector<8x512xf32>,
    %c0_198 = arith.constant 0 : index
    %c143_199 = arith.constant 143 : index
    %185 = vector.load %arg24[%c0_198, %c143_199] : memref<16x768xf32, #tpu.memory_space<vmem>>, vector<8x512xf32>
    %c96_200 = arith.constant 96 : index
    %c0_201 = arith.constant 0 : index
    %186 = vector.load %arg1[%c96_200, %c0_201] : memref<144x512xf32, #tpu.memory_space<vmem>>, vector<8x512xf32>
    %187 = arith.mulf %185, %186 : vector<8x512xf32>
    %c96_202 = arith.constant 96 : index
    %c0_203 = arith.constant 0 : index
    %188 = vector.load %arg25[%c96_202, %c0_203] : memref<144x512xf32, #tpu.memory_space<vmem>>, vector<8x512xf32>
    tpu.vector_store %arg25[%c96_202, %c0_203], %187 {strides = array<i32>} : memref<144x512xf32, #tpu.memory_space<vmem>>, vector<8x512xf32>,
    %c0_204 = arith.constant 0 : index
    %c144_205 = arith.constant 144 : index
    %189 = vector.load %arg24[%c0_204, %c144_205] : memref<16x768xf32, #tpu.memory_space<vmem>>, vector<8x512xf32>
    %c112_206 = arith.constant 112 : index
    %c0_207 = arith.constant 0 : index
    %190 = vector.load %arg1[%c112_206, %c0_207] : memref<144x512xf32, #tpu.memory_space<vmem>>, vector<8x512xf32>
    %191 = arith.mulf %189, %190 : vector<8x512xf32>
    %c112_208 = arith.constant 112 : index
    %c0_209 = arith.constant 0 : index
    %192 = vector.load %arg25[%c112_208, %c0_209] : memref<144x512xf32, #tpu.memory_space<vmem>>, vector<8x512xf32>
    tpu.vector_store %arg25[%c112_208, %c0_209], %191 {strides = array<i32>} : memref<144x512xf32, #tpu.memory_space<vmem>>, vector<8x512xf32>,
    %c0_210 = arith.constant 0 : index
    %c145_211 = arith.constant 145 : index
    %193 = vector.load %arg24[%c0_210, %c145_211] : memref<16x768xf32, #tpu.memory_space<vmem>>, vector<8x512xf32>
    %c128_212 = arith.constant 128 : index
    %c0_213 = arith.constant 0 : index
    %194 = vector.load %arg1[%c128_212, %c0_213] : memref<144x512xf32, #tpu.memory_space<vmem>>, vector<8x512xf32>
    %195 = arith.mulf %193, %194 : vector<8x512xf32>
    %c128_214 = arith.constant 128 : index
    %c0_215 = arith.constant 0 : index
    %196 = vector.load %arg25[%c128_214, %c0_215] : memref<144x512xf32, #tpu.memory_space<vmem>>, vector<8x512xf32>
    tpu.vector_store %arg25[%c128_214, %c0_215], %195 {strides = array<i32>} : memref<144x512xf32, #tpu.memory_space<vmem>>, vector<8x512xf32>,
    %c0_216 = arith.constant 0 : index
    %c0_217 = arith.constant 0 : index
    %197 = vector.load %arg25[%c0_216, %c0_217] : memref<144x512xf32, #tpu.memory_space<vmem>>, vector<144x512xf32>
    %cst_218 = arith.constant dense<0.000000e+00> : vector<16x512xf32>
    %198 = tpu.matmul %157, %197, %cst_218 {dimension_numbers = #tpu.dot_dimension_numbers<[1], [0], [0], [1], [0, 0, 1, 1], [], []>} : vector<16x144xf32>, vector<144x512xf32>, vector<16x512xf32> -> vector<16x512xf32>
    %199 = vector.broadcast %159 : vector<16x1xf32> to vector<16x512xf32>
    %200 = arith.addf %198, %199 : vector<16x512xf32>
    %cst_219 = arith.constant 0.000000e+00 : f32
    %201 = vector.broadcast %cst_219 : f32 to vector<16x512xf32>
    %202 = arith.maximumf %200, %201 : vector<16x512xf32>
    %c0_220 = arith.constant 0 : index
    %c0_221 = arith.constant 0 : index
    %c0_222 = arith.constant 0 : index
    %203 = vector.load %arg9[%c0_220, %c0_221, %c0_222] : memref<2x16x1xf32, #tpu.memory_space<vmem>>, vector<1x16x1xf32>
    %204 = vector.shape_cast %203 : vector<1x16x1xf32> to vector<16x1xf32>
    %c0_223 = arith.constant 0 : index
    %c0_224 = arith.constant 0 : index
    %c0_225 = arith.constant 0 : index
    %205 = vector.load %arg10[%c0_223, %c0_224, %c0_225] : memref<2x16x1xf32, #tpu.memory_space<vmem>>, vector<1x16x1xf32>
    %206 = vector.shape_cast %205 : vector<1x16x1xf32> to vector<16x1xf32>
    %cst_226 = arith.constant dense<0.000000e+00> : vector<16xf32>
    %207 = vector.multi_reduction <add>, %202, %cst_226 [1] : vector<16x512xf32> to vector<16xf32>
    %208 = vector.shape_cast %207 : vector<16xf32> to vector<16x1xf32>
    %cst_227 = arith.constant 0.001953125 : f32
    %209 = vector.broadcast %cst_227 : f32 to vector<16x1xf32>
    %210 = arith.mulf %208, %209 : vector<16x1xf32>
    %211 = arith.mulf %202, %202 : vector<16x512xf32>
    %cst_228 = arith.constant dense<0.000000e+00> : vector<16xf32>
    %212 = vector.multi_reduction <add>, %211, %cst_228 [1] : vector<16x512xf32> to vector<16xf32>
    %213 = vector.shape_cast %212 : vector<16xf32> to vector<16x1xf32>
    %cst_229 = arith.constant 0.001953125 : f32
    %214 = vector.broadcast %cst_229 : f32 to vector<16x1xf32>
    %215 = arith.mulf %213, %214 : vector<16x1xf32>
    %216 = arith.mulf %210, %210 : vector<16x1xf32>
    %217 = arith.subf %215, %216 : vector<16x1xf32>
    %cst_230 = arith.constant 9.99999974E-6 : f32
    %218 = vector.broadcast %cst_230 : f32 to vector<16x1xf32>
    %219 = arith.addf %217, %218 : vector<16x1xf32>
    %220 = math.rsqrt %219 : vector<16x1xf32>
    %221 = arith.mulf %220, %204 : vector<16x1xf32>
    %222 = vector.broadcast %221 : vector<16x1xf32> to vector<16x512xf32>
    %223 = arith.mulf %202, %222 : vector<16x512xf32>
    %224 = arith.mulf %210, %221 : vector<16x1xf32>
    %225 = arith.subf %206, %224 : vector<16x1xf32>
    %226 = vector.broadcast %225 : vector<16x1xf32> to vector<16x512xf32>
    %227 = arith.addf %223, %226 : vector<16x512xf32>
    %c1_231 = arith.constant 1 : index
    %c0_232 = arith.constant 0 : index
    %c0_233 = arith.constant 0 : index
    %228 = vector.load %arg7[%c1_231, %c0_232, %c0_233] : memref<2x16x144xf32, #tpu.memory_space<vmem>>, vector<1x16x144xf32>
    %229 = vector.shape_cast %228 : vector<1x16x144xf32> to vector<16x144xf32>
    %c1_234 = arith.constant 1 : index
    %c0_235 = arith.constant 0 : index
    %c0_236 = arith.constant 0 : index
    %230 = vector.load %arg8[%c1_234, %c0_235, %c0_236] : memref<2x16x1xf32, #tpu.memory_space<vmem>>, vector<1x16x1xf32>
    %231 = vector.shape_cast %230 : vector<1x16x1xf32> to vector<16x1xf32>
    %c0_237 = arith.constant 0 : index
    %c128_238 = arith.constant 128 : index
    %232 = vector.load %arg26[%c0_237, %c128_238] : memref<16x768xf32, #tpu.memory_space<vmem>>, vector<8x512xf32>
    tpu.vector_store %arg26[%c0_237, %c128_238], %155 {strides = array<i32>} : memref<16x768xf32, #tpu.memory_space<vmem>>, vector<8x512xf32>,
    %c0_239 = arith.constant 0 : index
    %c111_240 = arith.constant 111 : index
    %233 = vector.load %arg26[%c0_239, %c111_240] : memref<16x768xf32, #tpu.memory_space<vmem>>, vector<8x512xf32>
    %c0_241 = arith.constant 0 : index
    %c0_242 = arith.constant 0 : index
    %234 = vector.load %arg1[%c0_241, %c0_242] : memref<144x512xf32, #tpu.memory_space<vmem>>, vector<8x512xf32>
    %235 = arith.mulf %233, %234 : vector<8x512xf32>
    %c0_243 = arith.constant 0 : index
    %c0_244 = arith.constant 0 : index
    %236 = vector.load %arg27[%c0_243, %c0_244] : memref<144x512xf32, #tpu.memory_space<vmem>>, vector<8x512xf32>
    tpu.vector_store %arg27[%c0_243, %c0_244], %235 {strides = array<i32>} : memref<144x512xf32, #tpu.memory_space<vmem>>, vector<8x512xf32>,
    %c0_245 = arith.constant 0 : index
    %c112_246 = arith.constant 112 : index
    %237 = vector.load %arg26[%c0_245, %c112_246] : memref<16x768xf32, #tpu.memory_space<vmem>>, vector<8x512xf32>
    %c16_247 = arith.constant 16 : index
    %c0_248 = arith.constant 0 : index
    %238 = vector.load %arg1[%c16_247, %c0_248] : memref<144x512xf32, #tpu.memory_space<vmem>>, vector<8x512xf32>
    %239 = arith.mulf %237, %238 : vector<8x512xf32>
    %c16_249 = arith.constant 16 : index
    %c0_250 = arith.constant 0 : index
    %240 = vector.load %arg27[%c16_249, %c0_250] : memref<144x512xf32, #tpu.memory_space<vmem>>, vector<8x512xf32>
    tpu.vector_store %arg27[%c16_249, %c0_250], %239 {strides = array<i32>} : memref<144x512xf32, #tpu.memory_space<vmem>>, vector<8x512xf32>,
    %c0_251 = arith.constant 0 : index
    %c113_252 = arith.constant 113 : index
    %241 = vector.load %arg26[%c0_251, %c113_252] : memref<16x768xf32, #tpu.memory_space<vmem>>, vector<8x512xf32>
    %c32_253 = arith.constant 32 : index
    %c0_254 = arith.constant 0 : index
    %242 = vector.load %arg1[%c32_253, %c0_254] : memref<144x512xf32, #tpu.memory_space<vmem>>, vector<8x512xf32>
    %243 = arith.mulf %241, %242 : vector<8x512xf32>
    %c32_255 = arith.constant 32 : index
    %c0_256 = arith.constant 0 : index
    %244 = vector.load %arg27[%c32_255, %c0_256] : memref<144x512xf32, #tpu.memory_space<vmem>>, vector<8x512xf32>
    tpu.vector_store %arg27[%c32_255, %c0_256], %243 {strides = array<i32>} : memref<144x512xf32, #tpu.memory_space<vmem>>, vector<8x512xf32>,
    %c0_257 = arith.constant 0 : index
    %c127_258 = arith.constant 127 : index
    %245 = vector.load %arg26[%c0_257, %c127_258] : memref<16x768xf32, #tpu.memory_space<vmem>>, vector<8x512xf32>
    %c48_259 = arith.constant 48 : index
    %c0_260 = arith.constant 0 : index
    %246 = vector.load %arg1[%c48_259, %c0_260] : memref<144x512xf32, #tpu.memory_space<vmem>>, vector<8x512xf32>
    %247 = arith.mulf %245, %246 : vector<8x512xf32>
    %c48_261 = arith.constant 48 : index
    %c0_262 = arith.constant 0 : index
    %248 = vector.load %arg27[%c48_261, %c0_262] : memref<144x512xf32, #tpu.memory_space<vmem>>, vector<8x512xf32>
    tpu.vector_store %arg27[%c48_261, %c0_262], %247 {strides = array<i32>} : memref<144x512xf32, #tpu.memory_space<vmem>>, vector<8x512xf32>,
    %c0_263 = arith.constant 0 : index
    %c128_264 = arith.constant 128 : index
    %249 = vector.load %arg26[%c0_263, %c128_264] : memref<16x768xf32, #tpu.memory_space<vmem>>, vector<8x512xf32>
    %c64_265 = arith.constant 64 : index
    %c0_266 = arith.constant 0 : index
    %250 = vector.load %arg1[%c64_265, %c0_266] : memref<144x512xf32, #tpu.memory_space<vmem>>, vector<8x512xf32>
    %251 = arith.mulf %249, %250 : vector<8x512xf32>
    %c64_267 = arith.constant 64 : index
    %c0_268 = arith.constant 0 : index
    %252 = vector.load %arg27[%c64_267, %c0_268] : memref<144x512xf32, #tpu.memory_space<vmem>>, vector<8x512xf32>
    tpu.vector_store %arg27[%c64_267, %c0_268], %251 {strides = array<i32>} : memref<144x512xf32, #tpu.memory_space<vmem>>, vector<8x512xf32>,
    %c0_269 = arith.constant 0 : index
    %c129_270 = arith.constant 129 : index
    %253 = vector.load %arg26[%c0_269, %c129_270] : memref<16x768xf32, #tpu.memory_space<vmem>>, vector<8x512xf32>
    %c80_271 = arith.constant 80 : index
    %c0_272 = arith.constant 0 : index
    %254 = vector.load %arg1[%c80_271, %c0_272] : memref<144x512xf32, #tpu.memory_space<vmem>>, vector<8x512xf32>
    %255 = arith.mulf %253, %254 : vector<8x512xf32>
    %c80_273 = arith.constant 80 : index
    %c0_274 = arith.constant 0 : index
    %256 = vector.load %arg27[%c80_273, %c0_274] : memref<144x512xf32, #tpu.memory_space<vmem>>, vector<8x512xf32>
    tpu.vector_store %arg27[%c80_273, %c0_274], %255 {strides = array<i32>} : memref<144x512xf32, #tpu.memory_space<vmem>>, vector<8x512xf32>,
    %c0_275 = arith.constant 0 : index
    %c143_276 = arith.constant 143 : index
    %257 = vector.load %arg26[%c0_275, %c143_276] : memref<16x768xf32, #tpu.memory_space<vmem>>, vector<8x512xf32>
    %c96_277 = arith.constant 96 : index
    %c0_278 = arith.constant 0 : index
    %258 = vector.load %arg1[%c96_277, %c0_278] : memref<144x512xf32, #tpu.memory_space<vmem>>, vector<8x512xf32>
    %259 = arith.mulf %257, %258 : vector<8x512xf32>
    %c96_279 = arith.constant 96 : index
    %c0_280 = arith.constant 0 : index
    %260 = vector.load %arg27[%c96_279, %c0_280] : memref<144x512xf32, #tpu.memory_space<vmem>>, vector<8x512xf32>
    tpu.vector_store %arg27[%c96_279, %c0_280], %259 {strides = array<i32>} : memref<144x512xf32, #tpu.memory_space<vmem>>, vector<8x512xf32>,
    %c0_281 = arith.constant 0 : index
    %c144_282 = arith.constant 144 : index
    %261 = vector.load %arg26[%c0_281, %c144_282] : memref<16x768xf32, #tpu.memory_space<vmem>>, vector<8x512xf32>
    %c112_283 = arith.constant 112 : index
    %c0_284 = arith.constant 0 : index
    %262 = vector.load %arg1[%c112_283, %c0_284] : memref<144x512xf32, #tpu.memory_space<vmem>>, vector<8x512xf32>
    %263 = arith.mulf %261, %262 : vector<8x512xf32>
    %c112_285 = arith.constant 112 : index
    %c0_286 = arith.constant 0 : index
    %264 = vector.load %arg27[%c112_285, %c0_286] : memref<144x512xf32, #tpu.memory_space<vmem>>, vector<8x512xf32>
    tpu.vector_store %arg27[%c112_285, %c0_286], %263 {strides = array<i32>} : memref<144x512xf32, #tpu.memory_space<vmem>>, vector<8x512xf32>,
    %c0_287 = arith.constant 0 : index
    %c145_288 = arith.constant 145 : index
    %265 = vector.load %arg26[%c0_287, %c145_288] : memref<16x768xf32, #tpu.memory_space<vmem>>, vector<8x512xf32>
    %c128_289 = arith.constant 128 : index
    %c0_290 = arith.constant 0 : index
    %266 = vector.load %arg1[%c128_289, %c0_290] : memref<144x512xf32, #tpu.memory_space<vmem>>, vector<8x512xf32>
    %267 = arith.mulf %265, %266 : vector<8x512xf32>
    %c128_291 = arith.constant 128 : index
    %c0_292 = arith.constant 0 : index
    %268 = vector.load %arg27[%c128_291, %c0_292] : memref<144x512xf32, #tpu.memory_space<vmem>>, vector<8x512xf32>
    tpu.vector_store %arg27[%c128_291, %c0_292], %267 {strides = array<i32>} : memref<144x512xf32, #tpu.memory_space<vmem>>, vector<8x512xf32>,
    %c0_293 = arith.constant 0 : index
    %c0_294 = arith.constant 0 : index
    %269 = vector.load %arg27[%c0_293, %c0_294] : memref<144x512xf32, #tpu.memory_space<vmem>>, vector<144x512xf32>
    %cst_295 = arith.constant dense<0.000000e+00> : vector<16x512xf32>
    %270 = tpu.matmul %229, %269, %cst_295 {dimension_numbers = #tpu.dot_dimension_numbers<[1], [0], [0], [1], [0, 0, 1, 1], [], []>} : vector<16x144xf32>, vector<144x512xf32>, vector<16x512xf32> -> vector<16x512xf32>
    %271 = vector.broadcast %231 : vector<16x1xf32> to vector<16x512xf32>
    %272 = arith.addf %270, %271 : vector<16x512xf32>
    %cst_296 = arith.constant 0.000000e+00 : f32
    %273 = vector.broadcast %cst_296 : f32 to vector<16x512xf32>
    %274 = arith.maximumf %272, %273 : vector<16x512xf32>
    %c1_297 = arith.constant 1 : index
    %c0_298 = arith.constant 0 : index
    %c0_299 = arith.constant 0 : index
    %275 = vector.load %arg9[%c1_297, %c0_298, %c0_299] : memref<2x16x1xf32, #tpu.memory_space<vmem>>, vector<1x16x1xf32>
    %276 = vector.shape_cast %275 : vector<1x16x1xf32> to vector<16x1xf32>
    %c1_300 = arith.constant 1 : index
    %c0_301 = arith.constant 0 : index
    %c0_302 = arith.constant 0 : index
    %277 = vector.load %arg10[%c1_300, %c0_301, %c0_302] : memref<2x16x1xf32, #tpu.memory_space<vmem>>, vector<1x16x1xf32>
    %278 = vector.shape_cast %277 : vector<1x16x1xf32> to vector<16x1xf32>
    %cst_303 = arith.constant dense<0.000000e+00> : vector<16xf32>
    %279 = vector.multi_reduction <add>, %274, %cst_303 [1] : vector<16x512xf32> to vector<16xf32>
    %280 = vector.shape_cast %279 : vector<16xf32> to vector<16x1xf32>
    %cst_304 = arith.constant 0.001953125 : f32
    %281 = vector.broadcast %cst_304 : f32 to vector<16x1xf32>
    %282 = arith.mulf %280, %281 : vector<16x1xf32>
    %283 = arith.mulf %274, %274 : vector<16x512xf32>
    %cst_305 = arith.constant dense<0.000000e+00> : vector<16xf32>
    %284 = vector.multi_reduction <add>, %283, %cst_305 [1] : vector<16x512xf32> to vector<16xf32>
    %285 = vector.shape_cast %284 : vector<16xf32> to vector<16x1xf32>
    %cst_306 = arith.constant 0.001953125 : f32
    %286 = vector.broadcast %cst_306 : f32 to vector<16x1xf32>
    %287 = arith.mulf %285, %286 : vector<16x1xf32>
    %288 = arith.mulf %282, %282 : vector<16x1xf32>
    %289 = arith.subf %287, %288 : vector<16x1xf32>
    %cst_307 = arith.constant 9.99999974E-6 : f32
    %290 = vector.broadcast %cst_307 : f32 to vector<16x1xf32>
    %291 = arith.addf %289, %290 : vector<16x1xf32>
    %292 = math.rsqrt %291 : vector<16x1xf32>
    %293 = arith.mulf %292, %276 : vector<16x1xf32>
    %294 = vector.broadcast %293 : vector<16x1xf32> to vector<16x512xf32>
    %295 = arith.mulf %274, %294 : vector<16x512xf32>
    %296 = arith.mulf %282, %293 : vector<16x1xf32>
    %297 = arith.subf %278, %296 : vector<16x1xf32>
    %298 = vector.broadcast %297 : vector<16x1xf32> to vector<16x512xf32>
    %299 = arith.addf %295, %298 : vector<16x512xf32>
    %c0_308 = arith.constant 0 : index
    %c0_309 = arith.constant 0 : index
    %c0_310 = arith.constant 0 : index
    %300 = vector.load %arg11[%c0_308, %c0_309, %c0_310] : memref<2x16x144xf32, #tpu.memory_space<vmem>>, vector<1x16x144xf32>
    %301 = vector.shape_cast %300 : vector<1x16x144xf32> to vector<16x144xf32>
    %c0_311 = arith.constant 0 : index
    %c0_312 = arith.constant 0 : index
    %c0_313 = arith.constant 0 : index
    %302 = vector.load %arg12[%c0_311, %c0_312, %c0_313] : memref<2x16x1xf32, #tpu.memory_space<vmem>>, vector<1x16x1xf32>
    %303 = vector.shape_cast %302 : vector<1x16x1xf32> to vector<16x1xf32>
    %c0_314 = arith.constant 0 : index
    %c128_315 = arith.constant 128 : index
    %304 = vector.load %arg24[%c0_314, %c128_315] : memref<16x768xf32, #tpu.memory_space<vmem>>, vector<16x512xf32>
    tpu.vector_store %arg24[%c0_314, %c128_315], %227 {strides = array<i32>} : memref<16x768xf32, #tpu.memory_space<vmem>>, vector<16x512xf32>,
    %c0_316 = arith.constant 0 : index
    %c111_317 = arith.constant 111 : index
    %305 = vector.load %arg24[%c0_316, %c111_317] : memref<16x768xf32, #tpu.memory_space<vmem>>, vector<16x512xf32>
    %c0_318 = arith.constant 0 : index
    %c0_319 = arith.constant 0 : index
    %306 = vector.load %arg1[%c0_318, %c0_319] : memref<144x512xf32, #tpu.memory_space<vmem>>, vector<16x512xf32>
    %307 = arith.mulf %305, %306 : vector<16x512xf32>
    %c0_320 = arith.constant 0 : index
    %c0_321 = arith.constant 0 : index
    %308 = vector.load %arg25[%c0_320, %c0_321] : memref<144x512xf32, #tpu.memory_space<vmem>>, vector<16x512xf32>
    tpu.vector_store %arg25[%c0_320, %c0_321], %307 {strides = array<i32>} : memref<144x512xf32, #tpu.memory_space<vmem>>, vector<16x512xf32>,
    %c0_322 = arith.constant 0 : index
    %c112_323 = arith.constant 112 : index
    %309 = vector.load %arg24[%c0_322, %c112_323] : memref<16x768xf32, #tpu.memory_space<vmem>>, vector<16x512xf32>
    %c16_324 = arith.constant 16 : index
    %c0_325 = arith.constant 0 : index
    %310 = vector.load %arg1[%c16_324, %c0_325] : memref<144x512xf32, #tpu.memory_space<vmem>>, vector<16x512xf32>
    %311 = arith.mulf %309, %310 : vector<16x512xf32>
    %c16_326 = arith.constant 16 : index
    %c0_327 = arith.constant 0 : index
    %312 = vector.load %arg25[%c16_326, %c0_327] : memref<144x512xf32, #tpu.memory_space<vmem>>, vector<16x512xf32>
    tpu.vector_store %arg25[%c16_326, %c0_327], %311 {strides = array<i32>} : memref<144x512xf32, #tpu.memory_space<vmem>>, vector<16x512xf32>,
    %c0_328 = arith.constant 0 : index
    %c113_329 = arith.constant 113 : index
    %313 = vector.load %arg24[%c0_328, %c113_329] : memref<16x768xf32, #tpu.memory_space<vmem>>, vector<16x512xf32>
    %c32_330 = arith.constant 32 : index
    %c0_331 = arith.constant 0 : index
    %314 = vector.load %arg1[%c32_330, %c0_331] : memref<144x512xf32, #tpu.memory_space<vmem>>, vector<16x512xf32>
    %315 = arith.mulf %313, %314 : vector<16x512xf32>
    %c32_332 = arith.constant 32 : index
    %c0_333 = arith.constant 0 : index
    %316 = vector.load %arg25[%c32_332, %c0_333] : memref<144x512xf32, #tpu.memory_space<vmem>>, vector<16x512xf32>
    tpu.vector_store %arg25[%c32_332, %c0_333], %315 {strides = array<i32>} : memref<144x512xf32, #tpu.memory_space<vmem>>, vector<16x512xf32>,
    %c0_334 = arith.constant 0 : index
    %c127_335 = arith.constant 127 : index
    %317 = vector.load %arg24[%c0_334, %c127_335] : memref<16x768xf32, #tpu.memory_space<vmem>>, vector<16x512xf32>
    %c48_336 = arith.constant 48 : index
    %c0_337 = arith.constant 0 : index
    %318 = vector.load %arg1[%c48_336, %c0_337] : memref<144x512xf32, #tpu.memory_space<vmem>>, vector<16x512xf32>
    %319 = arith.mulf %317, %318 : vector<16x512xf32>
    %c48_338 = arith.constant 48 : index
    %c0_339 = arith.constant 0 : index
    %320 = vector.load %arg25[%c48_338, %c0_339] : memref<144x512xf32, #tpu.memory_space<vmem>>, vector<16x512xf32>
    tpu.vector_store %arg25[%c48_338, %c0_339], %319 {strides = array<i32>} : memref<144x512xf32, #tpu.memory_space<vmem>>, vector<16x512xf32>,
    %c0_340 = arith.constant 0 : index
    %c128_341 = arith.constant 128 : index
    %321 = vector.load %arg24[%c0_340, %c128_341] : memref<16x768xf32, #tpu.memory_space<vmem>>, vector<16x512xf32>
    %c64_342 = arith.constant 64 : index
    %c0_343 = arith.constant 0 : index
    %322 = vector.load %arg1[%c64_342, %c0_343] : memref<144x512xf32, #tpu.memory_space<vmem>>, vector<16x512xf32>
    %323 = arith.mulf %321, %322 : vector<16x512xf32>
    %c64_344 = arith.constant 64 : index
    %c0_345 = arith.constant 0 : index
    %324 = vector.load %arg25[%c64_344, %c0_345] : memref<144x512xf32, #tpu.memory_space<vmem>>, vector<16x512xf32>
    tpu.vector_store %arg25[%c64_344, %c0_345], %323 {strides = array<i32>} : memref<144x512xf32, #tpu.memory_space<vmem>>, vector<16x512xf32>,
    %c0_346 = arith.constant 0 : index
    %c129_347 = arith.constant 129 : index
    %325 = vector.load %arg24[%c0_346, %c129_347] : memref<16x768xf32, #tpu.memory_space<vmem>>, vector<16x512xf32>
    %c80_348 = arith.constant 80 : index
    %c0_349 = arith.constant 0 : index
    %326 = vector.load %arg1[%c80_348, %c0_349] : memref<144x512xf32, #tpu.memory_space<vmem>>, vector<16x512xf32>
    %327 = arith.mulf %325, %326 : vector<16x512xf32>
    %c80_350 = arith.constant 80 : index
    %c0_351 = arith.constant 0 : index
    %328 = vector.load %arg25[%c80_350, %c0_351] : memref<144x512xf32, #tpu.memory_space<vmem>>, vector<16x512xf32>
    tpu.vector_store %arg25[%c80_350, %c0_351], %327 {strides = array<i32>} : memref<144x512xf32, #tpu.memory_space<vmem>>, vector<16x512xf32>,
    %c0_352 = arith.constant 0 : index
    %c143_353 = arith.constant 143 : index
    %329 = vector.load %arg24[%c0_352, %c143_353] : memref<16x768xf32, #tpu.memory_space<vmem>>, vector<16x512xf32>
    %c96_354 = arith.constant 96 : index
    %c0_355 = arith.constant 0 : index
    %330 = vector.load %arg1[%c96_354, %c0_355] : memref<144x512xf32, #tpu.memory_space<vmem>>, vector<16x512xf32>
    %331 = arith.mulf %329, %330 : vector<16x512xf32>
    %c96_356 = arith.constant 96 : index
    %c0_357 = arith.constant 0 : index
    %332 = vector.load %arg25[%c96_356, %c0_357] : memref<144x512xf32, #tpu.memory_space<vmem>>, vector<16x512xf32>
    tpu.vector_store %arg25[%c96_356, %c0_357], %331 {strides = array<i32>} : memref<144x512xf32, #tpu.memory_space<vmem>>, vector<16x512xf32>,
    %c0_358 = arith.constant 0 : index
    %c144_359 = arith.constant 144 : index
    %333 = vector.load %arg24[%c0_358, %c144_359] : memref<16x768xf32, #tpu.memory_space<vmem>>, vector<16x512xf32>
    %c112_360 = arith.constant 112 : index
    %c0_361 = arith.constant 0 : index
    %334 = vector.load %arg1[%c112_360, %c0_361] : memref<144x512xf32, #tpu.memory_space<vmem>>, vector<16x512xf32>
    %335 = arith.mulf %333, %334 : vector<16x512xf32>
    %c112_362 = arith.constant 112 : index
    %c0_363 = arith.constant 0 : index
    %336 = vector.load %arg25[%c112_362, %c0_363] : memref<144x512xf32, #tpu.memory_space<vmem>>, vector<16x512xf32>
    tpu.vector_store %arg25[%c112_362, %c0_363], %335 {strides = array<i32>} : memref<144x512xf32, #tpu.memory_space<vmem>>, vector<16x512xf32>,
    %c0_364 = arith.constant 0 : index
    %c145_365 = arith.constant 145 : index
    %337 = vector.load %arg24[%c0_364, %c145_365] : memref<16x768xf32, #tpu.memory_space<vmem>>, vector<16x512xf32>
    %c128_366 = arith.constant 128 : index
    %c0_367 = arith.constant 0 : index
    %338 = vector.load %arg1[%c128_366, %c0_367] : memref<144x512xf32, #tpu.memory_space<vmem>>, vector<16x512xf32>
    %339 = arith.mulf %337, %338 : vector<16x512xf32>
    %c128_368 = arith.constant 128 : index
    %c0_369 = arith.constant 0 : index
    %340 = vector.load %arg25[%c128_368, %c0_369] : memref<144x512xf32, #tpu.memory_space<vmem>>, vector<16x512xf32>
    tpu.vector_store %arg25[%c128_368, %c0_369], %339 {strides = array<i32>} : memref<144x512xf32, #tpu.memory_space<vmem>>, vector<16x512xf32>,
    %c0_370 = arith.constant 0 : index
    %c0_371 = arith.constant 0 : index
    %341 = vector.load %arg25[%c0_370, %c0_371] : memref<144x512xf32, #tpu.memory_space<vmem>>, vector<144x512xf32>
    %cst_372 = arith.constant dense<0.000000e+00> : vector<16x512xf32>
    %342 = tpu.matmul %301, %341, %cst_372 {dimension_numbers = #tpu.dot_dimension_numbers<[1], [0], [0], [1], [0, 0, 1, 1], [], []>} : vector<16x144xf32>, vector<144x512xf32>, vector<16x512xf32> -> vector<16x512xf32>
    %343 = vector.broadcast %303 : vector<16x1xf32> to vector<16x512xf32>
    %344 = arith.addf %342, %343 : vector<16x512xf32>
    %cst_373 = arith.constant 0.000000e+00 : f32
    %345 = vector.broadcast %cst_373 : f32 to vector<16x512xf32>
    %346 = arith.maximumf %344, %345 : vector<16x512xf32>
    %c0_374 = arith.constant 0 : index
    %c0_375 = arith.constant 0 : index
    %c0_376 = arith.constant 0 : index
    %347 = vector.load %arg13[%c0_374, %c0_375, %c0_376] : memref<2x16x1xf32, #tpu.memory_space<vmem>>, vector<1x16x1xf32>
    %348 = vector.shape_cast %347 : vector<1x16x1xf32> to vector<16x1xf32>
    %c0_377 = arith.constant 0 : index
    %c0_378 = arith.constant 0 : index
    %c0_379 = arith.constant 0 : index
    %349 = vector.load %arg14[%c0_377, %c0_378, %c0_379] : memref<2x16x1xf32, #tpu.memory_space<vmem>>, vector<1x16x1xf32>
    %350 = vector.shape_cast %349 : vector<1x16x1xf32> to vector<16x1xf32>
    %cst_380 = arith.constant dense<0.000000e+00> : vector<16xf32>
    %351 = vector.multi_reduction <add>, %346, %cst_380 [1] : vector<16x512xf32> to vector<16xf32>
    %352 = vector.shape_cast %351 : vector<16xf32> to vector<16x1xf32>
    %cst_381 = arith.constant 0.001953125 : f32
    %353 = vector.broadcast %cst_381 : f32 to vector<16x1xf32>
    %354 = arith.mulf %352, %353 : vector<16x1xf32>
    %355 = arith.mulf %346, %346 : vector<16x512xf32>
    %cst_382 = arith.constant dense<0.000000e+00> : vector<16xf32>
    %356 = vector.multi_reduction <add>, %355, %cst_382 [1] : vector<16x512xf32> to vector<16xf32>
    %357 = vector.shape_cast %356 : vector<16xf32> to vector<16x1xf32>
    %cst_383 = arith.constant 0.001953125 : f32
    %358 = vector.broadcast %cst_383 : f32 to vector<16x1xf32>
    %359 = arith.mulf %357, %358 : vector<16x1xf32>
    %360 = arith.mulf %354, %354 : vector<16x1xf32>
    %361 = arith.subf %359, %360 : vector<16x1xf32>
    %cst_384 = arith.constant 9.99999974E-6 : f32
    %362 = vector.broadcast %cst_384 : f32 to vector<16x1xf32>
    %363 = arith.addf %361, %362 : vector<16x1xf32>
    %364 = math.rsqrt %363 : vector<16x1xf32>
    %365 = arith.mulf %364, %348 : vector<16x1xf32>
    %366 = vector.broadcast %365 : vector<16x1xf32> to vector<16x512xf32>
    %367 = arith.mulf %346, %366 : vector<16x512xf32>
    %368 = arith.mulf %354, %365 : vector<16x1xf32>
    %369 = arith.subf %350, %368 : vector<16x1xf32>
    %370 = vector.broadcast %369 : vector<16x1xf32> to vector<16x512xf32>
    %371 = arith.addf %367, %370 : vector<16x512xf32>
    %c1_385 = arith.constant 1 : index
    %c0_386 = arith.constant 0 : index
    %c0_387 = arith.constant 0 : index
    %372 = vector.load %arg11[%c1_385, %c0_386, %c0_387] : memref<2x16x144xf32, #tpu.memory_space<vmem>>, vector<1x16x144xf32>
    %373 = vector.shape_cast %372 : vector<1x16x144xf32> to vector<16x144xf32>
    %c1_388 = arith.constant 1 : index
    %c0_389 = arith.constant 0 : index
    %c0_390 = arith.constant 0 : index
    %374 = vector.load %arg12[%c1_388, %c0_389, %c0_390] : memref<2x16x1xf32, #tpu.memory_space<vmem>>, vector<1x16x1xf32>
    %375 = vector.shape_cast %374 : vector<1x16x1xf32> to vector<16x1xf32>
    %c0_391 = arith.constant 0 : index
    %c128_392 = arith.constant 128 : index
    %376 = vector.load %arg26[%c0_391, %c128_392] : memref<16x768xf32, #tpu.memory_space<vmem>>, vector<16x512xf32>
    tpu.vector_store %arg26[%c0_391, %c128_392], %299 {strides = array<i32>} : memref<16x768xf32, #tpu.memory_space<vmem>>, vector<16x512xf32>,
    %c0_393 = arith.constant 0 : index
    %c111_394 = arith.constant 111 : index
    %377 = vector.load %arg26[%c0_393, %c111_394] : memref<16x768xf32, #tpu.memory_space<vmem>>, vector<16x512xf32>
    %c0_395 = arith.constant 0 : index
    %c0_396 = arith.constant 0 : index
    %378 = vector.load %arg1[%c0_395, %c0_396] : memref<144x512xf32, #tpu.memory_space<vmem>>, vector<16x512xf32>
    %379 = arith.mulf %377, %378 : vector<16x512xf32>
    %c0_397 = arith.constant 0 : index
    %c0_398 = arith.constant 0 : index
    %380 = vector.load %arg27[%c0_397, %c0_398] : memref<144x512xf32, #tpu.memory_space<vmem>>, vector<16x512xf32>
    tpu.vector_store %arg27[%c0_397, %c0_398], %379 {strides = array<i32>} : memref<144x512xf32, #tpu.memory_space<vmem>>, vector<16x512xf32>,
    %c0_399 = arith.constant 0 : index
    %c112_400 = arith.constant 112 : index
    %381 = vector.load %arg26[%c0_399, %c112_400] : memref<16x768xf32, #tpu.memory_space<vmem>>, vector<16x512xf32>
    %c16_401 = arith.constant 16 : index
    %c0_402 = arith.constant 0 : index
    %382 = vector.load %arg1[%c16_401, %c0_402] : memref<144x512xf32, #tpu.memory_space<vmem>>, vector<16x512xf32>
    %383 = arith.mulf %381, %382 : vector<16x512xf32>
    %c16_403 = arith.constant 16 : index
    %c0_404 = arith.constant 0 : index
    %384 = vector.load %arg27[%c16_403, %c0_404] : memref<144x512xf32, #tpu.memory_space<vmem>>, vector<16x512xf32>
    tpu.vector_store %arg27[%c16_403, %c0_404], %383 {strides = array<i32>} : memref<144x512xf32, #tpu.memory_space<vmem>>, vector<16x512xf32>,
    %c0_405 = arith.constant 0 : index
    %c113_406 = arith.constant 113 : index
    %385 = vector.load %arg26[%c0_405, %c113_406] : memref<16x768xf32, #tpu.memory_space<vmem>>, vector<16x512xf32>
    %c32_407 = arith.constant 32 : index
    %c0_408 = arith.constant 0 : index
    %386 = vector.load %arg1[%c32_407, %c0_408] : memref<144x512xf32, #tpu.memory_space<vmem>>, vector<16x512xf32>
    %387 = arith.mulf %385, %386 : vector<16x512xf32>
    %c32_409 = arith.constant 32 : index
    %c0_410 = arith.constant 0 : index
    %388 = vector.load %arg27[%c32_409, %c0_410] : memref<144x512xf32, #tpu.memory_space<vmem>>, vector<16x512xf32>
    tpu.vector_store %arg27[%c32_409, %c0_410], %387 {strides = array<i32>} : memref<144x512xf32, #tpu.memory_space<vmem>>, vector<16x512xf32>,
    %c0_411 = arith.constant 0 : index
    %c127_412 = arith.constant 127 : index
    %389 = vector.load %arg26[%c0_411, %c127_412] : memref<16x768xf32, #tpu.memory_space<vmem>>, vector<16x512xf32>
    %c48_413 = arith.constant 48 : index
    %c0_414 = arith.constant 0 : index
    %390 = vector.load %arg1[%c48_413, %c0_414] : memref<144x512xf32, #tpu.memory_space<vmem>>, vector<16x512xf32>
    %391 = arith.mulf %389, %390 : vector<16x512xf32>
    %c48_415 = arith.constant 48 : index
    %c0_416 = arith.constant 0 : index
    %392 = vector.load %arg27[%c48_415, %c0_416] : memref<144x512xf32, #tpu.memory_space<vmem>>, vector<16x512xf32>
    tpu.vector_store %arg27[%c48_415, %c0_416], %391 {strides = array<i32>} : memref<144x512xf32, #tpu.memory_space<vmem>>, vector<16x512xf32>,
    %c0_417 = arith.constant 0 : index
    %c128_418 = arith.constant 128 : index
    %393 = vector.load %arg26[%c0_417, %c128_418] : memref<16x768xf32, #tpu.memory_space<vmem>>, vector<16x512xf32>
    %c64_419 = arith.constant 64 : index
    %c0_420 = arith.constant 0 : index
    %394 = vector.load %arg1[%c64_419, %c0_420] : memref<144x512xf32, #tpu.memory_space<vmem>>, vector<16x512xf32>
    %395 = arith.mulf %393, %394 : vector<16x512xf32>
    %c64_421 = arith.constant 64 : index
    %c0_422 = arith.constant 0 : index
    %396 = vector.load %arg27[%c64_421, %c0_422] : memref<144x512xf32, #tpu.memory_space<vmem>>, vector<16x512xf32>
    tpu.vector_store %arg27[%c64_421, %c0_422], %395 {strides = array<i32>} : memref<144x512xf32, #tpu.memory_space<vmem>>, vector<16x512xf32>,
    %c0_423 = arith.constant 0 : index
    %c129_424 = arith.constant 129 : index
    %397 = vector.load %arg26[%c0_423, %c129_424] : memref<16x768xf32, #tpu.memory_space<vmem>>, vector<16x512xf32>
    %c80_425 = arith.constant 80 : index
    %c0_426 = arith.constant 0 : index
    %398 = vector.load %arg1[%c80_425, %c0_426] : memref<144x512xf32, #tpu.memory_space<vmem>>, vector<16x512xf32>
    %399 = arith.mulf %397, %398 : vector<16x512xf32>
    %c80_427 = arith.constant 80 : index
    %c0_428 = arith.constant 0 : index
    %400 = vector.load %arg27[%c80_427, %c0_428] : memref<144x512xf32, #tpu.memory_space<vmem>>, vector<16x512xf32>
    tpu.vector_store %arg27[%c80_427, %c0_428], %399 {strides = array<i32>} : memref<144x512xf32, #tpu.memory_space<vmem>>, vector<16x512xf32>,
    %c0_429 = arith.constant 0 : index
    %c143_430 = arith.constant 143 : index
    %401 = vector.load %arg26[%c0_429, %c143_430] : memref<16x768xf32, #tpu.memory_space<vmem>>, vector<16x512xf32>
    %c96_431 = arith.constant 96 : index
    %c0_432 = arith.constant 0 : index
    %402 = vector.load %arg1[%c96_431, %c0_432] : memref<144x512xf32, #tpu.memory_space<vmem>>, vector<16x512xf32>
    %403 = arith.mulf %401, %402 : vector<16x512xf32>
    %c96_433 = arith.constant 96 : index
    %c0_434 = arith.constant 0 : index
    %404 = vector.load %arg27[%c96_433, %c0_434] : memref<144x512xf32, #tpu.memory_space<vmem>>, vector<16x512xf32>
    tpu.vector_store %arg27[%c96_433, %c0_434], %403 {strides = array<i32>} : memref<144x512xf32, #tpu.memory_space<vmem>>, vector<16x512xf32>,
    %c0_435 = arith.constant 0 : index
    %c144_436 = arith.constant 144 : index
    %405 = vector.load %arg26[%c0_435, %c144_436] : memref<16x768xf32, #tpu.memory_space<vmem>>, vector<16x512xf32>
    %c112_437 = arith.constant 112 : index
    %c0_438 = arith.constant 0 : index
    %406 = vector.load %arg1[%c112_437, %c0_438] : memref<144x512xf32, #tpu.memory_space<vmem>>, vector<16x512xf32>
    %407 = arith.mulf %405, %406 : vector<16x512xf32>
    %c112_439 = arith.constant 112 : index
    %c0_440 = arith.constant 0 : index
    %408 = vector.load %arg27[%c112_439, %c0_440] : memref<144x512xf32, #tpu.memory_space<vmem>>, vector<16x512xf32>
    tpu.vector_store %arg27[%c112_439, %c0_440], %407 {strides = array<i32>} : memref<144x512xf32, #tpu.memory_space<vmem>>, vector<16x512xf32>,
    %c0_441 = arith.constant 0 : index
    %c145_442 = arith.constant 145 : index
    %409 = vector.load %arg26[%c0_441, %c145_442] : memref<16x768xf32, #tpu.memory_space<vmem>>, vector<16x512xf32>
    %c128_443 = arith.constant 128 : index
    %c0_444 = arith.constant 0 : index
    %410 = vector.load %arg1[%c128_443, %c0_444] : memref<144x512xf32, #tpu.memory_space<vmem>>, vector<16x512xf32>
    %411 = arith.mulf %409, %410 : vector<16x512xf32>
    %c128_445 = arith.constant 128 : index
    %c0_446 = arith.constant 0 : index
    %412 = vector.load %arg27[%c128_445, %c0_446] : memref<144x512xf32, #tpu.memory_space<vmem>>, vector<16x512xf32>
    tpu.vector_store %arg27[%c128_445, %c0_446], %411 {strides = array<i32>} : memref<144x512xf32, #tpu.memory_space<vmem>>, vector<16x512xf32>,
    %c0_447 = arith.constant 0 : index
    %c0_448 = arith.constant 0 : index
    %413 = vector.load %arg27[%c0_447, %c0_448] : memref<144x512xf32, #tpu.memory_space<vmem>>, vector<144x512xf32>
    %cst_449 = arith.constant dense<0.000000e+00> : vector<16x512xf32>
    %414 = tpu.matmul %373, %413, %cst_449 {dimension_numbers = #tpu.dot_dimension_numbers<[1], [0], [0], [1], [0, 0, 1, 1], [], []>} : vector<16x144xf32>, vector<144x512xf32>, vector<16x512xf32> -> vector<16x512xf32>
    %415 = vector.broadcast %375 : vector<16x1xf32> to vector<16x512xf32>
    %416 = arith.addf %414, %415 : vector<16x512xf32>
    %cst_450 = arith.constant 0.000000e+00 : f32
    %417 = vector.broadcast %cst_450 : f32 to vector<16x512xf32>
    %418 = arith.maximumf %416, %417 : vector<16x512xf32>
    %c1_451 = arith.constant 1 : index
    %c0_452 = arith.constant 0 : index
    %c0_453 = arith.constant 0 : index
    %419 = vector.load %arg13[%c1_451, %c0_452, %c0_453] : memref<2x16x1xf32, #tpu.memory_space<vmem>>, vector<1x16x1xf32>
    %420 = vector.shape_cast %419 : vector<1x16x1xf32> to vector<16x1xf32>
    %c1_454 = arith.constant 1 : index
    %c0_455 = arith.constant 0 : index
    %c0_456 = arith.constant 0 : index
    %421 = vector.load %arg14[%c1_454, %c0_455, %c0_456] : memref<2x16x1xf32, #tpu.memory_space<vmem>>, vector<1x16x1xf32>
    %422 = vector.shape_cast %421 : vector<1x16x1xf32> to vector<16x1xf32>
    %cst_457 = arith.constant dense<0.000000e+00> : vector<16xf32>
    %423 = vector.multi_reduction <add>, %418, %cst_457 [1] : vector<16x512xf32> to vector<16xf32>
    %424 = vector.shape_cast %423 : vector<16xf32> to vector<16x1xf32>
    %cst_458 = arith.constant 0.001953125 : f32
    %425 = vector.broadcast %cst_458 : f32 to vector<16x1xf32>
    %426 = arith.mulf %424, %425 : vector<16x1xf32>
    %427 = arith.mulf %418, %418 : vector<16x512xf32>
    %cst_459 = arith.constant dense<0.000000e+00> : vector<16xf32>
    %428 = vector.multi_reduction <add>, %427, %cst_459 [1] : vector<16x512xf32> to vector<16xf32>
    %429 = vector.shape_cast %428 : vector<16xf32> to vector<16x1xf32>
    %cst_460 = arith.constant 0.001953125 : f32
    %430 = vector.broadcast %cst_460 : f32 to vector<16x1xf32>
    %431 = arith.mulf %429, %430 : vector<16x1xf32>
    %432 = arith.mulf %426, %426 : vector<16x1xf32>
    %433 = arith.subf %431, %432 : vector<16x1xf32>
    %cst_461 = arith.constant 9.99999974E-6 : f32
    %434 = vector.broadcast %cst_461 : f32 to vector<16x1xf32>
    %435 = arith.addf %433, %434 : vector<16x1xf32>
    %436 = math.rsqrt %435 : vector<16x1xf32>
    %437 = arith.mulf %436, %420 : vector<16x1xf32>
    %438 = vector.broadcast %437 : vector<16x1xf32> to vector<16x512xf32>
    %439 = arith.mulf %418, %438 : vector<16x512xf32>
    %440 = arith.mulf %426, %437 : vector<16x1xf32>
    %441 = arith.subf %422, %440 : vector<16x1xf32>
    %442 = vector.broadcast %441 : vector<16x1xf32> to vector<16x512xf32>
    %443 = arith.addf %439, %442 : vector<16x512xf32>
    %c0_462 = arith.constant 0 : index
    %c0_463 = arith.constant 0 : index
    %c0_464 = arith.constant 0 : index
    %444 = vector.load %arg15[%c0_462, %c0_463, %c0_464] : memref<2x8x144xf32, #tpu.memory_space<vmem>>, vector<1x8x144xf32>
    %445 = vector.shape_cast %444 : vector<1x8x144xf32> to vector<8x144xf32>
    %c0_465 = arith.constant 0 : index
    %c0_466 = arith.constant 0 : index
    %c0_467 = arith.constant 0 : index
    %446 = vector.load %arg16[%c0_465, %c0_466, %c0_467] : memref<2x8x1xf32, #tpu.memory_space<vmem>>, vector<1x8x1xf32>
    %447 = vector.shape_cast %446 : vector<1x8x1xf32> to vector<8x1xf32>
    %c0_468 = arith.constant 0 : index
    %c128_469 = arith.constant 128 : index
    %448 = vector.load %arg24[%c0_468, %c128_469] : memref<16x768xf32, #tpu.memory_space<vmem>>, vector<16x512xf32>
    tpu.vector_store %arg24[%c0_468, %c128_469], %371 {strides = array<i32>} : memref<16x768xf32, #tpu.memory_space<vmem>>, vector<16x512xf32>,
    %c0_470 = arith.constant 0 : index
    %c111_471 = arith.constant 111 : index
    %449 = vector.load %arg24[%c0_470, %c111_471] : memref<16x768xf32, #tpu.memory_space<vmem>>, vector<16x512xf32>
    %c0_472 = arith.constant 0 : index
    %c0_473 = arith.constant 0 : index
    %450 = vector.load %arg1[%c0_472, %c0_473] : memref<144x512xf32, #tpu.memory_space<vmem>>, vector<16x512xf32>
    %451 = arith.mulf %449, %450 : vector<16x512xf32>
    %c0_474 = arith.constant 0 : index
    %c0_475 = arith.constant 0 : index
    %452 = vector.load %arg25[%c0_474, %c0_475] : memref<144x512xf32, #tpu.memory_space<vmem>>, vector<16x512xf32>
    tpu.vector_store %arg25[%c0_474, %c0_475], %451 {strides = array<i32>} : memref<144x512xf32, #tpu.memory_space<vmem>>, vector<16x512xf32>,
    %c0_476 = arith.constant 0 : index
    %c112_477 = arith.constant 112 : index
    %453 = vector.load %arg24[%c0_476, %c112_477] : memref<16x768xf32, #tpu.memory_space<vmem>>, vector<16x512xf32>
    %c16_478 = arith.constant 16 : index
    %c0_479 = arith.constant 0 : index
    %454 = vector.load %arg1[%c16_478, %c0_479] : memref<144x512xf32, #tpu.memory_space<vmem>>, vector<16x512xf32>
    %455 = arith.mulf %453, %454 : vector<16x512xf32>
    %c16_480 = arith.constant 16 : index
    %c0_481 = arith.constant 0 : index
    %456 = vector.load %arg25[%c16_480, %c0_481] : memref<144x512xf32, #tpu.memory_space<vmem>>, vector<16x512xf32>
    tpu.vector_store %arg25[%c16_480, %c0_481], %455 {strides = array<i32>} : memref<144x512xf32, #tpu.memory_space<vmem>>, vector<16x512xf32>,
    %c0_482 = arith.constant 0 : index
    %c113_483 = arith.constant 113 : index
    %457 = vector.load %arg24[%c0_482, %c113_483] : memref<16x768xf32, #tpu.memory_space<vmem>>, vector<16x512xf32>
    %c32_484 = arith.constant 32 : index
    %c0_485 = arith.constant 0 : index
    %458 = vector.load %arg1[%c32_484, %c0_485] : memref<144x512xf32, #tpu.memory_space<vmem>>, vector<16x512xf32>
    %459 = arith.mulf %457, %458 : vector<16x512xf32>
    %c32_486 = arith.constant 32 : index
    %c0_487 = arith.constant 0 : index
    %460 = vector.load %arg25[%c32_486, %c0_487] : memref<144x512xf32, #tpu.memory_space<vmem>>, vector<16x512xf32>
    tpu.vector_store %arg25[%c32_486, %c0_487], %459 {strides = array<i32>} : memref<144x512xf32, #tpu.memory_space<vmem>>, vector<16x512xf32>,
    %c0_488 = arith.constant 0 : index
    %c127_489 = arith.constant 127 : index
    %461 = vector.load %arg24[%c0_488, %c127_489] : memref<16x768xf32, #tpu.memory_space<vmem>>, vector<16x512xf32>
    %c48_490 = arith.constant 48 : index
    %c0_491 = arith.constant 0 : index
    %462 = vector.load %arg1[%c48_490, %c0_491] : memref<144x512xf32, #tpu.memory_space<vmem>>, vector<16x512xf32>
    %463 = arith.mulf %461, %462 : vector<16x512xf32>
    %c48_492 = arith.constant 48 : index
    %c0_493 = arith.constant 0 : index
    %464 = vector.load %arg25[%c48_492, %c0_493] : memref<144x512xf32, #tpu.memory_space<vmem>>, vector<16x512xf32>
    tpu.vector_store %arg25[%c48_492, %c0_493], %463 {strides = array<i32>} : memref<144x512xf32, #tpu.memory_space<vmem>>, vector<16x512xf32>,
    %c0_494 = arith.constant 0 : index
    %c128_495 = arith.constant 128 : index
    %465 = vector.load %arg24[%c0_494, %c128_495] : memref<16x768xf32, #tpu.memory_space<vmem>>, vector<16x512xf32>
    %c64_496 = arith.constant 64 : index
    %c0_497 = arith.constant 0 : index
    %466 = vector.load %arg1[%c64_496, %c0_497] : memref<144x512xf32, #tpu.memory_space<vmem>>, vector<16x512xf32>
    %467 = arith.mulf %465, %466 : vector<16x512xf32>
    %c64_498 = arith.constant 64 : index
    %c0_499 = arith.constant 0 : index
    %468 = vector.load %arg25[%c64_498, %c0_499] : memref<144x512xf32, #tpu.memory_space<vmem>>, vector<16x512xf32>
    tpu.vector_store %arg25[%c64_498, %c0_499], %467 {strides = array<i32>} : memref<144x512xf32, #tpu.memory_space<vmem>>, vector<16x512xf32>,
    %c0_500 = arith.constant 0 : index
    %c129_501 = arith.constant 129 : index
    %469 = vector.load %arg24[%c0_500, %c129_501] : memref<16x768xf32, #tpu.memory_space<vmem>>, vector<16x512xf32>
    %c80_502 = arith.constant 80 : index
    %c0_503 = arith.constant 0 : index
    %470 = vector.load %arg1[%c80_502, %c0_503] : memref<144x512xf32, #tpu.memory_space<vmem>>, vector<16x512xf32>
    %471 = arith.mulf %469, %470 : vector<16x512xf32>
    %c80_504 = arith.constant 80 : index
    %c0_505 = arith.constant 0 : index
    %472 = vector.load %arg25[%c80_504, %c0_505] : memref<144x512xf32, #tpu.memory_space<vmem>>, vector<16x512xf32>
    tpu.vector_store %arg25[%c80_504, %c0_505], %471 {strides = array<i32>} : memref<144x512xf32, #tpu.memory_space<vmem>>, vector<16x512xf32>,
    %c0_506 = arith.constant 0 : index
    %c143_507 = arith.constant 143 : index
    %473 = vector.load %arg24[%c0_506, %c143_507] : memref<16x768xf32, #tpu.memory_space<vmem>>, vector<16x512xf32>
    %c96_508 = arith.constant 96 : index
    %c0_509 = arith.constant 0 : index
    %474 = vector.load %arg1[%c96_508, %c0_509] : memref<144x512xf32, #tpu.memory_space<vmem>>, vector<16x512xf32>
    %475 = arith.mulf %473, %474 : vector<16x512xf32>
    %c96_510 = arith.constant 96 : index
    %c0_511 = arith.constant 0 : index
    %476 = vector.load %arg25[%c96_510, %c0_511] : memref<144x512xf32, #tpu.memory_space<vmem>>, vector<16x512xf32>
    tpu.vector_store %arg25[%c96_510, %c0_511], %475 {strides = array<i32>} : memref<144x512xf32, #tpu.memory_space<vmem>>, vector<16x512xf32>,
    %c0_512 = arith.constant 0 : index
    %c144_513 = arith.constant 144 : index
    %477 = vector.load %arg24[%c0_512, %c144_513] : memref<16x768xf32, #tpu.memory_space<vmem>>, vector<16x512xf32>
    %c112_514 = arith.constant 112 : index
    %c0_515 = arith.constant 0 : index
    %478 = vector.load %arg1[%c112_514, %c0_515] : memref<144x512xf32, #tpu.memory_space<vmem>>, vector<16x512xf32>
    %479 = arith.mulf %477, %478 : vector<16x512xf32>
    %c112_516 = arith.constant 112 : index
    %c0_517 = arith.constant 0 : index
    %480 = vector.load %arg25[%c112_516, %c0_517] : memref<144x512xf32, #tpu.memory_space<vmem>>, vector<16x512xf32>
    tpu.vector_store %arg25[%c112_516, %c0_517], %479 {strides = array<i32>} : memref<144x512xf32, #tpu.memory_space<vmem>>, vector<16x512xf32>,
    %c0_518 = arith.constant 0 : index
    %c145_519 = arith.constant 145 : index
    %481 = vector.load %arg24[%c0_518, %c145_519] : memref<16x768xf32, #tpu.memory_space<vmem>>, vector<16x512xf32>
    %c128_520 = arith.constant 128 : index
    %c0_521 = arith.constant 0 : index
    %482 = vector.load %arg1[%c128_520, %c0_521] : memref<144x512xf32, #tpu.memory_space<vmem>>, vector<16x512xf32>
    %483 = arith.mulf %481, %482 : vector<16x512xf32>
    %c128_522 = arith.constant 128 : index
    %c0_523 = arith.constant 0 : index
    %484 = vector.load %arg25[%c128_522, %c0_523] : memref<144x512xf32, #tpu.memory_space<vmem>>, vector<16x512xf32>
    tpu.vector_store %arg25[%c128_522, %c0_523], %483 {strides = array<i32>} : memref<144x512xf32, #tpu.memory_space<vmem>>, vector<16x512xf32>,
    %c0_524 = arith.constant 0 : index
    %c0_525 = arith.constant 0 : index
    %485 = vector.load %arg25[%c0_524, %c0_525] : memref<144x512xf32, #tpu.memory_space<vmem>>, vector<144x512xf32>
    %cst_526 = arith.constant dense<0.000000e+00> : vector<8x512xf32>
    %486 = tpu.matmul %445, %485, %cst_526 {dimension_numbers = #tpu.dot_dimension_numbers<[1], [0], [0], [1], [0, 0, 1, 1], [], []>} : vector<8x144xf32>, vector<144x512xf32>, vector<8x512xf32> -> vector<8x512xf32>
    %487 = vector.broadcast %447 : vector<8x1xf32> to vector<8x512xf32>
    %488 = arith.addf %486, %487 : vector<8x512xf32>
    %cst_527 = arith.constant 0.000000e+00 : f32
    %489 = vector.broadcast %cst_527 : f32 to vector<8x512xf32>
    %490 = arith.maximumf %488, %489 : vector<8x512xf32>
    %c0_528 = arith.constant 0 : index
    %c0_529 = arith.constant 0 : index
    %c0_530 = arith.constant 0 : index
    %491 = vector.load %arg17[%c0_528, %c0_529, %c0_530] : memref<2x8x1xf32, #tpu.memory_space<vmem>>, vector<1x8x1xf32>
    %492 = vector.shape_cast %491 : vector<1x8x1xf32> to vector<8x1xf32>
    %c0_531 = arith.constant 0 : index
    %c0_532 = arith.constant 0 : index
    %c0_533 = arith.constant 0 : index
    %493 = vector.load %arg18[%c0_531, %c0_532, %c0_533] : memref<2x8x1xf32, #tpu.memory_space<vmem>>, vector<1x8x1xf32>
    %494 = vector.shape_cast %493 : vector<1x8x1xf32> to vector<8x1xf32>
    %cst_534 = arith.constant dense<0.000000e+00> : vector<8xf32>
    %495 = vector.multi_reduction <add>, %490, %cst_534 [1] : vector<8x512xf32> to vector<8xf32>
    %496 = vector.shape_cast %495 : vector<8xf32> to vector<8x1xf32>
    %cst_535 = arith.constant 0.001953125 : f32
    %497 = vector.broadcast %cst_535 : f32 to vector<8x1xf32>
    %498 = arith.mulf %496, %497 : vector<8x1xf32>
    %499 = arith.mulf %490, %490 : vector<8x512xf32>
    %cst_536 = arith.constant dense<0.000000e+00> : vector<8xf32>
    %500 = vector.multi_reduction <add>, %499, %cst_536 [1] : vector<8x512xf32> to vector<8xf32>
    %501 = vector.shape_cast %500 : vector<8xf32> to vector<8x1xf32>
    %cst_537 = arith.constant 0.001953125 : f32
    %502 = vector.broadcast %cst_537 : f32 to vector<8x1xf32>
    %503 = arith.mulf %501, %502 : vector<8x1xf32>
    %504 = arith.mulf %498, %498 : vector<8x1xf32>
    %505 = arith.subf %503, %504 : vector<8x1xf32>
    %cst_538 = arith.constant 9.99999974E-6 : f32
    %506 = vector.broadcast %cst_538 : f32 to vector<8x1xf32>
    %507 = arith.addf %505, %506 : vector<8x1xf32>
    %508 = math.rsqrt %507 : vector<8x1xf32>
    %509 = arith.mulf %508, %492 : vector<8x1xf32>
    %510 = vector.broadcast %509 : vector<8x1xf32> to vector<8x512xf32>
    %511 = arith.mulf %490, %510 : vector<8x512xf32>
    %512 = arith.mulf %498, %509 : vector<8x1xf32>
    %513 = arith.subf %494, %512 : vector<8x1xf32>
    %514 = vector.broadcast %513 : vector<8x1xf32> to vector<8x512xf32>
    %515 = arith.addf %511, %514 : vector<8x512xf32>
    %c1_539 = arith.constant 1 : index
    %c0_540 = arith.constant 0 : index
    %c0_541 = arith.constant 0 : index
    %516 = vector.load %arg15[%c1_539, %c0_540, %c0_541] : memref<2x8x144xf32, #tpu.memory_space<vmem>>, vector<1x8x144xf32>
    %517 = vector.shape_cast %516 : vector<1x8x144xf32> to vector<8x144xf32>
    %c1_542 = arith.constant 1 : index
    %c0_543 = arith.constant 0 : index
    %c0_544 = arith.constant 0 : index
    %518 = vector.load %arg16[%c1_542, %c0_543, %c0_544] : memref<2x8x1xf32, #tpu.memory_space<vmem>>, vector<1x8x1xf32>
    %519 = vector.shape_cast %518 : vector<1x8x1xf32> to vector<8x1xf32>
    %c0_545 = arith.constant 0 : index
    %c128_546 = arith.constant 128 : index
    %520 = vector.load %arg26[%c0_545, %c128_546] : memref<16x768xf32, #tpu.memory_space<vmem>>, vector<16x512xf32>
    tpu.vector_store %arg26[%c0_545, %c128_546], %443 {strides = array<i32>} : memref<16x768xf32, #tpu.memory_space<vmem>>, vector<16x512xf32>,
    %c0_547 = arith.constant 0 : index
    %c111_548 = arith.constant 111 : index
    %521 = vector.load %arg26[%c0_547, %c111_548] : memref<16x768xf32, #tpu.memory_space<vmem>>, vector<16x512xf32>
    %c0_549 = arith.constant 0 : index
    %c0_550 = arith.constant 0 : index
    %522 = vector.load %arg1[%c0_549, %c0_550] : memref<144x512xf32, #tpu.memory_space<vmem>>, vector<16x512xf32>
    %523 = arith.mulf %521, %522 : vector<16x512xf32>
    %c0_551 = arith.constant 0 : index
    %c0_552 = arith.constant 0 : index
    %524 = vector.load %arg27[%c0_551, %c0_552] : memref<144x512xf32, #tpu.memory_space<vmem>>, vector<16x512xf32>
    tpu.vector_store %arg27[%c0_551, %c0_552], %523 {strides = array<i32>} : memref<144x512xf32, #tpu.memory_space<vmem>>, vector<16x512xf32>,
    %c0_553 = arith.constant 0 : index
    %c112_554 = arith.constant 112 : index
    %525 = vector.load %arg26[%c0_553, %c112_554] : memref<16x768xf32, #tpu.memory_space<vmem>>, vector<16x512xf32>
    %c16_555 = arith.constant 16 : index
    %c0_556 = arith.constant 0 : index
    %526 = vector.load %arg1[%c16_555, %c0_556] : memref<144x512xf32, #tpu.memory_space<vmem>>, vector<16x512xf32>
    %527 = arith.mulf %525, %526 : vector<16x512xf32>
    %c16_557 = arith.constant 16 : index
    %c0_558 = arith.constant 0 : index
    %528 = vector.load %arg27[%c16_557, %c0_558] : memref<144x512xf32, #tpu.memory_space<vmem>>, vector<16x512xf32>
    tpu.vector_store %arg27[%c16_557, %c0_558], %527 {strides = array<i32>} : memref<144x512xf32, #tpu.memory_space<vmem>>, vector<16x512xf32>,
    %c0_559 = arith.constant 0 : index
    %c113_560 = arith.constant 113 : index
    %529 = vector.load %arg26[%c0_559, %c113_560] : memref<16x768xf32, #tpu.memory_space<vmem>>, vector<16x512xf32>
    %c32_561 = arith.constant 32 : index
    %c0_562 = arith.constant 0 : index
    %530 = vector.load %arg1[%c32_561, %c0_562] : memref<144x512xf32, #tpu.memory_space<vmem>>, vector<16x512xf32>
    %531 = arith.mulf %529, %530 : vector<16x512xf32>
    %c32_563 = arith.constant 32 : index
    %c0_564 = arith.constant 0 : index
    %532 = vector.load %arg27[%c32_563, %c0_564] : memref<144x512xf32, #tpu.memory_space<vmem>>, vector<16x512xf32>
    tpu.vector_store %arg27[%c32_563, %c0_564], %531 {strides = array<i32>} : memref<144x512xf32, #tpu.memory_space<vmem>>, vector<16x512xf32>,
    %c0_565 = arith.constant 0 : index
    %c127_566 = arith.constant 127 : index
    %533 = vector.load %arg26[%c0_565, %c127_566] : memref<16x768xf32, #tpu.memory_space<vmem>>, vector<16x512xf32>
    %c48_567 = arith.constant 48 : index
    %c0_568 = arith.constant 0 : index
    %534 = vector.load %arg1[%c48_567, %c0_568] : memref<144x512xf32, #tpu.memory_space<vmem>>, vector<16x512xf32>
    %535 = arith.mulf %533, %534 : vector<16x512xf32>
    %c48_569 = arith.constant 48 : index
    %c0_570 = arith.constant 0 : index
    %536 = vector.load %arg27[%c48_569, %c0_570] : memref<144x512xf32, #tpu.memory_space<vmem>>, vector<16x512xf32>
    tpu.vector_store %arg27[%c48_569, %c0_570], %535 {strides = array<i32>} : memref<144x512xf32, #tpu.memory_space<vmem>>, vector<16x512xf32>,
    %c0_571 = arith.constant 0 : index
    %c128_572 = arith.constant 128 : index
    %537 = vector.load %arg26[%c0_571, %c128_572] : memref<16x768xf32, #tpu.memory_space<vmem>>, vector<16x512xf32>
    %c64_573 = arith.constant 64 : index
    %c0_574 = arith.constant 0 : index
    %538 = vector.load %arg1[%c64_573, %c0_574] : memref<144x512xf32, #tpu.memory_space<vmem>>, vector<16x512xf32>
    %539 = arith.mulf %537, %538 : vector<16x512xf32>
    %c64_575 = arith.constant 64 : index
    %c0_576 = arith.constant 0 : index
    %540 = vector.load %arg27[%c64_575, %c0_576] : memref<144x512xf32, #tpu.memory_space<vmem>>, vector<16x512xf32>
    tpu.vector_store %arg27[%c64_575, %c0_576], %539 {strides = array<i32>} : memref<144x512xf32, #tpu.memory_space<vmem>>, vector<16x512xf32>,
    %c0_577 = arith.constant 0 : index
    %c129_578 = arith.constant 129 : index
    %541 = vector.load %arg26[%c0_577, %c129_578] : memref<16x768xf32, #tpu.memory_space<vmem>>, vector<16x512xf32>
    %c80_579 = arith.constant 80 : index
    %c0_580 = arith.constant 0 : index
    %542 = vector.load %arg1[%c80_579, %c0_580] : memref<144x512xf32, #tpu.memory_space<vmem>>, vector<16x512xf32>
    %543 = arith.mulf %541, %542 : vector<16x512xf32>
    %c80_581 = arith.constant 80 : index
    %c0_582 = arith.constant 0 : index
    %544 = vector.load %arg27[%c80_581, %c0_582] : memref<144x512xf32, #tpu.memory_space<vmem>>, vector<16x512xf32>
    tpu.vector_store %arg27[%c80_581, %c0_582], %543 {strides = array<i32>} : memref<144x512xf32, #tpu.memory_space<vmem>>, vector<16x512xf32>,
    %c0_583 = arith.constant 0 : index
    %c143_584 = arith.constant 143 : index
    %545 = vector.load %arg26[%c0_583, %c143_584] : memref<16x768xf32, #tpu.memory_space<vmem>>, vector<16x512xf32>
    %c96_585 = arith.constant 96 : index
    %c0_586 = arith.constant 0 : index
    %546 = vector.load %arg1[%c96_585, %c0_586] : memref<144x512xf32, #tpu.memory_space<vmem>>, vector<16x512xf32>
    %547 = arith.mulf %545, %546 : vector<16x512xf32>
    %c96_587 = arith.constant 96 : index
    %c0_588 = arith.constant 0 : index
    %548 = vector.load %arg27[%c96_587, %c0_588] : memref<144x512xf32, #tpu.memory_space<vmem>>, vector<16x512xf32>
    tpu.vector_store %arg27[%c96_587, %c0_588], %547 {strides = array<i32>} : memref<144x512xf32, #tpu.memory_space<vmem>>, vector<16x512xf32>,
    %c0_589 = arith.constant 0 : index
    %c144_590 = arith.constant 144 : index
    %549 = vector.load %arg26[%c0_589, %c144_590] : memref<16x768xf32, #tpu.memory_space<vmem>>, vector<16x512xf32>
    %c112_591 = arith.constant 112 : index
    %c0_592 = arith.constant 0 : index
    %550 = vector.load %arg1[%c112_591, %c0_592] : memref<144x512xf32, #tpu.memory_space<vmem>>, vector<16x512xf32>
    %551 = arith.mulf %549, %550 : vector<16x512xf32>
    %c112_593 = arith.constant 112 : index
    %c0_594 = arith.constant 0 : index
    %552 = vector.load %arg27[%c112_593, %c0_594] : memref<144x512xf32, #tpu.memory_space<vmem>>, vector<16x512xf32>
    tpu.vector_store %arg27[%c112_593, %c0_594], %551 {strides = array<i32>} : memref<144x512xf32, #tpu.memory_space<vmem>>, vector<16x512xf32>,
    %c0_595 = arith.constant 0 : index
    %c145_596 = arith.constant 145 : index
    %553 = vector.load %arg26[%c0_595, %c145_596] : memref<16x768xf32, #tpu.memory_space<vmem>>, vector<16x512xf32>
    %c128_597 = arith.constant 128 : index
    %c0_598 = arith.constant 0 : index
    %554 = vector.load %arg1[%c128_597, %c0_598] : memref<144x512xf32, #tpu.memory_space<vmem>>, vector<16x512xf32>
    %555 = arith.mulf %553, %554 : vector<16x512xf32>
    %c128_599 = arith.constant 128 : index
    %c0_600 = arith.constant 0 : index
    %556 = vector.load %arg27[%c128_599, %c0_600] : memref<144x512xf32, #tpu.memory_space<vmem>>, vector<16x512xf32>
    tpu.vector_store %arg27[%c128_599, %c0_600], %555 {strides = array<i32>} : memref<144x512xf32, #tpu.memory_space<vmem>>, vector<16x512xf32>,
    %c0_601 = arith.constant 0 : index
    %c0_602 = arith.constant 0 : index
    %557 = vector.load %arg27[%c0_601, %c0_602] : memref<144x512xf32, #tpu.memory_space<vmem>>, vector<144x512xf32>
    %cst_603 = arith.constant dense<0.000000e+00> : vector<8x512xf32>
    %558 = tpu.matmul %517, %557, %cst_603 {dimension_numbers = #tpu.dot_dimension_numbers<[1], [0], [0], [1], [0, 0, 1, 1], [], []>} : vector<8x144xf32>, vector<144x512xf32>, vector<8x512xf32> -> vector<8x512xf32>
    %559 = vector.broadcast %519 : vector<8x1xf32> to vector<8x512xf32>
    %560 = arith.addf %558, %559 : vector<8x512xf32>
    %cst_604 = arith.constant 0.000000e+00 : f32
    %561 = vector.broadcast %cst_604 : f32 to vector<8x512xf32>
    %562 = arith.maximumf %560, %561 : vector<8x512xf32>
    %c1_605 = arith.constant 1 : index
    %c0_606 = arith.constant 0 : index
    %c0_607 = arith.constant 0 : index
    %563 = vector.load %arg17[%c1_605, %c0_606, %c0_607] : memref<2x8x1xf32, #tpu.memory_space<vmem>>, vector<1x8x1xf32>
    %564 = vector.shape_cast %563 : vector<1x8x1xf32> to vector<8x1xf32>
    %c1_608 = arith.constant 1 : index
    %c0_609 = arith.constant 0 : index
    %c0_610 = arith.constant 0 : index
    %565 = vector.load %arg18[%c1_608, %c0_609, %c0_610] : memref<2x8x1xf32, #tpu.memory_space<vmem>>, vector<1x8x1xf32>
    %566 = vector.shape_cast %565 : vector<1x8x1xf32> to vector<8x1xf32>
    %cst_611 = arith.constant dense<0.000000e+00> : vector<8xf32>
    %567 = vector.multi_reduction <add>, %562, %cst_611 [1] : vector<8x512xf32> to vector<8xf32>
    %568 = vector.shape_cast %567 : vector<8xf32> to vector<8x1xf32>
    %cst_612 = arith.constant 0.001953125 : f32
    %569 = vector.broadcast %cst_612 : f32 to vector<8x1xf32>
    %570 = arith.mulf %568, %569 : vector<8x1xf32>
    %571 = arith.mulf %562, %562 : vector<8x512xf32>
    %cst_613 = arith.constant dense<0.000000e+00> : vector<8xf32>
    %572 = vector.multi_reduction <add>, %571, %cst_613 [1] : vector<8x512xf32> to vector<8xf32>
    %573 = vector.shape_cast %572 : vector<8xf32> to vector<8x1xf32>
    %cst_614 = arith.constant 0.001953125 : f32
    %574 = vector.broadcast %cst_614 : f32 to vector<8x1xf32>
    %575 = arith.mulf %573, %574 : vector<8x1xf32>
    %576 = arith.mulf %570, %570 : vector<8x1xf32>
    %577 = arith.subf %575, %576 : vector<8x1xf32>
    %cst_615 = arith.constant 9.99999974E-6 : f32
    %578 = vector.broadcast %cst_615 : f32 to vector<8x1xf32>
    %579 = arith.addf %577, %578 : vector<8x1xf32>
    %580 = math.rsqrt %579 : vector<8x1xf32>
    %581 = arith.mulf %580, %564 : vector<8x1xf32>
    %582 = vector.broadcast %581 : vector<8x1xf32> to vector<8x512xf32>
    %583 = arith.mulf %562, %582 : vector<8x512xf32>
    %584 = arith.mulf %570, %581 : vector<8x1xf32>
    %585 = arith.subf %566, %584 : vector<8x1xf32>
    %586 = vector.broadcast %585 : vector<8x1xf32> to vector<8x512xf32>
    %587 = arith.addf %583, %586 : vector<8x512xf32>
    %c0_616 = arith.constant 0 : index
    %c0_617 = arith.constant 0 : index
    %588 = vector.load %arg19[%c0_616, %c0_617] : memref<3x8xf32, #tpu.memory_space<vmem>>, vector<3x8xf32>
    %c0_618 = arith.constant 0 : index
    %c0_619 = arith.constant 0 : index
    %589 = vector.load %arg20[%c0_618, %c0_619] : memref<3x1xf32, #tpu.memory_space<vmem>>, vector<3x1xf32>
    %cst_620 = arith.constant dense<0.000000e+00> : vector<3x512xf32>
    %590 = tpu.matmul %588, %515, %cst_620 {dimension_numbers = #tpu.dot_dimension_numbers<[1], [0], [0], [1], [0, 0, 1, 1], [], []>} : vector<3x8xf32>, vector<8x512xf32>, vector<3x512xf32> -> vector<3x512xf32>
    %591 = vector.broadcast %589 : vector<3x1xf32> to vector<3x512xf32>
    %592 = arith.addf %590, %591 : vector<3x512xf32>
    %c0_621 = arith.constant 0 : index
    %c0_622 = arith.constant 0 : index
    %593 = vector.load %arg21[%c0_621, %c0_622] : memref<3x1xf32, #tpu.memory_space<vmem>>, vector<3x1xf32>
    %c0_623 = arith.constant 0 : index
    %c0_624 = arith.constant 0 : index
    %594 = vector.load %arg22[%c0_623, %c0_624] : memref<3x1xf32, #tpu.memory_space<vmem>>, vector<3x1xf32>
    %cst_625 = arith.constant dense<0.000000e+00> : vector<3xf32>
    %595 = vector.multi_reduction <add>, %592, %cst_625 [1] : vector<3x512xf32> to vector<3xf32>
    %596 = vector.shape_cast %595 : vector<3xf32> to vector<3x1xf32>
    %cst_626 = arith.constant 0.001953125 : f32
    %597 = vector.broadcast %cst_626 : f32 to vector<3x1xf32>
    %598 = arith.mulf %596, %597 : vector<3x1xf32>
    %599 = arith.mulf %592, %592 : vector<3x512xf32>
    %cst_627 = arith.constant dense<0.000000e+00> : vector<3xf32>
    %600 = vector.multi_reduction <add>, %599, %cst_627 [1] : vector<3x512xf32> to vector<3xf32>
    %601 = vector.shape_cast %600 : vector<3xf32> to vector<3x1xf32>
    %cst_628 = arith.constant 0.001953125 : f32
    %602 = vector.broadcast %cst_628 : f32 to vector<3x1xf32>
    %603 = arith.mulf %601, %602 : vector<3x1xf32>
    %604 = arith.mulf %598, %598 : vector<3x1xf32>
    %605 = arith.subf %603, %604 : vector<3x1xf32>
    %cst_629 = arith.constant 9.99999974E-6 : f32
    %606 = vector.broadcast %cst_629 : f32 to vector<3x1xf32>
    %607 = arith.addf %605, %606 : vector<3x1xf32>
    %608 = math.rsqrt %607 : vector<3x1xf32>
    %609 = arith.mulf %608, %593 : vector<3x1xf32>
    %610 = vector.broadcast %609 : vector<3x1xf32> to vector<3x512xf32>
    %611 = arith.mulf %592, %610 : vector<3x512xf32>
    %612 = arith.mulf %598, %609 : vector<3x1xf32>
    %613 = arith.subf %594, %612 : vector<3x1xf32>
    %614 = vector.broadcast %613 : vector<3x1xf32> to vector<3x512xf32>
    %615 = arith.addf %611, %614 : vector<3x512xf32>
    %cst_630 = arith.constant dense<0.000000e+00> : vector<3x512xf32>
    %616 = tpu.matmul %588, %587, %cst_630 {dimension_numbers = #tpu.dot_dimension_numbers<[1], [0], [0], [1], [0, 0, 1, 1], [], []>} : vector<3x8xf32>, vector<8x512xf32>, vector<3x512xf32> -> vector<3x512xf32>
    %617 = vector.broadcast %589 : vector<3x1xf32> to vector<3x512xf32>
    %618 = arith.addf %616, %617 : vector<3x512xf32>
    %c0_631 = arith.constant 0 : index
    %c0_632 = arith.constant 0 : index
    %619 = vector.load %arg21[%c0_631, %c0_632] : memref<3x1xf32, #tpu.memory_space<vmem>>, vector<3x1xf32>
    %c0_633 = arith.constant 0 : index
    %c0_634 = arith.constant 0 : index
    %620 = vector.load %arg22[%c0_633, %c0_634] : memref<3x1xf32, #tpu.memory_space<vmem>>, vector<3x1xf32>
    %cst_635 = arith.constant dense<0.000000e+00> : vector<3xf32>
    %621 = vector.multi_reduction <add>, %618, %cst_635 [1] : vector<3x512xf32> to vector<3xf32>
    %622 = vector.shape_cast %621 : vector<3xf32> to vector<3x1xf32>
    %cst_636 = arith.constant 0.001953125 : f32
    %623 = vector.broadcast %cst_636 : f32 to vector<3x1xf32>
    %624 = arith.mulf %622, %623 : vector<3x1xf32>
    %625 = arith.mulf %618, %618 : vector<3x512xf32>
    %cst_637 = arith.constant dense<0.000000e+00> : vector<3xf32>
    %626 = vector.multi_reduction <add>, %625, %cst_637 [1] : vector<3x512xf32> to vector<3xf32>
    %627 = vector.shape_cast %626 : vector<3xf32> to vector<3x1xf32>
    %cst_638 = arith.constant 0.001953125 : f32
    %628 = vector.broadcast %cst_638 : f32 to vector<3x1xf32>
    %629 = arith.mulf %627, %628 : vector<3x1xf32>
    %630 = arith.mulf %624, %624 : vector<3x1xf32>
    %631 = arith.subf %629, %630 : vector<3x1xf32>
    %cst_639 = arith.constant 9.99999974E-6 : f32
    %632 = vector.broadcast %cst_639 : f32 to vector<3x1xf32>
    %633 = arith.addf %631, %632 : vector<3x1xf32>
    %634 = math.rsqrt %633 : vector<3x1xf32>
    %635 = arith.mulf %634, %619 : vector<3x1xf32>
    %636 = vector.broadcast %635 : vector<3x1xf32> to vector<3x512xf32>
    %637 = arith.mulf %618, %636 : vector<3x512xf32>
    %638 = arith.mulf %624, %635 : vector<3x1xf32>
    %639 = arith.subf %620, %638 : vector<3x1xf32>
    %640 = vector.broadcast %639 : vector<3x1xf32> to vector<3x512xf32>
    %641 = arith.addf %637, %640 : vector<3x512xf32>
    %c0_640 = arith.constant 0 : index
    %c0_641 = arith.constant 0 : index
    %c0_642 = arith.constant 0 : index
    %642 = vector.load %arg23[%c0_640, %c0_641, %c0_642] : memref<2x3x512xf32, #tpu.memory_space<vmem>>, vector<1x3x512xf32>
    %643 = vector.shape_cast %642 : vector<1x3x512xf32> to vector<3x512xf32>
    %644 = vector.shape_cast %615 : vector<3x512xf32> to vector<1x3x512xf32>
    tpu.vector_store %arg23[%c0_640, %c0_641, %c0_642], %644 {strides = array<i32>} : memref<2x3x512xf32, #tpu.memory_space<vmem>>, vector<1x3x512xf32>,
    %c1_643 = arith.constant 1 : index
    %c0_644 = arith.constant 0 : index
    %c0_645 = arith.constant 0 : index
    %645 = vector.load %arg23[%c1_643, %c0_644, %c0_645] : memref<2x3x512xf32, #tpu.memory_space<vmem>>, vector<1x3x512xf32>
    %646 = vector.shape_cast %645 : vector<1x3x512xf32> to vector<3x512xf32>
    %647 = vector.shape_cast %641 : vector<3x512xf32> to vector<1x3x512xf32>
    tpu.vector_store %arg23[%c1_643, %c0_644, %c0_645], %647 {strides = array<i32>} : memref<2x3x512xf32, #tpu.memory_space<vmem>>, vector<1x3x512xf32>,
    return
  }
  func.func @transform_0(%arg0: i32) -> (i32, i32) {
    %c0_i32 = arith.constant 0 : i32
    %c0_i32_0 = arith.constant 0 : i32
    %c0_i32_1 = arith.constant 0 : i32
    return %c0_i32, %c0_i32_0 : i32, i32
  }
  func.func @transform_1(%arg0: i32) -> (i32, i32, i32) {
    %c0_i32 = arith.constant 0 : i32
    %c0_i32_0 = arith.constant 0 : i32
    %c0_i32_1 = arith.constant 0 : i32
    %c0_i32_2 = arith.constant 0 : i32
    return %c0_i32, %c0_i32_0, %c0_i32_1 : i32, i32, i32
  }
  func.func @transform_2(%arg0: i32) -> (i32, i32, i32) {
    %c0_i32 = arith.constant 0 : i32
    %c0_i32_0 = arith.constant 0 : i32
    %c0_i32_1 = arith.constant 0 : i32
    %c0_i32_2 = arith.constant 0 : i32
    return %c0_i32, %c0_i32_0, %c0_i32_1 : i32, i32, i32
  }
  func.func @transform_3(%arg0: i32) -> (i32, i32, i32) {
    %c0_i32 = arith.constant 0 : i32
    %c0_i32_0 = arith.constant 0 : i32
    %c0_i32_1 = arith.constant 0 : i32
    %c0_i32_2 = arith.constant 0 : i32
    return %c0_i32, %c0_i32_0, %c0_i32_1 : i32, i32, i32
  }
  func.func @transform_4(%arg0: i32) -> (i32, i32, i32) {
    %c0_i32 = arith.constant 0 : i32
    %c0_i32_0 = arith.constant 0 : i32
    %c0_i32_1 = arith.constant 0 : i32
    %c0_i32_2 = arith.constant 0 : i32
    return %c0_i32, %c0_i32_0, %c0_i32_1 : i32, i32, i32
  }
  func.func @transform_5(%arg0: i32) -> (i32, i32, i32) {
    %c0_i32 = arith.constant 0 : i32
    %c0_i32_0 = arith.constant 0 : i32
    %c0_i32_1 = arith.constant 0 : i32
    %c0_i32_2 = arith.constant 0 : i32
    return %c0_i32, %c0_i32_0, %c0_i32_1 : i32, i32, i32
  }
  func.func @transform_6(%arg0: i32) -> (i32, i32, i32) {
    %c0_i32 = arith.constant 0 : i32
    %c0_i32_0 = arith.constant 0 : i32
    %c0_i32_1 = arith.constant 0 : i32
    %c0_i32_2 = arith.constant 0 : i32
    return %c0_i32, %c0_i32_0, %c0_i32_1 : i32, i32, i32
  }
  func.func @transform_7(%arg0: i32) -> (i32, i32, i32) {
    %c0_i32 = arith.constant 0 : i32
    %c0_i32_0 = arith.constant 0 : i32
    %c0_i32_1 = arith.constant 0 : i32
    %c0_i32_2 = arith.constant 0 : i32
    return %c0_i32, %c0_i32_0, %c0_i32_1 : i32, i32, i32
  }
  func.func @transform_8(%arg0: i32) -> (i32, i32, i32) {
    %c0_i32 = arith.constant 0 : i32
    %c0_i32_0 = arith.constant 0 : i32
    %c0_i32_1 = arith.constant 0 : i32
    %c0_i32_2 = arith.constant 0 : i32
    return %c0_i32, %c0_i32_0, %c0_i32_1 : i32, i32, i32
  }
  func.func @transform_9(%arg0: i32) -> (i32, i32, i32) {
    %c0_i32 = arith.constant 0 : i32
    %c0_i32_0 = arith.constant 0 : i32
    %c0_i32_1 = arith.constant 0 : i32
    %c0_i32_2 = arith.constant 0 : i32
    return %c0_i32, %c0_i32_0, %c0_i32_1 : i32, i32, i32
  }
  func.func @transform_10(%arg0: i32) -> (i32, i32, i32) {
    %c0_i32 = arith.constant 0 : i32
    %c0_i32_0 = arith.constant 0 : i32
    %c0_i32_1 = arith.constant 0 : i32
    %c0_i32_2 = arith.constant 0 : i32
    return %c0_i32, %c0_i32_0, %c0_i32_1 : i32, i32, i32
  }
  func.func @transform_11(%arg0: i32) -> (i32, i32, i32) {
    %c0_i32 = arith.constant 0 : i32
    %c0_i32_0 = arith.constant 0 : i32
    %c0_i32_1 = arith.constant 0 : i32
    %c0_i32_2 = arith.constant 0 : i32
    return %c0_i32, %c0_i32_0, %c0_i32_1 : i32, i32, i32
  }
  func.func @transform_12(%arg0: i32) -> (i32, i32, i32) {
    %c0_i32 = arith.constant 0 : i32
    %c0_i32_0 = arith.constant 0 : i32
    %c0_i32_1 = arith.constant 0 : i32
    %c0_i32_2 = arith.constant 0 : i32
    return %c0_i32, %c0_i32_0, %c0_i32_1 : i32, i32, i32
  }
  func.func @transform_13(%arg0: i32) -> (i32, i32, i32) {
    %c0_i32 = arith.constant 0 : i32
    %c0_i32_0 = arith.constant 0 : i32
    %c0_i32_1 = arith.constant 0 : i32
    %c0_i32_2 = arith.constant 0 : i32
    return %c0_i32, %c0_i32_0, %c0_i32_1 : i32, i32, i32
  }
  func.func @transform_14(%arg0: i32) -> (i32, i32, i32) {
    %c0_i32 = arith.constant 0 : i32
    %c0_i32_0 = arith.constant 0 : i32
    %c0_i32_1 = arith.constant 0 : i32
    %c0_i32_2 = arith.constant 0 : i32
    return %c0_i32, %c0_i32_0, %c0_i32_1 : i32, i32, i32
  }
  func.func @transform_15(%arg0: i32) -> (i32, i32, i32) {
    %c0_i32 = arith.constant 0 : i32
    %c0_i32_0 = arith.constant 0 : i32
    %c0_i32_1 = arith.constant 0 : i32
    %c0_i32_2 = arith.constant 0 : i32
    return %c0_i32, %c0_i32_0, %c0_i32_1 : i32, i32, i32
  }
  func.func @transform_16(%arg0: i32) -> (i32, i32, i32) {
    %c0_i32 = arith.constant 0 : i32
    %c0_i32_0 = arith.constant 0 : i32
    %c0_i32_1 = arith.constant 0 : i32
    %c0_i32_2 = arith.constant 0 : i32
    return %c0_i32, %c0_i32_0, %c0_i32_1 : i32, i32, i32
  }
  func.func @transform_17(%arg0: i32) -> (i32, i32, i32) {
    %c0_i32 = arith.constant 0 : i32
    %c0_i32_0 = arith.constant 0 : i32
    %c0_i32_1 = arith.constant 0 : i32
    %c0_i32_2 = arith.constant 0 : i32
    return %c0_i32, %c0_i32_0, %c0_i32_1 : i32, i32, i32
  }
  func.func @transform_18(%arg0: i32) -> (i32, i32) {
    %c0_i32 = arith.constant 0 : i32
    %c0_i32_0 = arith.constant 0 : i32
    %c0_i32_1 = arith.constant 0 : i32
    return %c0_i32, %c0_i32_0 : i32, i32
  }
  func.func @transform_19(%arg0: i32) -> (i32, i32) {
    %c0_i32 = arith.constant 0 : i32
    %c0_i32_0 = arith.constant 0 : i32
    %c0_i32_1 = arith.constant 0 : i32
    return %c0_i32, %c0_i32_0 : i32, i32
  }
  func.func @transform_20(%arg0: i32) -> (i32, i32) {
    %c0_i32 = arith.constant 0 : i32
    %c0_i32_0 = arith.constant 0 : i32
    %c0_i32_1 = arith.constant 0 : i32
    return %c0_i32, %c0_i32_0 : i32, i32
  }
  func.func @transform_21(%arg0: i32) -> (i32, i32) {
    %c0_i32 = arith.constant 0 : i32
    %c0_i32_0 = arith.constant 0 : i32
    %c0_i32_1 = arith.constant 0 : i32
    return %c0_i32, %c0_i32_0 : i32, i32
  }
  func.func @transform_22(%arg0: i32) -> (i32, i32, i32) {
    %c0_i32 = arith.constant 0 : i32
    %c0_i32_0 = arith.constant 0 : i32
    %c0_i32_1 = arith.constant 0 : i32
    %c0_i32_2 = arith.constant 0 : i32
    return %c0_i32, %c0_i32_0, %c0_i32_1 : i32, i32, i32
  }
}

</mosaic_0001>

<llo_original>
// kernel: model_forward.1
$region0: #{model_forward.1}
  #allocation0 [shape = 'u32[]', space=smem, size = 0x4, offset = 0x4, fixed_abs, tag = 'smem constant byte address 0x4 - core index']
  #allocation1 [shape = 'u32[144,128]{1,0:T(1,128)}', space=vmem, size = 0x12000, scoped, tag = 'internal scratch']
  #allocation2 [shape = 'f32[16,768]{1,0:T(8,128)}', space=vmem, size = 0xc000, scoped, tag = 'scratch operand']
  #allocation3 [shape = 'f32[144,512]{1,0:T(8,128)}', space=vmem, size = 0x48000, scoped, tag = 'scratch operand']
  #allocation4 [shape = 'f32[16,768]{1,0:T(8,128)}', space=vmem, size = 0xc000, scoped, tag = 'scratch operand']
  #allocation5 [shape = 'f32[144,512]{1,0:T(8,128)}', space=vmem, size = 0x48000, scoped, tag = 'scratch operand']
  %s0 = inlined_call_operand.vmem [shape: f32[144,512], index: 0, kind: input, shape index: {}]
  %s1 = inlined_call_operand.vmem [shape: f32[2,4,512], index: 1, kind: input, shape index: {}]
  %s2 = inlined_call_operand.vmem [shape: f32[2,8,144], index: 2, kind: input, shape index: {}]
  %s3 = inlined_call_operand.vmem [shape: f32[2,8,1], index: 3, kind: input, shape index: {}, may-alias: {3,15}]
  %s4 = inlined_call_operand.vmem [shape: f32[2,8,1], index: 4, kind: input, shape index: {}, may-alias: {4,16}]
  %s5 = inlined_call_operand.vmem [shape: f32[2,8,1], index: 5, kind: input, shape index: {}, may-alias: {5,17}]
  %s6 = inlined_call_operand.vmem [shape: f32[2,16,144], index: 6, kind: input, shape index: {}]
  %s7 = inlined_call_operand.vmem [shape: f32[2,16,1], index: 7, kind: input, shape index: {}, may-alias: {7,11}]
  %s8 = inlined_call_operand.vmem [shape: f32[2,16,1], index: 8, kind: input, shape index: {}, may-alias: {8,12}]
  %s9 = inlined_call_operand.vmem [shape: f32[2,16,1], index: 9, kind: input, shape index: {}, may-alias: {9,13}]
  %s10 = inlined_call_operand.vmem [shape: f32[2,16,144], index: 10, kind: input, shape index: {}]
  %s11 = inlined_call_operand.vmem [shape: f32[2,16,1], index: 11, kind: input, shape index: {}, may-alias: {7,11}]
  %s12 = inlined_call_operand.vmem [shape: f32[2,16,1], index: 12, kind: input, shape index: {}, may-alias: {8,12}]
  %s13 = inlined_call_operand.vmem [shape: f32[2,16,1], index: 13, kind: input, shape index: {}, may-alias: {9,13}]
  %s14 = inlined_call_operand.vmem [shape: f32[2,8,144], index: 14, kind: input, shape index: {}]
  %s15 = inlined_call_operand.vmem [shape: f32[2,8,1], index: 15, kind: input, shape index: {}, may-alias: {3,15}]
  %s16 = inlined_call_operand.vmem [shape: f32[2,8,1], index: 16, kind: input, shape index: {}, may-alias: {4,16}]
  %s17 = inlined_call_operand.vmem [shape: f32[2,8,1], index: 17, kind: input, shape index: {}, may-alias: {5,17}]
  %s18 = inlined_call_operand.vmem [shape: f32[3,8], index: 18, kind: input, shape index: {}]
  %s19 = inlined_call_operand.vmem [shape: f32[3,1], index: 19, kind: input, shape index: {}]
  %s20 = inlined_call_operand.vmem [shape: f32[3,1], index: 20, kind: input, shape index: {}]
  %s21 = inlined_call_operand.vmem [shape: f32[3,1], index: 21, kind: input, shape index: {}]
  %s22 = inlined_call_operand.vmem [shape: f32[2,3,512], index: 22, kind: output, shape index: {}]
  %s23 = sld [smem:[#allocation0]]
  $region98: #{model_forward.1} parent=0
    _
  %s25 = ssub.s32 1, %s23
  %s26 = scalar_select 0, %s25, %s23
  // Predicated region
  $region2: #{model_forward.1} parent=0 // pred_check
    _
  $region3: #{model_forward.1} parent=0 // pred_check_branch
    %28 = sbr.rel (0) target = $region5
  $region4: #{model_forward.1} parent=0 // pred_region
    _
  $region5: #{model_forward.1} parent=0 // pred_fallthru
    _
  // Predicated region
  $region6: #{model_forward.1} parent=0 // pred_check
    _
  $region7: #{model_forward.1} parent=0 // pred_check_branch
    %30 = sbr.rel (0) target = $region9
  $region8: #{model_forward.1} parent=0 // pred_region
    _
  $region9: #{model_forward.1} parent=0 // pred_fallthru
    _
  // Predicated region
  $region10: #{model_forward.1} parent=0 // pred_check
    _
  $region11: #{model_forward.1} parent=0 // pred_check_branch
    %32 = sbr.rel (0) target = $region13
  $region12: #{model_forward.1} parent=0 // pred_region
    _
  $region13: #{model_forward.1} parent=0 // pred_fallthru
    _
  // Predicated region
  $region14: #{model_forward.1} parent=0 // pred_check
    _
  $region15: #{model_forward.1} parent=0 // pred_check_branch
    %34 = sbr.rel (0) target = $region17
  $region16: #{model_forward.1} parent=0 // pred_region
    _
  $region17: #{model_forward.1} parent=0 // pred_fallthru
    _
  // Predicated region
  $region18: #{model_forward.1} parent=0 // pred_check
    _
  $region19: #{model_forward.1} parent=0 // pred_check_branch
    %36 = sbr.rel (0) target = $region21
  $region20: #{model_forward.1} parent=0 // pred_region
    _
  $region21: #{model_forward.1} parent=0 // pred_fallthru
    _
  // Predicated region
  $region22: #{model_forward.1} parent=0 // pred_check
    _
  $region23: #{model_forward.1} parent=0 // pred_check_branch
    %38 = sbr.rel (0) target = $region25
  $region24: #{model_forward.1} parent=0 // pred_region
    _
  $region25: #{model_forward.1} parent=0 // pred_fallthru
    _
  // Predicated region
  $region26: #{model_forward.1} parent=0 // pred_check
    _
  $region27: #{model_forward.1} parent=0 // pred_check_branch
    %40 = sbr.rel (0) target = $region29
  $region28: #{model_forward.1} parent=0 // pred_region
    _
  $region29: #{model_forward.1} parent=0 // pred_fallthru
    _
  // Predicated region
  $region30: #{model_forward.1} parent=0 // pred_check
    _
  $region31: #{model_forward.1} parent=0 // pred_check_branch
    %42 = sbr.rel (0) target = $region33
  $region32: #{model_forward.1} parent=0 // pred_region
    _
  $region33: #{model_forward.1} parent=0 // pred_fallthru
    _
  // Predicated region
  $region34: #{model_forward.1} parent=0 // pred_check
    _
  $region35: #{model_forward.1} parent=0 // pred_check_branch
    %44 = sbr.rel (0) target = $region37
  $region36: #{model_forward.1} parent=0 // pred_region
    _
  $region37: #{model_forward.1} parent=0 // pred_fallthru
    _
  // Predicated region
  $region38: #{model_forward.1} parent=0 // pred_check
    _
  $region39: #{model_forward.1} parent=0 // pred_check_branch
    %46 = sbr.rel (0) target = $region41
  $region40: #{model_forward.1} parent=0 // pred_region
    _
  $region41: #{model_forward.1} parent=0 // pred_fallthru
    _
  // Predicated region
  $region42: #{model_forward.1} parent=0 // pred_check
    _
  $region43: #{model_forward.1} parent=0 // pred_check_branch
    %48 = sbr.rel (0) target = $region45
  $region44: #{model_forward.1} parent=0 // pred_region
    _
  $region45: #{model_forward.1} parent=0 // pred_fallthru
    _
  // Predicated region
  $region46: #{model_forward.1} parent=0 // pred_check
    _
  $region47: #{model_forward.1} parent=0 // pred_check_branch
    %50 = sbr.rel (0) target = $region49
  $region48: #{model_forward.1} parent=0 // pred_region
    _
  $region49: #{model_forward.1} parent=0 // pred_fallthru
    _
  // Predicated region
  $region50: #{model_forward.1} parent=0 // pred_check
    _
  $region51: #{model_forward.1} parent=0 // pred_check_branch
    %52 = sbr.rel (0) target = $region53
  $region52: #{model_forward.1} parent=0 // pred_region
    _
  $region53: #{model_forward.1} parent=0 // pred_fallthru
    _
  // Predicated region
  $region54: #{model_forward.1} parent=0 // pred_check
    _
  $region55: #{model_forward.1} parent=0 // pred_check_branch
    %54 = sbr.rel (0) target = $region57
  $region56: #{model_forward.1} parent=0 // pred_region
    _
  $region57: #{model_forward.1} parent=0 // pred_fallthru
    _
  // Predicated region
  $region58: #{model_forward.1} parent=0 // pred_check
    _
  $region59: #{model_forward.1} parent=0 // pred_check_branch
    %56 = sbr.rel (0) target = $region61
  $region60: #{model_forward.1} parent=0 // pred_region
    _
  $region61: #{model_forward.1} parent=0 // pred_fallthru
    _
  // Predicated region
  $region62: #{model_forward.1} parent=0 // pred_check
    _
  $region63: #{model_forward.1} parent=0 // pred_check_branch
    %58 = sbr.rel (0) target = $region65
  $region64: #{model_forward.1} parent=0 // pred_region
    _
  $region65: #{model_forward.1} parent=0 // pred_fallthru
    _
  // Predicated region
  $region66: #{model_forward.1} parent=0 // pred_check
    _
  $region67: #{model_forward.1} parent=0 // pred_check_branch
    %60 = sbr.rel (0) target = $region69
  $region68: #{model_forward.1} parent=0 // pred_region
    _
  $region69: #{model_forward.1} parent=0 // pred_fallthru
    _
  // Predicated region
  $region70: #{model_forward.1} parent=0 // pred_check
    _
  $region71: #{model_forward.1} parent=0 // pred_check_branch
    %62 = sbr.rel (0) target = $region73
  $region72: #{model_forward.1} parent=0 // pred_region
    _
  $region73: #{model_forward.1} parent=0 // pred_fallthru
    _
  // Predicated region
  $region74: #{model_forward.1} parent=0 // pred_check
    _
  $region75: #{model_forward.1} parent=0 // pred_check_branch
    %64 = sbr.rel (0) target = $region77
  $region76: #{model_forward.1} parent=0 // pred_region
    _
  $region77: #{model_forward.1} parent=0 // pred_fallthru
    _
  // Predicated region
  $region78: #{model_forward.1} parent=0 // pred_check
    _
  $region79: #{model_forward.1} parent=0 // pred_check_branch
    %66 = sbr.rel (0) target = $region81
  $region80: #{model_forward.1} parent=0 // pred_region
    _
  $region81: #{model_forward.1} parent=0 // pred_fallthru
    _
  // Predicated region
  $region82: #{model_forward.1} parent=0 // pred_check
    _
  $region83: #{model_forward.1} parent=0 // pred_check_branch
    %68 = sbr.rel (0) target = $region85
  $region84: #{model_forward.1} parent=0 // pred_region
    _
  $region85: #{model_forward.1} parent=0 // pred_fallthru
    _
  // Predicated region
  $region86: #{model_forward.1} parent=0 // pred_check
    _
  $region87: #{model_forward.1} parent=0 // pred_check_branch
    %70 = sbr.rel (0) target = $region89
  $region88: #{model_forward.1} parent=0 // pred_region
    _
  $region89: #{model_forward.1} parent=0 // pred_fallthru
    _
  %71 = vst [vmem:[#allocation2] sm:$0xff] 0.0
  %72 = vst [vmem:[#allocation2 + $0x8] sm:$0xff] 0.0
  %73 = vst [vmem:[#allocation2 + $0x10] sm:$0xff] 0.0
  %74 = vst [vmem:[#allocation2 + $0x18] sm:$0xff] 0.0
  %75 = vst [vmem:[#allocation2 + $0x20] sm:$0xff] 0.0
  %76 = vst [vmem:[#allocation2 + $0x28] sm:$0xff] 0.0
  %77 = vst [vmem:[#allocation2 + $0x30] sm:$0xff] 0.0
  %78 = vst [vmem:[#allocation2 + $0x38] sm:$0xff] 0.0
  %79 = vst [vmem:[#allocation2 + $0x40] sm:$0xff] 0.0
  %80 = vst [vmem:[#allocation2 + $0x48] sm:$0xff] 0.0
  %81 = vst [vmem:[#allocation2 + $0x50] sm:$0xff] 0.0
  %82 = vst [vmem:[#allocation2 + $0x58] sm:$0xff] 0.0
  %83 = vst [vmem:[#allocation4] sm:$0xff] 0.0
  %84 = vst [vmem:[#allocation4 + $0x8] sm:$0xff] 0.0
  %85 = vst [vmem:[#allocation4 + $0x10] sm:$0xff] 0.0
  %86 = vst [vmem:[#allocation4 + $0x18] sm:$0xff] 0.0
  %87 = vst [vmem:[#allocation4 + $0x20] sm:$0xff] 0.0
  %88 = vst [vmem:[#allocation4 + $0x28] sm:$0xff] 0.0
  %89 = vst [vmem:[#allocation4 + $0x30] sm:$0xff] 0.0
  %90 = vst [vmem:[#allocation4 + $0x38] sm:$0xff] 0.0
  %91 = vst [vmem:[#allocation4 + $0x40] sm:$0xff] 0.0
  %92 = vst [vmem:[#allocation4 + $0x48] sm:$0xff] 0.0
  %93 = vst [vmem:[#allocation4 + $0x50] sm:$0xff] 0.0
  %94 = vst [vmem:[#allocation4 + $0x58] sm:$0xff] 0.0
  %95 = vst [vmem:[#allocation3] sm:$0xff] 0.0
  %96 = vst [vmem:[#allocation3 + $0x8] sm:$0xff] 0.0
  %97 = vst [vmem:[#allocation3 + $0x10] sm:$0xff] 0.0
  %98 = vst [vmem:[#allocation3 + $0x18] sm:$0xff] 0.0
  %99 = vst [vmem:[#allocation3 + $0x20] sm:$0xff] 0.0
  %100 = vst [vmem:[#allocation3 + $0x28] sm:$0xff] 0.0
  %101 = vst [vmem:[#allocation3 + $0x30] sm:$0xff] 0.0
  %102 = vst [vmem:[#allocation3 + $0x38] sm:$0xff] 0.0
  %103 = vst [vmem:[#allocation3 + $0x40] sm:$0xff] 0.0
  %104 = vst [vmem:[#allocation3 + $0x48] sm:$0xff] 0.0
  %105 = vst [vmem:[#allocation3 + $0x50] sm:$0xff] 0.0
  %106 = vst [vmem:[#allocation3 + $0x58] sm:$0xff] 0.0
  %107 = vst [vmem:[#allocation3 + $0x60] sm:$0xff] 0.0
  %108 = vst [vmem:[#allocation3 + $0x68] sm:$0xff] 0.0
  %109 = vst [vmem:[#allocation3 + $0x70] sm:$0xff] 0.0
  %110 = vst [vmem:[#allocation3 + $0x78] sm:$0xff] 0.0
  %111 = vst [vmem:[#allocation3 + $0x80] sm:$0xff] 0.0
  %112 = vst [vmem:[#allocation3 + $0x88] sm:$0xff] 0.0
  %113 = vst [vmem:[#allocation3 + $0x90] sm:$0xff] 0.0
  %114 = vst [vmem:[#allocation3 + $0x98] sm:$0xff] 0.0
  %115 = vst [vmem:[#allocation3 + $0xa0] sm:$0xff] 0.0
  %116 = vst [vmem:[#allocation3 + $0xa8] sm:$0xff] 0.0
  %117 = vst [vmem:[#allocation3 + $0xb0] sm:$0xff] 0.0
  %118 = vst [vmem:[#allocation3 + $0xb8] sm:$0xff] 0.0
  %119 = vst [vmem:[#allocation3 + $0xc0] sm:$0xff] 0.0
  %120 = vst [vmem:[#allocation3 + $0xc8] sm:$0xff] 0.0
  %121 = vst [vmem:[#allocation3 + $0xd0] sm:$0xff] 0.0
  %122 = vst [vmem:[#allocation3 + $0xd8] sm:$0xff] 0.0
  %123 = vst [vmem:[#allocation3 + $0xe0] sm:$0xff] 0.0
  %124 = vst [vmem:[#allocation3 + $0xe8] sm:$0xff] 0.0
  %125 = vst [vmem:[#allocation3 + $0xf0] sm:$0xff] 0.0
  %126 = vst [vmem:[#allocation3 + $0xf8] sm:$0xff] 0.0
  %127 = vst [vmem:[#allocation3 + $0x100] sm:$0xff] 0.0
  %128 = vst [vmem:[#allocation3 + $0x108] sm:$0xff] 0.0
  %129 = vst [vmem:[#allocation3 + $0x110] sm:$0xff] 0.0
  %130 = vst [vmem:[#allocation3 + $0x118] sm:$0xff] 0.0
  %131 = vst [vmem:[#allocation3 + $0x120] sm:$0xff] 0.0
  %132 = vst [vmem:[#allocation3 + $0x128] sm:$0xff] 0.0
  %133 = vst [vmem:[#allocation3 + $0x130] sm:$0xff] 0.0
  %134 = vst [vmem:[#allocation3 + $0x138] sm:$0xff] 0.0
  %135 = vst [vmem:[#allocation3 + $0x140] sm:$0xff] 0.0
  %136 = vst [vmem:[#allocation3 + $0x148] sm:$0xff] 0.0
  %137 = vst [vmem:[#allocation3 + $0x150] sm:$0xff] 0.0
  %138 = vst [vmem:[#allocation3 + $0x158] sm:$0xff] 0.0
  %139 = vst [vmem:[#allocation3 + $0x160] sm:$0xff] 0.0
  %140 = vst [vmem:[#allocation3 + $0x168] sm:$0xff] 0.0
  %141 = vst [vmem:[#allocation3 + $0x170] sm:$0xff] 0.0
  %142 = vst [vmem:[#allocation3 + $0x178] sm:$0xff] 0.0
  %143 = vst [vmem:[#allocation3 + $0x180] sm:$0xff] 0.0
  %144 = vst [vmem:[#allocation3 + $0x188] sm:$0xff] 0.0
  %145 = vst [vmem:[#allocation3 + $0x190] sm:$0xff] 0.0
  %146 = vst [vmem:[#allocation3 + $0x198] sm:$0xff] 0.0
  %147 = vst [vmem:[#allocation3 + $0x1a0] sm:$0xff] 0.0
  %148 = vst [vmem:[#allocation3 + $0x1a8] sm:$0xff] 0.0
  %149 = vst [vmem:[#allocation3 + $0x1b0] sm:$0xff] 0.0
  %150 = vst [vmem:[#allocation3 + $0x1b8] sm:$0xff] 0.0
  %151 = vst [vmem:[#allocation3 + $0x1c0] sm:$0xff] 0.0
  %152 = vst [vmem:[#allocation3 + $0x1c8] sm:$0xff] 0.0
  %153 = vst [vmem:[#allocation3 + $0x1d0] sm:$0xff] 0.0
  %154 = vst [vmem:[#allocation3 + $0x1d8] sm:$0xff] 0.0
  %155 = vst [vmem:[#allocation3 + $0x1e0] sm:$0xff] 0.0
  %156 = vst [vmem:[#allocation3 + $0x1e8] sm:$0xff] 0.0
  %157 = vst [vmem:[#allocation3 + $0x1f0] sm:$0xff] 0.0
  %158 = vst [vmem:[#allocation3 + $0x1f8] sm:$0xff] 0.0
  %159 = vst [vmem:[#allocation3 + $0x200] sm:$0xff] 0.0
  %160 = vst [vmem:[#allocation3 + $0x208] sm:$0xff] 0.0
  %161 = vst [vmem:[#allocation3 + $0x210] sm:$0xff] 0.0
  %162 = vst [vmem:[#allocation3 + $0x218] sm:$0xff] 0.0
  %163 = vst [vmem:[#allocation3 + $0x220] sm:$0xff] 0.0
  %164 = vst [vmem:[#allocation3 + $0x228] sm:$0xff] 0.0
  %165 = vst [vmem:[#allocation3 + $0x230] sm:$0xff] 0.0
  %166 = vst [vmem:[#allocation3 + $0x238] sm:$0xff] 0.0
  %167 = vst [vmem:[#allocation5] sm:$0xff] 0.0
  %168 = vst [vmem:[#allocation5 + $0x8] sm:$0xff] 0.0
  %169 = vst [vmem:[#allocation5 + $0x10] sm:$0xff] 0.0
  %170 = vst [vmem:[#allocation5 + $0x18] sm:$0xff] 0.0
  %171 = vst [vmem:[#allocation5 + $0x20] sm:$0xff] 0.0
  %172 = vst [vmem:[#allocation5 + $0x28] sm:$0xff] 0.0
  %173 = vst [vmem:[#allocation5 + $0x30] sm:$0xff] 0.0
  %174 = vst [vmem:[#allocation5 + $0x38] sm:$0xff] 0.0
  %175 = vst [vmem:[#allocation5 + $0x40] sm:$0xff] 0.0
  %176 = vst [vmem:[#allocation5 + $0x48] sm:$0xff] 0.0
  %177 = vst [vmem:[#allocation5 + $0x50] sm:$0xff] 0.0
  %178 = vst [vmem:[#allocation5 + $0x58] sm:$0xff] 0.0
  %179 = vst [vmem:[#allocation5 + $0x60] sm:$0xff] 0.0
  %180 = vst [vmem:[#allocation5 + $0x68] sm:$0xff] 0.0
  %181 = vst [vmem:[#allocation5 + $0x70] sm:$0xff] 0.0
  %182 = vst [vmem:[#allocation5 + $0x78] sm:$0xff] 0.0
  %183 = vst [vmem:[#allocation5 + $0x80] sm:$0xff] 0.0
  %184 = vst [vmem:[#allocation5 + $0x88] sm:$0xff] 0.0
  %185 = vst [vmem:[#allocation5 + $0x90] sm:$0xff] 0.0
  %186 = vst [vmem:[#allocation5 + $0x98] sm:$0xff] 0.0
  %187 = vst [vmem:[#allocation5 + $0xa0] sm:$0xff] 0.0
  %188 = vst [vmem:[#allocation5 + $0xa8] sm:$0xff] 0.0
  %189 = vst [vmem:[#allocation5 + $0xb0] sm:$0xff] 0.0
  %190 = vst [vmem:[#allocation5 + $0xb8] sm:$0xff] 0.0
  %191 = vst [vmem:[#allocation5 + $0xc0] sm:$0xff] 0.0
  %192 = vst [vmem:[#allocation5 + $0xc8] sm:$0xff] 0.0
  %193 = vst [vmem:[#allocation5 + $0xd0] sm:$0xff] 0.0
  %194 = vst [vmem:[#allocation5 + $0xd8] sm:$0xff] 0.0
  %195 = vst [vmem:[#allocation5 + $0xe0] sm:$0xff] 0.0
  %196 = vst [vmem:[#allocation5 + $0xe8] sm:$0xff] 0.0
  %197 = vst [vmem:[#allocation5 + $0xf0] sm:$0xff] 0.0
  %198 = vst [vmem:[#allocation5 + $0xf8] sm:$0xff] 0.0
  %199 = vst [vmem:[#allocation5 + $0x100] sm:$0xff] 0.0
  %200 = vst [vmem:[#allocation5 + $0x108] sm:$0xff] 0.0
  %201 = vst [vmem:[#allocation5 + $0x110] sm:$0xff] 0.0
  %202 = vst [vmem:[#allocation5 + $0x118] sm:$0xff] 0.0
  %203 = vst [vmem:[#allocation5 + $0x120] sm:$0xff] 0.0
  %204 = vst [vmem:[#allocation5 + $0x128] sm:$0xff] 0.0
  %205 = vst [vmem:[#allocation5 + $0x130] sm:$0xff] 0.0
  %206 = vst [vmem:[#allocation5 + $0x138] sm:$0xff] 0.0
  %207 = vst [vmem:[#allocation5 + $0x140] sm:$0xff] 0.0
  %208 = vst [vmem:[#allocation5 + $0x148] sm:$0xff] 0.0
  %209 = vst [vmem:[#allocation5 + $0x150] sm:$0xff] 0.0
  %210 = vst [vmem:[#allocation5 + $0x158] sm:$0xff] 0.0
  %211 = vst [vmem:[#allocation5 + $0x160] sm:$0xff] 0.0
  %212 = vst [vmem:[#allocation5 + $0x168] sm:$0xff] 0.0
  %213 = vst [vmem:[#allocation5 + $0x170] sm:$0xff] 0.0
  %214 = vst [vmem:[#allocation5 + $0x178] sm:$0xff] 0.0
  %215 = vst [vmem:[#allocation5 + $0x180] sm:$0xff] 0.0
  %216 = vst [vmem:[#allocation5 + $0x188] sm:$0xff] 0.0
  %217 = vst [vmem:[#allocation5 + $0x190] sm:$0xff] 0.0
  %218 = vst [vmem:[#allocation5 + $0x198] sm:$0xff] 0.0
  %219 = vst [vmem:[#allocation5 + $0x1a0] sm:$0xff] 0.0
  %220 = vst [vmem:[#allocation5 + $0x1a8] sm:$0xff] 0.0
  %221 = vst [vmem:[#allocation5 + $0x1b0] sm:$0xff] 0.0
  %222 = vst [vmem:[#allocation5 + $0x1b8] sm:$0xff] 0.0
  %223 = vst [vmem:[#allocation5 + $0x1c0] sm:$0xff] 0.0
  %224 = vst [vmem:[#allocation5 + $0x1c8] sm:$0xff] 0.0
  %225 = vst [vmem:[#allocation5 + $0x1d0] sm:$0xff] 0.0
  %226 = vst [vmem:[#allocation5 + $0x1d8] sm:$0xff] 0.0
  %227 = vst [vmem:[#allocation5 + $0x1e0] sm:$0xff] 0.0
  %228 = vst [vmem:[#allocation5 + $0x1e8] sm:$0xff] 0.0
  %229 = vst [vmem:[#allocation5 + $0x1f0] sm:$0xff] 0.0
  %230 = vst [vmem:[#allocation5 + $0x1f8] sm:$0xff] 0.0
  %231 = vst [vmem:[#allocation5 + $0x200] sm:$0xff] 0.0
  %232 = vst [vmem:[#allocation5 + $0x208] sm:$0xff] 0.0
  %233 = vst [vmem:[#allocation5 + $0x210] sm:$0xff] 0.0
  %234 = vst [vmem:[#allocation5 + $0x218] sm:$0xff] 0.0
  %235 = vst [vmem:[#allocation5 + $0x220] sm:$0xff] 0.0
  %236 = vst [vmem:[#allocation5 + $0x228] sm:$0xff] 0.0
  %237 = vst [vmem:[#allocation5 + $0x230] sm:$0xff] 0.0
  %238 = vst [vmem:[#allocation5 + $0x238] sm:$0xff] 0.0
  %v239 = vld [vmem:[%s1] sm:$0xff]
  %v240 = vld [vmem:[%s1 + $0x8] sm:$0xff]
  %s241 = scalar_lea.vmem %s1, 16
  %v242 = vld [vmem:[%s241] sm:$0xff]
  %v243 = vld [vmem:[%s241 + $0x8] sm:$0xff]
  %v244 = vld [vmem:[%s2] sm:$0xff]
  %v245 = vld [vmem:[%s2 + $0x8] sm:$0xff]
  %v246 = vld [vmem:[%s3] sm:$0xff]
  %v249 = vcombine.high %v239, %v239
  %v250 = vcombine.high %v240, %v240
  %253 = vst [vmem:[#allocation2 + $0x8] sm:$0xf] %v239
  %254 = vst [vmem:[#allocation2 + $0x10] sm:$0xf] %v249
  %255 = vst [vmem:[#allocation2 + $0x18] sm:$0xf] %v240
  %256 = vst [vmem:[#allocation2 + $0x20] sm:$0xf] %v250
  %v257 = vld [vmem:[#allocation2] sm:$0xf]
  %v258 = vld [vmem:[#allocation2 + $0x8] sm:$0xf]
  %v259 = vld [vmem:[#allocation2 + $0x10] sm:$0xf]
  %v260 = vld [vmem:[#allocation2 + $0x18] sm:$0xf]
  %v261 = vld [vmem:[#allocation2 + $0x20] sm:$0xf]
  %v262 = vld [vmem:[%s0] sm:$0xf]
  %v263 = vld [vmem:[%s0 + $0x8] sm:$0xf]
  %v264 = vld [vmem:[%s0 + $0x10] sm:$0xf]
  %v265 = vld [vmem:[%s0 + $0x18] sm:$0xf]
  %270 = vrot.lane.b32.xlu0 %v262, 111
  %v271 = vpop.permute.xlu0 %270
  %272 = vrot.lane.b32.xlu0 %v263, 111
  %v273 = vpop.permute.xlu0 %272
  %274 = vrot.lane.b32.xlu0 %v264, 111
  %v275 = vpop.permute.xlu0 %274
  %276 = vrot.lane.b32.xlu0 %v265, 111
  %v277 = vpop.permute.xlu0 %276
  %vm278 = vcmask 908288
  %v279 = vsel %vm278, %v271, %v273
  %v280 = vsel %vm278, %v273, %v275
  %v281 = vsel %vm278, %v275, %v277
  %v287 = vmul.f32 %v257, %v271
  %v288 = vmul.f32 %v258, %v279
  %v289 = vmul.f32 %v259, %v280
  %v290 = vmul.f32 %v260, %v281
  %v291 = vmul.f32 %v261, %v277
  %297 = vrot.lane.b32.xlu0 %v287, 17
  %v298 = vpop.permute.xlu0 %297
  %299 = vrot.lane.b32.xlu0 %v288, 17
  %v300 = vpop.permute.xlu0 %299
  %301 = vrot.lane.b32.xlu0 %v289, 17
  %v302 = vpop.permute.xlu0 %301
  %303 = vrot.lane.b32.xlu0 %v290, 17
  %v304 = vpop.permute.xlu0 %303
  %305 = vrot.lane.b32.xlu0 %v291, 17
  %v306 = vpop.permute.xlu0 %305
  %vm307 = vcmask 138240
  %v308 = vsel %vm307, %v298, %v300
  %v309 = vsel %vm307, %v300, %v302
  %v310 = vsel %vm307, %v302, %v304
  %v311 = vsel %vm307, %v304, %v306
  %316 = vst [vmem:[#allocation3] sm:$0xf] %v308
  %317 = vst [vmem:[#allocation3 + $0x8] sm:$0xf] %v309
  %318 = vst [vmem:[#allocation3 + $0x10] sm:$0xf] %v310
  %319 = vst [vmem:[#allocation3 + $0x18] sm:$0xf] %v311
  %v320 = vld [vmem:[#allocation2] sm:$0xf]
  %v321 = vld [vmem:[#allocation2 + $0x8] sm:$0xf]
  %v322 = vld [vmem:[#allocation2 + $0x10] sm:$0xf]
  %v323 = vld [vmem:[#allocation2 + $0x18] sm:$0xf]
  %v324 = vld [vmem:[#allocation2 + $0x20] sm:$0xf]
  %v325 = vld [vmem:[%s0 + $0x40] sm:$0xf]
  %v326 = vld [vmem:[%s0 + $0x48] sm:$0xf]
  %v327 = vld [vmem:[%s0 + $0x50] sm:$0xf]
  %v328 = vld [vmem:[%s0 + $0x58] sm:$0xf]
  %333 = vrot.lane.b32.xlu0 %v325, 112
  %v334 = vpop.permute.xlu0 %333
  %335 = vrot.lane.b32.xlu0 %v326, 112
  %v336 = vpop.permute.xlu0 %335
  %337 = vrot.lane.b32.xlu0 %v327, 112
  %v338 = vpop.permute.xlu0 %337
  %339 = vrot.lane.b32.xlu0 %v328, 112
  %v340 = vpop.permute.xlu0 %339
  %vm341 = vcmask 916480
  %v342 = vsel %vm341, %v334, %v336
  %v343 = vsel %vm341, %v336, %v338
  %v344 = vsel %vm341, %v338, %v340
  %v350 = vmul.f32 %v320, %v334
  %v351 = vmul.f32 %v321, %v342
  %v352 = vmul.f32 %v322, %v343
  %v353 = vmul.f32 %v323, %v344
  %v354 = vmul.f32 %v324, %v340
  %360 = vrot.lane.b32.xlu0 %v350, 16
  %v361 = vpop.permute.xlu0 %360
  %362 = vrot.lane.b32.xlu0 %v351, 16
  %v363 = vpop.permute.xlu0 %362
  %364 = vrot.lane.b32.xlu0 %v352, 16
  %v365 = vpop.permute.xlu0 %364
  %366 = vrot.lane.b32.xlu0 %v353, 16
  %v367 = vpop.permute.xlu0 %366
  %368 = vrot.lane.b32.xlu0 %v354, 16
  %v369 = vpop.permute.xlu0 %368
  %vm370 = vcmask 130048
  %v371 = vsel %vm370, %v361, %v363
  %v372 = vsel %vm370, %v363, %v365
  %v373 = vsel %vm370, %v365, %v367
  %v374 = vsel %vm370, %v367, %v369
  %379 = vst [vmem:[#allocation3 + $0x40] sm:$0xf] %v371
  %380 = vst [vmem:[#allocation3 + $0x48] sm:$0xf] %v372
  %381 = vst [vmem:[#allocation3 + $0x50] sm:$0xf] %v373
  %382 = vst [vmem:[#allocation3 + $0x58] sm:$0xf] %v374
  %v383 = vld [vmem:[#allocation2] sm:$0xf]
  %v384 = vld [vmem:[#allocation2 + $0x8] sm:$0xf]
  %v385 = vld [vmem:[#allocation2 + $0x10] sm:$0xf]
  %v386 = vld [vmem:[#allocation2 + $0x18] sm:$0xf]
  %v387 = vld [vmem:[#allocation2 + $0x20] sm:$0xf]
  %v388 = vld [vmem:[%s0 + $0x80] sm:$0xf]
  %v389 = vld [vmem:[%s0 + $0x88] sm:$0xf]
  %v390 = vld [vmem:[%s0 + $0x90] sm:$0xf]
  %v391 = vld [vmem:[%s0 + $0x98] sm:$0xf]
  %396 = vrot.lane.b32.xlu0 %v388, 113
  %v397 = vpop.permute.xlu0 %396
  %398 = vrot.lane.b32.xlu0 %v389, 113
  %v399 = vpop.permute.xlu0 %398
  %400 = vrot.lane.b32.xlu0 %v390, 113
  %v401 = vpop.permute.xlu0 %400
  %402 = vrot.lane.b32.xlu0 %v391, 113
  %v403 = vpop.permute.xlu0 %402
  %vm404 = vcmask 924672
  %v405 = vsel %vm404, %v397, %v399
  %v406 = vsel %vm404, %v399, %v401
  %v407 = vsel %vm404, %v401, %v403
  %v413 = vmul.f32 %v383, %v397
  %v414 = vmul.f32 %v384, %v405
  %v415 = vmul.f32 %v385, %v406
  %v416 = vmul.f32 %v386, %v407
  %v417 = vmul.f32 %v387, %v403
  %423 = vrot.lane.b32.xlu0 %v413, 15
  %v424 = vpop.permute.xlu0 %423
  %425 = vrot.lane.b32.xlu0 %v414, 15
  %v426 = vpop.permute.xlu0 %425
  %427 = vrot.lane.b32.xlu0 %v415, 15
  %v428 = vpop.permute.xlu0 %427
  %429 = vrot.lane.b32.xlu0 %v416, 15
  %v430 = vpop.permute.xlu0 %429
  %431 = vrot.lane.b32.xlu0 %v417, 15
  %v432 = vpop.permute.xlu0 %431
  %vm433 = vcmask 121856
  %v434 = vsel %vm433, %v424, %v426
  %v435 = vsel %vm433, %v426, %v428
  %v436 = vsel %vm433, %v428, %v430
  %v437 = vsel %vm433, %v430, %v432
  %442 = vst [vmem:[#allocation3 + $0x80] sm:$0xf] %v434
  %443 = vst [vmem:[#allocation3 + $0x88] sm:$0xf] %v435
  %444 = vst [vmem:[#allocation3 + $0x90] sm:$0xf] %v436
  %445 = vst [vmem:[#allocation3 + $0x98] sm:$0xf] %v437
  %v446 = vld [vmem:[#allocation2] sm:$0xf]
  %v447 = vld [vmem:[#allocation2 + $0x8] sm:$0xf]
  %v448 = vld [vmem:[#allocation2 + $0x10] sm:$0xf]
  %v449 = vld [vmem:[#allocation2 + $0x18] sm:$0xf]
  %v450 = vld [vmem:[#allocation2 + $0x20] sm:$0xf]
  %v451 = vld [vmem:[%s0 + $0xc0] sm:$0xf]
  %v452 = vld [vmem:[%s0 + $0xc8] sm:$0xf]
  %v453 = vld [vmem:[%s0 + $0xd0] sm:$0xf]
  %v454 = vld [vmem:[%s0 + $0xd8] sm:$0xf]
  %459 = vrot.lane.b32.xlu0 %v451, 127
  %v460 = vpop.permute.xlu0 %459
  %461 = vrot.lane.b32.xlu0 %v452, 127
  %v462 = vpop.permute.xlu0 %461
  %463 = vrot.lane.b32.xlu0 %v453, 127
  %v464 = vpop.permute.xlu0 %463
  %465 = vrot.lane.b32.xlu0 %v454, 127
  %v466 = vpop.permute.xlu0 %465
  %vm467 = vcmask 1039360
  %v468 = vsel %vm467, %v460, %v462
  %v469 = vsel %vm467, %v462, %v464
  %v470 = vsel %vm467, %v464, %v466
  %v476 = vmul.f32 %v446, %v460
  %v477 = vmul.f32 %v447, %v468
  %v478 = vmul.f32 %v448, %v469
  %v479 = vmul.f32 %v449, %v470
  %v480 = vmul.f32 %v450, %v466
  %486 = vrot.lane.b32.xlu0 %v476, 1
  %v487 = vpop.permute.xlu0 %486
  %488 = vrot.lane.b32.xlu0 %v477, 1
  %v489 = vpop.permute.xlu0 %488
  %490 = vrot.lane.b32.xlu0 %v478, 1
  %v491 = vpop.permute.xlu0 %490
  %492 = vrot.lane.b32.xlu0 %v479, 1
  %v493 = vpop.permute.xlu0 %492
  %494 = vrot.lane.b32.xlu0 %v480, 1
  %v495 = vpop.permute.xlu0 %494
  %vm496 = vcmask 7168
  %v497 = vsel %vm496, %v487, %v489
  %v498 = vsel %vm496, %v489, %v491
  %v499 = vsel %vm496, %v491, %v493
  %v500 = vsel %vm496, %v493, %v495
  %505 = vst [vmem:[#allocation3 + $0xc0] sm:$0xf] %v497
  %506 = vst [vmem:[#allocation3 + $0xc8] sm:$0xf] %v498
  %507 = vst [vmem:[#allocation3 + $0xd0] sm:$0xf] %v499
  %508 = vst [vmem:[#allocation3 + $0xd8] sm:$0xf] %v500
  %v509 = vld [vmem:[#allocation2 + $0x8] sm:$0xf]
  %v510 = vld [vmem:[#allocation2 + $0x10] sm:$0xf]
  %v511 = vld [vmem:[#allocation2 + $0x18] sm:$0xf]
  %v512 = vld [vmem:[#allocation2 + $0x20] sm:$0xf]
  %v513 = vld [vmem:[%s0 + $0x100] sm:$0xf]
  %v514 = vld [vmem:[%s0 + $0x108] sm:$0xf]
  %v515 = vld [vmem:[%s0 + $0x110] sm:$0xf]
  %v516 = vld [vmem:[%s0 + $0x118] sm:$0xf]
  %v517 = vmul.f32 %v509, %v513
  %v518 = vmul.f32 %v510, %v514
  %v519 = vmul.f32 %v511, %v515
  %v520 = vmul.f32 %v512, %v516
  %521 = vst [vmem:[#allocation3 + $0x100] sm:$0xf] %v517
  %522 = vst [vmem:[#allocation3 + $0x108] sm:$0xf] %v518
  %523 = vst [vmem:[#allocation3 + $0x110] sm:$0xf] %v519
  %524 = vst [vmem:[#allocation3 + $0x118] sm:$0xf] %v520
  %v525 = vld [vmem:[#allocation2 + $0x8] sm:$0xf]
  %v526 = vld [vmem:[#allocation2 + $0x10] sm:$0xf]
  %v527 = vld [vmem:[#allocation2 + $0x18] sm:$0xf]
  %v528 = vld [vmem:[#allocation2 + $0x20] sm:$0xf]
  %v529 = vld [vmem:[#allocation2 + $0x28] sm:$0xf]
  %v530 = vld [vmem:[%s0 + $0x140] sm:$0xf]
  %v531 = vld [vmem:[%s0 + $0x148] sm:$0xf]
  %v532 = vld [vmem:[%s0 + $0x150] sm:$0xf]
  %v533 = vld [vmem:[%s0 + $0x158] sm:$0xf]
  %538 = vrot.lane.b32.xlu0 %v530, 1
  %v539 = vpop.permute.xlu0 %538
  %540 = vrot.lane.b32.xlu0 %v531, 1
  %v541 = vpop.permute.xlu0 %540
  %542 = vrot.lane.b32.xlu0 %v532, 1
  %v543 = vpop.permute.xlu0 %542
  %544 = vrot.lane.b32.xlu0 %v533, 1
  %v545 = vpop.permute.xlu0 %544
  %v546 = vsel %vm496, %v539, %v541
  %v547 = vsel %vm496, %v541, %v543
  %v548 = vsel %vm496, %v543, %v545
  %v554 = vmul.f32 %v525, %v539
  %v555 = vmul.f32 %v526, %v546
  %v556 = vmul.f32 %v527, %v547
  %v557 = vmul.f32 %v528, %v548
  %v558 = vmul.f32 %v529, %v545
  %564 = vrot.lane.b32.xlu0 %v554, 127
  %v565 = vpop.permute.xlu0 %564
  %566 = vrot.lane.b32.xlu0 %v555, 127
  %v567 = vpop.permute.xlu0 %566
  %568 = vrot.lane.b32.xlu0 %v556, 127
  %v569 = vpop.permute.xlu0 %568
  %570 = vrot.lane.b32.xlu0 %v557, 127
  %v571 = vpop.permute.xlu0 %570
  %572 = vrot.lane.b32.xlu0 %v558, 127
  %v573 = vpop.permute.xlu0 %572
  %v574 = vsel %vm467, %v565, %v567
  %v575 = vsel %vm467, %v567, %v569
  %v576 = vsel %vm467, %v569, %v571
  %v577 = vsel %vm467, %v571, %v573
  %582 = vst [vmem:[#allocation3 + $0x140] sm:$0xf] %v574
  %583 = vst [vmem:[#allocation3 + $0x148] sm:$0xf] %v575
  %584 = vst [vmem:[#allocation3 + $0x150] sm:$0xf] %v576
  %585 = vst [vmem:[#allocation3 + $0x158] sm:$0xf] %v577
  %v586 = vld [vmem:[#allocation2 + $0x8] sm:$0xf]
  %v587 = vld [vmem:[#allocation2 + $0x10] sm:$0xf]
  %v588 = vld [vmem:[#allocation2 + $0x18] sm:$0xf]
  %v589 = vld [vmem:[#allocation2 + $0x20] sm:$0xf]
  %v590 = vld [vmem:[#allocation2 + $0x28] sm:$0xf]
  %v591 = vld [vmem:[%s0 + $0x180] sm:$0xf]
  %v592 = vld [vmem:[%s0 + $0x188] sm:$0xf]
  %v593 = vld [vmem:[%s0 + $0x190] sm:$0xf]
  %v594 = vld [vmem:[%s0 + $0x198] sm:$0xf]
  %599 = vrot.lane.b32.xlu0 %v591, 15
  %v600 = vpop.permute.xlu0 %599
  %601 = vrot.lane.b32.xlu0 %v592, 15
  %v602 = vpop.permute.xlu0 %601
  %603 = vrot.lane.b32.xlu0 %v593, 15
  %v604 = vpop.permute.xlu0 %603
  %605 = vrot.lane.b32.xlu0 %v594, 15
  %v606 = vpop.permute.xlu0 %605
  %v607 = vsel %vm433, %v600, %v602
  %v608 = vsel %vm433, %v602, %v604
  %v609 = vsel %vm433, %v604, %v606
  %v615 = vmul.f32 %v586, %v600
  %v616 = vmul.f32 %v587, %v607
  %v617 = vmul.f32 %v588, %v608
  %v618 = vmul.f32 %v589, %v609
  %v619 = vmul.f32 %v590, %v606
  %625 = vrot.lane.b32.xlu0 %v615, 113
  %v626 = vpop.permute.xlu0 %625
  %627 = vrot.lane.b32.xlu0 %v616, 113
  %v628 = vpop.permute.xlu0 %627
  %629 = vrot.lane.b32.xlu0 %v617, 113
  %v630 = vpop.permute.xlu0 %629
  %631 = vrot.lane.b32.xlu0 %v618, 113
  %v632 = vpop.permute.xlu0 %631
  %633 = vrot.lane.b32.xlu0 %v619, 113
  %v634 = vpop.permute.xlu0 %633
  %v635 = vsel %vm404, %v626, %v628
  %v636 = vsel %vm404, %v628, %v630
  %v637 = vsel %vm404, %v630, %v632
  %v638 = vsel %vm404, %v632, %v634
  %643 = vst [vmem:[#allocation3 + $0x180] sm:$0xf] %v635
  %644 = vst [vmem:[#allocation3 + $0x188] sm:$0xf] %v636
  %645 = vst [vmem:[#allocation3 + $0x190] sm:$0xf] %v637
  %646 = vst [vmem:[#allocation3 + $0x198] sm:$0xf] %v638
  %v647 = vld [vmem:[#allocation2 + $0x8] sm:$0xf]
  %v648 = vld [vmem:[#allocation2 + $0x10] sm:$0xf]
  %v649 = vld [vmem:[#allocation2 + $0x18] sm:$0xf]
  %v650 = vld [vmem:[#allocation2 + $0x20] sm:$0xf]
  %v651 = vld [vmem:[#allocation2 + $0x28] sm:$0xf]
  %v652 = vld [vmem:[%s0 + $0x1c0] sm:$0xf]
  %v653 = vld [vmem:[%s0 + $0x1c8] sm:$0xf]
  %v654 = vld [vmem:[%s0 + $0x1d0] sm:$0xf]
  %v655 = vld [vmem:[%s0 + $0x1d8] sm:$0xf]
  %660 = vrot.lane.b32.xlu0 %v652, 16
  %v661 = vpop.permute.xlu0 %660
  %662 = vrot.lane.b32.xlu0 %v653, 16
  %v663 = vpop.permute.xlu0 %662
  %664 = vrot.lane.b32.xlu0 %v654, 16
  %v665 = vpop.permute.xlu0 %664
  %666 = vrot.lane.b32.xlu0 %v655, 16
  %v667 = vpop.permute.xlu0 %666
  %v668 = vsel %vm370, %v661, %v663
  %v669 = vsel %vm370, %v663, %v665
  %v670 = vsel %vm370, %v665, %v667
  %v676 = vmul.f32 %v647, %v661
  %v677 = vmul.f32 %v648, %v668
  %v678 = vmul.f32 %v649, %v669
  %v679 = vmul.f32 %v650, %v670
  %v680 = vmul.f32 %v651, %v667
  %686 = vrot.lane.b32.xlu0 %v676, 112
  %v687 = vpop.permute.xlu0 %686
  %688 = vrot.lane.b32.xlu0 %v677, 112
  %v689 = vpop.permute.xlu0 %688
  %690 = vrot.lane.b32.xlu0 %v678, 112
  %v691 = vpop.permute.xlu0 %690
  %692 = vrot.lane.b32.xlu0 %v679, 112
  %v693 = vpop.permute.xlu0 %692
  %694 = vrot.lane.b32.xlu0 %v680, 112
  %v695 = vpop.permute.xlu0 %694
  %v696 = vsel %vm341, %v687, %v689
  %v697 = vsel %vm341, %v689, %v691
  %v698 = vsel %vm341, %v691, %v693
  %v699 = vsel %vm341, %v693, %v695
  %704 = vst [vmem:[#allocation3 + $0x1c0] sm:$0xf] %v696
  %705 = vst [vmem:[#allocation3 + $0x1c8] sm:$0xf] %v697
  %706 = vst [vmem:[#allocation3 + $0x1d0] sm:$0xf] %v698
  %707 = vst [vmem:[#allocation3 + $0x1d8] sm:$0xf] %v699
  %v708 = vld [vmem:[#allocation2 + $0x8] sm:$0xf]
  %v709 = vld [vmem:[#allocation2 + $0x10] sm:$0xf]
  %v710 = vld [vmem:[#allocation2 + $0x18] sm:$0xf]
  %v711 = vld [vmem:[#allocation2 + $0x20] sm:$0xf]
  %v712 = vld [vmem:[#allocation2 + $0x28] sm:$0xf]
  %v713 = vld [vmem:[%s0 + $0x200] sm:$0xf]
  %v714 = vld [vmem:[%s0 + $0x208] sm:$0xf]
  %v715 = vld [vmem:[%s0 + $0x210] sm:$0xf]
  %v716 = vld [vmem:[%s0 + $0x218] sm:$0xf]
  %721 = vrot.lane.b32.xlu0 %v713, 17
  %v722 = vpop.permute.xlu0 %721
  %723 = vrot.lane.b32.xlu0 %v714, 17
  %v724 = vpop.permute.xlu0 %723
  %725 = vrot.lane.b32.xlu0 %v715, 17
  %v726 = vpop.permute.xlu0 %725
  %727 = vrot.lane.b32.xlu0 %v716, 17
  %v728 = vpop.permute.xlu0 %727
  %v729 = vsel %vm307, %v722, %v724
  %v730 = vsel %vm307, %v724, %v726
  %v731 = vsel %vm307, %v726, %v728
  %v737 = vmul.f32 %v708, %v722
  %v738 = vmul.f32 %v709, %v729
  %v739 = vmul.f32 %v710, %v730
  %v740 = vmul.f32 %v711, %v731
  %v741 = vmul.f32 %v712, %v728
  %747 = vrot.lane.b32.xlu0 %v737, 111
  %v748 = vpop.permute.xlu0 %747
  %749 = vrot.lane.b32.xlu0 %v738, 111
  %v750 = vpop.permute.xlu0 %749
  %751 = vrot.lane.b32.xlu0 %v739, 111
  %v752 = vpop.permute.xlu0 %751
  %753 = vrot.lane.b32.xlu0 %v740, 111
  %v754 = vpop.permute.xlu0 %753
  %755 = vrot.lane.b32.xlu0 %v741, 111
  %v756 = vpop.permute.xlu0 %755
  %v757 = vsel %vm278, %v748, %v750
  %v758 = vsel %vm278, %v750, %v752
  %v759 = vsel %vm278, %v752, %v754
  %v760 = vsel %vm278, %v754, %v756
  %765 = vst [vmem:[#allocation3 + $0x200] sm:$0xf] %v757
  %766 = vst [vmem:[#allocation3 + $0x208] sm:$0xf] %v758
  %767 = vst [vmem:[#allocation3 + $0x210] sm:$0xf] %v759
  %768 = vst [vmem:[#allocation3 + $0x218] sm:$0xf] %v760
  %v769 = vld [vmem:[#allocation3] sm:$0xff]
  %v770 = vld [vmem:[#allocation3 + $0x8] sm:$0xff]
  %v771 = vld [vmem:[#allocation3 + $0x10] sm:$0xff]
  %v772 = vld [vmem:[#allocation3 + $0x18] sm:$0xff]
  %v773 = vld [vmem:[#allocation3 + $0x20] sm:$0xff]
  %v774 = vld [vmem:[#allocation3 + $0x28] sm:$0xff]
  %v775 = vld [vmem:[#allocation3 + $0x30] sm:$0xff]
  %v776 = vld [vmem:[#allocation3 + $0x38] sm:$0xff]
  %v777 = vld [vmem:[#allocation3 + $0x40] sm:$0xff]
  %v778 = vld [vmem:[#allocation3 + $0x48] sm:$0xff]
  %v779 = vld [vmem:[#allocation3 + $0x50] sm:$0xff]
  %v780 = vld [vmem:[#allocation3 + $0x58] sm:$0xff]
  %v781 = vld [vmem:[#allocation3 + $0x60] sm:$0xff]
  %v782 = vld [vmem:[#allocation3 + $0x68] sm:$0xff]
  %v783 = vld [vmem:[#allocation3 + $0x70] sm:$0xff]
  %v784 = vld [vmem:[#allocation3 + $0x78] sm:$0xff]
  %v785 = vld [vmem:[#allocation3 + $0x80] sm:$0xff]
  %v786 = vld [vmem:[#allocation3 + $0x88] sm:$0xff]
  %v787 = vld [vmem:[#allocation3 + $0x90] sm:$0xff]
  %v788 = vld [vmem:[#allocation3 + $0x98] sm:$0xff]
  %v789 = vld [vmem:[#allocation3 + $0xa0] sm:$0xff]
  %v790 = vld [vmem:[#allocation3 + $0xa8] sm:$0xff]
  %v791 = vld [vmem:[#allocation3 + $0xb0] sm:$0xff]
  %v792 = vld [vmem:[#allocation3 + $0xb8] sm:$0xff]
  %v793 = vld [vmem:[#allocation3 + $0xc0] sm:$0xff]
  %v794 = vld [vmem:[#allocation3 + $0xc8] sm:$0xff]
  %v795 = vld [vmem:[#allocation3 + $0xd0] sm:$0xff]
  %v796 = vld [vmem:[#allocation3 + $0xd8] sm:$0xff]
  %v797 = vld [vmem:[#allocation3 + $0xe0] sm:$0xff]
  %v798 = vld [vmem:[#allocation3 + $0xe8] sm:$0xff]
  %v799 = vld [vmem:[#allocation3 + $0xf0] sm:$0xff]
  %v800 = vld [vmem:[#allocation3 + $0xf8] sm:$0xff]
  %v801 = vld [vmem:[#allocation3 + $0x100] sm:$0xff]
  %v802 = vld [vmem:[#allocation3 + $0x108] sm:$0xff]
  %v803 = vld [vmem:[#allocation3 + $0x110] sm:$0xff]
  %v804 = vld [vmem:[#allocation3 + $0x118] sm:$0xff]
  %v805 = vld [vmem:[#allocation3 + $0x120] sm:$0xff]
  %v806 = vld [vmem:[#allocation3 + $0x128] sm:$0xff]
  %v807 = vld [vmem:[#allocation3 + $0x130] sm:$0xff]
  %v808 = vld [vmem:[#allocation3 + $0x138] sm:$0xff]
  %v809 = vld [vmem:[#allocation3 + $0x140] sm:$0xff]
  %v810 = vld [vmem:[#allocation3 + $0x148] sm:$0xff]
  %v811 = vld [vmem:[#allocation3 + $0x150] sm:$0xff]
  %v812 = vld [vmem:[#allocation3 + $0x158] sm:$0xff]
  %v813 = vld [vmem:[#allocation3 + $0x160] sm:$0xff]
  %v814 = vld [vmem:[#allocation3 + $0x168] sm:$0xff]
  %v815 = vld [vmem:[#allocation3 + $0x170] sm:$0xff]
  %v816 = vld [vmem:[#allocation3 + $0x178] sm:$0xff]
  %v817 = vld [vmem:[#allocation3 + $0x180] sm:$0xff]
  %v818 = vld [vmem:[#allocation3 + $0x188] sm:$0xff]
  %v819 = vld [vmem:[#allocation3 + $0x190] sm:$0xff]
  %v820 = vld [vmem:[#allocation3 + $0x198] sm:$0xff]
  %v821 = vld [vmem:[#allocation3 + $0x1a0] sm:$0xff]
  %v822 = vld [vmem:[#allocation3 + $0x1a8] sm:$0xff]
  %v823 = vld [vmem:[#allocation3 + $0x1b0] sm:$0xff]
  %v824 = vld [vmem:[#allocation3 + $0x1b8] sm:$0xff]
  %v825 = vld [vmem:[#allocation3 + $0x1c0] sm:$0xff]
  %v826 = vld [vmem:[#allocation3 + $0x1c8] sm:$0xff]
  %v827 = vld [vmem:[#allocation3 + $0x1d0] sm:$0xff]
  %v828 = vld [vmem:[#allocation3 + $0x1d8] sm:$0xff]
  %v829 = vld [vmem:[#allocation3 + $0x1e0] sm:$0xff]
  %v830 = vld [vmem:[#allocation3 + $0x1e8] sm:$0xff]
  %v831 = vld [vmem:[#allocation3 + $0x1f0] sm:$0xff]
  %v832 = vld [vmem:[#allocation3 + $0x1f8] sm:$0xff]
  %v833 = vld [vmem:[#allocation3 + $0x200] sm:$0xff]
  %v834 = vld [vmem:[#allocation3 + $0x208] sm:$0xff]
  %v835 = vld [vmem:[#allocation3 + $0x210] sm:$0xff]
  %v836 = vld [vmem:[#allocation3 + $0x218] sm:$0xff]
  %v837 = vld [vmem:[#allocation3 + $0x220] sm:$0xff]
  %v838 = vld [vmem:[#allocation3 + $0x228] sm:$0xff]
  %v839 = vld [vmem:[#allocation3 + $0x230] sm:$0xff]
  %v840 = vld [vmem:[#allocation3 + $0x238] sm:$0xff]
  %842 = vset.pattern.permute.xlu0 0
  %843 = vperm.xlu0 %842, %v246
  %v844 = vpop.permute.xlu0 %843
  %v847 = vsel %vm370, %v245, 0
  %849 = vmatprep.subr.mxu0 %v770
  %850 = vmatpush1.msra.mxu0 %v769
  %851 = vmatprep.subr.mxu0 %v774
  %852 = vmatpush1.msra.mxu0 %v773
  %853 = vmatprep.subr.mxu0 %v778
  %854 = vmatpush1.msra.mxu0 %v777
  %855 = vmatprep.subr.mxu0 %v782
  %856 = vmatpush1.msra.mxu0 %v781
  %857 = vmatprep.subr.mxu0 %v786
  %858 = vmatpush1.msra.mxu0 %v785
  %859 = vmatprep.subr.mxu0 %v790
  %860 = vmatpush1.msra.mxu0 %v789
  %861 = vmatprep.subr.mxu0 %v794
  %862 = vmatpush1.msra.mxu0 %v793
  %863 = vmatprep.subr.mxu0 %v798
  %864 = vmatpush1.msra.mxu0 %v797
  %865 = vmatprep.subr.mxu0 %v802
  %866 = vmatpush1.msra.mxu0 %v801
  %867 = vmatprep.subr.mxu0 %v806
  %868 = vmatpush1.msra.mxu0 %v805
  %869 = vmatprep.subr.mxu0 %v810
  %870 = vmatpush1.msra.mxu0 %v809
  %871 = vmatprep.subr.mxu0 %v814
  %872 = vmatpush1.msra.mxu0 %v813
  %873 = vmatprep.subr.mxu0 %v818
  %874 = vmatpush1.msra.mxu0 %v817
  %875 = vmatprep.subr.mxu0 %v822
  %876 = vmatpush1.msra.mxu0 %v821
  %877 = vmatprep.subr.mxu0 %v826
  %878 = vmatpush1.msra.mxu0 %v825
  %879 = vmatprep.subr.mxu0 %v830
  %880 = vmatpush1.msra.mxu0 %v829
  %881 = vmatprep.subr.mxu0 %v834
  %882 = vmatpush1.msra.mxu0 %v833
  %883 = vmatprep.subr.mxu0 %v838
  %884 = vmatpush1.msra.mxu0 %v837
  %885 = vmatprep.subr.mxu0 0.0
  %886 = vmatpush1.msra.mxu0 0.0
  %887 = vmatprep.subr.mxu0 0.0
  %888 = vmatpush1.msra.mxu0 0.0
  %889 = vmatprep.subr.mxu0 0.0
  %890 = vmatpush1.msra.mxu0 0.0
  %891 = vmatprep.subr.mxu0 0.0
  %892 = vmatpush1.msra.mxu0 0.0
  %893 = vmatprep.subr.mxu0 0.0
  %894 = vmatpush1.msra.mxu0 0.0
  %895 = vmatprep.subr.mxu0 0.0
  %896 = vmatpush1.msra.mxu0 0.0
  %897 = vmatprep.subr.mxu0 0.0
  %898 = vmatpush1.msra.mxu0 0.0
  %899 = vmatprep.subr.mxu0 0.0
  %900 = vmatpush1.msra.mxu0 0.0
  %901 = vmatprep.subr.mxu0 0.0
  %902 = vmatpush1.msra.mxu0 0.0
  %903 = vmatprep.subr.mxu0 0.0
  %904 = vmatpush1.msra.mxu0 0.0
  %905 = vmatprep.subr.mxu0 0.0
  %906 = vmatpush1.msra.mxu0 0.0
  %907 = vmatprep.subr.mxu0 0.0
  %908 = vmatpush1.msra.mxu0 0.0
  %909 = vmatprep.subr.mxu0 0.0
  %910 = vmatpush1.msra.mxu0 0.0
  %911 = vmatprep.subr.mxu0 0.0
  %912 = vmatpush1.msra.mxu0 0.0
  %913 = vmatprep.mubr.f32.mxu0 %v847
  %914 = vmatmul.mubr.f32.gmra.mrb[0].mxu0 %v244
  %v915 = vpop.f32.mrb[0].mxu0
  %v916 = vadd.f32 %v844, %v915
  %v917 = vpop.f32.mrb[0].mxu0
  %v918 = vadd.f32 %v844, %v917
  %919 = vdwg.mxu0
  %920 = vmatprep.subr.mxu0 %v772
  %921 = vmatpush1.msra.mxu0 %v771
  %922 = vmatprep.subr.mxu0 %v776
  %923 = vmatpush1.msra.mxu0 %v775
  %924 = vmatprep.subr.mxu0 %v780
  %925 = vmatpush1.msra.mxu0 %v779
  %926 = vmatprep.subr.mxu0 %v784
  %927 = vmatpush1.msra.mxu0 %v783
  %928 = vmatprep.subr.mxu0 %v788
  %929 = vmatpush1.msra.mxu0 %v787
  %930 = vmatprep.subr.mxu0 %v792
  %931 = vmatpush1.msra.mxu0 %v791
  %932 = vmatprep.subr.mxu0 %v796
  %933 = vmatpush1.msra.mxu0 %v795
  %934 = vmatprep.subr.mxu0 %v800
  %935 = vmatpush1.msra.mxu0 %v799
  %936 = vmatprep.subr.mxu0 %v804
  %937 = vmatpush1.msra.mxu0 %v803
  %938 = vmatprep.subr.mxu0 %v808
  %939 = vmatpush1.msra.mxu0 %v807
  %940 = vmatprep.subr.mxu0 %v812
  %941 = vmatpush1.msra.mxu0 %v811
  %942 = vmatprep.subr.mxu0 %v816
  %943 = vmatpush1.msra.mxu0 %v815
  %944 = vmatprep.subr.mxu0 %v820
  %945 = vmatpush1.msra.mxu0 %v819
  %946 = vmatprep.subr.mxu0 %v824
  %947 = vmatpush1.msra.mxu0 %v823
  %948 = vmatprep.subr.mxu0 %v828
  %949 = vmatpush1.msra.mxu0 %v827
  %950 = vmatprep.subr.mxu0 %v832
  %951 = vmatpush1.msra.mxu0 %v831
  %952 = vmatprep.subr.mxu0 %v836
  %953 = vmatpush1.msra.mxu0 %v835
  %954 = vmatprep.subr.mxu0 %v840
  %955 = vmatpush1.msra.mxu0 %v839
  %956 = vmatprep.subr.mxu0 0.0
  %957 = vmatpush1.msra.mxu0 0.0
  %958 = vmatprep.subr.mxu0 0.0
  %959 = vmatpush1.msra.mxu0 0.0
  %960 = vmatprep.subr.mxu0 0.0
  %961 = vmatpush1.msra.mxu0 0.0
  %962 = vmatprep.subr.mxu0 0.0
  %963 = vmatpush1.msra.mxu0 0.0
  %964 = vmatprep.subr.mxu0 0.0
  %965 = vmatpush1.msra.mxu0 0.0
  %966 = vmatprep.subr.mxu0 0.0
  %967 = vmatpush1.msra.mxu0 0.0
  %968 = vmatprep.subr.mxu0 0.0
  %969 = vmatpush1.msra.mxu0 0.0
  %970 = vmatprep.subr.mxu0 0.0
  %971 = vmatpush1.msra.mxu0 0.0
  %972 = vmatprep.subr.mxu0 0.0
  %973 = vmatpush1.msra.mxu0 0.0
  %974 = vmatprep.subr.mxu0 0.0
  %975 = vmatpush1.msra.mxu0 0.0
  %976 = vmatprep.subr.mxu0 0.0
  %977 = vmatpush1.msra.mxu0 0.0
  %978 = vmatprep.subr.mxu0 0.0
  %979 = vmatpush1.msra.mxu0 0.0
  %980 = vmatprep.subr.mxu0 0.0
  %981 = vmatpush1.msra.mxu0 0.0
  %982 = vmatprep.subr.mxu0 0.0
  %983 = vmatpush1.msra.mxu0 0.0
  %984 = vmatprep.mubr.f32.mxu0 %v847
  %985 = vmatmul.mubr.f32.gmra.mrb[0].mxu0 %v244
  %v986 = vpop.f32.mrb[0].mxu0
  %v987 = vadd.f32 %v844, %v986
  %v988 = vpop.f32.mrb[0].mxu0
  %v989 = vadd.f32 %v844, %v988
  %990 = vdwg.mxu0
  %v991 = vmax.f32 %v916, 0.0
  %v992 = vmax.f32 %v918, 0.0
  %v993 = vmax.f32 %v987, 0.0
  %v994 = vmax.f32 %v989, 0.0
  %v995 = vld [vmem:[%s4] sm:$0xff]
  %v996 = vld [vmem:[%s5] sm:$0xff]
  %v997 = vadd.f32 %v991, %v992
  %v998 = vadd.f32 %v997, %v993
  %v999 = vadd.f32 %v998, %v994
  %1000 = vadd.xlane.f32.xlu0 %v999
  %v1001 = vpop.xlane.xlu0 %1000
  %v1002 = vmul.f32 %v1001, 0.001953125
  %v1003 = vmul.f32 %v991, %v991
  %v1004 = vmul.f32 %v992, %v992
  %v1005 = vmul.f32 %v993, %v993
  %v1006 = vmul.f32 %v994, %v994
  %v1007 = vadd.f32 %v1003, %v1004
  %v1008 = vadd.f32 %v1007, %v1005
  %v1009 = vadd.f32 %v1008, %v1006
  %1010 = vadd.xlane.f32.xlu0 %v1009
  %v1011 = vpop.xlane.xlu0 %1010
  %v1012 = vmul.f32 %v1011, 0.001953125
  %v1013 = vmul.f32 %v1002, %v1002
  %v1014 = vsub.f32 %v1012, %v1013
  %v1015 = vadd.f32 %v1014, 1e-05
  %v1016 = vrsqrt.pop %v1015
  %v1017 = vmul.f32 %v1016, %v995
  %1019 = vset.pattern.permute.xlu0 0
  %1020 = vperm.xlu0 %1019, %v1017
  %v1021 = vpop.permute.xlu0 %1020
  %v1023 = vmul.f32 %v991, %v1021
  %v1024 = vmul.f32 %v992, %v1021
  %v1025 = vmul.f32 %v993, %v1021
  %v1026 = vmul.f32 %v994, %v1021
  %v1027 = vmul.f32 %v1002, %v1017
  %v1028 = vsub.f32 %v996, %v1027
  %1030 = vset.pattern.permute.xlu0 0
  %1031 = vperm.xlu0 %1030, %v1028
  %v1032 = vpop.permute.xlu0 %1031
  %v1034 = vadd.f32 %v1023, %v1032
  %v1035 = vadd.f32 %v1024, %v1032
  %v1036 = vadd.f32 %v1025, %v1032
  %v1037 = vadd.f32 %v1026, %v1032
  %s1038 = scalar_lea.vmem %s2, 16
  %v1039 = vld [vmem:[%s1038] sm:$0xff]
  %v1040 = vld [vmem:[%s1038 + $0x8] sm:$0xff]
  %s1041 = scalar_lea.vmem %s3, 8
  %v1042 = vld [vmem:[%s1041] sm:$0xff]
  %v1045 = vcombine.high %v242, %v242
  %v1046 = vcombine.high %v243, %v243
  %1049 = vst [vmem:[#allocation4 + $0x8] sm:$0xf] %v242
  %1050 = vst [vmem:[#allocation4 + $0x10] sm:$0xf] %v1045
  %1051 = vst [vmem:[#allocation4 + $0x18] sm:$0xf] %v243
  %1052 = vst [vmem:[#allocation4 + $0x20] sm:$0xf] %v1046
  %v1053 = vld [vmem:[#allocation4] sm:$0xf]
  %v1054 = vld [vmem:[#allocation4 + $0x8] sm:$0xf]
  %v1055 = vld [vmem:[#allocation4 + $0x10] sm:$0xf]
  %v1056 = vld [vmem:[#allocation4 + $0x18] sm:$0xf]
  %v1057 = vld [vmem:[#allocation4 + $0x20] sm:$0xf]
  %v1058 = vld [vmem:[%s0] sm:$0xf]
  %v1059 = vld [vmem:[%s0 + $0x8] sm:$0xf]
  %v1060 = vld [vmem:[%s0 + $0x10] sm:$0xf]
  %v1061 = vld [vmem:[%s0 + $0x18] sm:$0xf]
  %1066 = vrot.lane.b32.xlu0 %v1058, 111
  %v1067 = vpop.permute.xlu0 %1066
  %1068 = vrot.lane.b32.xlu0 %v1059, 111
  %v1069 = vpop.permute.xlu0 %1068
  %1070 = vrot.lane.b32.xlu0 %v1060, 111
  %v1071 = vpop.permute.xlu0 %1070
  %1072 = vrot.lane.b32.xlu0 %v1061, 111
  %v1073 = vpop.permute.xlu0 %1072
  %v1074 = vsel %vm278, %v1067, %v1069
  %v1075 = vsel %vm278, %v1069, %v1071
  %v1076 = vsel %vm278, %v1071, %v1073
  %v1082 = vmul.f32 %v1053, %v1067
  %v1083 = vmul.f32 %v1054, %v1074
  %v1084 = vmul.f32 %v1055, %v1075
  %v1085 = vmul.f32 %v1056, %v1076
  %v1086 = vmul.f32 %v1057, %v1073
  %1092 = vrot.lane.b32.xlu0 %v1082, 17
  %v1093 = vpop.permute.xlu0 %1092
  %1094 = vrot.lane.b32.xlu0 %v1083, 17
  %v1095 = vpop.permute.xlu0 %1094
  %1096 = vrot.lane.b32.xlu0 %v1084, 17
  %v1097 = vpop.permute.xlu0 %1096
  %1098 = vrot.lane.b32.xlu0 %v1085, 17
  %v1099 = vpop.permute.xlu0 %1098
  %1100 = vrot.lane.b32.xlu0 %v1086, 17
  %v1101 = vpop.permute.xlu0 %1100
  %v1102 = vsel %vm307, %v1093, %v1095
  %v1103 = vsel %vm307, %v1095, %v1097
  %v1104 = vsel %vm307, %v1097, %v1099
  %v1105 = vsel %vm307, %v1099, %v1101
  %1110 = vst [vmem:[#allocation5] sm:$0xf] %v1102
  %1111 = vst [vmem:[#allocation5 + $0x8] sm:$0xf] %v1103
  %1112 = vst [vmem:[#allocation5 + $0x10] sm:$0xf] %v1104
  %1113 = vst [vmem:[#allocation5 + $0x18] sm:$0xf] %v1105
  %v1114 = vld [vmem:[#allocation4] sm:$0xf]
  %v1115 = vld [vmem:[#allocation4 + $0x8] sm:$0xf]
  %v1116 = vld [vmem:[#allocation4 + $0x10] sm:$0xf]
  %v1117 = vld [vmem:[#allocation4 + $0x18] sm:$0xf]
  %v1118 = vld [vmem:[#allocation4 + $0x20] sm:$0xf]
  %v1119 = vld [vmem:[%s0 + $0x40] sm:$0xf]
  %v1120 = vld [vmem:[%s0 + $0x48] sm:$0xf]
  %v1121 = vld [vmem:[%s0 + $0x50] sm:$0xf]
  %v1122 = vld [vmem:[%s0 + $0x58] sm:$0xf]
  %1127 = vrot.lane.b32.xlu0 %v1119, 112
  %v1128 = vpop.permute.xlu0 %1127
  %1129 = vrot.lane.b32.xlu0 %v1120, 112
  %v1130 = vpop.permute.xlu0 %1129
  %1131 = vrot.lane.b32.xlu0 %v1121, 112
  %v1132 = vpop.permute.xlu0 %1131
  %1133 = vrot.lane.b32.xlu0 %v1122, 112
  %v1134 = vpop.permute.xlu0 %1133
  %v1135 = vsel %vm341, %v1128, %v1130
  %v1136 = vsel %vm341, %v1130, %v1132
  %v1137 = vsel %vm341, %v1132, %v1134
  %v1143 = vmul.f32 %v1114, %v1128
  %v1144 = vmul.f32 %v1115, %v1135
  %v1145 = vmul.f32 %v1116, %v1136
  %v1146 = vmul.f32 %v1117, %v1137
  %v1147 = vmul.f32 %v1118, %v1134
  %1153 = vrot.lane.b32.xlu0 %v1143, 16
  %v1154 = vpop.permute.xlu0 %1153
  %1155 = vrot.lane.b32.xlu0 %v1144, 16
  %v1156 = vpop.permute.xlu0 %1155
  %1157 = vrot.lane.b32.xlu0 %v1145, 16
  %v1158 = vpop.permute.xlu0 %1157
  %1159 = vrot.lane.b32.xlu0 %v1146, 16
  %v1160 = vpop.permute.xlu0 %1159
  %1161 = vrot.lane.b32.xlu0 %v1147, 16
  %v1162 = vpop.permute.xlu0 %1161
  %v1163 = vsel %vm370, %v1154, %v1156
  %v1164 = vsel %vm370, %v1156, %v1158
  %v1165 = vsel %vm370, %v1158, %v1160
  %v1166 = vsel %vm370, %v1160, %v1162
  %1171 = vst [vmem:[#allocation5 + $0x40] sm:$0xf] %v1163
  %1172 = vst [vmem:[#allocation5 + $0x48] sm:$0xf] %v1164
  %1173 = vst [vmem:[#allocation5 + $0x50] sm:$0xf] %v1165
  %1174 = vst [vmem:[#allocation5 + $0x58] sm:$0xf] %v1166
  %v1175 = vld [vmem:[#allocation4] sm:$0xf]
  %v1176 = vld [vmem:[#allocation4 + $0x8] sm:$0xf]
  %v1177 = vld [vmem:[#allocation4 + $0x10] sm:$0xf]
  %v1178 = vld [vmem:[#allocation4 + $0x18] sm:$0xf]
  %v1179 = vld [vmem:[#allocation4 + $0x20] sm:$0xf]
  %v1180 = vld [vmem:[%s0 + $0x80] sm:$0xf]
  %v1181 = vld [vmem:[%s0 + $0x88] sm:$0xf]
  %v1182 = vld [vmem:[%s0 + $0x90] sm:$0xf]
  %v1183 = vld [vmem:[%s0 + $0x98] sm:$0xf]
  %1188 = vrot.lane.b32.xlu0 %v1180, 113
  %v1189 = vpop.permute.xlu0 %1188
  %1190 = vrot.lane.b32.xlu0 %v1181, 113
  %v1191 = vpop.permute.xlu0 %1190
  %1192 = vrot.lane.b32.xlu0 %v1182, 113
  %v1193 = vpop.permute.xlu0 %1192
  %1194 = vrot.lane.b32.xlu0 %v1183, 113
  %v1195 = vpop.permute.xlu0 %1194
  %v1196 = vsel %vm404, %v1189, %v1191
  %v1197 = vsel %vm404, %v1191, %v1193
  %v1198 = vsel %vm404, %v1193, %v1195
  %v1204 = vmul.f32 %v1175, %v1189
  %v1205 = vmul.f32 %v1176, %v1196
  %v1206 = vmul.f32 %v1177, %v1197
  %v1207 = vmul.f32 %v1178, %v1198
  %v1208 = vmul.f32 %v1179, %v1195
  %1214 = vrot.lane.b32.xlu0 %v1204, 15
  %v1215 = vpop.permute.xlu0 %1214
  %1216 = vrot.lane.b32.xlu0 %v1205, 15
  %v1217 = vpop.permute.xlu0 %1216
  %1218 = vrot.lane.b32.xlu0 %v1206, 15
  %v1219 = vpop.permute.xlu0 %1218
  %1220 = vrot.lane.b32.xlu0 %v1207, 15
  %v1221 = vpop.permute.xlu0 %1220
  %1222 = vrot.lane.b32.xlu0 %v1208, 15
  %v1223 = vpop.permute.xlu0 %1222
  %v1224 = vsel %vm433, %v1215, %v1217
  %v1225 = vsel %vm433, %v1217, %v1219
  %v1226 = vsel %vm433, %v1219, %v1221
  %v1227 = vsel %vm433, %v1221, %v1223
  %1232 = vst [vmem:[#allocation5 + $0x80] sm:$0xf] %v1224
  %1233 = vst [vmem:[#allocation5 + $0x88] sm:$0xf] %v1225
  %1234 = vst [vmem:[#allocation5 + $0x90] sm:$0xf] %v1226
  %1235 = vst [vmem:[#allocation5 + $0x98] sm:$0xf] %v1227
  %v1236 = vld [vmem:[#allocation4] sm:$0xf]
  %v1237 = vld [vmem:[#allocation4 + $0x8] sm:$0xf]
  %v1238 = vld [vmem:[#allocation4 + $0x10] sm:$0xf]
  %v1239 = vld [vmem:[#allocation4 + $0x18] sm:$0xf]
  %v1240 = vld [vmem:[#allocation4 + $0x20] sm:$0xf]
  %v1241 = vld [vmem:[%s0 + $0xc0] sm:$0xf]
  %v1242 = vld [vmem:[%s0 + $0xc8] sm:$0xf]
  %v1243 = vld [vmem:[%s0 + $0xd0] sm:$0xf]
  %v1244 = vld [vmem:[%s0 + $0xd8] sm:$0xf]
  %1249 = vrot.lane.b32.xlu0 %v1241, 127
  %v1250 = vpop.permute.xlu0 %1249
  %1251 = vrot.lane.b32.xlu0 %v1242, 127
  %v1252 = vpop.permute.xlu0 %1251
  %1253 = vrot.lane.b32.xlu0 %v1243, 127
  %v1254 = vpop.permute.xlu0 %1253
  %1255 = vrot.lane.b32.xlu0 %v1244, 127
  %v1256 = vpop.permute.xlu0 %1255
  %v1257 = vsel %vm467, %v1250, %v1252
  %v1258 = vsel %vm467, %v1252, %v1254
  %v1259 = vsel %vm467, %v1254, %v1256
  %v1265 = vmul.f32 %v1236, %v1250
  %v1266 = vmul.f32 %v1237, %v1257
  %v1267 = vmul.f32 %v1238, %v1258
  %v1268 = vmul.f32 %v1239, %v1259
  %v1269 = vmul.f32 %v1240, %v1256
  %1275 = vrot.lane.b32.xlu0 %v1265, 1
  %v1276 = vpop.permute.xlu0 %1275
  %1277 = vrot.lane.b32.xlu0 %v1266, 1
  %v1278 = vpop.permute.xlu0 %1277
  %1279 = vrot.lane.b32.xlu0 %v1267, 1
  %v1280 = vpop.permute.xlu0 %1279
  %1281 = vrot.lane.b32.xlu0 %v1268, 1
  %v1282 = vpop.permute.xlu0 %1281
  %1283 = vrot.lane.b32.xlu0 %v1269, 1
  %v1284 = vpop.permute.xlu0 %1283
  %v1285 = vsel %vm496, %v1276, %v1278
  %v1286 = vsel %vm496, %v1278, %v1280
  %v1287 = vsel %vm496, %v1280, %v1282
  %v1288 = vsel %vm496, %v1282, %v1284
  %1293 = vst [vmem:[#allocation5 + $0xc0] sm:$0xf] %v1285
  %1294 = vst [vmem:[#allocation5 + $0xc8] sm:$0xf] %v1286
  %1295 = vst [vmem:[#allocation5 + $0xd0] sm:$0xf] %v1287
  %1296 = vst [vmem:[#allocation5 + $0xd8] sm:$0xf] %v1288
  %v1297 = vld [vmem:[#allocation4 + $0x8] sm:$0xf]
  %v1298 = vld [vmem:[#allocation4 + $0x10] sm:$0xf]
  %v1299 = vld [vmem:[#allocation4 + $0x18] sm:$0xf]
  %v1300 = vld [vmem:[#allocation4 + $0x20] sm:$0xf]
  %v1301 = vld [vmem:[%s0 + $0x100] sm:$0xf]
  %v1302 = vld [vmem:[%s0 + $0x108] sm:$0xf]
  %v1303 = vld [vmem:[%s0 + $0x110] sm:$0xf]
  %v1304 = vld [vmem:[%s0 + $0x118] sm:$0xf]
  %v1305 = vmul.f32 %v1297, %v1301
  %v1306 = vmul.f32 %v1298, %v1302
  %v1307 = vmul.f32 %v1299, %v1303
  %v1308 = vmul.f32 %v1300, %v1304
  %1309 = vst [vmem:[#allocation5 + $0x100] sm:$0xf] %v1305
  %1310 = vst [vmem:[#allocation5 + $0x108] sm:$0xf] %v1306
  %1311 = vst [vmem:[#allocation5 + $0x110] sm:$0xf] %v1307
  %1312 = vst [vmem:[#allocation5 + $0x118] sm:$0xf] %v1308
  %v1313 = vld [vmem:[#allocation4 + $0x8] sm:$0xf]
  %v1314 = vld [vmem:[#allocation4 + $0x10] sm:$0xf]
  %v1315 = vld [vmem:[#allocation4 + $0x18] sm:$0xf]
  %v1316 = vld [vmem:[#allocation4 + $0x20] sm:$0xf]
  %v1317 = vld [vmem:[#allocation4 + $0x28] sm:$0xf]
  %v1318 = vld [vmem:[%s0 + $0x140] sm:$0xf]
  %v1319 = vld [vmem:[%s0 + $0x148] sm:$0xf]
  %v1320 = vld [vmem:[%s0 + $0x150] sm:$0xf]
  %v1321 = vld [vmem:[%s0 + $0x158] sm:$0xf]
  %1326 = vrot.lane.b32.xlu0 %v1318, 1
  %v1327 = vpop.permute.xlu0 %1326
  %1328 = vrot.lane.b32.xlu0 %v1319, 1
  %v1329 = vpop.permute.xlu0 %1328
  %1330 = vrot.lane.b32.xlu0 %v1320, 1
  %v1331 = vpop.permute.xlu0 %1330
  %1332 = vrot.lane.b32.xlu0 %v1321, 1
  %v1333 = vpop.permute.xlu0 %1332
  %v1334 = vsel %vm496, %v1327, %v1329
  %v1335 = vsel %vm496, %v1329, %v1331
  %v1336 = vsel %vm496, %v1331, %v1333
  %v1342 = vmul.f32 %v1313, %v1327
  %v1343 = vmul.f32 %v1314, %v1334
  %v1344 = vmul.f32 %v1315, %v1335
  %v1345 = vmul.f32 %v1316, %v1336
  %v1346 = vmul.f32 %v1317, %v1333
  %1352 = vrot.lane.b32.xlu0 %v1342, 127
  %v1353 = vpop.permute.xlu0 %1352
  %1354 = vrot.lane.b32.xlu0 %v1343, 127
  %v1355 = vpop.permute.xlu0 %1354
  %1356 = vrot.lane.b32.xlu0 %v1344, 127
  %v1357 = vpop.permute.xlu0 %1356
  %1358 = vrot.lane.b32.xlu0 %v1345, 127
  %v1359 = vpop.permute.xlu0 %1358
  %1360 = vrot.lane.b32.xlu0 %v1346, 127
  %v1361 = vpop.permute.xlu0 %1360
  %v1362 = vsel %vm467, %v1353, %v1355
  %v1363 = vsel %vm467, %v1355, %v1357
  %v1364 = vsel %vm467, %v1357, %v1359
  %v1365 = vsel %vm467, %v1359, %v1361
  %1370 = vst [vmem:[#allocation5 + $0x140] sm:$0xf] %v1362
  %1371 = vst [vmem:[#allocation5 + $0x148] sm:$0xf] %v1363
  %1372 = vst [vmem:[#allocation5 + $0x150] sm:$0xf] %v1364
  %1373 = vst [vmem:[#allocation5 + $0x158] sm:$0xf] %v1365
  %v1374 = vld [vmem:[#allocation4 + $0x8] sm:$0xf]
  %v1375 = vld [vmem:[#allocation4 + $0x10] sm:$0xf]
  %v1376 = vld [vmem:[#allocation4 + $0x18] sm:$0xf]
  %v1377 = vld [vmem:[#allocation4 + $0x20] sm:$0xf]
  %v1378 = vld [vmem:[#allocation4 + $0x28] sm:$0xf]
  %v1379 = vld [vmem:[%s0 + $0x180] sm:$0xf]
  %v1380 = vld [vmem:[%s0 + $0x188] sm:$0xf]
  %v1381 = vld [vmem:[%s0 + $0x190] sm:$0xf]
  %v1382 = vld [vmem:[%s0 + $0x198] sm:$0xf]
  %1387 = vrot.lane.b32.xlu0 %v1379, 15
  %v1388 = vpop.permute.xlu0 %1387
  %1389 = vrot.lane.b32.xlu0 %v1380, 15
  %v1390 = vpop.permute.xlu0 %1389
  %1391 = vrot.lane.b32.xlu0 %v1381, 15
  %v1392 = vpop.permute.xlu0 %1391
  %1393 = vrot.lane.b32.xlu0 %v1382, 15
  %v1394 = vpop.permute.xlu0 %1393
  %v1395 = vsel %vm433, %v1388, %v1390
  %v1396 = vsel %vm433, %v1390, %v1392
  %v1397 = vsel %vm433, %v1392, %v1394
  %v1403 = vmul.f32 %v1374, %v1388
  %v1404 = vmul.f32 %v1375, %v1395
  %v1405 = vmul.f32 %v1376, %v1396
  %v1406 = vmul.f32 %v1377, %v1397
  %v1407 = vmul.f32 %v1378, %v1394
  %1413 = vrot.lane.b32.xlu0 %v1403, 113
  %v1414 = vpop.permute.xlu0 %1413
  %1415 = vrot.lane.b32.xlu0 %v1404, 113
  %v1416 = vpop.permute.xlu0 %1415
  %1417 = vrot.lane.b32.xlu0 %v1405, 113
  %v1418 = vpop.permute.xlu0 %1417
  %1419 = vrot.lane.b32.xlu0 %v1406, 113
  %v1420 = vpop.permute.xlu0 %1419
  %1421 = vrot.lane.b32.xlu0 %v1407, 113
  %v1422 = vpop.permute.xlu0 %1421
  %v1423 = vsel %vm404, %v1414, %v1416
  %v1424 = vsel %vm404, %v1416, %v1418
  %v1425 = vsel %vm404, %v1418, %v1420
  %v1426 = vsel %vm404, %v1420, %v1422
  %1431 = vst [vmem:[#allocation5 + $0x180] sm:$0xf] %v1423
  %1432 = vst [vmem:[#allocation5 + $0x188] sm:$0xf] %v1424
  %1433 = vst [vmem:[#allocation5 + $0x190] sm:$0xf] %v1425
  %1434 = vst [vmem:[#allocation5 + $0x198] sm:$0xf] %v1426
  %v1435 = vld [vmem:[#allocation4 + $0x8] sm:$0xf]
  %v1436 = vld [vmem:[#allocation4 + $0x10] sm:$0xf]
  %v1437 = vld [vmem:[#allocation4 + $0x18] sm:$0xf]
  %v1438 = vld [vmem:[#allocation4 + $0x20] sm:$0xf]
  %v1439 = vld [vmem:[#allocation4 + $0x28] sm:$0xf]
  %v1440 = vld [vmem:[%s0 + $0x1c0] sm:$0xf]
  %v1441 = vld [vmem:[%s0 + $0x1c8] sm:$0xf]
  %v1442 = vld [vmem:[%s0 + $0x1d0] sm:$0xf]
  %v1443 = vld [vmem:[%s0 + $0x1d8] sm:$0xf]
  %1448 = vrot.lane.b32.xlu0 %v1440, 16
  %v1449 = vpop.permute.xlu0 %1448
  %1450 = vrot.lane.b32.xlu0 %v1441, 16
  %v1451 = vpop.permute.xlu0 %1450
  %1452 = vrot.lane.b32.xlu0 %v1442, 16
  %v1453 = vpop.permute.xlu0 %1452
  %1454 = vrot.lane.b32.xlu0 %v1443, 16
  %v1455 = vpop.permute.xlu0 %1454
  %v1456 = vsel %vm370, %v1449, %v1451
  %v1457 = vsel %vm370, %v1451, %v1453
  %v1458 = vsel %vm370, %v1453, %v1455
  %v1464 = vmul.f32 %v1435, %v1449
  %v1465 = vmul.f32 %v1436, %v1456
  %v1466 = vmul.f32 %v1437, %v1457
  %v1467 = vmul.f32 %v1438, %v1458
  %v1468 = vmul.f32 %v1439, %v1455
  %1474 = vrot.lane.b32.xlu0 %v1464, 112
  %v1475 = vpop.permute.xlu0 %1474
  %1476 = vrot.lane.b32.xlu0 %v1465, 112
  %v1477 = vpop.permute.xlu0 %1476
  %1478 = vrot.lane.b32.xlu0 %v1466, 112
  %v1479 = vpop.permute.xlu0 %1478
  %1480 = vrot.lane.b32.xlu0 %v1467, 112
  %v1481 = vpop.permute.xlu0 %1480
  %1482 = vrot.lane.b32.xlu0 %v1468, 112
  %v1483 = vpop.permute.xlu0 %1482
  %v1484 = vsel %vm341, %v1475, %v1477
  %v1485 = vsel %vm341, %v1477, %v1479
  %v1486 = vsel %vm341, %v1479, %v1481
  %v1487 = vsel %vm341, %v1481, %v1483
  %1492 = vst [vmem:[#allocation5 + $0x1c0] sm:$0xf] %v1484
  %1493 = vst [vmem:[#allocation5 + $0x1c8] sm:$0xf] %v1485
  %1494 = vst [vmem:[#allocation5 + $0x1d0] sm:$0xf] %v1486
  %1495 = vst [vmem:[#allocation5 + $0x1d8] sm:$0xf] %v1487
  %v1496 = vld [vmem:[#allocation4 + $0x8] sm:$0xf]
  %v1497 = vld [vmem:[#allocation4 + $0x10] sm:$0xf]
  %v1498 = vld [vmem:[#allocation4 + $0x18] sm:$0xf]
  %v1499 = vld [vmem:[#allocation4 + $0x20] sm:$0xf]
  %v1500 = vld [vmem:[#allocation4 + $0x28] sm:$0xf]
  %v1501 = vld [vmem:[%s0 + $0x200] sm:$0xf]
  %v1502 = vld [vmem:[%s0 + $0x208] sm:$0xf]
  %v1503 = vld [vmem:[%s0 + $0x210] sm:$0xf]
  %v1504 = vld [vmem:[%s0 + $0x218] sm:$0xf]
  %1509 = vrot.lane.b32.xlu0 %v1501, 17
  %v1510 = vpop.permute.xlu0 %1509
  %1511 = vrot.lane.b32.xlu0 %v1502, 17
  %v1512 = vpop.permute.xlu0 %1511
  %1513 = vrot.lane.b32.xlu0 %v1503, 17
  %v1514 = vpop.permute.xlu0 %1513
  %1515 = vrot.lane.b32.xlu0 %v1504, 17
  %v1516 = vpop.permute.xlu0 %1515
  %v1517 = vsel %vm307, %v1510, %v1512
  %v1518 = vsel %vm307, %v1512, %v1514
  %v1519 = vsel %vm307, %v1514, %v1516
  %v1525 = vmul.f32 %v1496, %v1510
  %v1526 = vmul.f32 %v1497, %v1517
  %v1527 = vmul.f32 %v1498, %v1518
  %v1528 = vmul.f32 %v1499, %v1519
  %v1529 = vmul.f32 %v1500, %v1516
  %1535 = vrot.lane.b32.xlu0 %v1525, 111
  %v1536 = vpop.permute.xlu0 %1535
  %1537 = vrot.lane.b32.xlu0 %v1526, 111
  %v1538 = vpop.permute.xlu0 %1537
  %1539 = vrot.lane.b32.xlu0 %v1527, 111
  %v1540 = vpop.permute.xlu0 %1539
  %1541 = vrot.lane.b32.xlu0 %v1528, 111
  %v1542 = vpop.permute.xlu0 %1541
  %1543 = vrot.lane.b32.xlu0 %v1529, 111
  %v1544 = vpop.permute.xlu0 %1543
  %v1545 = vsel %vm278, %v1536, %v1538
  %v1546 = vsel %vm278, %v1538, %v1540
  %v1547 = vsel %vm278, %v1540, %v1542
  %v1548 = vsel %vm278, %v1542, %v1544
  %1553 = vst [vmem:[#allocation5 + $0x200] sm:$0xf] %v1545
  %1554 = vst [vmem:[#allocation5 + $0x208] sm:$0xf] %v1546
  %1555 = vst [vmem:[#allocation5 + $0x210] sm:$0xf] %v1547
  %1556 = vst [vmem:[#allocation5 + $0x218] sm:$0xf] %v1548
  %v1557 = vld [vmem:[#allocation5] sm:$0xff]
  %v1558 = vld [vmem:[#allocation5 + $0x8] sm:$0xff]
  %v1559 = vld [vmem:[#allocation5 + $0x10] sm:$0xff]
  %v1560 = vld [vmem:[#allocation5 + $0x18] sm:$0xff]
  %v1561 = vld [vmem:[#allocation5 + $0x20] sm:$0xff]
  %v1562 = vld [vmem:[#allocation5 + $0x28] sm:$0xff]
  %v1563 = vld [vmem:[#allocation5 + $0x30] sm:$0xff]
  %v1564 = vld [vmem:[#allocation5 + $0x38] sm:$0xff]
  %v1565 = vld [vmem:[#allocation5 + $0x40] sm:$0xff]
  %v1566 = vld [vmem:[#allocation5 + $0x48] sm:$0xff]
  %v1567 = vld [vmem:[#allocation5 + $0x50] sm:$0xff]
  %v1568 = vld [vmem:[#allocation5 + $0x58] sm:$0xff]
  %v1569 = vld [vmem:[#allocation5 + $0x60] sm:$0xff]
  %v1570 = vld [vmem:[#allocation5 + $0x68] sm:$0xff]
  %v1571 = vld [vmem:[#allocation5 + $0x70] sm:$0xff]
  %v1572 = vld [vmem:[#allocation5 + $0x78] sm:$0xff]
  %v1573 = vld [vmem:[#allocation5 + $0x80] sm:$0xff]
  %v1574 = vld [vmem:[#allocation5 + $0x88] sm:$0xff]
  %v1575 = vld [vmem:[#allocation5 + $0x90] sm:$0xff]
  %v1576 = vld [vmem:[#allocation5 + $0x98] sm:$0xff]
  %v1577 = vld [vmem:[#allocation5 + $0xa0] sm:$0xff]
  %v1578 = vld [vmem:[#allocation5 + $0xa8] sm:$0xff]
  %v1579 = vld [vmem:[#allocation5 + $0xb0] sm:$0xff]
  %v1580 = vld [vmem:[#allocation5 + $0xb8] sm:$0xff]
  %v1581 = vld [vmem:[#allocation5 + $0xc0] sm:$0xff]
  %v1582 = vld [vmem:[#allocation5 + $0xc8] sm:$0xff]
  %v1583 = vld [vmem:[#allocation5 + $0xd0] sm:$0xff]
  %v1584 = vld [vmem:[#allocation5 + $0xd8] sm:$0xff]
  %v1585 = vld [vmem:[#allocation5 + $0xe0] sm:$0xff]
  %v1586 = vld [vmem:[#allocation5 + $0xe8] sm:$0xff]
  %v1587 = vld [vmem:[#allocation5 + $0xf0] sm:$0xff]
  %v1588 = vld [vmem:[#allocation5 + $0xf8] sm:$0xff]
  %v1589 = vld [vmem:[#allocation5 + $0x100] sm:$0xff]
  %v1590 = vld [vmem:[#allocation5 + $0x108] sm:$0xff]
  %v1591 = vld [vmem:[#allocation5 + $0x110] sm:$0xff]
  %v1592 = vld [vmem:[#allocation5 + $0x118] sm:$0xff]
  %v1593 = vld [vmem:[#allocation5 + $0x120] sm:$0xff]
  %v1594 = vld [vmem:[#allocation5 + $0x128] sm:$0xff]
  %v1595 = vld [vmem:[#allocation5 + $0x130] sm:$0xff]
  %v1596 = vld [vmem:[#allocation5 + $0x138] sm:$0xff]
  %v1597 = vld [vmem:[#allocation5 + $0x140] sm:$0xff]
  %v1598 = vld [vmem:[#allocation5 + $0x148] sm:$0xff]
  %v1599 = vld [vmem:[#allocation5 + $0x150] sm:$0xff]
  %v1600 = vld [vmem:[#allocation5 + $0x158] sm:$0xff]
  %v1601 = vld [vmem:[#allocation5 + $0x160] sm:$0xff]
  %v1602 = vld [vmem:[#allocation5 + $0x168] sm:$0xff]
  %v1603 = vld [vmem:[#allocation5 + $0x170] sm:$0xff]
  %v1604 = vld [vmem:[#allocation5 + $0x178] sm:$0xff]
  %v1605 = vld [vmem:[#allocation5 + $0x180] sm:$0xff]
  %v1606 = vld [vmem:[#allocation5 + $0x188] sm:$0xff]
  %v1607 = vld [vmem:[#allocation5 + $0x190] sm:$0xff]
  %v1608 = vld [vmem:[#allocation5 + $0x198] sm:$0xff]
  %v1609 = vld [vmem:[#allocation5 + $0x1a0] sm:$0xff]
  %v1610 = vld [vmem:[#allocation5 + $0x1a8] sm:$0xff]
  %v1611 = vld [vmem:[#allocation5 + $0x1b0] sm:$0xff]
  %v1612 = vld [vmem:[#allocation5 + $0x1b8] sm:$0xff]
  %v1613 = vld [vmem:[#allocation5 + $0x1c0] sm:$0xff]
  %v1614 = vld [vmem:[#allocation5 + $0x1c8] sm:$0xff]
  %v1615 = vld [vmem:[#allocation5 + $0x1d0] sm:$0xff]
  %v1616 = vld [vmem:[#allocation5 + $0x1d8] sm:$0xff]
  %v1617 = vld [vmem:[#allocation5 + $0x1e0] sm:$0xff]
  %v1618 = vld [vmem:[#allocation5 + $0x1e8] sm:$0xff]
  %v1619 = vld [vmem:[#allocation5 + $0x1f0] sm:$0xff]
  %v1620 = vld [vmem:[#allocation5 + $0x1f8] sm:$0xff]
  %v1621 = vld [vmem:[#allocation5 + $0x200] sm:$0xff]
  %v1622 = vld [vmem:[#allocation5 + $0x208] sm:$0xff]
  %v1623 = vld [vmem:[#allocation5 + $0x210] sm:$0xff]
  %v1624 = vld [vmem:[#allocation5 + $0x218] sm:$0xff]
  %v1625 = vld [vmem:[#allocation5 + $0x220] sm:$0xff]
  %v1626 = vld [vmem:[#allocation5 + $0x228] sm:$0xff]
  %v1627 = vld [vmem:[#allocation5 + $0x230] sm:$0xff]
  %v1628 = vld [vmem:[#allocation5 + $0x238] sm:$0xff]
  %1630 = vset.pattern.permute.xlu0 0
  %1631 = vperm.xlu0 %1630, %v1042
  %v1632 = vpop.permute.xlu0 %1631
  %v1635 = vsel %vm370, %v1040, 0
  %1637 = vmatprep.subr.mxu0 %v1558
  %1638 = vmatpush1.msra.mxu0 %v1557
  %1639 = vmatprep.subr.mxu0 %v1562
  %1640 = vmatpush1.msra.mxu0 %v1561
  %1641 = vmatprep.subr.mxu0 %v1566
  %1642 = vmatpush1.msra.mxu0 %v1565
  %1643 = vmatprep.subr.mxu0 %v1570
  %1644 = vmatpush1.msra.mxu0 %v1569
  %1645 = vmatprep.subr.mxu0 %v1574
  %1646 = vmatpush1.msra.mxu0 %v1573
  %1647 = vmatprep.subr.mxu0 %v1578
  %1648 = vmatpush1.msra.mxu0 %v1577
  %1649 = vmatprep.subr.mxu0 %v1582
  %1650 = vmatpush1.msra.mxu0 %v1581
  %1651 = vmatprep.subr.mxu0 %v1586
  %1652 = vmatpush1.msra.mxu0 %v1585
  %1653 = vmatprep.subr.mxu0 %v1590
  %1654 = vmatpush1.msra.mxu0 %v1589
  %1655 = vmatprep.subr.mxu0 %v1594
  %1656 = vmatpush1.msra.mxu0 %v1593
  %1657 = vmatprep.subr.mxu0 %v1598
  %1658 = vmatpush1.msra.mxu0 %v1597
  %1659 = vmatprep.subr.mxu0 %v1602
  %1660 = vmatpush1.msra.mxu0 %v1601
  %1661 = vmatprep.subr.mxu0 %v1606
  %1662 = vmatpush1.msra.mxu0 %v1605
  %1663 = vmatprep.subr.mxu0 %v1610
  %1664 = vmatpush1.msra.mxu0 %v1609
  %1665 = vmatprep.subr.mxu0 %v1614
  %1666 = vmatpush1.msra.mxu0 %v1613
  %1667 = vmatprep.subr.mxu0 %v1618
  %1668 = vmatpush1.msra.mxu0 %v1617
  %1669 = vmatprep.subr.mxu0 %v1622
  %1670 = vmatpush1.msra.mxu0 %v1621
  %1671 = vmatprep.subr.mxu0 %v1626
  %1672 = vmatpush1.msra.mxu0 %v1625
  %1673 = vmatprep.subr.mxu0 0.0
  %1674 = vmatpush1.msra.mxu0 0.0
  %1675 = vmatprep.subr.mxu0 0.0
  %1676 = vmatpush1.msra.mxu0 0.0
  %1677 = vmatprep.subr.mxu0 0.0
  %1678 = vmatpush1.msra.mxu0 0.0
  %1679 = vmatprep.subr.mxu0 0.0
  %1680 = vmatpush1.msra.mxu0 0.0
  %1681 = vmatprep.subr.mxu0 0.0
  %1682 = vmatpush1.msra.mxu0 0.0
  %1683 = vmatprep.subr.mxu0 0.0
  %1684 = vmatpush1.msra.mxu0 0.0
  %1685 = vmatprep.subr.mxu0 0.0
  %1686 = vmatpush1.msra.mxu0 0.0
  %1687 = vmatprep.subr.mxu0 0.0
  %1688 = vmatpush1.msra.mxu0 0.0
  %1689 = vmatprep.subr.mxu0 0.0
  %1690 = vmatpush1.msra.mxu0 0.0
  %1691 = vmatprep.subr.mxu0 0.0
  %1692 = vmatpush1.msra.mxu0 0.0
  %1693 = vmatprep.subr.mxu0 0.0
  %1694 = vmatpush1.msra.mxu0 0.0
  %1695 = vmatprep.subr.mxu0 0.0
  %1696 = vmatpush1.msra.mxu0 0.0
  %1697 = vmatprep.subr.mxu0 0.0
  %1698 = vmatpush1.msra.mxu0 0.0
  %1699 = vmatprep.subr.mxu0 0.0
  %1700 = vmatpush1.msra.mxu0 0.0
  %1701 = vmatprep.mubr.f32.mxu0 %v1635
  %1702 = vmatmul.mubr.f32.gmra.mrb[0].mxu0 %v1039
  %v1703 = vpop.f32.mrb[0].mxu0
  %v1704 = vadd.f32 %v1632, %v1703
  %v1705 = vpop.f32.mrb[0].mxu0
  %v1706 = vadd.f32 %v1632, %v1705
  %1707 = vdwg.mxu0
  %1708 = vmatprep.subr.mxu0 %v1560
  %1709 = vmatpush1.msra.mxu0 %v1559
  %1710 = vmatprep.subr.mxu0 %v1564
  %1711 = vmatpush1.msra.mxu0 %v1563
  %1712 = vmatprep.subr.mxu0 %v1568
  %1713 = vmatpush1.msra.mxu0 %v1567
  %1714 = vmatprep.subr.mxu0 %v1572
  %1715 = vmatpush1.msra.mxu0 %v1571
  %1716 = vmatprep.subr.mxu0 %v1576
  %1717 = vmatpush1.msra.mxu0 %v1575
  %1718 = vmatprep.subr.mxu0 %v1580
  %1719 = vmatpush1.msra.mxu0 %v1579
  %1720 = vmatprep.subr.mxu0 %v1584
  %1721 = vmatpush1.msra.mxu0 %v1583
  %1722 = vmatprep.subr.mxu0 %v1588
  %1723 = vmatpush1.msra.mxu0 %v1587
  %1724 = vmatprep.subr.mxu0 %v1592
  %1725 = vmatpush1.msra.mxu0 %v1591
  %1726 = vmatprep.subr.mxu0 %v1596
  %1727 = vmatpush1.msra.mxu0 %v1595
  %1728 = vmatprep.subr.mxu0 %v1600
  %1729 = vmatpush1.msra.mxu0 %v1599
  %1730 = vmatprep.subr.mxu0 %v1604
  %1731 = vmatpush1.msra.mxu0 %v1603
  %1732 = vmatprep.subr.mxu0 %v1608
  %1733 = vmatpush1.msra.mxu0 %v1607
  %1734 = vmatprep.subr.mxu0 %v1612
  %1735 = vmatpush1.msra.mxu0 %v1611
  %1736 = vmatprep.subr.mxu0 %v1616
  %1737 = vmatpush1.msra.mxu0 %v1615
  %1738 = vmatprep.subr.mxu0 %v1620
  %1739 = vmatpush1.msra.mxu0 %v1619
  %1740 = vmatprep.subr.mxu0 %v1624
  %1741 = vmatpush1.msra.mxu0 %v1623
  %1742 = vmatprep.subr.mxu0 %v1628
  %1743 = vmatpush1.msra.mxu0 %v1627
  %1744 = vmatprep.subr.mxu0 0.0
  %1745 = vmatpush1.msra.mxu0 0.0
  %1746 = vmatprep.subr.mxu0 0.0
  %1747 = vmatpush1.msra.mxu0 0.0
  %1748 = vmatprep.subr.mxu0 0.0
  %1749 = vmatpush1.msra.mxu0 0.0
  %1750 = vmatprep.subr.mxu0 0.0
  %1751 = vmatpush1.msra.mxu0 0.0
  %1752 = vmatprep.subr.mxu0 0.0
  %1753 = vmatpush1.msra.mxu0 0.0
  %1754 = vmatprep.subr.mxu0 0.0
  %1755 = vmatpush1.msra.mxu0 0.0
  %1756 = vmatprep.subr.mxu0 0.0
  %1757 = vmatpush1.msra.mxu0 0.0
  %1758 = vmatprep.subr.mxu0 0.0
  %1759 = vmatpush1.msra.mxu0 0.0
  %1760 = vmatprep.subr.mxu0 0.0
  %1761 = vmatpush1.msra.mxu0 0.0
  %1762 = vmatprep.subr.mxu0 0.0
  %1763 = vmatpush1.msra.mxu0 0.0
  %1764 = vmatprep.subr.mxu0 0.0
  %1765 = vmatpush1.msra.mxu0 0.0
  %1766 = vmatprep.subr.mxu0 0.0
  %1767 = vmatpush1.msra.mxu0 0.0
  %1768 = vmatprep.subr.mxu0 0.0
  %1769 = vmatpush1.msra.mxu0 0.0
  %1770 = vmatprep.subr.mxu0 0.0
  %1771 = vmatpush1.msra.mxu0 0.0
  %1772 = vmatprep.mubr.f32.mxu0 %v1635
  %1773 = vmatmul.mubr.f32.gmra.mrb[0].mxu0 %v1039
  %v1774 = vpop.f32.mrb[0].mxu0
  %v1775 = vadd.f32 %v1632, %v1774
  %v1776 = vpop.f32.mrb[0].mxu0
  %v1777 = vadd.f32 %v1632, %v1776
  %1778 = vdwg.mxu0
  %v1779 = vmax.f32 %v1704, 0.0
  %v1780 = vmax.f32 %v1706, 0.0
  %v1781 = vmax.f32 %v1775, 0.0
  %v1782 = vmax.f32 %v1777, 0.0
  %s1783 = scalar_lea.vmem %s4, 8
  %v1784 = vld [vmem:[%s1783] sm:$0xff]
  %s1785 = scalar_lea.vmem %s5, 8
  %v1786 = vld [vmem:[%s1785] sm:$0xff]
  %v1787 = vadd.f32 %v1779, %v1780
  %v1788 = vadd.f32 %v1787, %v1781
  %v1789 = vadd.f32 %v1788, %v1782
  %1790 = vadd.xlane.f32.xlu0 %v1789
  %v1791 = vpop.xlane.xlu0 %1790
  %v1792 = vmul.f32 %v1791, 0.001953125
  %v1793 = vmul.f32 %v1779, %v1779
  %v1794 = vmul.f32 %v1780, %v1780
  %v1795 = vmul.f32 %v1781, %v1781
  %v1796 = vmul.f32 %v1782, %v1782
  %v1797 = vadd.f32 %v1793, %v1794
  %v1798 = vadd.f32 %v1797, %v1795
  %v1799 = vadd.f32 %v1798, %v1796
  %1800 = vadd.xlane.f32.xlu0 %v1799
  %v1801 = vpop.xlane.xlu0 %1800
  %v1802 = vmul.f32 %v1801, 0.001953125
  %v1803 = vmul.f32 %v1792, %v1792
  %v1804 = vsub.f32 %v1802, %v1803
  %v1805 = vadd.f32 %v1804, 1e-05
  %v1806 = vrsqrt.pop %v1805
  %v1807 = vmul.f32 %v1806, %v1784
  %1809 = vset.pattern.permute.xlu0 0
  %1810 = vperm.xlu0 %1809, %v1807
  %v1811 = vpop.permute.xlu0 %1810
  %v1813 = vmul.f32 %v1779, %v1811
  %v1814 = vmul.f32 %v1780, %v1811
  %v1815 = vmul.f32 %v1781, %v1811
  %v1816 = vmul.f32 %v1782, %v1811
  %v1817 = vmul.f32 %v1792, %v1807
  %v1818 = vsub.f32 %v1786, %v1817
  %1820 = vset.pattern.permute.xlu0 0
  %1821 = vperm.xlu0 %1820, %v1818
  %v1822 = vpop.permute.xlu0 %1821
  %v1824 = vadd.f32 %v1813, %v1822
  %v1825 = vadd.f32 %v1814, %v1822
  %v1826 = vadd.f32 %v1815, %v1822
  %v1827 = vadd.f32 %v1816, %v1822
  %v1828 = vld [vmem:[%s6] sm:$0xff]
  %v1829 = vld [vmem:[%s6 + $0x8] sm:$0xff]
  %v1830 = vld [vmem:[%s6 + $0x10] sm:$0xff]
  %v1831 = vld [vmem:[%s6 + $0x18] sm:$0xff]
  %v1832 = vld [vmem:[%s7] sm:$0xff]
  %v1833 = vld [vmem:[%s7 + $0x8] sm:$0xff]
  %1834 = vst [vmem:[#allocation2 + $0x8] sm:$0xff] %v1034
  %1835 = vst [vmem:[#allocation2 + $0x10] sm:$0xff] %v1035
  %1836 = vst [vmem:[#allocation2 + $0x18] sm:$0xff] %v1036
  %1837 = vst [vmem:[#allocation2 + $0x20] sm:$0xff] %v1037
  %v1838 = vld [vmem:[#allocation2] sm:$0xff]
  %v1839 = vld [vmem:[#allocation2 + $0x8] sm:$0xff]
  %v1840 = vld [vmem:[#allocation2 + $0x10] sm:$0xff]
  %v1841 = vld [vmem:[#allocation2 + $0x18] sm:$0xff]
  %v1842 = vld [vmem:[#allocation2 + $0x20] sm:$0xff]
  %v1843 = vld [vmem:[%s0] sm:$0xff]
  %v1844 = vld [vmem:[%s0 + $0x8] sm:$0xff]
  %v1845 = vld [vmem:[%s0 + $0x10] sm:$0xff]
  %v1846 = vld [vmem:[%s0 + $0x18] sm:$0xff]
  %1851 = vrot.lane.b32.xlu0 %v1843, 111
  %v1852 = vpop.permute.xlu0 %1851
  %1853 = vrot.lane.b32.xlu0 %v1844, 111
  %v1854 = vpop.permute.xlu0 %1853
  %1855 = vrot.lane.b32.xlu0 %v1845, 111
  %v1856 = vpop.permute.xlu0 %1855
  %1857 = vrot.lane.b32.xlu0 %v1846, 111
  %v1858 = vpop.permute.xlu0 %1857
  %v1859 = vsel %vm278, %v1852, %v1854
  %v1860 = vsel %vm278, %v1854, %v1856
  %v1861 = vsel %vm278, %v1856, %v1858
  %v1867 = vmul.f32 %v1838, %v1852
  %v1868 = vmul.f32 %v1839, %v1859
  %v1869 = vmul.f32 %v1840, %v1860
  %v1870 = vmul.f32 %v1841, %v1861
  %v1871 = vmul.f32 %v1842, %v1858
  %1877 = vrot.lane.b32.xlu0 %v1867, 17
  %v1878 = vpop.permute.xlu0 %1877
  %1879 = vrot.lane.b32.xlu0 %v1868, 17
  %v1880 = vpop.permute.xlu0 %1879
  %1881 = vrot.lane.b32.xlu0 %v1869, 17
  %v1882 = vpop.permute.xlu0 %1881
  %1883 = vrot.lane.b32.xlu0 %v1870, 17
  %v1884 = vpop.permute.xlu0 %1883
  %1885 = vrot.lane.b32.xlu0 %v1871, 17
  %v1886 = vpop.permute.xlu0 %1885
  %v1887 = vsel %vm307, %v1878, %v1880
  %v1888 = vsel %vm307, %v1880, %v1882
  %v1889 = vsel %vm307, %v1882, %v1884
  %v1890 = vsel %vm307, %v1884, %v1886
  %1895 = vst [vmem:[#allocation3] sm:$0xff] %v1887
  %1896 = vst [vmem:[#allocation3 + $0x8] sm:$0xff] %v1888
  %1897 = vst [vmem:[#allocation3 + $0x10] sm:$0xff] %v1889
  %1898 = vst [vmem:[#allocation3 + $0x18] sm:$0xff] %v1890
  %v1899 = vld [vmem:[#allocation2] sm:$0xff]
  %v1900 = vld [vmem:[#allocation2 + $0x8] sm:$0xff]
  %v1901 = vld [vmem:[#allocation2 + $0x10] sm:$0xff]
  %v1902 = vld [vmem:[#allocation2 + $0x18] sm:$0xff]
  %v1903 = vld [vmem:[#allocation2 + $0x20] sm:$0xff]
  %v1904 = vld [vmem:[%s0 + $0x40] sm:$0xff]
  %v1905 = vld [vmem:[%s0 + $0x48] sm:$0xff]
  %v1906 = vld [vmem:[%s0 + $0x50] sm:$0xff]
  %v1907 = vld [vmem:[%s0 + $0x58] sm:$0xff]
  %1912 = vrot.lane.b32.xlu0 %v1904, 112
  %v1913 = vpop.permute.xlu0 %1912
  %1914 = vrot.lane.b32.xlu0 %v1905, 112
  %v1915 = vpop.permute.xlu0 %1914
  %1916 = vrot.lane.b32.xlu0 %v1906, 112
  %v1917 = vpop.permute.xlu0 %1916
  %1918 = vrot.lane.b32.xlu0 %v1907, 112
  %v1919 = vpop.permute.xlu0 %1918
  %v1920 = vsel %vm341, %v1913, %v1915
  %v1921 = vsel %vm341, %v1915, %v1917
  %v1922 = vsel %vm341, %v1917, %v1919
  %v1928 = vmul.f32 %v1899, %v1913
  %v1929 = vmul.f32 %v1900, %v1920
  %v1930 = vmul.f32 %v1901, %v1921
  %v1931 = vmul.f32 %v1902, %v1922
  %v1932 = vmul.f32 %v1903, %v1919
  %1938 = vrot.lane.b32.xlu0 %v1928, 16
  %v1939 = vpop.permute.xlu0 %1938
  %1940 = vrot.lane.b32.xlu0 %v1929, 16
  %v1941 = vpop.permute.xlu0 %1940
  %1942 = vrot.lane.b32.xlu0 %v1930, 16
  %v1943 = vpop.permute.xlu0 %1942
  %1944 = vrot.lane.b32.xlu0 %v1931, 16
  %v1945 = vpop.permute.xlu0 %1944
  %1946 = vrot.lane.b32.xlu0 %v1932, 16
  %v1947 = vpop.permute.xlu0 %1946
  %v1948 = vsel %vm370, %v1939, %v1941
  %v1949 = vsel %vm370, %v1941, %v1943
  %v1950 = vsel %vm370, %v1943, %v1945
  %v1951 = vsel %vm370, %v1945, %v1947
  %1956 = vst [vmem:[#allocation3 + $0x40] sm:$0xff] %v1948
  %1957 = vst [vmem:[#allocation3 + $0x48] sm:$0xff] %v1949
  %1958 = vst [vmem:[#allocation3 + $0x50] sm:$0xff] %v1950
  %1959 = vst [vmem:[#allocation3 + $0x58] sm:$0xff] %v1951
  %v1960 = vld [vmem:[#allocation2] sm:$0xff]
  %v1961 = vld [vmem:[#allocation2 + $0x8] sm:$0xff]
  %v1962 = vld [vmem:[#allocation2 + $0x10] sm:$0xff]
  %v1963 = vld [vmem:[#allocation2 + $0x18] sm:$0xff]
  %v1964 = vld [vmem:[#allocation2 + $0x20] sm:$0xff]
  %v1965 = vld [vmem:[%s0 + $0x80] sm:$0xff]
  %v1966 = vld [vmem:[%s0 + $0x88] sm:$0xff]
  %v1967 = vld [vmem:[%s0 + $0x90] sm:$0xff]
  %v1968 = vld [vmem:[%s0 + $0x98] sm:$0xff]
  %1973 = vrot.lane.b32.xlu0 %v1965, 113
  %v1974 = vpop.permute.xlu0 %1973
  %1975 = vrot.lane.b32.xlu0 %v1966, 113
  %v1976 = vpop.permute.xlu0 %1975
  %1977 = vrot.lane.b32.xlu0 %v1967, 113
  %v1978 = vpop.permute.xlu0 %1977
  %1979 = vrot.lane.b32.xlu0 %v1968, 113
  %v1980 = vpop.permute.xlu0 %1979
  %v1981 = vsel %vm404, %v1974, %v1976
  %v1982 = vsel %vm404, %v1976, %v1978
  %v1983 = vsel %vm404, %v1978, %v1980
  %v1989 = vmul.f32 %v1960, %v1974
  %v1990 = vmul.f32 %v1961, %v1981
  %v1991 = vmul.f32 %v1962, %v1982
  %v1992 = vmul.f32 %v1963, %v1983
  %v1993 = vmul.f32 %v1964, %v1980
  %1999 = vrot.lane.b32.xlu0 %v1989, 15
  %v2000 = vpop.permute.xlu0 %1999
  %2001 = vrot.lane.b32.xlu0 %v1990, 15
  %v2002 = vpop.permute.xlu0 %2001
  %2003 = vrot.lane.b32.xlu0 %v1991, 15
  %v2004 = vpop.permute.xlu0 %2003
  %2005 = vrot.lane.b32.xlu0 %v1992, 15
  %v2006 = vpop.permute.xlu0 %2005
  %2007 = vrot.lane.b32.xlu0 %v1993, 15
  %v2008 = vpop.permute.xlu0 %2007
  %v2009 = vsel %vm433, %v2000, %v2002
  %v2010 = vsel %vm433, %v2002, %v2004
  %v2011 = vsel %vm433, %v2004, %v2006
  %v2012 = vsel %vm433, %v2006, %v2008
  %2017 = vst [vmem:[#allocation3 + $0x80] sm:$0xff] %v2009
  %2018 = vst [vmem:[#allocation3 + $0x88] sm:$0xff] %v2010
  %2019 = vst [vmem:[#allocation3 + $0x90] sm:$0xff] %v2011
  %2020 = vst [vmem:[#allocation3 + $0x98] sm:$0xff] %v2012
  %v2021 = vld [vmem:[#allocation2] sm:$0xff]
  %v2022 = vld [vmem:[#allocation2 + $0x8] sm:$0xff]
  %v2023 = vld [vmem:[#allocation2 + $0x10] sm:$0xff]
  %v2024 = vld [vmem:[#allocation2 + $0x18] sm:$0xff]
  %v2025 = vld [vmem:[#allocation2 + $0x20] sm:$0xff]
  %v2026 = vld [vmem:[%s0 + $0xc0] sm:$0xff]
  %v2027 = vld [vmem:[%s0 + $0xc8] sm:$0xff]
  %v2028 = vld [vmem:[%s0 + $0xd0] sm:$0xff]
  %v2029 = vld [vmem:[%s0 + $0xd8] sm:$0xff]
  %2034 = vrot.lane.b32.xlu0 %v2026, 127
  %v2035 = vpop.permute.xlu0 %2034
  %2036 = vrot.lane.b32.xlu0 %v2027, 127
  %v2037 = vpop.permute.xlu0 %2036
  %2038 = vrot.lane.b32.xlu0 %v2028, 127
  %v2039 = vpop.permute.xlu0 %2038
  %2040 = vrot.lane.b32.xlu0 %v2029, 127
  %v2041 = vpop.permute.xlu0 %2040
  %v2042 = vsel %vm467, %v2035, %v2037
  %v2043 = vsel %vm467, %v2037, %v2039
  %v2044 = vsel %vm467, %v2039, %v2041
  %v2050 = vmul.f32 %v2021, %v2035
  %v2051 = vmul.f32 %v2022, %v2042
  %v2052 = vmul.f32 %v2023, %v2043
  %v2053 = vmul.f32 %v2024, %v2044
  %v2054 = vmul.f32 %v2025, %v2041
  %2060 = vrot.lane.b32.xlu0 %v2050, 1
  %v2061 = vpop.permute.xlu0 %2060
  %2062 = vrot.lane.b32.xlu0 %v2051, 1
  %v2063 = vpop.permute.xlu0 %2062
  %2064 = vrot.lane.b32.xlu0 %v2052, 1
  %v2065 = vpop.permute.xlu0 %2064
  %2066 = vrot.lane.b32.xlu0 %v2053, 1
  %v2067 = vpop.permute.xlu0 %2066
  %2068 = vrot.lane.b32.xlu0 %v2054, 1
  %v2069 = vpop.permute.xlu0 %2068
  %v2070 = vsel %vm496, %v2061, %v2063
  %v2071 = vsel %vm496, %v2063, %v2065
  %v2072 = vsel %vm496, %v2065, %v2067
  %v2073 = vsel %vm496, %v2067, %v2069
  %2078 = vst [vmem:[#allocation3 + $0xc0] sm:$0xff] %v2070
  %2079 = vst [vmem:[#allocation3 + $0xc8] sm:$0xff] %v2071
  %2080 = vst [vmem:[#allocation3 + $0xd0] sm:$0xff] %v2072
  %2081 = vst [vmem:[#allocation3 + $0xd8] sm:$0xff] %v2073
  %v2082 = vld [vmem:[#allocation2 + $0x8] sm:$0xff]
  %v2083 = vld [vmem:[#allocation2 + $0x10] sm:$0xff]
  %v2084 = vld [vmem:[#allocation2 + $0x18] sm:$0xff]
  %v2085 = vld [vmem:[#allocation2 + $0x20] sm:$0xff]
  %v2086 = vld [vmem:[%s0 + $0x100] sm:$0xff]
  %v2087 = vld [vmem:[%s0 + $0x108] sm:$0xff]
  %v2088 = vld [vmem:[%s0 + $0x110] sm:$0xff]
  %v2089 = vld [vmem:[%s0 + $0x118] sm:$0xff]
  %v2090 = vmul.f32 %v2082, %v2086
  %v2091 = vmul.f32 %v2083, %v2087
  %v2092 = vmul.f32 %v2084, %v2088
  %v2093 = vmul.f32 %v2085, %v2089
  %2094 = vst [vmem:[#allocation3 + $0x100] sm:$0xff] %v2090
  %2095 = vst [vmem:[#allocation3 + $0x108] sm:$0xff] %v2091
  %2096 = vst [vmem:[#allocation3 + $0x110] sm:$0xff] %v2092
  %2097 = vst [vmem:[#allocation3 + $0x118] sm:$0xff] %v2093
  %v2098 = vld [vmem:[#allocation2 + $0x8] sm:$0xff]
  %v2099 = vld [vmem:[#allocation2 + $0x10] sm:$0xff]
  %v2100 = vld [vmem:[#allocation2 + $0x18] sm:$0xff]
  %v2101 = vld [vmem:[#allocation2 + $0x20] sm:$0xff]
  %v2102 = vld [vmem:[#allocation2 + $0x28] sm:$0xff]
  %v2103 = vld [vmem:[%s0 + $0x140] sm:$0xff]
  %v2104 = vld [vmem:[%s0 + $0x148] sm:$0xff]
  %v2105 = vld [vmem:[%s0 + $0x150] sm:$0xff]
  %v2106 = vld [vmem:[%s0 + $0x158] sm:$0xff]
  %2111 = vrot.lane.b32.xlu0 %v2103, 1
  %v2112 = vpop.permute.xlu0 %2111
  %2113 = vrot.lane.b32.xlu0 %v2104, 1
  %v2114 = vpop.permute.xlu0 %2113
  %2115 = vrot.lane.b32.xlu0 %v2105, 1
  %v2116 = vpop.permute.xlu0 %2115
  %2117 = vrot.lane.b32.xlu0 %v2106, 1
  %v2118 = vpop.permute.xlu0 %2117
  %v2119 = vsel %vm496, %v2112, %v2114
  %v2120 = vsel %vm496, %v2114, %v2116
  %v2121 = vsel %vm496, %v2116, %v2118
  %v2127 = vmul.f32 %v2098, %v2112
  %v2128 = vmul.f32 %v2099, %v2119
  %v2129 = vmul.f32 %v2100, %v2120
  %v2130 = vmul.f32 %v2101, %v2121
  %v2131 = vmul.f32 %v2102, %v2118
  %2137 = vrot.lane.b32.xlu0 %v2127, 127
  %v2138 = vpop.permute.xlu0 %2137
  %2139 = vrot.lane.b32.xlu0 %v2128, 127
  %v2140 = vpop.permute.xlu0 %2139
  %2141 = vrot.lane.b32.xlu0 %v2129, 127
  %v2142 = vpop.permute.xlu0 %2141
  %2143 = vrot.lane.b32.xlu0 %v2130, 127
  %v2144 = vpop.permute.xlu0 %2143
  %2145 = vrot.lane.b32.xlu0 %v2131, 127
  %v2146 = vpop.permute.xlu0 %2145
  %v2147 = vsel %vm467, %v2138, %v2140
  %v2148 = vsel %vm467, %v2140, %v2142
  %v2149 = vsel %vm467, %v2142, %v2144
  %v2150 = vsel %vm467, %v2144, %v2146
  %2155 = vst [vmem:[#allocation3 + $0x140] sm:$0xff] %v2147
  %2156 = vst [vmem:[#allocation3 + $0x148] sm:$0xff] %v2148
  %2157 = vst [vmem:[#allocation3 + $0x150] sm:$0xff] %v2149
  %2158 = vst [vmem:[#allocation3 + $0x158] sm:$0xff] %v2150
  %v2159 = vld [vmem:[#allocation2 + $0x8] sm:$0xff]
  %v2160 = vld [vmem:[#allocation2 + $0x10] sm:$0xff]
  %v2161 = vld [vmem:[#allocation2 + $0x18] sm:$0xff]
  %v2162 = vld [vmem:[#allocation2 + $0x20] sm:$0xff]
  %v2163 = vld [vmem:[#allocation2 + $0x28] sm:$0xff]
  %v2164 = vld [vmem:[%s0 + $0x180] sm:$0xff]
  %v2165 = vld [vmem:[%s0 + $0x188] sm:$0xff]
  %v2166 = vld [vmem:[%s0 + $0x190] sm:$0xff]
  %v2167 = vld [vmem:[%s0 + $0x198] sm:$0xff]
  %2172 = vrot.lane.b32.xlu0 %v2164, 15
  %v2173 = vpop.permute.xlu0 %2172
  %2174 = vrot.lane.b32.xlu0 %v2165, 15
  %v2175 = vpop.permute.xlu0 %2174
  %2176 = vrot.lane.b32.xlu0 %v2166, 15
  %v2177 = vpop.permute.xlu0 %2176
  %2178 = vrot.lane.b32.xlu0 %v2167, 15
  %v2179 = vpop.permute.xlu0 %2178
  %v2180 = vsel %vm433, %v2173, %v2175
  %v2181 = vsel %vm433, %v2175, %v2177
  %v2182 = vsel %vm433, %v2177, %v2179
  %v2188 = vmul.f32 %v2159, %v2173
  %v2189 = vmul.f32 %v2160, %v2180
  %v2190 = vmul.f32 %v2161, %v2181
  %v2191 = vmul.f32 %v2162, %v2182
  %v2192 = vmul.f32 %v2163, %v2179
  %2198 = vrot.lane.b32.xlu0 %v2188, 113
  %v2199 = vpop.permute.xlu0 %2198
  %2200 = vrot.lane.b32.xlu0 %v2189, 113
  %v2201 = vpop.permute.xlu0 %2200
  %2202 = vrot.lane.b32.xlu0 %v2190, 113
  %v2203 = vpop.permute.xlu0 %2202
  %2204 = vrot.lane.b32.xlu0 %v2191, 113
  %v2205 = vpop.permute.xlu0 %2204
  %2206 = vrot.lane.b32.xlu0 %v2192, 113
  %v2207 = vpop.permute.xlu0 %2206
  %v2208 = vsel %vm404, %v2199, %v2201
  %v2209 = vsel %vm404, %v2201, %v2203
  %v2210 = vsel %vm404, %v2203, %v2205
  %v2211 = vsel %vm404, %v2205, %v2207
  %2216 = vst [vmem:[#allocation3 + $0x180] sm:$0xff] %v2208
  %2217 = vst [vmem:[#allocation3 + $0x188] sm:$0xff] %v2209
  %2218 = vst [vmem:[#allocation3 + $0x190] sm:$0xff] %v2210
  %2219 = vst [vmem:[#allocation3 + $0x198] sm:$0xff] %v2211
  %v2220 = vld [vmem:[#allocation2 + $0x8] sm:$0xff]
  %v2221 = vld [vmem:[#allocation2 + $0x10] sm:$0xff]
  %v2222 = vld [vmem:[#allocation2 + $0x18] sm:$0xff]
  %v2223 = vld [vmem:[#allocation2 + $0x20] sm:$0xff]
  %v2224 = vld [vmem:[#allocation2 + $0x28] sm:$0xff]
  %v2225 = vld [vmem:[%s0 + $0x1c0] sm:$0xff]
  %v2226 = vld [vmem:[%s0 + $0x1c8] sm:$0xff]
  %v2227 = vld [vmem:[%s0 + $0x1d0] sm:$0xff]
  %v2228 = vld [vmem:[%s0 + $0x1d8] sm:$0xff]
  %2233 = vrot.lane.b32.xlu0 %v2225, 16
  %v2234 = vpop.permute.xlu0 %2233
  %2235 = vrot.lane.b32.xlu0 %v2226, 16
  %v2236 = vpop.permute.xlu0 %2235
  %2237 = vrot.lane.b32.xlu0 %v2227, 16
  %v2238 = vpop.permute.xlu0 %2237
  %2239 = vrot.lane.b32.xlu0 %v2228, 16
  %v2240 = vpop.permute.xlu0 %2239
  %v2241 = vsel %vm370, %v2234, %v2236
  %v2242 = vsel %vm370, %v2236, %v2238
  %v2243 = vsel %vm370, %v2238, %v2240
  %v2249 = vmul.f32 %v2220, %v2234
  %v2250 = vmul.f32 %v2221, %v2241
  %v2251 = vmul.f32 %v2222, %v2242
  %v2252 = vmul.f32 %v2223, %v2243
  %v2253 = vmul.f32 %v2224, %v2240
  %2259 = vrot.lane.b32.xlu0 %v2249, 112
  %v2260 = vpop.permute.xlu0 %2259
  %2261 = vrot.lane.b32.xlu0 %v2250, 112
  %v2262 = vpop.permute.xlu0 %2261
  %2263 = vrot.lane.b32.xlu0 %v2251, 112
  %v2264 = vpop.permute.xlu0 %2263
  %2265 = vrot.lane.b32.xlu0 %v2252, 112
  %v2266 = vpop.permute.xlu0 %2265
  %2267 = vrot.lane.b32.xlu0 %v2253, 112
  %v2268 = vpop.permute.xlu0 %2267
  %v2269 = vsel %vm341, %v2260, %v2262
  %v2270 = vsel %vm341, %v2262, %v2264
  %v2271 = vsel %vm341, %v2264, %v2266
  %v2272 = vsel %vm341, %v2266, %v2268
  %2277 = vst [vmem:[#allocation3 + $0x1c0] sm:$0xff] %v2269
  %2278 = vst [vmem:[#allocation3 + $0x1c8] sm:$0xff] %v2270
  %2279 = vst [vmem:[#allocation3 + $0x1d0] sm:$0xff] %v2271
  %2280 = vst [vmem:[#allocation3 + $0x1d8] sm:$0xff] %v2272
  %v2281 = vld [vmem:[#allocation2 + $0x8] sm:$0xff]
  %v2282 = vld [vmem:[#allocation2 + $0x10] sm:$0xff]
  %v2283 = vld [vmem:[#allocation2 + $0x18] sm:$0xff]
  %v2284 = vld [vmem:[#allocation2 + $0x20] sm:$0xff]
  %v2285 = vld [vmem:[#allocation2 + $0x28] sm:$0xff]
  %v2286 = vld [vmem:[%s0 + $0x200] sm:$0xff]
  %v2287 = vld [vmem:[%s0 + $0x208] sm:$0xff]
  %v2288 = vld [vmem:[%s0 + $0x210] sm:$0xff]
  %v2289 = vld [vmem:[%s0 + $0x218] sm:$0xff]
  %2294 = vrot.lane.b32.xlu0 %v2286, 17
  %v2295 = vpop.permute.xlu0 %2294
  %2296 = vrot.lane.b32.xlu0 %v2287, 17
  %v2297 = vpop.permute.xlu0 %2296
  %2298 = vrot.lane.b32.xlu0 %v2288, 17
  %v2299 = vpop.permute.xlu0 %2298
  %2300 = vrot.lane.b32.xlu0 %v2289, 17
  %v2301 = vpop.permute.xlu0 %2300
  %v2302 = vsel %vm307, %v2295, %v2297
  %v2303 = vsel %vm307, %v2297, %v2299
  %v2304 = vsel %vm307, %v2299, %v2301
  %v2310 = vmul.f32 %v2281, %v2295
  %v2311 = vmul.f32 %v2282, %v2302
  %v2312 = vmul.f32 %v2283, %v2303
  %v2313 = vmul.f32 %v2284, %v2304
  %v2314 = vmul.f32 %v2285, %v2301
  %2320 = vrot.lane.b32.xlu0 %v2310, 111
  %v2321 = vpop.permute.xlu0 %2320
  %2322 = vrot.lane.b32.xlu0 %v2311, 111
  %v2323 = vpop.permute.xlu0 %2322
  %2324 = vrot.lane.b32.xlu0 %v2312, 111
  %v2325 = vpop.permute.xlu0 %2324
  %2326 = vrot.lane.b32.xlu0 %v2313, 111
  %v2327 = vpop.permute.xlu0 %2326
  %2328 = vrot.lane.b32.xlu0 %v2314, 111
  %v2329 = vpop.permute.xlu0 %2328
  %v2330 = vsel %vm278, %v2321, %v2323
  %v2331 = vsel %vm278, %v2323, %v2325
  %v2332 = vsel %vm278, %v2325, %v2327
  %v2333 = vsel %vm278, %v2327, %v2329
  %2338 = vst [vmem:[#allocation3 + $0x200] sm:$0xff] %v2330
  %2339 = vst [vmem:[#allocation3 + $0x208] sm:$0xff] %v2331
  %2340 = vst [vmem:[#allocation3 + $0x210] sm:$0xff] %v2332
  %2341 = vst [vmem:[#allocation3 + $0x218] sm:$0xff] %v2333
  %v2342 = vld [vmem:[#allocation3] sm:$0xff]
  %v2343 = vld [vmem:[#allocation3 + $0x8] sm:$0xff]
  %v2344 = vld [vmem:[#allocation3 + $0x10] sm:$0xff]
  %v2345 = vld [vmem:[#allocation3 + $0x18] sm:$0xff]
  %v2346 = vld [vmem:[#allocation3 + $0x20] sm:$0xff]
  %v2347 = vld [vmem:[#allocation3 + $0x28] sm:$0xff]
  %v2348 = vld [vmem:[#allocation3 + $0x30] sm:$0xff]
  %v2349 = vld [vmem:[#allocation3 + $0x38] sm:$0xff]
  %v2350 = vld [vmem:[#allocation3 + $0x40] sm:$0xff]
  %v2351 = vld [vmem:[#allocation3 + $0x48] sm:$0xff]
  %v2352 = vld [vmem:[#allocation3 + $0x50] sm:$0xff]
  %v2353 = vld [vmem:[#allocation3 + $0x58] sm:$0xff]
  %v2354 = vld [vmem:[#allocation3 + $0x60] sm:$0xff]
  %v2355 = vld [vmem:[#allocation3 + $0x68] sm:$0xff]
  %v2356 = vld [vmem:[#allocation3 + $0x70] sm:$0xff]
  %v2357 = vld [vmem:[#allocation3 + $0x78] sm:$0xff]
  %v2358 = vld [vmem:[#allocation3 + $0x80] sm:$0xff]
  %v2359 = vld [vmem:[#allocation3 + $0x88] sm:$0xff]
  %v2360 = vld [vmem:[#allocation3 + $0x90] sm:$0xff]
  %v2361 = vld [vmem:[#allocation3 + $0x98] sm:$0xff]
  %v2362 = vld [vmem:[#allocation3 + $0xa0] sm:$0xff]
  %v2363 = vld [vmem:[#allocation3 + $0xa8] sm:$0xff]
  %v2364 = vld [vmem:[#allocation3 + $0xb0] sm:$0xff]
  %v2365 = vld [vmem:[#allocation3 + $0xb8] sm:$0xff]
  %v2366 = vld [vmem:[#allocation3 + $0xc0] sm:$0xff]
  %v2367 = vld [vmem:[#allocation3 + $0xc8] sm:$0xff]
  %v2368 = vld [vmem:[#allocation3 + $0xd0] sm:$0xff]
  %v2369 = vld [vmem:[#allocation3 + $0xd8] sm:$0xff]
  %v2370 = vld [vmem:[#allocation3 + $0xe0] sm:$0xff]
  %v2371 = vld [vmem:[#allocation3 + $0xe8] sm:$0xff]
  %v2372 = vld [vmem:[#allocation3 + $0xf0] sm:$0xff]
  %v2373 = vld [vmem:[#allocation3 + $0xf8] sm:$0xff]
  %v2374 = vld [vmem:[#allocation3 + $0x100] sm:$0xff]
  %v2375 = vld [vmem:[#allocation3 + $0x108] sm:$0xff]
  %v2376 = vld [vmem:[#allocation3 + $0x110] sm:$0xff]
  %v2377 = vld [vmem:[#allocation3 + $0x118] sm:$0xff]
  %v2378 = vld [vmem:[#allocation3 + $0x120] sm:$0xff]
  %v2379 = vld [vmem:[#allocation3 + $0x128] sm:$0xff]
  %v2380 = vld [vmem:[#allocation3 + $0x130] sm:$0xff]
  %v2381 = vld [vmem:[#allocation3 + $0x138] sm:$0xff]
  %v2382 = vld [vmem:[#allocation3 + $0x140] sm:$0xff]
  %v2383 = vld [vmem:[#allocation3 + $0x148] sm:$0xff]
  %v2384 = vld [vmem:[#allocation3 + $0x150] sm:$0xff]
  %v2385 = vld [vmem:[#allocation3 + $0x158] sm:$0xff]
  %v2386 = vld [vmem:[#allocation3 + $0x160] sm:$0xff]
  %v2387 = vld [vmem:[#allocation3 + $0x168] sm:$0xff]
  %v2388 = vld [vmem:[#allocation3 + $0x170] sm:$0xff]
  %v2389 = vld [vmem:[#allocation3 + $0x178] sm:$0xff]
  %v2390 = vld [vmem:[#allocation3 + $0x180] sm:$0xff]
  %v2391 = vld [vmem:[#allocation3 + $0x188] sm:$0xff]
  %v2392 = vld [vmem:[#allocation3 + $0x190] sm:$0xff]
  %v2393 = vld [vmem:[#allocation3 + $0x198] sm:$0xff]
  %v2394 = vld [vmem:[#allocation3 + $0x1a0] sm:$0xff]
  %v2395 = vld [vmem:[#allocation3 + $0x1a8] sm:$0xff]
  %v2396 = vld [vmem:[#allocation3 + $0x1b0] sm:$0xff]
  %v2397 = vld [vmem:[#allocation3 + $0x1b8] sm:$0xff]
  %v2398 = vld [vmem:[#allocation3 + $0x1c0] sm:$0xff]
  %v2399 = vld [vmem:[#allocation3 + $0x1c8] sm:$0xff]
  %v2400 = vld [vmem:[#allocation3 + $0x1d0] sm:$0xff]
  %v2401 = vld [vmem:[#allocation3 + $0x1d8] sm:$0xff]
  %v2402 = vld [vmem:[#allocation3 + $0x1e0] sm:$0xff]
  %v2403 = vld [vmem:[#allocation3 + $0x1e8] sm:$0xff]
  %v2404 = vld [vmem:[#allocation3 + $0x1f0] sm:$0xff]
  %v2405 = vld [vmem:[#allocation3 + $0x1f8] sm:$0xff]
  %v2406 = vld [vmem:[#allocation3 + $0x200] sm:$0xff]
  %v2407 = vld [vmem:[#allocation3 + $0x208] sm:$0xff]
  %v2408 = vld [vmem:[#allocation3 + $0x210] sm:$0xff]
  %v2409 = vld [vmem:[#allocation3 + $0x218] sm:$0xff]
  %v2410 = vld [vmem:[#allocation3 + $0x220] sm:$0xff]
  %v2411 = vld [vmem:[#allocation3 + $0x228] sm:$0xff]
  %v2412 = vld [vmem:[#allocation3 + $0x230] sm:$0xff]
  %v2413 = vld [vmem:[#allocation3 + $0x238] sm:$0xff]
  %2415 = vset.pattern.permute.xlu0 0
  %2416 = vperm.xlu0 %2415, %v1832
  %v2417 = vpop.permute.xlu0 %2416
  %2420 = vset.pattern.permute.xlu0 0
  %2421 = vperm.xlu0 %2420, %v1833
  %v2422 = vpop.permute.xlu0 %2421
  %v2425 = vsel %vm370, %v1829, 0
  %v2428 = vsel %vm370, %v1831, 0
  %2430 = vmatprep.subr.mxu0 %v2343
  %2431 = vmatpush1.msra.mxu0 %v2342
  %2432 = vmatprep.subr.mxu0 %v2347
  %2433 = vmatpush1.msra.mxu0 %v2346
  %2434 = vmatprep.subr.mxu0 %v2351
  %2435 = vmatpush1.msra.mxu0 %v2350
  %2436 = vmatprep.subr.mxu0 %v2355
  %2437 = vmatpush1.msra.mxu0 %v2354
  %2438 = vmatprep.subr.mxu0 %v2359
  %2439 = vmatpush1.msra.mxu0 %v2358
  %2440 = vmatprep.subr.mxu0 %v2363
  %2441 = vmatpush1.msra.mxu0 %v2362
  %2442 = vmatprep.subr.mxu0 %v2367
  %2443 = vmatpush1.msra.mxu0 %v2366
  %2444 = vmatprep.subr.mxu0 %v2371
  %2445 = vmatpush1.msra.mxu0 %v2370
  %2446 = vmatprep.subr.mxu0 %v2375
  %2447 = vmatpush1.msra.mxu0 %v2374
  %2448 = vmatprep.subr.mxu0 %v2379
  %2449 = vmatpush1.msra.mxu0 %v2378
  %2450 = vmatprep.subr.mxu0 %v2383
  %2451 = vmatpush1.msra.mxu0 %v2382
  %2452 = vmatprep.subr.mxu0 %v2387
  %2453 = vmatpush1.msra.mxu0 %v2386
  %2454 = vmatprep.subr.mxu0 %v2391
  %2455 = vmatpush1.msra.mxu0 %v2390
  %2456 = vmatprep.subr.mxu0 %v2395
  %2457 = vmatpush1.msra.mxu0 %v2394
  %2458 = vmatprep.subr.mxu0 %v2399
  %2459 = vmatpush1.msra.mxu0 %v2398
  %2460 = vmatprep.subr.mxu0 %v2403
  %2461 = vmatpush1.msra.mxu0 %v2402
  %2462 = vmatprep.subr.mxu0 %v2407
  %2463 = vmatpush1.msra.mxu0 %v2406
  %2464 = vmatprep.subr.mxu0 %v2411
  %2465 = vmatpush1.msra.mxu0 %v2410
  %2466 = vmatprep.subr.mxu0 0.0
  %2467 = vmatpush1.msra.mxu0 0.0
  %2468 = vmatprep.subr.mxu0 0.0
  %2469 = vmatpush1.msra.mxu0 0.0
  %2470 = vmatprep.subr.mxu0 0.0
  %2471 = vmatpush1.msra.mxu0 0.0
  %2472 = vmatprep.subr.mxu0 0.0
  %2473 = vmatpush1.msra.mxu0 0.0
  %2474 = vmatprep.subr.mxu0 0.0
  %2475 = vmatpush1.msra.mxu0 0.0
  %2476 = vmatprep.subr.mxu0 0.0
  %2477 = vmatpush1.msra.mxu0 0.0
  %2478 = vmatprep.subr.mxu0 0.0
  %2479 = vmatpush1.msra.mxu0 0.0
  %2480 = vmatprep.subr.mxu0 0.0
  %2481 = vmatpush1.msra.mxu0 0.0
  %2482 = vmatprep.subr.mxu0 0.0
  %2483 = vmatpush1.msra.mxu0 0.0
  %2484 = vmatprep.subr.mxu0 0.0
  %2485 = vmatpush1.msra.mxu0 0.0
  %2486 = vmatprep.subr.mxu0 0.0
  %2487 = vmatpush1.msra.mxu0 0.0
  %2488 = vmatprep.subr.mxu0 0.0
  %2489 = vmatpush1.msra.mxu0 0.0
  %2490 = vmatprep.subr.mxu0 0.0
  %2491 = vmatpush1.msra.mxu0 0.0
  %2492 = vmatprep.subr.mxu0 0.0
  %2493 = vmatpush1.msra.mxu0 0.0
  %2494 = vmatprep.mubr.f32.mxu0 %v2425
  %2495 = vmatmul.mubr.f32.gmra.mrb[0].mxu0 %v1828
  %v2496 = vpop.f32.mrb[0].mxu0
  %v2497 = vadd.f32 %v2417, %v2496
  %v2498 = vpop.f32.mrb[0].mxu0
  %v2499 = vadd.f32 %v2417, %v2498
  %2500 = vmatprep.mubr.f32.mxu0 %v2428
  %2501 = vmatmul.mubr.f32.gmra.mrb[0].mxu0 %v1830
  %v2502 = vpop.f32.mrb[0].mxu0
  %v2503 = vadd.f32 %v2422, %v2502
  %v2504 = vpop.f32.mrb[0].mxu0
  %v2505 = vadd.f32 %v2422, %v2504
  %2506 = vdwg.mxu0
  %2507 = vmatprep.subr.mxu0 %v2345
  %2508 = vmatpush1.msra.mxu0 %v2344
  %2509 = vmatprep.subr.mxu0 %v2349
  %2510 = vmatpush1.msra.mxu0 %v2348
  %2511 = vmatprep.subr.mxu0 %v2353
  %2512 = vmatpush1.msra.mxu0 %v2352
  %2513 = vmatprep.subr.mxu0 %v2357
  %2514 = vmatpush1.msra.mxu0 %v2356
  %2515 = vmatprep.subr.mxu0 %v2361
  %2516 = vmatpush1.msra.mxu0 %v2360
  %2517 = vmatprep.subr.mxu0 %v2365
  %2518 = vmatpush1.msra.mxu0 %v2364
  %2519 = vmatprep.subr.mxu0 %v2369
  %2520 = vmatpush1.msra.mxu0 %v2368
  %2521 = vmatprep.subr.mxu0 %v2373
  %2522 = vmatpush1.msra.mxu0 %v2372
  %2523 = vmatprep.subr.mxu0 %v2377
  %2524 = vmatpush1.msra.mxu0 %v2376
  %2525 = vmatprep.subr.mxu0 %v2381
  %2526 = vmatpush1.msra.mxu0 %v2380
  %2527 = vmatprep.subr.mxu0 %v2385
  %2528 = vmatpush1.msra.mxu0 %v2384
  %2529 = vmatprep.subr.mxu0 %v2389
  %2530 = vmatpush1.msra.mxu0 %v2388
  %2531 = vmatprep.subr.mxu0 %v2393
  %2532 = vmatpush1.msra.mxu0 %v2392
  %2533 = vmatprep.subr.mxu0 %v2397
  %2534 = vmatpush1.msra.mxu0 %v2396
  %2535 = vmatprep.subr.mxu0 %v2401
  %2536 = vmatpush1.msra.mxu0 %v2400
  %2537 = vmatprep.subr.mxu0 %v2405
  %2538 = vmatpush1.msra.mxu0 %v2404
  %2539 = vmatprep.subr.mxu0 %v2409
  %2540 = vmatpush1.msra.mxu0 %v2408
  %2541 = vmatprep.subr.mxu0 %v2413
  %2542 = vmatpush1.msra.mxu0 %v2412
  %2543 = vmatprep.subr.mxu0 0.0
  %2544 = vmatpush1.msra.mxu0 0.0
  %2545 = vmatprep.subr.mxu0 0.0
  %2546 = vmatpush1.msra.mxu0 0.0
  %2547 = vmatprep.subr.mxu0 0.0
  %2548 = vmatpush1.msra.mxu0 0.0
  %2549 = vmatprep.subr.mxu0 0.0
  %2550 = vmatpush1.msra.mxu0 0.0
  %2551 = vmatprep.subr.mxu0 0.0
  %2552 = vmatpush1.msra.mxu0 0.0
  %2553 = vmatprep.subr.mxu0 0.0
  %2554 = vmatpush1.msra.mxu0 0.0
  %2555 = vmatprep.subr.mxu0 0.0
  %2556 = vmatpush1.msra.mxu0 0.0
  %2557 = vmatprep.subr.mxu0 0.0
  %2558 = vmatpush1.msra.mxu0 0.0
  %2559 = vmatprep.subr.mxu0 0.0
  %2560 = vmatpush1.msra.mxu0 0.0
  %2561 = vmatprep.subr.mxu0 0.0
  %2562 = vmatpush1.msra.mxu0 0.0
  %2563 = vmatprep.subr.mxu0 0.0
  %2564 = vmatpush1.msra.mxu0 0.0
  %2565 = vmatprep.subr.mxu0 0.0
  %2566 = vmatpush1.msra.mxu0 0.0
  %2567 = vmatprep.subr.mxu0 0.0
  %2568 = vmatpush1.msra.mxu0 0.0
  %2569 = vmatprep.subr.mxu0 0.0
  %2570 = vmatpush1.msra.mxu0 0.0
  %2571 = vmatprep.mubr.f32.mxu0 %v2425
  %2572 = vmatmul.mubr.f32.gmra.mrb[0].mxu0 %v1828
  %v2573 = vpop.f32.mrb[0].mxu0
  %v2574 = vadd.f32 %v2417, %v2573
  %v2575 = vpop.f32.mrb[0].mxu0
  %v2576 = vadd.f32 %v2417, %v2575
  %2577 = vmatprep.mubr.f32.mxu0 %v2428
  %2578 = vmatmul.mubr.f32.gmra.mrb[0].mxu0 %v1830
  %v2579 = vpop.f32.mrb[0].mxu0
  %v2580 = vadd.f32 %v2422, %v2579
  %v2581 = vpop.f32.mrb[0].mxu0
  %v2582 = vadd.f32 %v2422, %v2581
  %2583 = vdwg.mxu0
  %v2584 = vmax.f32 %v2497, 0.0
  %v2585 = vmax.f32 %v2499, 0.0
  %v2586 = vmax.f32 %v2574, 0.0
  %v2587 = vmax.f32 %v2576, 0.0
  %v2588 = vmax.f32 %v2503, 0.0
  %v2589 = vmax.f32 %v2505, 0.0
  %v2590 = vmax.f32 %v2580, 0.0
  %v2591 = vmax.f32 %v2582, 0.0
  %v2592 = vld [vmem:[%s8] sm:$0xff]
  %v2593 = vld [vmem:[%s8 + $0x8] sm:$0xff]
  %v2594 = vld [vmem:[%s9] sm:$0xff]
  %v2595 = vld [vmem:[%s9 + $0x8] sm:$0xff]
  %v2596 = vadd.f32 %v2584, %v2585
  %v2597 = vadd.f32 %v2596, %v2586
  %v2598 = vadd.f32 %v2597, %v2587
  %2599 = vadd.xlane.f32.xlu0 %v2598
  %v2600 = vpop.xlane.xlu0 %2599
  %v2601 = vadd.f32 %v2588, %v2589
  %v2602 = vadd.f32 %v2601, %v2590
  %v2603 = vadd.f32 %v2602, %v2591
  %2604 = vadd.xlane.f32.xlu0 %v2603
  %v2605 = vpop.xlane.xlu0 %2604
  %v2606 = vmul.f32 %v2600, 0.001953125
  %v2607 = vmul.f32 %v2605, 0.001953125
  %v2608 = vmul.f32 %v2584, %v2584
  %v2609 = vmul.f32 %v2585, %v2585
  %v2610 = vmul.f32 %v2586, %v2586
  %v2611 = vmul.f32 %v2587, %v2587
  %v2612 = vmul.f32 %v2588, %v2588
  %v2613 = vmul.f32 %v2589, %v2589
  %v2614 = vmul.f32 %v2590, %v2590
  %v2615 = vmul.f32 %v2591, %v2591
  %v2616 = vadd.f32 %v2608, %v2609
  %v2617 = vadd.f32 %v2616, %v2610
  %v2618 = vadd.f32 %v2617, %v2611
  %2619 = vadd.xlane.f32.xlu0 %v2618
  %v2620 = vpop.xlane.xlu0 %2619
  %v2621 = vadd.f32 %v2612, %v2613
  %v2622 = vadd.f32 %v2621, %v2614
  %v2623 = vadd.f32 %v2622, %v2615
  %2624 = vadd.xlane.f32.xlu0 %v2623
  %v2625 = vpop.xlane.xlu0 %2624
  %v2626 = vmul.f32 %v2620, 0.001953125
  %v2627 = vmul.f32 %v2625, 0.001953125
  %v2628 = vmul.f32 %v2606, %v2606
  %v2629 = vmul.f32 %v2607, %v2607
  %v2630 = vsub.f32 %v2626, %v2628
  %v2631 = vsub.f32 %v2627, %v2629
  %v2632 = vadd.f32 %v2630, 1e-05
  %v2633 = vadd.f32 %v2631, 1e-05
  %v2634 = vrsqrt.pop %v2632
  %v2635 = vrsqrt.pop %v2633
  %v2636 = vmul.f32 %v2634, %v2592
  %v2637 = vmul.f32 %v2635, %v2593
  %2639 = vset.pattern.permute.xlu0 0
  %2640 = vperm.xlu0 %2639, %v2636
  %v2641 = vpop.permute.xlu0 %2640
  %2644 = vset.pattern.permute.xlu0 0
  %2645 = vperm.xlu0 %2644, %v2637
  %v2646 = vpop.permute.xlu0 %2645
  %v2648 = vmul.f32 %v2584, %v2641
  %v2649 = vmul.f32 %v2585, %v2641
  %v2650 = vmul.f32 %v2586, %v2641
  %v2651 = vmul.f32 %v2587, %v2641
  %v2652 = vmul.f32 %v2588, %v2646
  %v2653 = vmul.f32 %v2589, %v2646
  %v2654 = vmul.f32 %v2590, %v2646
  %v2655 = vmul.f32 %v2591, %v2646
  %v2656 = vmul.f32 %v2606, %v2636
  %v2657 = vmul.f32 %v2607, %v2637
  %v2658 = vsub.f32 %v2594, %v2656
  %v2659 = vsub.f32 %v2595, %v2657
  %2661 = vset.pattern.permute.xlu0 0
  %2662 = vperm.xlu0 %2661, %v2658
  %v2663 = vpop.permute.xlu0 %2662
  %2666 = vset.pattern.permute.xlu0 0
  %2667 = vperm.xlu0 %2666, %v2659
  %v2668 = vpop.permute.xlu0 %2667
  %v2670 = vadd.f32 %v2648, %v2663
  %v2671 = vadd.f32 %v2649, %v2663
  %v2672 = vadd.f32 %v2650, %v2663
  %v2673 = vadd.f32 %v2651, %v2663
  %v2674 = vadd.f32 %v2652, %v2668
  %v2675 = vadd.f32 %v2653, %v2668
  %v2676 = vadd.f32 %v2654, %v2668
  %v2677 = vadd.f32 %v2655, %v2668
  %s2678 = scalar_lea.vmem %s6, 32
  %v2679 = vld [vmem:[%s2678] sm:$0xff]
  %v2680 = vld [vmem:[%s2678 + $0x8] sm:$0xff]
  %v2681 = vld [vmem:[%s2678 + $0x10] sm:$0xff]
  %v2682 = vld [vmem:[%s2678 + $0x18] sm:$0xff]
  %s2683 = scalar_lea.vmem %s7, 16
  %v2684 = vld [vmem:[%s2683] sm:$0xff]
  %v2685 = vld [vmem:[%s2683 + $0x8] sm:$0xff]
  %2686 = vst [vmem:[#allocation4 + $0x8] sm:$0xff] %v1824
  %2687 = vst [vmem:[#allocation4 + $0x10] sm:$0xff] %v1825
  %2688 = vst [vmem:[#allocation4 + $0x18] sm:$0xff] %v1826
  %2689 = vst [vmem:[#allocation4 + $0x20] sm:$0xff] %v1827
  %v2690 = vld [vmem:[#allocation4] sm:$0xff]
  %v2691 = vld [vmem:[#allocation4 + $0x8] sm:$0xff]
  %v2692 = vld [vmem:[#allocation4 + $0x10] sm:$0xff]
  %v2693 = vld [vmem:[#allocation4 + $0x18] sm:$0xff]
  %v2694 = vld [vmem:[#allocation4 + $0x20] sm:$0xff]
  %v2695 = vld [vmem:[%s0] sm:$0xff]
  %v2696 = vld [vmem:[%s0 + $0x8] sm:$0xff]
  %v2697 = vld [vmem:[%s0 + $0x10] sm:$0xff]
  %v2698 = vld [vmem:[%s0 + $0x18] sm:$0xff]
  %2703 = vrot.lane.b32.xlu0 %v2695, 111
  %v2704 = vpop.permute.xlu0 %2703
  %2705 = vrot.lane.b32.xlu0 %v2696, 111
  %v2706 = vpop.permute.xlu0 %2705
  %2707 = vrot.lane.b32.xlu0 %v2697, 111
  %v2708 = vpop.permute.xlu0 %2707
  %2709 = vrot.lane.b32.xlu0 %v2698, 111
  %v2710 = vpop.permute.xlu0 %2709
  %v2711 = vsel %vm278, %v2704, %v2706
  %v2712 = vsel %vm278, %v2706, %v2708
  %v2713 = vsel %vm278, %v2708, %v2710
  %v2719 = vmul.f32 %v2690, %v2704
  %v2720 = vmul.f32 %v2691, %v2711
  %v2721 = vmul.f32 %v2692, %v2712
  %v2722 = vmul.f32 %v2693, %v2713
  %v2723 = vmul.f32 %v2694, %v2710
  %2729 = vrot.lane.b32.xlu0 %v2719, 17
  %v2730 = vpop.permute.xlu0 %2729
  %2731 = vrot.lane.b32.xlu0 %v2720, 17
  %v2732 = vpop.permute.xlu0 %2731
  %2733 = vrot.lane.b32.xlu0 %v2721, 17
  %v2734 = vpop.permute.xlu0 %2733
  %2735 = vrot.lane.b32.xlu0 %v2722, 17
  %v2736 = vpop.permute.xlu0 %2735
  %2737 = vrot.lane.b32.xlu0 %v2723, 17
  %v2738 = vpop.permute.xlu0 %2737
  %v2739 = vsel %vm307, %v2730, %v2732
  %v2740 = vsel %vm307, %v2732, %v2734
  %v2741 = vsel %vm307, %v2734, %v2736
  %v2742 = vsel %vm307, %v2736, %v2738
  %2747 = vst [vmem:[#allocation5] sm:$0xff] %v2739
  %2748 = vst [vmem:[#allocation5 + $0x8] sm:$0xff] %v2740
  %2749 = vst [vmem:[#allocation5 + $0x10] sm:$0xff] %v2741
  %2750 = vst [vmem:[#allocation5 + $0x18] sm:$0xff] %v2742
  %v2751 = vld [vmem:[#allocation4] sm:$0xff]
  %v2752 = vld [vmem:[#allocation4 + $0x8] sm:$0xff]
  %v2753 = vld [vmem:[#allocation4 + $0x10] sm:$0xff]
  %v2754 = vld [vmem:[#allocation4 + $0x18] sm:$0xff]
  %v2755 = vld [vmem:[#allocation4 + $0x20] sm:$0xff]
  %v2756 = vld [vmem:[%s0 + $0x40] sm:$0xff]
  %v2757 = vld [vmem:[%s0 + $0x48] sm:$0xff]
  %v2758 = vld [vmem:[%s0 + $0x50] sm:$0xff]
  %v2759 = vld [vmem:[%s0 + $0x58] sm:$0xff]
  %2764 = vrot.lane.b32.xlu0 %v2756, 112
  %v2765 = vpop.permute.xlu0 %2764
  %2766 = vrot.lane.b32.xlu0 %v2757, 112
  %v2767 = vpop.permute.xlu0 %2766
  %2768 = vrot.lane.b32.xlu0 %v2758, 112
  %v2769 = vpop.permute.xlu0 %2768
  %2770 = vrot.lane.b32.xlu0 %v2759, 112
  %v2771 = vpop.permute.xlu0 %2770
  %v2772 = vsel %vm341, %v2765, %v2767
  %v2773 = vsel %vm341, %v2767, %v2769
  %v2774 = vsel %vm341, %v2769, %v2771
  %v2780 = vmul.f32 %v2751, %v2765
  %v2781 = vmul.f32 %v2752, %v2772
  %v2782 = vmul.f32 %v2753, %v2773
  %v2783 = vmul.f32 %v2754, %v2774
  %v2784 = vmul.f32 %v2755, %v2771
  %2790 = vrot.lane.b32.xlu0 %v2780, 16
  %v2791 = vpop.permute.xlu0 %2790
  %2792 = vrot.lane.b32.xlu0 %v2781, 16
  %v2793 = vpop.permute.xlu0 %2792
  %2794 = vrot.lane.b32.xlu0 %v2782, 16
  %v2795 = vpop.permute.xlu0 %2794
  %2796 = vrot.lane.b32.xlu0 %v2783, 16
  %v2797 = vpop.permute.xlu0 %2796
  %2798 = vrot.lane.b32.xlu0 %v2784, 16
  %v2799 = vpop.permute.xlu0 %2798
  %v2800 = vsel %vm370, %v2791, %v2793
  %v2801 = vsel %vm370, %v2793, %v2795
  %v2802 = vsel %vm370, %v2795, %v2797
  %v2803 = vsel %vm370, %v2797, %v2799
  %2808 = vst [vmem:[#allocation5 + $0x40] sm:$0xff] %v2800
  %2809 = vst [vmem:[#allocation5 + $0x48] sm:$0xff] %v2801
  %2810 = vst [vmem:[#allocation5 + $0x50] sm:$0xff] %v2802
  %2811 = vst [vmem:[#allocation5 + $0x58] sm:$0xff] %v2803
  %v2812 = vld [vmem:[#allocation4] sm:$0xff]
  %v2813 = vld [vmem:[#allocation4 + $0x8] sm:$0xff]
  %v2814 = vld [vmem:[#allocation4 + $0x10] sm:$0xff]
  %v2815 = vld [vmem:[#allocation4 + $0x18] sm:$0xff]
  %v2816 = vld [vmem:[#allocation4 + $0x20] sm:$0xff]
  %v2817 = vld [vmem:[%s0 + $0x80] sm:$0xff]
  %v2818 = vld [vmem:[%s0 + $0x88] sm:$0xff]
  %v2819 = vld [vmem:[%s0 + $0x90] sm:$0xff]
  %v2820 = vld [vmem:[%s0 + $0x98] sm:$0xff]
  %2825 = vrot.lane.b32.xlu0 %v2817, 113
  %v2826 = vpop.permute.xlu0 %2825
  %2827 = vrot.lane.b32.xlu0 %v2818, 113
  %v2828 = vpop.permute.xlu0 %2827
  %2829 = vrot.lane.b32.xlu0 %v2819, 113
  %v2830 = vpop.permute.xlu0 %2829
  %2831 = vrot.lane.b32.xlu0 %v2820, 113
  %v2832 = vpop.permute.xlu0 %2831
  %v2833 = vsel %vm404, %v2826, %v2828
  %v2834 = vsel %vm404, %v2828, %v2830
  %v2835 = vsel %vm404, %v2830, %v2832
  %v2841 = vmul.f32 %v2812, %v2826
  %v2842 = vmul.f32 %v2813, %v2833
  %v2843 = vmul.f32 %v2814, %v2834
  %v2844 = vmul.f32 %v2815, %v2835
  %v2845 = vmul.f32 %v2816, %v2832
  %2851 = vrot.lane.b32.xlu0 %v2841, 15
  %v2852 = vpop.permute.xlu0 %2851
  %2853 = vrot.lane.b32.xlu0 %v2842, 15
  %v2854 = vpop.permute.xlu0 %2853
  %2855 = vrot.lane.b32.xlu0 %v2843, 15
  %v2856 = vpop.permute.xlu0 %2855
  %2857 = vrot.lane.b32.xlu0 %v2844, 15
  %v2858 = vpop.permute.xlu0 %2857
  %2859 = vrot.lane.b32.xlu0 %v2845, 15
  %v2860 = vpop.permute.xlu0 %2859
  %v2861 = vsel %vm433, %v2852, %v2854
  %v2862 = vsel %vm433, %v2854, %v2856
  %v2863 = vsel %vm433, %v2856, %v2858
  %v2864 = vsel %vm433, %v2858, %v2860
  %2869 = vst [vmem:[#allocation5 + $0x80] sm:$0xff] %v2861
  %2870 = vst [vmem:[#allocation5 + $0x88] sm:$0xff] %v2862
  %2871 = vst [vmem:[#allocation5 + $0x90] sm:$0xff] %v2863
  %2872 = vst [vmem:[#allocation5 + $0x98] sm:$0xff] %v2864
  %v2873 = vld [vmem:[#allocation4] sm:$0xff]
  %v2874 = vld [vmem:[#allocation4 + $0x8] sm:$0xff]
  %v2875 = vld [vmem:[#allocation4 + $0x10] sm:$0xff]
  %v2876 = vld [vmem:[#allocation4 + $0x18] sm:$0xff]
  %v2877 = vld [vmem:[#allocation4 + $0x20] sm:$0xff]
  %v2878 = vld [vmem:[%s0 + $0xc0] sm:$0xff]
  %v2879 = vld [vmem:[%s0 + $0xc8] sm:$0xff]
  %v2880 = vld [vmem:[%s0 + $0xd0] sm:$0xff]
  %v2881 = vld [vmem:[%s0 + $0xd8] sm:$0xff]
  %2886 = vrot.lane.b32.xlu0 %v2878, 127
  %v2887 = vpop.permute.xlu0 %2886
  %2888 = vrot.lane.b32.xlu0 %v2879, 127
  %v2889 = vpop.permute.xlu0 %2888
  %2890 = vrot.lane.b32.xlu0 %v2880, 127
  %v2891 = vpop.permute.xlu0 %2890
  %2892 = vrot.lane.b32.xlu0 %v2881, 127
  %v2893 = vpop.permute.xlu0 %2892
  %v2894 = vsel %vm467, %v2887, %v2889
  %v2895 = vsel %vm467, %v2889, %v2891
  %v2896 = vsel %vm467, %v2891, %v2893
  %v2902 = vmul.f32 %v2873, %v2887
  %v2903 = vmul.f32 %v2874, %v2894
  %v2904 = vmul.f32 %v2875, %v2895
  %v2905 = vmul.f32 %v2876, %v2896
  %v2906 = vmul.f32 %v2877, %v2893
  %2912 = vrot.lane.b32.xlu0 %v2902, 1
  %v2913 = vpop.permute.xlu0 %2912
  %2914 = vrot.lane.b32.xlu0 %v2903, 1
  %v2915 = vpop.permute.xlu0 %2914
  %2916 = vrot.lane.b32.xlu0 %v2904, 1
  %v2917 = vpop.permute.xlu0 %2916
  %2918 = vrot.lane.b32.xlu0 %v2905, 1
  %v2919 = vpop.permute.xlu0 %2918
  %2920 = vrot.lane.b32.xlu0 %v2906, 1
  %v2921 = vpop.permute.xlu0 %2920
  %v2922 = vsel %vm496, %v2913, %v2915
  %v2923 = vsel %vm496, %v2915, %v2917
  %v2924 = vsel %vm496, %v2917, %v2919
  %v2925 = vsel %vm496, %v2919, %v2921
  %2930 = vst [vmem:[#allocation5 + $0xc0] sm:$0xff] %v2922
  %2931 = vst [vmem:[#allocation5 + $0xc8] sm:$0xff] %v2923
  %2932 = vst [vmem:[#allocation5 + $0xd0] sm:$0xff] %v2924
  %2933 = vst [vmem:[#allocation5 + $0xd8] sm:$0xff] %v2925
  %v2934 = vld [vmem:[#allocation4 + $0x8] sm:$0xff]
  %v2935 = vld [vmem:[#allocation4 + $0x10] sm:$0xff]
  %v2936 = vld [vmem:[#allocation4 + $0x18] sm:$0xff]
  %v2937 = vld [vmem:[#allocation4 + $0x20] sm:$0xff]
  %v2938 = vld [vmem:[%s0 + $0x100] sm:$0xff]
  %v2939 = vld [vmem:[%s0 + $0x108] sm:$0xff]
  %v2940 = vld [vmem:[%s0 + $0x110] sm:$0xff]
  %v2941 = vld [vmem:[%s0 + $0x118] sm:$0xff]
  %v2942 = vmul.f32 %v2934, %v2938
  %v2943 = vmul.f32 %v2935, %v2939
  %v2944 = vmul.f32 %v2936, %v2940
  %v2945 = vmul.f32 %v2937, %v2941
  %2946 = vst [vmem:[#allocation5 + $0x100] sm:$0xff] %v2942
  %2947 = vst [vmem:[#allocation5 + $0x108] sm:$0xff] %v2943
  %2948 = vst [vmem:[#allocation5 + $0x110] sm:$0xff] %v2944
  %2949 = vst [vmem:[#allocation5 + $0x118] sm:$0xff] %v2945
  %v2950 = vld [vmem:[#allocation4 + $0x8] sm:$0xff]
  %v2951 = vld [vmem:[#allocation4 + $0x10] sm:$0xff]
  %v2952 = vld [vmem:[#allocation4 + $0x18] sm:$0xff]
  %v2953 = vld [vmem:[#allocation4 + $0x20] sm:$0xff]
  %v2954 = vld [vmem:[#allocation4 + $0x28] sm:$0xff]
  %v2955 = vld [vmem:[%s0 + $0x140] sm:$0xff]
  %v2956 = vld [vmem:[%s0 + $0x148] sm:$0xff]
  %v2957 = vld [vmem:[%s0 + $0x150] sm:$0xff]
  %v2958 = vld [vmem:[%s0 + $0x158] sm:$0xff]
  %2963 = vrot.lane.b32.xlu0 %v2955, 1
  %v2964 = vpop.permute.xlu0 %2963
  %2965 = vrot.lane.b32.xlu0 %v2956, 1
  %v2966 = vpop.permute.xlu0 %2965
  %2967 = vrot.lane.b32.xlu0 %v2957, 1
  %v2968 = vpop.permute.xlu0 %2967
  %2969 = vrot.lane.b32.xlu0 %v2958, 1
  %v2970 = vpop.permute.xlu0 %2969
  %v2971 = vsel %vm496, %v2964, %v2966
  %v2972 = vsel %vm496, %v2966, %v2968
  %v2973 = vsel %vm496, %v2968, %v2970
  %v2979 = vmul.f32 %v2950, %v2964
  %v2980 = vmul.f32 %v2951, %v2971
  %v2981 = vmul.f32 %v2952, %v2972
  %v2982 = vmul.f32 %v2953, %v2973
  %v2983 = vmul.f32 %v2954, %v2970
  %2989 = vrot.lane.b32.xlu0 %v2979, 127
  %v2990 = vpop.permute.xlu0 %2989
  %2991 = vrot.lane.b32.xlu0 %v2980, 127
  %v2992 = vpop.permute.xlu0 %2991
  %2993 = vrot.lane.b32.xlu0 %v2981, 127
  %v2994 = vpop.permute.xlu0 %2993
  %2995 = vrot.lane.b32.xlu0 %v2982, 127
  %v2996 = vpop.permute.xlu0 %2995
  %2997 = vrot.lane.b32.xlu0 %v2983, 127
  %v2998 = vpop.permute.xlu0 %2997
  %v2999 = vsel %vm467, %v2990, %v2992
  %v3000 = vsel %vm467, %v2992, %v2994
  %v3001 = vsel %vm467, %v2994, %v2996
  %v3002 = vsel %vm467, %v2996, %v2998
  %3007 = vst [vmem:[#allocation5 + $0x140] sm:$0xff] %v2999
  %3008 = vst [vmem:[#allocation5 + $0x148] sm:$0xff] %v3000
  %3009 = vst [vmem:[#allocation5 + $0x150] sm:$0xff] %v3001
  %3010 = vst [vmem:[#allocation5 + $0x158] sm:$0xff] %v3002
  %v3011 = vld [vmem:[#allocation4 + $0x8] sm:$0xff]
  %v3012 = vld [vmem:[#allocation4 + $0x10] sm:$0xff]
  %v3013 = vld [vmem:[#allocation4 + $0x18] sm:$0xff]
  %v3014 = vld [vmem:[#allocation4 + $0x20] sm:$0xff]
  %v3015 = vld [vmem:[#allocation4 + $0x28] sm:$0xff]
  %v3016 = vld [vmem:[%s0 + $0x180] sm:$0xff]
  %v3017 = vld [vmem:[%s0 + $0x188] sm:$0xff]
  %v3018 = vld [vmem:[%s0 + $0x190] sm:$0xff]
  %v3019 = vld [vmem:[%s0 + $0x198] sm:$0xff]
  %3024 = vrot.lane.b32.xlu0 %v3016, 15
  %v3025 = vpop.permute.xlu0 %3024
  %3026 = vrot.lane.b32.xlu0 %v3017, 15
  %v3027 = vpop.permute.xlu0 %3026
  %3028 = vrot.lane.b32.xlu0 %v3018, 15
  %v3029 = vpop.permute.xlu0 %3028
  %3030 = vrot.lane.b32.xlu0 %v3019, 15
  %v3031 = vpop.permute.xlu0 %3030
  %v3032 = vsel %vm433, %v3025, %v3027
  %v3033 = vsel %vm433, %v3027, %v3029
  %v3034 = vsel %vm433, %v3029, %v3031
  %v3040 = vmul.f32 %v3011, %v3025
  %v3041 = vmul.f32 %v3012, %v3032
  %v3042 = vmul.f32 %v3013, %v3033
  %v3043 = vmul.f32 %v3014, %v3034
  %v3044 = vmul.f32 %v3015, %v3031
  %3050 = vrot.lane.b32.xlu0 %v3040, 113
  %v3051 = vpop.permute.xlu0 %3050
  %3052 = vrot.lane.b32.xlu0 %v3041, 113
  %v3053 = vpop.permute.xlu0 %3052
  %3054 = vrot.lane.b32.xlu0 %v3042, 113
  %v3055 = vpop.permute.xlu0 %3054
  %3056 = vrot.lane.b32.xlu0 %v3043, 113
  %v3057 = vpop.permute.xlu0 %3056
  %3058 = vrot.lane.b32.xlu0 %v3044, 113
  %v3059 = vpop.permute.xlu0 %3058
  %v3060 = vsel %vm404, %v3051, %v3053
  %v3061 = vsel %vm404, %v3053, %v3055
  %v3062 = vsel %vm404, %v3055, %v3057
  %v3063 = vsel %vm404, %v3057, %v3059
  %3068 = vst [vmem:[#allocation5 + $0x180] sm:$0xff] %v3060
  %3069 = vst [vmem:[#allocation5 + $0x188] sm:$0xff] %v3061
  %3070 = vst [vmem:[#allocation5 + $0x190] sm:$0xff] %v3062
  %3071 = vst [vmem:[#allocation5 + $0x198] sm:$0xff] %v3063
  %v3072 = vld [vmem:[#allocation4 + $0x8] sm:$0xff]
  %v3073 = vld [vmem:[#allocation4 + $0x10] sm:$0xff]
  %v3074 = vld [vmem:[#allocation4 + $0x18] sm:$0xff]
  %v3075 = vld [vmem:[#allocation4 + $0x20] sm:$0xff]
  %v3076 = vld [vmem:[#allocation4 + $0x28] sm:$0xff]
  %v3077 = vld [vmem:[%s0 + $0x1c0] sm:$0xff]
  %v3078 = vld [vmem:[%s0 + $0x1c8] sm:$0xff]
  %v3079 = vld [vmem:[%s0 + $0x1d0] sm:$0xff]
  %v3080 = vld [vmem:[%s0 + $0x1d8] sm:$0xff]
  %3085 = vrot.lane.b32.xlu0 %v3077, 16
  %v3086 = vpop.permute.xlu0 %3085
  %3087 = vrot.lane.b32.xlu0 %v3078, 16
  %v3088 = vpop.permute.xlu0 %3087
  %3089 = vrot.lane.b32.xlu0 %v3079, 16
  %v3090 = vpop.permute.xlu0 %3089
  %3091 = vrot.lane.b32.xlu0 %v3080, 16
  %v3092 = vpop.permute.xlu0 %3091
  %v3093 = vsel %vm370, %v3086, %v3088
  %v3094 = vsel %vm370, %v3088, %v3090
  %v3095 = vsel %vm370, %v3090, %v3092
  %v3101 = vmul.f32 %v3072, %v3086
  %v3102 = vmul.f32 %v3073, %v3093
  %v3103 = vmul.f32 %v3074, %v3094
  %v3104 = vmul.f32 %v3075, %v3095
  %v3105 = vmul.f32 %v3076, %v3092
  %3111 = vrot.lane.b32.xlu0 %v3101, 112
  %v3112 = vpop.permute.xlu0 %3111
  %3113 = vrot.lane.b32.xlu0 %v3102, 112
  %v3114 = vpop.permute.xlu0 %3113
  %3115 = vrot.lane.b32.xlu0 %v3103, 112
  %v3116 = vpop.permute.xlu0 %3115
  %3117 = vrot.lane.b32.xlu0 %v3104, 112
  %v3118 = vpop.permute.xlu0 %3117
  %3119 = vrot.lane.b32.xlu0 %v3105, 112
  %v3120 = vpop.permute.xlu0 %3119
  %v3121 = vsel %vm341, %v3112, %v3114
  %v3122 = vsel %vm341, %v3114, %v3116
  %v3123 = vsel %vm341, %v3116, %v3118
  %v3124 = vsel %vm341, %v3118, %v3120
  %3129 = vst [vmem:[#allocation5 + $0x1c0] sm:$0xff] %v3121
  %3130 = vst [vmem:[#allocation5 + $0x1c8] sm:$0xff] %v3122
  %3131 = vst [vmem:[#allocation5 + $0x1d0] sm:$0xff] %v3123
  %3132 = vst [vmem:[#allocation5 + $0x1d8] sm:$0xff] %v3124
  %v3133 = vld [vmem:[#allocation4 + $0x8] sm:$0xff]
  %v3134 = vld [vmem:[#allocation4 + $0x10] sm:$0xff]
  %v3135 = vld [vmem:[#allocation4 + $0x18] sm:$0xff]
  %v3136 = vld [vmem:[#allocation4 + $0x20] sm:$0xff]
  %v3137 = vld [vmem:[#allocation4 + $0x28] sm:$0xff]
  %v3138 = vld [vmem:[%s0 + $0x200] sm:$0xff]
  %v3139 = vld [vmem:[%s0 + $0x208] sm:$0xff]
  %v3140 = vld [vmem:[%s0 + $0x210] sm:$0xff]
  %v3141 = vld [vmem:[%s0 + $0x218] sm:$0xff]
  %3146 = vrot.lane.b32.xlu0 %v3138, 17
  %v3147 = vpop.permute.xlu0 %3146
  %3148 = vrot.lane.b32.xlu0 %v3139, 17
  %v3149 = vpop.permute.xlu0 %3148
  %3150 = vrot.lane.b32.xlu0 %v3140, 17
  %v3151 = vpop.permute.xlu0 %3150
  %3152 = vrot.lane.b32.xlu0 %v3141, 17
  %v3153 = vpop.permute.xlu0 %3152
  %v3154 = vsel %vm307, %v3147, %v3149
  %v3155 = vsel %vm307, %v3149, %v3151
  %v3156 = vsel %vm307, %v3151, %v3153
  %v3162 = vmul.f32 %v3133, %v3147
  %v3163 = vmul.f32 %v3134, %v3154
  %v3164 = vmul.f32 %v3135, %v3155
  %v3165 = vmul.f32 %v3136, %v3156
  %v3166 = vmul.f32 %v3137, %v3153
  %3172 = vrot.lane.b32.xlu0 %v3162, 111
  %v3173 = vpop.permute.xlu0 %3172
  %3174 = vrot.lane.b32.xlu0 %v3163, 111
  %v3175 = vpop.permute.xlu0 %3174
  %3176 = vrot.lane.b32.xlu0 %v3164, 111
  %v3177 = vpop.permute.xlu0 %3176
  %3178 = vrot.lane.b32.xlu0 %v3165, 111
  %v3179 = vpop.permute.xlu0 %3178
  %3180 = vrot.lane.b32.xlu0 %v3166, 111
  %v3181 = vpop.permute.xlu0 %3180
  %v3182 = vsel %vm278, %v3173, %v3175
  %v3183 = vsel %vm278, %v3175, %v3177
  %v3184 = vsel %vm278, %v3177, %v3179
  %v3185 = vsel %vm278, %v3179, %v3181
  %3190 = vst [vmem:[#allocation5 + $0x200] sm:$0xff] %v3182
  %3191 = vst [vmem:[#allocation5 + $0x208] sm:$0xff] %v3183
  %3192 = vst [vmem:[#allocation5 + $0x210] sm:$0xff] %v3184
  %3193 = vst [vmem:[#allocation5 + $0x218] sm:$0xff] %v3185
  %v3194 = vld [vmem:[#allocation5] sm:$0xff]
  %v3195 = vld [vmem:[#allocation5 + $0x8] sm:$0xff]
  %v3196 = vld [vmem:[#allocation5 + $0x10] sm:$0xff]
  %v3197 = vld [vmem:[#allocation5 + $0x18] sm:$0xff]
  %v3198 = vld [vmem:[#allocation5 + $0x20] sm:$0xff]
  %v3199 = vld [vmem:[#allocation5 + $0x28] sm:$0xff]
  %v3200 = vld [vmem:[#allocation5 + $0x30] sm:$0xff]
  %v3201 = vld [vmem:[#allocation5 + $0x38] sm:$0xff]
  %v3202 = vld [vmem:[#allocation5 + $0x40] sm:$0xff]
  %v3203 = vld [vmem:[#allocation5 + $0x48] sm:$0xff]
  %v3204 = vld [vmem:[#allocation5 + $0x50] sm:$0xff]
  %v3205 = vld [vmem:[#allocation5 + $0x58] sm:$0xff]
  %v3206 = vld [vmem:[#allocation5 + $0x60] sm:$0xff]
  %v3207 = vld [vmem:[#allocation5 + $0x68] sm:$0xff]
  %v3208 = vld [vmem:[#allocation5 + $0x70] sm:$0xff]
  %v3209 = vld [vmem:[#allocation5 + $0x78] sm:$0xff]
  %v3210 = vld [vmem:[#allocation5 + $0x80] sm:$0xff]
  %v3211 = vld [vmem:[#allocation5 + $0x88] sm:$0xff]
  %v3212 = vld [vmem:[#allocation5 + $0x90] sm:$0xff]
  %v3213 = vld [vmem:[#allocation5 + $0x98] sm:$0xff]
  %v3214 = vld [vmem:[#allocation5 + $0xa0] sm:$0xff]
  %v3215 = vld [vmem:[#allocation5 + $0xa8] sm:$0xff]
  %v3216 = vld [vmem:[#allocation5 + $0xb0] sm:$0xff]
  %v3217 = vld [vmem:[#allocation5 + $0xb8] sm:$0xff]
  %v3218 = vld [vmem:[#allocation5 + $0xc0] sm:$0xff]
  %v3219 = vld [vmem:[#allocation5 + $0xc8] sm:$0xff]
  %v3220 = vld [vmem:[#allocation5 + $0xd0] sm:$0xff]
  %v3221 = vld [vmem:[#allocation5 + $0xd8] sm:$0xff]
  %v3222 = vld [vmem:[#allocation5 + $0xe0] sm:$0xff]
  %v3223 = vld [vmem:[#allocation5 + $0xe8] sm:$0xff]
  %v3224 = vld [vmem:[#allocation5 + $0xf0] sm:$0xff]
  %v3225 = vld [vmem:[#allocation5 + $0xf8] sm:$0xff]
  %v3226 = vld [vmem:[#allocation5 + $0x100] sm:$0xff]
  %v3227 = vld [vmem:[#allocation5 + $0x108] sm:$0xff]
  %v3228 = vld [vmem:[#allocation5 + $0x110] sm:$0xff]
  %v3229 = vld [vmem:[#allocation5 + $0x118] sm:$0xff]
  %v3230 = vld [vmem:[#allocation5 + $0x120] sm:$0xff]
  %v3231 = vld [vmem:[#allocation5 + $0x128] sm:$0xff]
  %v3232 = vld [vmem:[#allocation5 + $0x130] sm:$0xff]
  %v3233 = vld [vmem:[#allocation5 + $0x138] sm:$0xff]
  %v3234 = vld [vmem:[#allocation5 + $0x140] sm:$0xff]
  %v3235 = vld [vmem:[#allocation5 + $0x148] sm:$0xff]
  %v3236 = vld [vmem:[#allocation5 + $0x150] sm:$0xff]
  %v3237 = vld [vmem:[#allocation5 + $0x158] sm:$0xff]
  %v3238 = vld [vmem:[#allocation5 + $0x160] sm:$0xff]
  %v3239 = vld [vmem:[#allocation5 + $0x168] sm:$0xff]
  %v3240 = vld [vmem:[#allocation5 + $0x170] sm:$0xff]
  %v3241 = vld [vmem:[#allocation5 + $0x178] sm:$0xff]
  %v3242 = vld [vmem:[#allocation5 + $0x180] sm:$0xff]
  %v3243 = vld [vmem:[#allocation5 + $0x188] sm:$0xff]
  %v3244 = vld [vmem:[#allocation5 + $0x190] sm:$0xff]
  %v3245 = vld [vmem:[#allocation5 + $0x198] sm:$0xff]
  %v3246 = vld [vmem:[#allocation5 + $0x1a0] sm:$0xff]
  %v3247 = vld [vmem:[#allocation5 + $0x1a8] sm:$0xff]
  %v3248 = vld [vmem:[#allocation5 + $0x1b0] sm:$0xff]
  %v3249 = vld [vmem:[#allocation5 + $0x1b8] sm:$0xff]
  %v3250 = vld [vmem:[#allocation5 + $0x1c0] sm:$0xff]
  %v3251 = vld [vmem:[#allocation5 + $0x1c8] sm:$0xff]
  %v3252 = vld [vmem:[#allocation5 + $0x1d0] sm:$0xff]
  %v3253 = vld [vmem:[#allocation5 + $0x1d8] sm:$0xff]
  %v3254 = vld [vmem:[#allocation5 + $0x1e0] sm:$0xff]
  %v3255 = vld [vmem:[#allocation5 + $0x1e8] sm:$0xff]
  %v3256 = vld [vmem:[#allocation5 + $0x1f0] sm:$0xff]
  %v3257 = vld [vmem:[#allocation5 + $0x1f8] sm:$0xff]
  %v3258 = vld [vmem:[#allocation5 + $0x200] sm:$0xff]
  %v3259 = vld [vmem:[#allocation5 + $0x208] sm:$0xff]
  %v3260 = vld [vmem:[#allocation5 + $0x210] sm:$0xff]
  %v3261 = vld [vmem:[#allocation5 + $0x218] sm:$0xff]
  %v3262 = vld [vmem:[#allocation5 + $0x220] sm:$0xff]
  %v3263 = vld [vmem:[#allocation5 + $0x228] sm:$0xff]
  %v3264 = vld [vmem:[#allocation5 + $0x230] sm:$0xff]
  %v3265 = vld [vmem:[#allocation5 + $0x238] sm:$0xff]
  %3267 = vset.pattern.permute.xlu0 0
  %3268 = vperm.xlu0 %3267, %v2684
  %v3269 = vpop.permute.xlu0 %3268
  %3272 = vset.pattern.permute.xlu0 0
  %3273 = vperm.xlu0 %3272, %v2685
  %v3274 = vpop.permute.xlu0 %3273
  %v3277 = vsel %vm370, %v2680, 0
  %v3280 = vsel %vm370, %v2682, 0
  %3282 = vmatprep.subr.mxu0 %v3195
  %3283 = vmatpush1.msra.mxu0 %v3194
  %3284 = vmatprep.subr.mxu0 %v3199
  %3285 = vmatpush1.msra.mxu0 %v3198
  %3286 = vmatprep.subr.mxu0 %v3203
  %3287 = vmatpush1.msra.mxu0 %v3202
  %3288 = vmatprep.subr.mxu0 %v3207
  %3289 = vmatpush1.msra.mxu0 %v3206
  %3290 = vmatprep.subr.mxu0 %v3211
  %3291 = vmatpush1.msra.mxu0 %v3210
  %3292 = vmatprep.subr.mxu0 %v3215
  %3293 = vmatpush1.msra.mxu0 %v3214
  %3294 = vmatprep.subr.mxu0 %v3219
  %3295 = vmatpush1.msra.mxu0 %v3218
  %3296 = vmatprep.subr.mxu0 %v3223
  %3297 = vmatpush1.msra.mxu0 %v3222
  %3298 = vmatprep.subr.mxu0 %v3227
  %3299 = vmatpush1.msra.mxu0 %v3226
  %3300 = vmatprep.subr.mxu0 %v3231
  %3301 = vmatpush1.msra.mxu0 %v3230
  %3302 = vmatprep.subr.mxu0 %v3235
  %3303 = vmatpush1.msra.mxu0 %v3234
  %3304 = vmatprep.subr.mxu0 %v3239
  %3305 = vmatpush1.msra.mxu0 %v3238
  %3306 = vmatprep.subr.mxu0 %v3243
  %3307 = vmatpush1.msra.mxu0 %v3242
  %3308 = vmatprep.subr.mxu0 %v3247
  %3309 = vmatpush1.msra.mxu0 %v3246
  %3310 = vmatprep.subr.mxu0 %v3251
  %3311 = vmatpush1.msra.mxu0 %v3250
  %3312 = vmatprep.subr.mxu0 %v3255
  %3313 = vmatpush1.msra.mxu0 %v3254
  %3314 = vmatprep.subr.mxu0 %v3259
  %3315 = vmatpush1.msra.mxu0 %v3258
  %3316 = vmatprep.subr.mxu0 %v3263
  %3317 = vmatpush1.msra.mxu0 %v3262
  %3318 = vmatprep.subr.mxu0 0.0
  %3319 = vmatpush1.msra.mxu0 0.0
  %3320 = vmatprep.subr.mxu0 0.0
  %3321 = vmatpush1.msra.mxu0 0.0
  %3322 = vmatprep.subr.mxu0 0.0
  %3323 = vmatpush1.msra.mxu0 0.0
  %3324 = vmatprep.subr.mxu0 0.0
  %3325 = vmatpush1.msra.mxu0 0.0
  %3326 = vmatprep.subr.mxu0 0.0
  %3327 = vmatpush1.msra.mxu0 0.0
  %3328 = vmatprep.subr.mxu0 0.0
  %3329 = vmatpush1.msra.mxu0 0.0
  %3330 = vmatprep.subr.mxu0 0.0
  %3331 = vmatpush1.msra.mxu0 0.0
  %3332 = vmatprep.subr.mxu0 0.0
  %3333 = vmatpush1.msra.mxu0 0.0
  %3334 = vmatprep.subr.mxu0 0.0
  %3335 = vmatpush1.msra.mxu0 0.0
  %3336 = vmatprep.subr.mxu0 0.0
  %3337 = vmatpush1.msra.mxu0 0.0
  %3338 = vmatprep.subr.mxu0 0.0
  %3339 = vmatpush1.msra.mxu0 0.0
  %3340 = vmatprep.subr.mxu0 0.0
  %3341 = vmatpush1.msra.mxu0 0.0
  %3342 = vmatprep.subr.mxu0 0.0
  %3343 = vmatpush1.msra.mxu0 0.0
  %3344 = vmatprep.subr.mxu0 0.0
  %3345 = vmatpush1.msra.mxu0 0.0
  %3346 = vmatprep.mubr.f32.mxu0 %v3277
  %3347 = vmatmul.mubr.f32.gmra.mrb[0].mxu0 %v2679
  %v3348 = vpop.f32.mrb[0].mxu0
  %v3349 = vadd.f32 %v3269, %v3348
  %v3350 = vpop.f32.mrb[0].mxu0
  %v3351 = vadd.f32 %v3269, %v3350
  %3352 = vmatprep.mubr.f32.mxu0 %v3280
  %3353 = vmatmul.mubr.f32.gmra.mrb[0].mxu0 %v2681
  %v3354 = vpop.f32.mrb[0].mxu0
  %v3355 = vadd.f32 %v3274, %v3354
  %v3356 = vpop.f32.mrb[0].mxu0
  %v3357 = vadd.f32 %v3274, %v3356
  %3358 = vdwg.mxu0
  %3359 = vmatprep.subr.mxu0 %v3197
  %3360 = vmatpush1.msra.mxu0 %v3196
  %3361 = vmatprep.subr.mxu0 %v3201
  %3362 = vmatpush1.msra.mxu0 %v3200
  %3363 = vmatprep.subr.mxu0 %v3205
  %3364 = vmatpush1.msra.mxu0 %v3204
  %3365 = vmatprep.subr.mxu0 %v3209
  %3366 = vmatpush1.msra.mxu0 %v3208
  %3367 = vmatprep.subr.mxu0 %v3213
  %3368 = vmatpush1.msra.mxu0 %v3212
  %3369 = vmatprep.subr.mxu0 %v3217
  %3370 = vmatpush1.msra.mxu0 %v3216
  %3371 = vmatprep.subr.mxu0 %v3221
  %3372 = vmatpush1.msra.mxu0 %v3220
  %3373 = vmatprep.subr.mxu0 %v3225
  %3374 = vmatpush1.msra.mxu0 %v3224
  %3375 = vmatprep.subr.mxu0 %v3229
  %3376 = vmatpush1.msra.mxu0 %v3228
  %3377 = vmatprep.subr.mxu0 %v3233
  %3378 = vmatpush1.msra.mxu0 %v3232
  %3379 = vmatprep.subr.mxu0 %v3237
  %3380 = vmatpush1.msra.mxu0 %v3236
  %3381 = vmatprep.subr.mxu0 %v3241
  %3382 = vmatpush1.msra.mxu0 %v3240
  %3383 = vmatprep.subr.mxu0 %v3245
  %3384 = vmatpush1.msra.mxu0 %v3244
  %3385 = vmatprep.subr.mxu0 %v3249
  %3386 = vmatpush1.msra.mxu0 %v3248
  %3387 = vmatprep.subr.mxu0 %v3253
  %3388 = vmatpush1.msra.mxu0 %v3252
  %3389 = vmatprep.subr.mxu0 %v3257
  %3390 = vmatpush1.msra.mxu0 %v3256
  %3391 = vmatprep.subr.mxu0 %v3261
  %3392 = vmatpush1.msra.mxu0 %v3260
  %3393 = vmatprep.subr.mxu0 %v3265
  %3394 = vmatpush1.msra.mxu0 %v3264
  %3395 = vmatprep.subr.mxu0 0.0
  %3396 = vmatpush1.msra.mxu0 0.0
  %3397 = vmatprep.subr.mxu0 0.0
  %3398 = vmatpush1.msra.mxu0 0.0
  %3399 = vmatprep.subr.mxu0 0.0
  %3400 = vmatpush1.msra.mxu0 0.0
  %3401 = vmatprep.subr.mxu0 0.0
  %3402 = vmatpush1.msra.mxu0 0.0
  %3403 = vmatprep.subr.mxu0 0.0
  %3404 = vmatpush1.msra.mxu0 0.0
  %3405 = vmatprep.subr.mxu0 0.0
  %3406 = vmatpush1.msra.mxu0 0.0
  %3407 = vmatprep.subr.mxu0 0.0
  %3408 = vmatpush1.msra.mxu0 0.0
  %3409 = vmatprep.subr.mxu0 0.0
  %3410 = vmatpush1.msra.mxu0 0.0
  %3411 = vmatprep.subr.mxu0 0.0
  %3412 = vmatpush1.msra.mxu0 0.0
  %3413 = vmatprep.subr.mxu0 0.0
  %3414 = vmatpush1.msra.mxu0 0.0
  %3415 = vmatprep.subr.mxu0 0.0
  %3416 = vmatpush1.msra.mxu0 0.0
  %3417 = vmatprep.subr.mxu0 0.0
  %3418 = vmatpush1.msra.mxu0 0.0
  %3419 = vmatprep.subr.mxu0 0.0
  %3420 = vmatpush1.msra.mxu0 0.0
  %3421 = vmatprep.subr.mxu0 0.0
  %3422 = vmatpush1.msra.mxu0 0.0
  %3423 = vmatprep.mubr.f32.mxu0 %v3277
  %3424 = vmatmul.mubr.f32.gmra.mrb[0].mxu0 %v2679
  %v3425 = vpop.f32.mrb[0].mxu0
  %v3426 = vadd.f32 %v3269, %v3425
  %v3427 = vpop.f32.mrb[0].mxu0
  %v3428 = vadd.f32 %v3269, %v3427
  %3429 = vmatprep.mubr.f32.mxu0 %v3280
  %3430 = vmatmul.mubr.f32.gmra.mrb[0].mxu0 %v2681
  %v3431 = vpop.f32.mrb[0].mxu0
  %v3432 = vadd.f32 %v3274, %v3431
  %v3433 = vpop.f32.mrb[0].mxu0
  %v3434 = vadd.f32 %v3274, %v3433
  %3435 = vdwg.mxu0
  %v3436 = vmax.f32 %v3349, 0.0
  %v3437 = vmax.f32 %v3351, 0.0
  %v3438 = vmax.f32 %v3426, 0.0
  %v3439 = vmax.f32 %v3428, 0.0
  %v3440 = vmax.f32 %v3355, 0.0
  %v3441 = vmax.f32 %v3357, 0.0
  %v3442 = vmax.f32 %v3432, 0.0
  %v3443 = vmax.f32 %v3434, 0.0
  %s3444 = scalar_lea.vmem %s8, 16
  %v3445 = vld [vmem:[%s3444] sm:$0xff]
  %v3446 = vld [vmem:[%s3444 + $0x8] sm:$0xff]
  %s3447 = scalar_lea.vmem %s9, 16
  %v3448 = vld [vmem:[%s3447] sm:$0xff]
  %v3449 = vld [vmem:[%s3447 + $0x8] sm:$0xff]
  %v3450 = vadd.f32 %v3436, %v3437
  %v3451 = vadd.f32 %v3450, %v3438
  %v3452 = vadd.f32 %v3451, %v3439
  %3453 = vadd.xlane.f32.xlu0 %v3452
  %v3454 = vpop.xlane.xlu0 %3453
  %v3455 = vadd.f32 %v3440, %v3441
  %v3456 = vadd.f32 %v3455, %v3442
  %v3457 = vadd.f32 %v3456, %v3443
  %3458 = vadd.xlane.f32.xlu0 %v3457
  %v3459 = vpop.xlane.xlu0 %3458
  %v3460 = vmul.f32 %v3454, 0.001953125
  %v3461 = vmul.f32 %v3459, 0.001953125
  %v3462 = vmul.f32 %v3436, %v3436
  %v3463 = vmul.f32 %v3437, %v3437
  %v3464 = vmul.f32 %v3438, %v3438
  %v3465 = vmul.f32 %v3439, %v3439
  %v3466 = vmul.f32 %v3440, %v3440
  %v3467 = vmul.f32 %v3441, %v3441
  %v3468 = vmul.f32 %v3442, %v3442
  %v3469 = vmul.f32 %v3443, %v3443
  %v3470 = vadd.f32 %v3462, %v3463
  %v3471 = vadd.f32 %v3470, %v3464
  %v3472 = vadd.f32 %v3471, %v3465
  %3473 = vadd.xlane.f32.xlu0 %v3472
  %v3474 = vpop.xlane.xlu0 %3473
  %v3475 = vadd.f32 %v3466, %v3467
  %v3476 = vadd.f32 %v3475, %v3468
  %v3477 = vadd.f32 %v3476, %v3469
  %3478 = vadd.xlane.f32.xlu0 %v3477
  %v3479 = vpop.xlane.xlu0 %3478
  %v3480 = vmul.f32 %v3474, 0.001953125
  %v3481 = vmul.f32 %v3479, 0.001953125
  %v3482 = vmul.f32 %v3460, %v3460
  %v3483 = vmul.f32 %v3461, %v3461
  %v3484 = vsub.f32 %v3480, %v3482
  %v3485 = vsub.f32 %v3481, %v3483
  %v3486 = vadd.f32 %v3484, 1e-05
  %v3487 = vadd.f32 %v3485, 1e-05
  %v3488 = vrsqrt.pop %v3486
  %v3489 = vrsqrt.pop %v3487
  %v3490 = vmul.f32 %v3488, %v3445
  %v3491 = vmul.f32 %v3489, %v3446
  %3493 = vset.pattern.permute.xlu0 0
  %3494 = vperm.xlu0 %3493, %v3490
  %v3495 = vpop.permute.xlu0 %3494
  %3498 = vset.pattern.permute.xlu0 0
  %3499 = vperm.xlu0 %3498, %v3491
  %v3500 = vpop.permute.xlu0 %3499
  %v3502 = vmul.f32 %v3436, %v3495
  %v3503 = vmul.f32 %v3437, %v3495
  %v3504 = vmul.f32 %v3438, %v3495
  %v3505 = vmul.f32 %v3439, %v3495
  %v3506 = vmul.f32 %v3440, %v3500
  %v3507 = vmul.f32 %v3441, %v3500
  %v3508 = vmul.f32 %v3442, %v3500
  %v3509 = vmul.f32 %v3443, %v3500
  %v3510 = vmul.f32 %v3460, %v3490
  %v3511 = vmul.f32 %v3461, %v3491
  %v3512 = vsub.f32 %v3448, %v3510
  %v3513 = vsub.f32 %v3449, %v3511
  %3515 = vset.pattern.permute.xlu0 0
  %3516 = vperm.xlu0 %3515, %v3512
  %v3517 = vpop.permute.xlu0 %3516
  %3520 = vset.pattern.permute.xlu0 0
  %3521 = vperm.xlu0 %3520, %v3513
  %v3522 = vpop.permute.xlu0 %3521
  %v3524 = vadd.f32 %v3502, %v3517
  %v3525 = vadd.f32 %v3503, %v3517
  %v3526 = vadd.f32 %v3504, %v3517
  %v3527 = vadd.f32 %v3505, %v3517
  %v3528 = vadd.f32 %v3506, %v3522
  %v3529 = vadd.f32 %v3507, %v3522
  %v3530 = vadd.f32 %v3508, %v3522
  %v3531 = vadd.f32 %v3509, %v3522
  %v3532 = vld [vmem:[%s10] sm:$0xff]
  %v3533 = vld [vmem:[%s10 + $0x8] sm:$0xff]
  %v3534 = vld [vmem:[%s10 + $0x10] sm:$0xff]
  %v3535 = vld [vmem:[%s10 + $0x18] sm:$0xff]
  %v3536 = vld [vmem:[%s11] sm:$0xff]
  %v3537 = vld [vmem:[%s11 + $0x8] sm:$0xff]
  %3538 = vst [vmem:[#allocation2 + $0x8] sm:$0xff] %v2670
  %3539 = vst [vmem:[#allocation2 + $0x10] sm:$0xff] %v2671
  %3540 = vst [vmem:[#allocation2 + $0x18] sm:$0xff] %v2672
  %3541 = vst [vmem:[#allocation2 + $0x20] sm:$0xff] %v2673
  %3542 = vst [vmem:[#allocation2 + $0x38] sm:$0xff] %v2674
  %3543 = vst [vmem:[#allocation2 + $0x40] sm:$0xff] %v2675
  %3544 = vst [vmem:[#allocation2 + $0x48] sm:$0xff] %v2676
  %3545 = vst [vmem:[#allocation2 + $0x50] sm:$0xff] %v2677
  %v3546 = vld [vmem:[#allocation2] sm:$0xff]
  %v3547 = vld [vmem:[#allocation2 + $0x8] sm:$0xff]
  %v3548 = vld [vmem:[#allocation2 + $0x10] sm:$0xff]
  %v3549 = vld [vmem:[#allocation2 + $0x18] sm:$0xff]
  %v3550 = vld [vmem:[#allocation2 + $0x20] sm:$0xff]
  %v3551 = vld [vmem:[#allocation2 + $0x30] sm:$0xff]
  %v3552 = vld [vmem:[#allocation2 + $0x38] sm:$0xff]
  %v3553 = vld [vmem:[#allocation2 + $0x40] sm:$0xff]
  %v3554 = vld [vmem:[#allocation2 + $0x48] sm:$0xff]
  %v3555 = vld [vmem:[#allocation2 + $0x50] sm:$0xff]
  %v3556 = vld [vmem:[%s0] sm:$0xff]
  %v3557 = vld [vmem:[%s0 + $0x8] sm:$0xff]
  %v3558 = vld [vmem:[%s0 + $0x10] sm:$0xff]
  %v3559 = vld [vmem:[%s0 + $0x18] sm:$0xff]
  %v3560 = vld [vmem:[%s0 + $0x20] sm:$0xff]
  %v3561 = vld [vmem:[%s0 + $0x28] sm:$0xff]
  %v3562 = vld [vmem:[%s0 + $0x30] sm:$0xff]
  %v3563 = vld [vmem:[%s0 + $0x38] sm:$0xff]
  %3572 = vrot.lane.b32.xlu0 %v3556, 111
  %v3573 = vpop.permute.xlu0 %3572
  %3574 = vrot.lane.b32.xlu0 %v3557, 111
  %v3575 = vpop.permute.xlu0 %3574
  %3576 = vrot.lane.b32.xlu0 %v3558, 111
  %v3577 = vpop.permute.xlu0 %3576
  %3578 = vrot.lane.b32.xlu0 %v3559, 111
  %v3579 = vpop.permute.xlu0 %3578
  %3580 = vrot.lane.b32.xlu0 %v3560, 111
  %v3581 = vpop.permute.xlu0 %3580
  %3582 = vrot.lane.b32.xlu0 %v3561, 111
  %v3583 = vpop.permute.xlu0 %3582
  %3584 = vrot.lane.b32.xlu0 %v3562, 111
  %v3585 = vpop.permute.xlu0 %3584
  %3586 = vrot.lane.b32.xlu0 %v3563, 111
  %v3587 = vpop.permute.xlu0 %3586
  %v3588 = vsel %vm278, %v3573, %v3575
  %v3589 = vsel %vm278, %v3575, %v3577
  %v3590 = vsel %vm278, %v3577, %v3579
  %v3591 = vsel %vm278, %v3581, %v3583
  %v3592 = vsel %vm278, %v3583, %v3585
  %v3593 = vsel %vm278, %v3585, %v3587
  %v3604 = vmul.f32 %v3546, %v3573
  %v3605 = vmul.f32 %v3547, %v3588
  %v3606 = vmul.f32 %v3548, %v3589
  %v3607 = vmul.f32 %v3549, %v3590
  %v3608 = vmul.f32 %v3550, %v3579
  %v3609 = vmul.f32 %v3551, %v3581
  %v3610 = vmul.f32 %v3552, %v3591
  %v3611 = vmul.f32 %v3553, %v3592
  %v3612 = vmul.f32 %v3554, %v3593
  %v3613 = vmul.f32 %v3555, %v3587
  %3624 = vrot.lane.b32.xlu0 %v3604, 17
  %v3625 = vpop.permute.xlu0 %3624
  %3626 = vrot.lane.b32.xlu0 %v3605, 17
  %v3627 = vpop.permute.xlu0 %3626
  %3628 = vrot.lane.b32.xlu0 %v3606, 17
  %v3629 = vpop.permute.xlu0 %3628
  %3630 = vrot.lane.b32.xlu0 %v3607, 17
  %v3631 = vpop.permute.xlu0 %3630
  %3632 = vrot.lane.b32.xlu0 %v3608, 17
  %v3633 = vpop.permute.xlu0 %3632
  %3634 = vrot.lane.b32.xlu0 %v3609, 17
  %v3635 = vpop.permute.xlu0 %3634
  %3636 = vrot.lane.b32.xlu0 %v3610, 17
  %v3637 = vpop.permute.xlu0 %3636
  %3638 = vrot.lane.b32.xlu0 %v3611, 17
  %v3639 = vpop.permute.xlu0 %3638
  %3640 = vrot.lane.b32.xlu0 %v3612, 17
  %v3641 = vpop.permute.xlu0 %3640
  %3642 = vrot.lane.b32.xlu0 %v3613, 17
  %v3643 = vpop.permute.xlu0 %3642
  %v3644 = vsel %vm307, %v3625, %v3627
  %v3645 = vsel %vm307, %v3627, %v3629
  %v3646 = vsel %vm307, %v3629, %v3631
  %v3647 = vsel %vm307, %v3631, %v3633
  %v3648 = vsel %vm307, %v3635, %v3637
  %v3649 = vsel %vm307, %v3637, %v3639
  %v3650 = vsel %vm307, %v3639, %v3641
  %v3651 = vsel %vm307, %v3641, %v3643
  %3660 = vst [vmem:[#allocation3] sm:$0xff] %v3644
  %3661 = vst [vmem:[#allocation3 + $0x8] sm:$0xff] %v3645
  %3662 = vst [vmem:[#allocation3 + $0x10] sm:$0xff] %v3646
  %3663 = vst [vmem:[#allocation3 + $0x18] sm:$0xff] %v3647
  %3664 = vst [vmem:[#allocation3 + $0x20] sm:$0xff] %v3648
  %3665 = vst [vmem:[#allocation3 + $0x28] sm:$0xff] %v3649
  %3666 = vst [vmem:[#allocation3 + $0x30] sm:$0xff] %v3650
  %3667 = vst [vmem:[#allocation3 + $0x38] sm:$0xff] %v3651
  %v3668 = vld [vmem:[#allocation2] sm:$0xff]
  %v3669 = vld [vmem:[#allocation2 + $0x8] sm:$0xff]
  %v3670 = vld [vmem:[#allocation2 + $0x10] sm:$0xff]
  %v3671 = vld [vmem:[#allocation2 + $0x18] sm:$0xff]
  %v3672 = vld [vmem:[#allocation2 + $0x20] sm:$0xff]
  %v3673 = vld [vmem:[#allocation2 + $0x30] sm:$0xff]
  %v3674 = vld [vmem:[#allocation2 + $0x38] sm:$0xff]
  %v3675 = vld [vmem:[#allocation2 + $0x40] sm:$0xff]
  %v3676 = vld [vmem:[#allocation2 + $0x48] sm:$0xff]
  %v3677 = vld [vmem:[#allocation2 + $0x50] sm:$0xff]
  %v3678 = vld [vmem:[%s0 + $0x40] sm:$0xff]
  %v3679 = vld [vmem:[%s0 + $0x48] sm:$0xff]
  %v3680 = vld [vmem:[%s0 + $0x50] sm:$0xff]
  %v3681 = vld [vmem:[%s0 + $0x58] sm:$0xff]
  %v3682 = vld [vmem:[%s0 + $0x60] sm:$0xff]
  %v3683 = vld [vmem:[%s0 + $0x68] sm:$0xff]
  %v3684 = vld [vmem:[%s0 + $0x70] sm:$0xff]
  %v3685 = vld [vmem:[%s0 + $0x78] sm:$0xff]
  %3694 = vrot.lane.b32.xlu0 %v3678, 112
  %v3695 = vpop.permute.xlu0 %3694
  %3696 = vrot.lane.b32.xlu0 %v3679, 112
  %v3697 = vpop.permute.xlu0 %3696
  %3698 = vrot.lane.b32.xlu0 %v3680, 112
  %v3699 = vpop.permute.xlu0 %3698
  %3700 = vrot.lane.b32.xlu0 %v3681, 112
  %v3701 = vpop.permute.xlu0 %3700
  %3702 = vrot.lane.b32.xlu0 %v3682, 112
  %v3703 = vpop.permute.xlu0 %3702
  %3704 = vrot.lane.b32.xlu0 %v3683, 112
  %v3705 = vpop.permute.xlu0 %3704
  %3706 = vrot.lane.b32.xlu0 %v3684, 112
  %v3707 = vpop.permute.xlu0 %3706
  %3708 = vrot.lane.b32.xlu0 %v3685, 112
  %v3709 = vpop.permute.xlu0 %3708
  %v3710 = vsel %vm341, %v3695, %v3697
  %v3711 = vsel %vm341, %v3697, %v3699
  %v3712 = vsel %vm341, %v3699, %v3701
  %v3713 = vsel %vm341, %v3703, %v3705
  %v3714 = vsel %vm341, %v3705, %v3707
  %v3715 = vsel %vm341, %v3707, %v3709
  %v3726 = vmul.f32 %v3668, %v3695
  %v3727 = vmul.f32 %v3669, %v3710
  %v3728 = vmul.f32 %v3670, %v3711
  %v3729 = vmul.f32 %v3671, %v3712
  %v3730 = vmul.f32 %v3672, %v3701
  %v3731 = vmul.f32 %v3673, %v3703
  %v3732 = vmul.f32 %v3674, %v3713
  %v3733 = vmul.f32 %v3675, %v3714
  %v3734 = vmul.f32 %v3676, %v3715
  %v3735 = vmul.f32 %v3677, %v3709
  %3746 = vrot.lane.b32.xlu0 %v3726, 16
  %v3747 = vpop.permute.xlu0 %3746
  %3748 = vrot.lane.b32.xlu0 %v3727, 16
  %v3749 = vpop.permute.xlu0 %3748
  %3750 = vrot.lane.b32.xlu0 %v3728, 16
  %v3751 = vpop.permute.xlu0 %3750
  %3752 = vrot.lane.b32.xlu0 %v3729, 16
  %v3753 = vpop.permute.xlu0 %3752
  %3754 = vrot.lane.b32.xlu0 %v3730, 16
  %v3755 = vpop.permute.xlu0 %3754
  %3756 = vrot.lane.b32.xlu0 %v3731, 16
  %v3757 = vpop.permute.xlu0 %3756
  %3758 = vrot.lane.b32.xlu0 %v3732, 16
  %v3759 = vpop.permute.xlu0 %3758
  %3760 = vrot.lane.b32.xlu0 %v3733, 16
  %v3761 = vpop.permute.xlu0 %3760
  %3762 = vrot.lane.b32.xlu0 %v3734, 16
  %v3763 = vpop.permute.xlu0 %3762
  %3764 = vrot.lane.b32.xlu0 %v3735, 16
  %v3765 = vpop.permute.xlu0 %3764
  %v3766 = vsel %vm370, %v3747, %v3749
  %v3767 = vsel %vm370, %v3749, %v3751
  %v3768 = vsel %vm370, %v3751, %v3753
  %v3769 = vsel %vm370, %v3753, %v3755
  %v3770 = vsel %vm370, %v3757, %v3759
  %v3771 = vsel %vm370, %v3759, %v3761
  %v3772 = vsel %vm370, %v3761, %v3763
  %v3773 = vsel %vm370, %v3763, %v3765
  %3782 = vst [vmem:[#allocation3 + $0x40] sm:$0xff] %v3766
  %3783 = vst [vmem:[#allocation3 + $0x48] sm:$0xff] %v3767
  %3784 = vst [vmem:[#allocation3 + $0x50] sm:$0xff] %v3768
  %3785 = vst [vmem:[#allocation3 + $0x58] sm:$0xff] %v3769
  %3786 = vst [vmem:[#allocation3 + $0x60] sm:$0xff] %v3770
  %3787 = vst [vmem:[#allocation3 + $0x68] sm:$0xff] %v3771
  %3788 = vst [vmem:[#allocation3 + $0x70] sm:$0xff] %v3772
  %3789 = vst [vmem:[#allocation3 + $0x78] sm:$0xff] %v3773
  %v3790 = vld [vmem:[#allocation2] sm:$0xff]
  %v3791 = vld [vmem:[#allocation2 + $0x8] sm:$0xff]
  %v3792 = vld [vmem:[#allocation2 + $0x10] sm:$0xff]
  %v3793 = vld [vmem:[#allocation2 + $0x18] sm:$0xff]
  %v3794 = vld [vmem:[#allocation2 + $0x20] sm:$0xff]
  %v3795 = vld [vmem:[#allocation2 + $0x30] sm:$0xff]
  %v3796 = vld [vmem:[#allocation2 + $0x38] sm:$0xff]
  %v3797 = vld [vmem:[#allocation2 + $0x40] sm:$0xff]
  %v3798 = vld [vmem:[#allocation2 + $0x48] sm:$0xff]
  %v3799 = vld [vmem:[#allocation2 + $0x50] sm:$0xff]
  %v3800 = vld [vmem:[%s0 + $0x80] sm:$0xff]
  %v3801 = vld [vmem:[%s0 + $0x88] sm:$0xff]
  %v3802 = vld [vmem:[%s0 + $0x90] sm:$0xff]
  %v3803 = vld [vmem:[%s0 + $0x98] sm:$0xff]
  %v3804 = vld [vmem:[%s0 + $0xa0] sm:$0xff]
  %v3805 = vld [vmem:[%s0 + $0xa8] sm:$0xff]
  %v3806 = vld [vmem:[%s0 + $0xb0] sm:$0xff]
  %v3807 = vld [vmem:[%s0 + $0xb8] sm:$0xff]
  %3816 = vrot.lane.b32.xlu0 %v3800, 113
  %v3817 = vpop.permute.xlu0 %3816
  %3818 = vrot.lane.b32.xlu0 %v3801, 113
  %v3819 = vpop.permute.xlu0 %3818
  %3820 = vrot.lane.b32.xlu0 %v3802, 113
  %v3821 = vpop.permute.xlu0 %3820
  %3822 = vrot.lane.b32.xlu0 %v3803, 113
  %v3823 = vpop.permute.xlu0 %3822
  %3824 = vrot.lane.b32.xlu0 %v3804, 113
  %v3825 = vpop.permute.xlu0 %3824
  %3826 = vrot.lane.b32.xlu0 %v3805, 113
  %v3827 = vpop.permute.xlu0 %3826
  %3828 = vrot.lane.b32.xlu0 %v3806, 113
  %v3829 = vpop.permute.xlu0 %3828
  %3830 = vrot.lane.b32.xlu0 %v3807, 113
  %v3831 = vpop.permute.xlu0 %3830
  %v3832 = vsel %vm404, %v3817, %v3819
  %v3833 = vsel %vm404, %v3819, %v3821
  %v3834 = vsel %vm404, %v3821, %v3823
  %v3835 = vsel %vm404, %v3825, %v3827
  %v3836 = vsel %vm404, %v3827, %v3829
  %v3837 = vsel %vm404, %v3829, %v3831
  %v3848 = vmul.f32 %v3790, %v3817
  %v3849 = vmul.f32 %v3791, %v3832
  %v3850 = vmul.f32 %v3792, %v3833
  %v3851 = vmul.f32 %v3793, %v3834
  %v3852 = vmul.f32 %v3794, %v3823
  %v3853 = vmul.f32 %v3795, %v3825
  %v3854 = vmul.f32 %v3796, %v3835
  %v3855 = vmul.f32 %v3797, %v3836
  %v3856 = vmul.f32 %v3798, %v3837
  %v3857 = vmul.f32 %v3799, %v3831
  %3868 = vrot.lane.b32.xlu0 %v3848, 15
  %v3869 = vpop.permute.xlu0 %3868
  %3870 = vrot.lane.b32.xlu0 %v3849, 15
  %v3871 = vpop.permute.xlu0 %3870
  %3872 = vrot.lane.b32.xlu0 %v3850, 15
  %v3873 = vpop.permute.xlu0 %3872
  %3874 = vrot.lane.b32.xlu0 %v3851, 15
  %v3875 = vpop.permute.xlu0 %3874
  %3876 = vrot.lane.b32.xlu0 %v3852, 15
  %v3877 = vpop.permute.xlu0 %3876
  %3878 = vrot.lane.b32.xlu0 %v3853, 15
  %v3879 = vpop.permute.xlu0 %3878
  %3880 = vrot.lane.b32.xlu0 %v3854, 15
  %v3881 = vpop.permute.xlu0 %3880
  %3882 = vrot.lane.b32.xlu0 %v3855, 15
  %v3883 = vpop.permute.xlu0 %3882
  %3884 = vrot.lane.b32.xlu0 %v3856, 15
  %v3885 = vpop.permute.xlu0 %3884
  %3886 = vrot.lane.b32.xlu0 %v3857, 15
  %v3887 = vpop.permute.xlu0 %3886
  %v3888 = vsel %vm433, %v3869, %v3871
  %v3889 = vsel %vm433, %v3871, %v3873
  %v3890 = vsel %vm433, %v3873, %v3875
  %v3891 = vsel %vm433, %v3875, %v3877
  %v3892 = vsel %vm433, %v3879, %v3881
  %v3893 = vsel %vm433, %v3881, %v3883
  %v3894 = vsel %vm433, %v3883, %v3885
  %v3895 = vsel %vm433, %v3885, %v3887
  %3904 = vst [vmem:[#allocation3 + $0x80] sm:$0xff] %v3888
  %3905 = vst [vmem:[#allocation3 + $0x88] sm:$0xff] %v3889
  %3906 = vst [vmem:[#allocation3 + $0x90] sm:$0xff] %v3890
  %3907 = vst [vmem:[#allocation3 + $0x98] sm:$0xff] %v3891
  %3908 = vst [vmem:[#allocation3 + $0xa0] sm:$0xff] %v3892
  %3909 = vst [vmem:[#allocation3 + $0xa8] sm:$0xff] %v3893
  %3910 = vst [vmem:[#allocation3 + $0xb0] sm:$0xff] %v3894
  %3911 = vst [vmem:[#allocation3 + $0xb8] sm:$0xff] %v3895
  %v3912 = vld [vmem:[#allocation2] sm:$0xff]
  %v3913 = vld [vmem:[#allocation2 + $0x8] sm:$0xff]
  %v3914 = vld [vmem:[#allocation2 + $0x10] sm:$0xff]
  %v3915 = vld [vmem:[#allocation2 + $0x18] sm:$0xff]
  %v3916 = vld [vmem:[#allocation2 + $0x20] sm:$0xff]
  %v3917 = vld [vmem:[#allocation2 + $0x30] sm:$0xff]
  %v3918 = vld [vmem:[#allocation2 + $0x38] sm:$0xff]
  %v3919 = vld [vmem:[#allocation2 + $0x40] sm:$0xff]
  %v3920 = vld [vmem:[#allocation2 + $0x48] sm:$0xff]
  %v3921 = vld [vmem:[#allocation2 + $0x50] sm:$0xff]
  %v3922 = vld [vmem:[%s0 + $0xc0] sm:$0xff]
  %v3923 = vld [vmem:[%s0 + $0xc8] sm:$0xff]
  %v3924 = vld [vmem:[%s0 + $0xd0] sm:$0xff]
  %v3925 = vld [vmem:[%s0 + $0xd8] sm:$0xff]
  %v3926 = vld [vmem:[%s0 + $0xe0] sm:$0xff]
  %v3927 = vld [vmem:[%s0 + $0xe8] sm:$0xff]
  %v3928 = vld [vmem:[%s0 + $0xf0] sm:$0xff]
  %v3929 = vld [vmem:[%s0 + $0xf8] sm:$0xff]
  %3938 = vrot.lane.b32.xlu0 %v3922, 127
  %v3939 = vpop.permute.xlu0 %3938
  %3940 = vrot.lane.b32.xlu0 %v3923, 127
  %v3941 = vpop.permute.xlu0 %3940
  %3942 = vrot.lane.b32.xlu0 %v3924, 127
  %v3943 = vpop.permute.xlu0 %3942
  %3944 = vrot.lane.b32.xlu0 %v3925, 127
  %v3945 = vpop.permute.xlu0 %3944
  %3946 = vrot.lane.b32.xlu0 %v3926, 127
  %v3947 = vpop.permute.xlu0 %3946
  %3948 = vrot.lane.b32.xlu0 %v3927, 127
  %v3949 = vpop.permute.xlu0 %3948
  %3950 = vrot.lane.b32.xlu0 %v3928, 127
  %v3951 = vpop.permute.xlu0 %3950
  %3952 = vrot.lane.b32.xlu0 %v3929, 127
  %v3953 = vpop.permute.xlu0 %3952
  %v3954 = vsel %vm467, %v3939, %v3941
  %v3955 = vsel %vm467, %v3941, %v3943
  %v3956 = vsel %vm467, %v3943, %v3945
  %v3957 = vsel %vm467, %v3947, %v3949
  %v3958 = vsel %vm467, %v3949, %v3951
  %v3959 = vsel %vm467, %v3951, %v3953
  %v3970 = vmul.f32 %v3912, %v3939
  %v3971 = vmul.f32 %v3913, %v3954
  %v3972 = vmul.f32 %v3914, %v3955
  %v3973 = vmul.f32 %v3915, %v3956
  %v3974 = vmul.f32 %v3916, %v3945
  %v3975 = vmul.f32 %v3917, %v3947
  %v3976 = vmul.f32 %v3918, %v3957
  %v3977 = vmul.f32 %v3919, %v3958
  %v3978 = vmul.f32 %v3920, %v3959
  %v3979 = vmul.f32 %v3921, %v3953
  %3990 = vrot.lane.b32.xlu0 %v3970, 1
  %v3991 = vpop.permute.xlu0 %3990
  %3992 = vrot.lane.b32.xlu0 %v3971, 1
  %v3993 = vpop.permute.xlu0 %3992
  %3994 = vrot.lane.b32.xlu0 %v3972, 1
  %v3995 = vpop.permute.xlu0 %3994
  %3996 = vrot.lane.b32.xlu0 %v3973, 1
  %v3997 = vpop.permute.xlu0 %3996
  %3998 = vrot.lane.b32.xlu0 %v3974, 1
  %v3999 = vpop.permute.xlu0 %3998
  %4000 = vrot.lane.b32.xlu0 %v3975, 1
  %v4001 = vpop.permute.xlu0 %4000
  %4002 = vrot.lane.b32.xlu0 %v3976, 1
  %v4003 = vpop.permute.xlu0 %4002
  %4004 = vrot.lane.b32.xlu0 %v3977, 1
  %v4005 = vpop.permute.xlu0 %4004
  %4006 = vrot.lane.b32.xlu0 %v3978, 1
  %v4007 = vpop.permute.xlu0 %4006
  %4008 = vrot.lane.b32.xlu0 %v3979, 1
  %v4009 = vpop.permute.xlu0 %4008
  %v4010 = vsel %vm496, %v3991, %v3993
  %v4011 = vsel %vm496, %v3993, %v3995
  %v4012 = vsel %vm496, %v3995, %v3997
  %v4013 = vsel %vm496, %v3997, %v3999
  %v4014 = vsel %vm496, %v4001, %v4003
  %v4015 = vsel %vm496, %v4003, %v4005
  %v4016 = vsel %vm496, %v4005, %v4007
  %v4017 = vsel %vm496, %v4007, %v4009
  %4026 = vst [vmem:[#allocation3 + $0xc0] sm:$0xff] %v4010
  %4027 = vst [vmem:[#allocation3 + $0xc8] sm:$0xff] %v4011
  %4028 = vst [vmem:[#allocation3 + $0xd0] sm:$0xff] %v4012
  %4029 = vst [vmem:[#allocation3 + $0xd8] sm:$0xff] %v4013
  %4030 = vst [vmem:[#allocation3 + $0xe0] sm:$0xff] %v4014
  %4031 = vst [vmem:[#allocation3 + $0xe8] sm:$0xff] %v4015
  %4032 = vst [vmem:[#allocation3 + $0xf0] sm:$0xff] %v4016
  %4033 = vst [vmem:[#allocation3 + $0xf8] sm:$0xff] %v4017
  %v4034 = vld [vmem:[#allocation2 + $0x8] sm:$0xff]
  %v4035 = vld [vmem:[#allocation2 + $0x10] sm:$0xff]
  %v4036 = vld [vmem:[#allocation2 + $0x18] sm:$0xff]
  %v4037 = vld [vmem:[#allocation2 + $0x20] sm:$0xff]
  %v4038 = vld [vmem:[#allocation2 + $0x38] sm:$0xff]
  %v4039 = vld [vmem:[#allocation2 + $0x40] sm:$0xff]
  %v4040 = vld [vmem:[#allocation2 + $0x48] sm:$0xff]
  %v4041 = vld [vmem:[#allocation2 + $0x50] sm:$0xff]
  %v4042 = vld [vmem:[%s0 + $0x100] sm:$0xff]
  %v4043 = vld [vmem:[%s0 + $0x108] sm:$0xff]
  %v4044 = vld [vmem:[%s0 + $0x110] sm:$0xff]
  %v4045 = vld [vmem:[%s0 + $0x118] sm:$0xff]
  %v4046 = vld [vmem:[%s0 + $0x120] sm:$0xff]
  %v4047 = vld [vmem:[%s0 + $0x128] sm:$0xff]
  %v4048 = vld [vmem:[%s0 + $0x130] sm:$0xff]
  %v4049 = vld [vmem:[%s0 + $0x138] sm:$0xff]
  %v4050 = vmul.f32 %v4034, %v4042
  %v4051 = vmul.f32 %v4035, %v4043
  %v4052 = vmul.f32 %v4036, %v4044
  %v4053 = vmul.f32 %v4037, %v4045
  %v4054 = vmul.f32 %v4038, %v4046
  %v4055 = vmul.f32 %v4039, %v4047
  %v4056 = vmul.f32 %v4040, %v4048
  %v4057 = vmul.f32 %v4041, %v4049
  %4058 = vst [vmem:[#allocation3 + $0x100] sm:$0xff] %v4050
  %4059 = vst [vmem:[#allocation3 + $0x108] sm:$0xff] %v4051
  %4060 = vst [vmem:[#allocation3 + $0x110] sm:$0xff] %v4052
  %4061 = vst [vmem:[#allocation3 + $0x118] sm:$0xff] %v4053
  %4062 = vst [vmem:[#allocation3 + $0x120] sm:$0xff] %v4054
  %4063 = vst [vmem:[#allocation3 + $0x128] sm:$0xff] %v4055
  %4064 = vst [vmem:[#allocation3 + $0x130] sm:$0xff] %v4056
  %4065 = vst [vmem:[#allocation3 + $0x138] sm:$0xff] %v4057
  %v4066 = vld [vmem:[#allocation2 + $0x8] sm:$0xff]
  %v4067 = vld [vmem:[#allocation2 + $0x10] sm:$0xff]
  %v4068 = vld [vmem:[#allocation2 + $0x18] sm:$0xff]
  %v4069 = vld [vmem:[#allocation2 + $0x20] sm:$0xff]
  %v4070 = vld [vmem:[#allocation2 + $0x28] sm:$0xff]
  %v4071 = vld [vmem:[#allocation2 + $0x38] sm:$0xff]
  %v4072 = vld [vmem:[#allocation2 + $0x40] sm:$0xff]
  %v4073 = vld [vmem:[#allocation2 + $0x48] sm:$0xff]
  %v4074 = vld [vmem:[#allocation2 + $0x50] sm:$0xff]
  %v4075 = vld [vmem:[#allocation2 + $0x58] sm:$0xff]
  %v4076 = vld [vmem:[%s0 + $0x140] sm:$0xff]
  %v4077 = vld [vmem:[%s0 + $0x148] sm:$0xff]
  %v4078 = vld [vmem:[%s0 + $0x150] sm:$0xff]
  %v4079 = vld [vmem:[%s0 + $0x158] sm:$0xff]
  %v4080 = vld [vmem:[%s0 + $0x160] sm:$0xff]
  %v4081 = vld [vmem:[%s0 + $0x168] sm:$0xff]
  %v4082 = vld [vmem:[%s0 + $0x170] sm:$0xff]
  %v4083 = vld [vmem:[%s0 + $0x178] sm:$0xff]
  %4092 = vrot.lane.b32.xlu0 %v4076, 1
  %v4093 = vpop.permute.xlu0 %4092
  %4094 = vrot.lane.b32.xlu0 %v4077, 1
  %v4095 = vpop.permute.xlu0 %4094
  %4096 = vrot.lane.b32.xlu0 %v4078, 1
  %v4097 = vpop.permute.xlu0 %4096
  %4098 = vrot.lane.b32.xlu0 %v4079, 1
  %v4099 = vpop.permute.xlu0 %4098
  %4100 = vrot.lane.b32.xlu0 %v4080, 1
  %v4101 = vpop.permute.xlu0 %4100
  %4102 = vrot.lane.b32.xlu0 %v4081, 1
  %v4103 = vpop.permute.xlu0 %4102
  %4104 = vrot.lane.b32.xlu0 %v4082, 1
  %v4105 = vpop.permute.xlu0 %4104
  %4106 = vrot.lane.b32.xlu0 %v4083, 1
  %v4107 = vpop.permute.xlu0 %4106
  %v4108 = vsel %vm496, %v4093, %v4095
  %v4109 = vsel %vm496, %v4095, %v4097
  %v4110 = vsel %vm496, %v4097, %v4099
  %v4111 = vsel %vm496, %v4101, %v4103
  %v4112 = vsel %vm496, %v4103, %v4105
  %v4113 = vsel %vm496, %v4105, %v4107
  %v4124 = vmul.f32 %v4066, %v4093
  %v4125 = vmul.f32 %v4067, %v4108
  %v4126 = vmul.f32 %v4068, %v4109
  %v4127 = vmul.f32 %v4069, %v4110
  %v4128 = vmul.f32 %v4070, %v4099
  %v4129 = vmul.f32 %v4071, %v4101
  %v4130 = vmul.f32 %v4072, %v4111
  %v4131 = vmul.f32 %v4073, %v4112
  %v4132 = vmul.f32 %v4074, %v4113
  %v4133 = vmul.f32 %v4075, %v4107
  %4144 = vrot.lane.b32.xlu0 %v4124, 127
  %v4145 = vpop.permute.xlu0 %4144
  %4146 = vrot.lane.b32.xlu0 %v4125, 127
  %v4147 = vpop.permute.xlu0 %4146
  %4148 = vrot.lane.b32.xlu0 %v4126, 127
  %v4149 = vpop.permute.xlu0 %4148
  %4150 = vrot.lane.b32.xlu0 %v4127, 127
  %v4151 = vpop.permute.xlu0 %4150
  %4152 = vrot.lane.b32.xlu0 %v4128, 127
  %v4153 = vpop.permute.xlu0 %4152
  %4154 = vrot.lane.b32.xlu0 %v4129, 127
  %v4155 = vpop.permute.xlu0 %4154
  %4156 = vrot.lane.b32.xlu0 %v4130, 127
  %v4157 = vpop.permute.xlu0 %4156
  %4158 = vrot.lane.b32.xlu0 %v4131, 127
  %v4159 = vpop.permute.xlu0 %4158
  %4160 = vrot.lane.b32.xlu0 %v4132, 127
  %v4161 = vpop.permute.xlu0 %4160
  %4162 = vrot.lane.b32.xlu0 %v4133, 127
  %v4163 = vpop.permute.xlu0 %4162
  %v4164 = vsel %vm467, %v4145, %v4147
  %v4165 = vsel %vm467, %v4147, %v4149
  %v4166 = vsel %vm467, %v4149, %v4151
  %v4167 = vsel %vm467, %v4151, %v4153
  %v4168 = vsel %vm467, %v4155, %v4157
  %v4169 = vsel %vm467, %v4157, %v4159
  %v4170 = vsel %vm467, %v4159, %v4161
  %v4171 = vsel %vm467, %v4161, %v4163
  %4180 = vst [vmem:[#allocation3 + $0x140] sm:$0xff] %v4164
  %4181 = vst [vmem:[#allocation3 + $0x148] sm:$0xff] %v4165
  %4182 = vst [vmem:[#allocation3 + $0x150] sm:$0xff] %v4166
  %4183 = vst [vmem:[#allocation3 + $0x158] sm:$0xff] %v4167
  %4184 = vst [vmem:[#allocation3 + $0x160] sm:$0xff] %v4168
  %4185 = vst [vmem:[#allocation3 + $0x168] sm:$0xff] %v4169
  %4186 = vst [vmem:[#allocation3 + $0x170] sm:$0xff] %v4170
  %4187 = vst [vmem:[#allocation3 + $0x178] sm:$0xff] %v4171
  %v4188 = vld [vmem:[#allocation2 + $0x8] sm:$0xff]
  %v4189 = vld [vmem:[#allocation2 + $0x10] sm:$0xff]
  %v4190 = vld [vmem:[#allocation2 + $0x18] sm:$0xff]
  %v4191 = vld [vmem:[#allocation2 + $0x20] sm:$0xff]
  %v4192 = vld [vmem:[#allocation2 + $0x28] sm:$0xff]
  %v4193 = vld [vmem:[#allocation2 + $0x38] sm:$0xff]
  %v4194 = vld [vmem:[#allocation2 + $0x40] sm:$0xff]
  %v4195 = vld [vmem:[#allocation2 + $0x48] sm:$0xff]
  %v4196 = vld [vmem:[#allocation2 + $0x50] sm:$0xff]
  %v4197 = vld [vmem:[#allocation2 + $0x58] sm:$0xff]
  %v4198 = vld [vmem:[%s0 + $0x180] sm:$0xff]
  %v4199 = vld [vmem:[%s0 + $0x188] sm:$0xff]
  %v4200 = vld [vmem:[%s0 + $0x190] sm:$0xff]
  %v4201 = vld [vmem:[%s0 + $0x198] sm:$0xff]
  %v4202 = vld [vmem:[%s0 + $0x1a0] sm:$0xff]
  %v4203 = vld [vmem:[%s0 + $0x1a8] sm:$0xff]
  %v4204 = vld [vmem:[%s0 + $0x1b0] sm:$0xff]
  %v4205 = vld [vmem:[%s0 + $0x1b8] sm:$0xff]
  %4214 = vrot.lane.b32.xlu0 %v4198, 15
  %v4215 = vpop.permute.xlu0 %4214
  %4216 = vrot.lane.b32.xlu0 %v4199, 15
  %v4217 = vpop.permute.xlu0 %4216
  %4218 = vrot.lane.b32.xlu0 %v4200, 15
  %v4219 = vpop.permute.xlu0 %4218
  %4220 = vrot.lane.b32.xlu0 %v4201, 15
  %v4221 = vpop.permute.xlu0 %4220
  %4222 = vrot.lane.b32.xlu0 %v4202, 15
  %v4223 = vpop.permute.xlu0 %4222
  %4224 = vrot.lane.b32.xlu0 %v4203, 15
  %v4225 = vpop.permute.xlu0 %4224
  %4226 = vrot.lane.b32.xlu0 %v4204, 15
  %v4227 = vpop.permute.xlu0 %4226
  %4228 = vrot.lane.b32.xlu0 %v4205, 15
  %v4229 = vpop.permute.xlu0 %4228
  %v4230 = vsel %vm433, %v4215, %v4217
  %v4231 = vsel %vm433, %v4217, %v4219
  %v4232 = vsel %vm433, %v4219, %v4221
  %v4233 = vsel %vm433, %v4223, %v4225
  %v4234 = vsel %vm433, %v4225, %v4227
  %v4235 = vsel %vm433, %v4227, %v4229
  %v4246 = vmul.f32 %v4188, %v4215
  %v4247 = vmul.f32 %v4189, %v4230
  %v4248 = vmul.f32 %v4190, %v4231
  %v4249 = vmul.f32 %v4191, %v4232
  %v4250 = vmul.f32 %v4192, %v4221
  %v4251 = vmul.f32 %v4193, %v4223
  %v4252 = vmul.f32 %v4194, %v4233
  %v4253 = vmul.f32 %v4195, %v4234
  %v4254 = vmul.f32 %v4196, %v4235
  %v4255 = vmul.f32 %v4197, %v4229
  %4266 = vrot.lane.b32.xlu0 %v4246, 113
  %v4267 = vpop.permute.xlu0 %4266
  %4268 = vrot.lane.b32.xlu0 %v4247, 113
  %v4269 = vpop.permute.xlu0 %4268
  %4270 = vrot.lane.b32.xlu0 %v4248, 113
  %v4271 = vpop.permute.xlu0 %4270
  %4272 = vrot.lane.b32.xlu0 %v4249, 113
  %v4273 = vpop.permute.xlu0 %4272
  %4274 = vrot.lane.b32.xlu0 %v4250, 113
  %v4275 = vpop.permute.xlu0 %4274
  %4276 = vrot.lane.b32.xlu0 %v4251, 113
  %v4277 = vpop.permute.xlu0 %4276
  %4278 = vrot.lane.b32.xlu0 %v4252, 113
  %v4279 = vpop.permute.xlu0 %4278
  %4280 = vrot.lane.b32.xlu0 %v4253, 113
  %v4281 = vpop.permute.xlu0 %4280
  %4282 = vrot.lane.b32.xlu0 %v4254, 113
  %v4283 = vpop.permute.xlu0 %4282
  %4284 = vrot.lane.b32.xlu0 %v4255, 113
  %v4285 = vpop.permute.xlu0 %4284
  %v4286 = vsel %vm404, %v4267, %v4269
  %v4287 = vsel %vm404, %v4269, %v4271
  %v4288 = vsel %vm404, %v4271, %v4273
  %v4289 = vsel %vm404, %v4273, %v4275
  %v4290 = vsel %vm404, %v4277, %v4279
  %v4291 = vsel %vm404, %v4279, %v4281
  %v4292 = vsel %vm404, %v4281, %v4283
  %v4293 = vsel %vm404, %v4283, %v4285
  %4302 = vst [vmem:[#allocation3 + $0x180] sm:$0xff] %v4286
  %4303 = vst [vmem:[#allocation3 + $0x188] sm:$0xff] %v4287
  %4304 = vst [vmem:[#allocation3 + $0x190] sm:$0xff] %v4288
  %4305 = vst [vmem:[#allocation3 + $0x198] sm:$0xff] %v4289
  %4306 = vst [vmem:[#allocation3 + $0x1a0] sm:$0xff] %v4290
  %4307 = vst [vmem:[#allocation3 + $0x1a8] sm:$0xff] %v4291
  %4308 = vst [vmem:[#allocation3 + $0x1b0] sm:$0xff] %v4292
  %4309 = vst [vmem:[#allocation3 + $0x1b8] sm:$0xff] %v4293
  %v4310 = vld [vmem:[#allocation2 + $0x8] sm:$0xff]
  %v4311 = vld [vmem:[#allocation2 + $0x10] sm:$0xff]
  %v4312 = vld [vmem:[#allocation2 + $0x18] sm:$0xff]
  %v4313 = vld [vmem:[#allocation2 + $0x20] sm:$0xff]
  %v4314 = vld [vmem:[#allocation2 + $0x28] sm:$0xff]
  %v4315 = vld [vmem:[#allocation2 + $0x38] sm:$0xff]
  %v4316 = vld [vmem:[#allocation2 + $0x40] sm:$0xff]
  %v4317 = vld [vmem:[#allocation2 + $0x48] sm:$0xff]
  %v4318 = vld [vmem:[#allocation2 + $0x50] sm:$0xff]
  %v4319 = vld [vmem:[#allocation2 + $0x58] sm:$0xff]
  %v4320 = vld [vmem:[%s0 + $0x1c0] sm:$0xff]
  %v4321 = vld [vmem:[%s0 + $0x1c8] sm:$0xff]
  %v4322 = vld [vmem:[%s0 + $0x1d0] sm:$0xff]
  %v4323 = vld [vmem:[%s0 + $0x1d8] sm:$0xff]
  %v4324 = vld [vmem:[%s0 + $0x1e0] sm:$0xff]
  %v4325 = vld [vmem:[%s0 + $0x1e8] sm:$0xff]
  %v4326 = vld [vmem:[%s0 + $0x1f0] sm:$0xff]
  %v4327 = vld [vmem:[%s0 + $0x1f8] sm:$0xff]
  %4336 = vrot.lane.b32.xlu0 %v4320, 16
  %v4337 = vpop.permute.xlu0 %4336
  %4338 = vrot.lane.b32.xlu0 %v4321, 16
  %v4339 = vpop.permute.xlu0 %4338
  %4340 = vrot.lane.b32.xlu0 %v4322, 16
  %v4341 = vpop.permute.xlu0 %4340
  %4342 = vrot.lane.b32.xlu0 %v4323, 16
  %v4343 = vpop.permute.xlu0 %4342
  %4344 = vrot.lane.b32.xlu0 %v4324, 16
  %v4345 = vpop.permute.xlu0 %4344
  %4346 = vrot.lane.b32.xlu0 %v4325, 16
  %v4347 = vpop.permute.xlu0 %4346
  %4348 = vrot.lane.b32.xlu0 %v4326, 16
  %v4349 = vpop.permute.xlu0 %4348
  %4350 = vrot.lane.b32.xlu0 %v4327, 16
  %v4351 = vpop.permute.xlu0 %4350
  %v4352 = vsel %vm370, %v4337, %v4339
  %v4353 = vsel %vm370, %v4339, %v4341
  %v4354 = vsel %vm370, %v4341, %v4343
  %v4355 = vsel %vm370, %v4345, %v4347
  %v4356 = vsel %vm370, %v4347, %v4349
  %v4357 = vsel %vm370, %v4349, %v4351
  %v4368 = vmul.f32 %v4310, %v4337
  %v4369 = vmul.f32 %v4311, %v4352
  %v4370 = vmul.f32 %v4312, %v4353
  %v4371 = vmul.f32 %v4313, %v4354
  %v4372 = vmul.f32 %v4314, %v4343
  %v4373 = vmul.f32 %v4315, %v4345
  %v4374 = vmul.f32 %v4316, %v4355
  %v4375 = vmul.f32 %v4317, %v4356
  %v4376 = vmul.f32 %v4318, %v4357
  %v4377 = vmul.f32 %v4319, %v4351
  %4388 = vrot.lane.b32.xlu0 %v4368, 112
  %v4389 = vpop.permute.xlu0 %4388
  %4390 = vrot.lane.b32.xlu0 %v4369, 112
  %v4391 = vpop.permute.xlu0 %4390
  %4392 = vrot.lane.b32.xlu0 %v4370, 112
  %v4393 = vpop.permute.xlu0 %4392
  %4394 = vrot.lane.b32.xlu0 %v4371, 112
  %v4395 = vpop.permute.xlu0 %4394
  %4396 = vrot.lane.b32.xlu0 %v4372, 112
  %v4397 = vpop.permute.xlu0 %4396
  %4398 = vrot.lane.b32.xlu0 %v4373, 112
  %v4399 = vpop.permute.xlu0 %4398
  %4400 = vrot.lane.b32.xlu0 %v4374, 112
  %v4401 = vpop.permute.xlu0 %4400
  %4402 = vrot.lane.b32.xlu0 %v4375, 112
  %v4403 = vpop.permute.xlu0 %4402
  %4404 = vrot.lane.b32.xlu0 %v4376, 112
  %v4405 = vpop.permute.xlu0 %4404
  %4406 = vrot.lane.b32.xlu0 %v4377, 112
  %v4407 = vpop.permute.xlu0 %4406
  %v4408 = vsel %vm341, %v4389, %v4391
  %v4409 = vsel %vm341, %v4391, %v4393
  %v4410 = vsel %vm341, %v4393, %v4395
  %v4411 = vsel %vm341, %v4395, %v4397
  %v4412 = vsel %vm341, %v4399, %v4401
  %v4413 = vsel %vm341, %v4401, %v4403
  %v4414 = vsel %vm341, %v4403, %v4405
  %v4415 = vsel %vm341, %v4405, %v4407
  %4424 = vst [vmem:[#allocation3 + $0x1c0] sm:$0xff] %v4408
  %4425 = vst [vmem:[#allocation3 + $0x1c8] sm:$0xff] %v4409
  %4426 = vst [vmem:[#allocation3 + $0x1d0] sm:$0xff] %v4410
  %4427 = vst [vmem:[#allocation3 + $0x1d8] sm:$0xff] %v4411
  %4428 = vst [vmem:[#allocation3 + $0x1e0] sm:$0xff] %v4412
  %4429 = vst [vmem:[#allocation3 + $0x1e8] sm:$0xff] %v4413
  %4430 = vst [vmem:[#allocation3 + $0x1f0] sm:$0xff] %v4414
  %4431 = vst [vmem:[#allocation3 + $0x1f8] sm:$0xff] %v4415
  %v4432 = vld [vmem:[#allocation2 + $0x8] sm:$0xff]
  %v4433 = vld [vmem:[#allocation2 + $0x10] sm:$0xff]
  %v4434 = vld [vmem:[#allocation2 + $0x18] sm:$0xff]
  %v4435 = vld [vmem:[#allocation2 + $0x20] sm:$0xff]
  %v4436 = vld [vmem:[#allocation2 + $0x28] sm:$0xff]
  %v4437 = vld [vmem:[#allocation2 + $0x38] sm:$0xff]
  %v4438 = vld [vmem:[#allocation2 + $0x40] sm:$0xff]
  %v4439 = vld [vmem:[#allocation2 + $0x48] sm:$0xff]
  %v4440 = vld [vmem:[#allocation2 + $0x50] sm:$0xff]
  %v4441 = vld [vmem:[#allocation2 + $0x58] sm:$0xff]
  %v4442 = vld [vmem:[%s0 + $0x200] sm:$0xff]
  %v4443 = vld [vmem:[%s0 + $0x208] sm:$0xff]
  %v4444 = vld [vmem:[%s0 + $0x210] sm:$0xff]
  %v4445 = vld [vmem:[%s0 + $0x218] sm:$0xff]
  %v4446 = vld [vmem:[%s0 + $0x220] sm:$0xff]
  %v4447 = vld [vmem:[%s0 + $0x228] sm:$0xff]
  %v4448 = vld [vmem:[%s0 + $0x230] sm:$0xff]
  %v4449 = vld [vmem:[%s0 + $0x238] sm:$0xff]
  %4458 = vrot.lane.b32.xlu0 %v4442, 17
  %v4459 = vpop.permute.xlu0 %4458
  %4460 = vrot.lane.b32.xlu0 %v4443, 17
  %v4461 = vpop.permute.xlu0 %4460
  %4462 = vrot.lane.b32.xlu0 %v4444, 17
  %v4463 = vpop.permute.xlu0 %4462
  %4464 = vrot.lane.b32.xlu0 %v4445, 17
  %v4465 = vpop.permute.xlu0 %4464
  %4466 = vrot.lane.b32.xlu0 %v4446, 17
  %v4467 = vpop.permute.xlu0 %4466
  %4468 = vrot.lane.b32.xlu0 %v4447, 17
  %v4469 = vpop.permute.xlu0 %4468
  %4470 = vrot.lane.b32.xlu0 %v4448, 17
  %v4471 = vpop.permute.xlu0 %4470
  %4472 = vrot.lane.b32.xlu0 %v4449, 17
  %v4473 = vpop.permute.xlu0 %4472
  %v4474 = vsel %vm307, %v4459, %v4461
  %v4475 = vsel %vm307, %v4461, %v4463
  %v4476 = vsel %vm307, %v4463, %v4465
  %v4477 = vsel %vm307, %v4467, %v4469
  %v4478 = vsel %vm307, %v4469, %v4471
  %v4479 = vsel %vm307, %v4471, %v4473
  %v4490 = vmul.f32 %v4432, %v4459
  %v4491 = vmul.f32 %v4433, %v4474
  %v4492 = vmul.f32 %v4434, %v4475
  %v4493 = vmul.f32 %v4435, %v4476
  %v4494 = vmul.f32 %v4436, %v4465
  %v4495 = vmul.f32 %v4437, %v4467
  %v4496 = vmul.f32 %v4438, %v4477
  %v4497 = vmul.f32 %v4439, %v4478
  %v4498 = vmul.f32 %v4440, %v4479
  %v4499 = vmul.f32 %v4441, %v4473
  %4510 = vrot.lane.b32.xlu0 %v4490, 111
  %v4511 = vpop.permute.xlu0 %4510
  %4512 = vrot.lane.b32.xlu0 %v4491, 111
  %v4513 = vpop.permute.xlu0 %4512
  %4514 = vrot.lane.b32.xlu0 %v4492, 111
  %v4515 = vpop.permute.xlu0 %4514
  %4516 = vrot.lane.b32.xlu0 %v4493, 111
  %v4517 = vpop.permute.xlu0 %4516
  %4518 = vrot.lane.b32.xlu0 %v4494, 111
  %v4519 = vpop.permute.xlu0 %4518
  %4520 = vrot.lane.b32.xlu0 %v4495, 111
  %v4521 = vpop.permute.xlu0 %4520
  %4522 = vrot.lane.b32.xlu0 %v4496, 111
  %v4523 = vpop.permute.xlu0 %4522
  %4524 = vrot.lane.b32.xlu0 %v4497, 111
  %v4525 = vpop.permute.xlu0 %4524
  %4526 = vrot.lane.b32.xlu0 %v4498, 111
  %v4527 = vpop.permute.xlu0 %4526
  %4528 = vrot.lane.b32.xlu0 %v4499, 111
  %v4529 = vpop.permute.xlu0 %4528
  %v4530 = vsel %vm278, %v4511, %v4513
  %v4531 = vsel %vm278, %v4513, %v4515
  %v4532 = vsel %vm278, %v4515, %v4517
  %v4533 = vsel %vm278, %v4517, %v4519
  %v4534 = vsel %vm278, %v4521, %v4523
  %v4535 = vsel %vm278, %v4523, %v4525
  %v4536 = vsel %vm278, %v4525, %v4527
  %v4537 = vsel %vm278, %v4527, %v4529
  %4546 = vst [vmem:[#allocation3 + $0x200] sm:$0xff] %v4530
  %4547 = vst [vmem:[#allocation3 + $0x208] sm:$0xff] %v4531
  %4548 = vst [vmem:[#allocation3 + $0x210] sm:$0xff] %v4532
  %4549 = vst [vmem:[#allocation3 + $0x218] sm:$0xff] %v4533
  %4550 = vst [vmem:[#allocation3 + $0x220] sm:$0xff] %v4534
  %4551 = vst [vmem:[#allocation3 + $0x228] sm:$0xff] %v4535
  %4552 = vst [vmem:[#allocation3 + $0x230] sm:$0xff] %v4536
  %4553 = vst [vmem:[#allocation3 + $0x238] sm:$0xff] %v4537
  %v4554 = vld [vmem:[#allocation3] sm:$0xff]
  %v4555 = vld [vmem:[#allocation3 + $0x8] sm:$0xff]
  %v4556 = vld [vmem:[#allocation3 + $0x10] sm:$0xff]
  %v4557 = vld [vmem:[#allocation3 + $0x18] sm:$0xff]
  %v4558 = vld [vmem:[#allocation3 + $0x20] sm:$0xff]
  %v4559 = vld [vmem:[#allocation3 + $0x28] sm:$0xff]
  %v4560 = vld [vmem:[#allocation3 + $0x30] sm:$0xff]
  %v4561 = vld [vmem:[#allocation3 + $0x38] sm:$0xff]
  %v4562 = vld [vmem:[#allocation3 + $0x40] sm:$0xff]
  %v4563 = vld [vmem:[#allocation3 + $0x48] sm:$0xff]
  %v4564 = vld [vmem:[#allocation3 + $0x50] sm:$0xff]
  %v4565 = vld [vmem:[#allocation3 + $0x58] sm:$0xff]
  %v4566 = vld [vmem:[#allocation3 + $0x60] sm:$0xff]
  %v4567 = vld [vmem:[#allocation3 + $0x68] sm:$0xff]
  %v4568 = vld [vmem:[#allocation3 + $0x70] sm:$0xff]
  %v4569 = vld [vmem:[#allocation3 + $0x78] sm:$0xff]
  %v4570 = vld [vmem:[#allocation3 + $0x80] sm:$0xff]
  %v4571 = vld [vmem:[#allocation3 + $0x88] sm:$0xff]
  %v4572 = vld [vmem:[#allocation3 + $0x90] sm:$0xff]
  %v4573 = vld [vmem:[#allocation3 + $0x98] sm:$0xff]
  %v4574 = vld [vmem:[#allocation3 + $0xa0] sm:$0xff]
  %v4575 = vld [vmem:[#allocation3 + $0xa8] sm:$0xff]
  %v4576 = vld [vmem:[#allocation3 + $0xb0] sm:$0xff]
  %v4577 = vld [vmem:[#allocation3 + $0xb8] sm:$0xff]
  %v4578 = vld [vmem:[#allocation3 + $0xc0] sm:$0xff]
  %v4579 = vld [vmem:[#allocation3 + $0xc8] sm:$0xff]
  %v4580 = vld [vmem:[#allocation3 + $0xd0] sm:$0xff]
  %v4581 = vld [vmem:[#allocation3 + $0xd8] sm:$0xff]
  %v4582 = vld [vmem:[#allocation3 + $0xe0] sm:$0xff]
  %v4583 = vld [vmem:[#allocation3 + $0xe8] sm:$0xff]
  %v4584 = vld [vmem:[#allocation3 + $0xf0] sm:$0xff]
  %v4585 = vld [vmem:[#allocation3 + $0xf8] sm:$0xff]
  %v4586 = vld [vmem:[#allocation3 + $0x100] sm:$0xff]
  %v4587 = vld [vmem:[#allocation3 + $0x108] sm:$0xff]
  %v4588 = vld [vmem:[#allocation3 + $0x110] sm:$0xff]
  %v4589 = vld [vmem:[#allocation3 + $0x118] sm:$0xff]
  %v4590 = vld [vmem:[#allocation3 + $0x120] sm:$0xff]
  %v4591 = vld [vmem:[#allocation3 + $0x128] sm:$0xff]
  %v4592 = vld [vmem:[#allocation3 + $0x130] sm:$0xff]
  %v4593 = vld [vmem:[#allocation3 + $0x138] sm:$0xff]
  %v4594 = vld [vmem:[#allocation3 + $0x140] sm:$0xff]
  %v4595 = vld [vmem:[#allocation3 + $0x148] sm:$0xff]
  %v4596 = vld [vmem:[#allocation3 + $0x150] sm:$0xff]
  %v4597 = vld [vmem:[#allocation3 + $0x158] sm:$0xff]
  %v4598 = vld [vmem:[#allocation3 + $0x160] sm:$0xff]
  %v4599 = vld [vmem:[#allocation3 + $0x168] sm:$0xff]
  %v4600 = vld [vmem:[#allocation3 + $0x170] sm:$0xff]
  %v4601 = vld [vmem:[#allocation3 + $0x178] sm:$0xff]
  %v4602 = vld [vmem:[#allocation3 + $0x180] sm:$0xff]
  %v4603 = vld [vmem:[#allocation3 + $0x188] sm:$0xff]
  %v4604 = vld [vmem:[#allocation3 + $0x190] sm:$0xff]
  %v4605 = vld [vmem:[#allocation3 + $0x198] sm:$0xff]
  %v4606 = vld [vmem:[#allocation3 + $0x1a0] sm:$0xff]
  %v4607 = vld [vmem:[#allocation3 + $0x1a8] sm:$0xff]
  %v4608 = vld [vmem:[#allocation3 + $0x1b0] sm:$0xff]
  %v4609 = vld [vmem:[#allocation3 + $0x1b8] sm:$0xff]
  %v4610 = vld [vmem:[#allocation3 + $0x1c0] sm:$0xff]
  %v4611 = vld [vmem:[#allocation3 + $0x1c8] sm:$0xff]
  %v4612 = vld [vmem:[#allocation3 + $0x1d0] sm:$0xff]
  %v4613 = vld [vmem:[#allocation3 + $0x1d8] sm:$0xff]
  %v4614 = vld [vmem:[#allocation3 + $0x1e0] sm:$0xff]
  %v4615 = vld [vmem:[#allocation3 + $0x1e8] sm:$0xff]
  %v4616 = vld [vmem:[#allocation3 + $0x1f0] sm:$0xff]
  %v4617 = vld [vmem:[#allocation3 + $0x1f8] sm:$0xff]
  %v4618 = vld [vmem:[#allocation3 + $0x200] sm:$0xff]
  %v4619 = vld [vmem:[#allocation3 + $0x208] sm:$0xff]
  %v4620 = vld [vmem:[#allocation3 + $0x210] sm:$0xff]
  %v4621 = vld [vmem:[#allocation3 + $0x218] sm:$0xff]
  %v4622 = vld [vmem:[#allocation3 + $0x220] sm:$0xff]
  %v4623 = vld [vmem:[#allocation3 + $0x228] sm:$0xff]
  %v4624 = vld [vmem:[#allocation3 + $0x230] sm:$0xff]
  %v4625 = vld [vmem:[#allocation3 + $0x238] sm:$0xff]
  %4627 = vset.pattern.permute.xlu0 0
  %4628 = vperm.xlu0 %4627, %v3536
  %v4629 = vpop.permute.xlu0 %4628
  %4632 = vset.pattern.permute.xlu0 0
  %4633 = vperm.xlu0 %4632, %v3537
  %v4634 = vpop.permute.xlu0 %4633
  %v4637 = vsel %vm370, %v3533, 0
  %v4640 = vsel %vm370, %v3535, 0
  %4642 = vmatprep.subr.mxu0 %v4555
  %4643 = vmatpush1.msra.mxu0 %v4554
  %4644 = vmatprep.subr.mxu0 %v4559
  %4645 = vmatpush1.msra.mxu0 %v4558
  %4646 = vmatprep.subr.mxu0 %v4563
  %4647 = vmatpush1.msra.mxu0 %v4562
  %4648 = vmatprep.subr.mxu0 %v4567
  %4649 = vmatpush1.msra.mxu0 %v4566
  %4650 = vmatprep.subr.mxu0 %v4571
  %4651 = vmatpush1.msra.mxu0 %v4570
  %4652 = vmatprep.subr.mxu0 %v4575
  %4653 = vmatpush1.msra.mxu0 %v4574
  %4654 = vmatprep.subr.mxu0 %v4579
  %4655 = vmatpush1.msra.mxu0 %v4578
  %4656 = vmatprep.subr.mxu0 %v4583
  %4657 = vmatpush1.msra.mxu0 %v4582
  %4658 = vmatprep.subr.mxu0 %v4587
  %4659 = vmatpush1.msra.mxu0 %v4586
  %4660 = vmatprep.subr.mxu0 %v4591
  %4661 = vmatpush1.msra.mxu0 %v4590
  %4662 = vmatprep.subr.mxu0 %v4595
  %4663 = vmatpush1.msra.mxu0 %v4594
  %4664 = vmatprep.subr.mxu0 %v4599
  %4665 = vmatpush1.msra.mxu0 %v4598
  %4666 = vmatprep.subr.mxu0 %v4603
  %4667 = vmatpush1.msra.mxu0 %v4602
  %4668 = vmatprep.subr.mxu0 %v4607
  %4669 = vmatpush1.msra.mxu0 %v4606
  %4670 = vmatprep.subr.mxu0 %v4611
  %4671 = vmatpush1.msra.mxu0 %v4610
  %4672 = vmatprep.subr.mxu0 %v4615
  %4673 = vmatpush1.msra.mxu0 %v4614
  %4674 = vmatprep.subr.mxu0 %v4619
  %4675 = vmatpush1.msra.mxu0 %v4618
  %4676 = vmatprep.subr.mxu0 %v4623
  %4677 = vmatpush1.msra.mxu0 %v4622
  %4678 = vmatprep.subr.mxu0 0.0
  %4679 = vmatpush1.msra.mxu0 0.0
  %4680 = vmatprep.subr.mxu0 0.0
  %4681 = vmatpush1.msra.mxu0 0.0
  %4682 = vmatprep.subr.mxu0 0.0
  %4683 = vmatpush1.msra.mxu0 0.0
  %4684 = vmatprep.subr.mxu0 0.0
  %4685 = vmatpush1.msra.mxu0 0.0
  %4686 = vmatprep.subr.mxu0 0.0
  %4687 = vmatpush1.msra.mxu0 0.0
  %4688 = vmatprep.subr.mxu0 0.0
  %4689 = vmatpush1.msra.mxu0 0.0
  %4690 = vmatprep.subr.mxu0 0.0
  %4691 = vmatpush1.msra.mxu0 0.0
  %4692 = vmatprep.subr.mxu0 0.0
  %4693 = vmatpush1.msra.mxu0 0.0
  %4694 = vmatprep.subr.mxu0 0.0
  %4695 = vmatpush1.msra.mxu0 0.0
  %4696 = vmatprep.subr.mxu0 0.0
  %4697 = vmatpush1.msra.mxu0 0.0
  %4698 = vmatprep.subr.mxu0 0.0
  %4699 = vmatpush1.msra.mxu0 0.0
  %4700 = vmatprep.subr.mxu0 0.0
  %4701 = vmatpush1.msra.mxu0 0.0
  %4702 = vmatprep.subr.mxu0 0.0
  %4703 = vmatpush1.msra.mxu0 0.0
  %4704 = vmatprep.subr.mxu0 0.0
  %4705 = vmatpush1.msra.mxu0 0.0
  %4706 = vmatprep.mubr.f32.mxu0 %v4637
  %4707 = vmatmul.mubr.f32.gmra.mrb[0].mxu0 %v3532
  %v4708 = vpop.f32.mrb[0].mxu0
  %v4709 = vadd.f32 %v4629, %v4708
  %v4710 = vpop.f32.mrb[0].mxu0
  %v4711 = vadd.f32 %v4629, %v4710
  %4712 = vmatprep.mubr.f32.mxu0 %v4640
  %4713 = vmatmul.mubr.f32.gmra.mrb[0].mxu0 %v3534
  %v4714 = vpop.f32.mrb[0].mxu0
  %v4715 = vadd.f32 %v4634, %v4714
  %v4716 = vpop.f32.mrb[0].mxu0
  %v4717 = vadd.f32 %v4634, %v4716
  %4718 = vdwg.mxu0
  %4719 = vmatprep.subr.mxu0 %v4557
  %4720 = vmatpush1.msra.mxu0 %v4556
  %4721 = vmatprep.subr.mxu0 %v4561
  %4722 = vmatpush1.msra.mxu0 %v4560
  %4723 = vmatprep.subr.mxu0 %v4565
  %4724 = vmatpush1.msra.mxu0 %v4564
  %4725 = vmatprep.subr.mxu0 %v4569
  %4726 = vmatpush1.msra.mxu0 %v4568
  %4727 = vmatprep.subr.mxu0 %v4573
  %4728 = vmatpush1.msra.mxu0 %v4572
  %4729 = vmatprep.subr.mxu0 %v4577
  %4730 = vmatpush1.msra.mxu0 %v4576
  %4731 = vmatprep.subr.mxu0 %v4581
  %4732 = vmatpush1.msra.mxu0 %v4580
  %4733 = vmatprep.subr.mxu0 %v4585
  %4734 = vmatpush1.msra.mxu0 %v4584
  %4735 = vmatprep.subr.mxu0 %v4589
  %4736 = vmatpush1.msra.mxu0 %v4588
  %4737 = vmatprep.subr.mxu0 %v4593
  %4738 = vmatpush1.msra.mxu0 %v4592
  %4739 = vmatprep.subr.mxu0 %v4597
  %4740 = vmatpush1.msra.mxu0 %v4596
  %4741 = vmatprep.subr.mxu0 %v4601
  %4742 = vmatpush1.msra.mxu0 %v4600
  %4743 = vmatprep.subr.mxu0 %v4605
  %4744 = vmatpush1.msra.mxu0 %v4604
  %4745 = vmatprep.subr.mxu0 %v4609
  %4746 = vmatpush1.msra.mxu0 %v4608
  %4747 = vmatprep.subr.mxu0 %v4613
  %4748 = vmatpush1.msra.mxu0 %v4612
  %4749 = vmatprep.subr.mxu0 %v4617
  %4750 = vmatpush1.msra.mxu0 %v4616
  %4751 = vmatprep.subr.mxu0 %v4621
  %4752 = vmatpush1.msra.mxu0 %v4620
  %4753 = vmatprep.subr.mxu0 %v4625
  %4754 = vmatpush1.msra.mxu0 %v4624
  %4755 = vmatprep.subr.mxu0 0.0
  %4756 = vmatpush1.msra.mxu0 0.0
  %4757 = vmatprep.subr.mxu0 0.0
  %4758 = vmatpush1.msra.mxu0 0.0
  %4759 = vmatprep.subr.mxu0 0.0
  %4760 = vmatpush1.msra.mxu0 0.0
  %4761 = vmatprep.subr.mxu0 0.0
  %4762 = vmatpush1.msra.mxu0 0.0
  %4763 = vmatprep.subr.mxu0 0.0
  %4764 = vmatpush1.msra.mxu0 0.0
  %4765 = vmatprep.subr.mxu0 0.0
  %4766 = vmatpush1.msra.mxu0 0.0
  %4767 = vmatprep.subr.mxu0 0.0
  %4768 = vmatpush1.msra.mxu0 0.0
  %4769 = vmatprep.subr.mxu0 0.0
  %4770 = vmatpush1.msra.mxu0 0.0
  %4771 = vmatprep.subr.mxu0 0.0
  %4772 = vmatpush1.msra.mxu0 0.0
  %4773 = vmatprep.subr.mxu0 0.0
  %4774 = vmatpush1.msra.mxu0 0.0
  %4775 = vmatprep.subr.mxu0 0.0
  %4776 = vmatpush1.msra.mxu0 0.0
  %4777 = vmatprep.subr.mxu0 0.0
  %4778 = vmatpush1.msra.mxu0 0.0
  %4779 = vmatprep.subr.mxu0 0.0
  %4780 = vmatpush1.msra.mxu0 0.0
  %4781 = vmatprep.subr.mxu0 0.0
  %4782 = vmatpush1.msra.mxu0 0.0
  %4783 = vmatprep.mubr.f32.mxu0 %v4637
  %4784 = vmatmul.mubr.f32.gmra.mrb[0].mxu0 %v3532
  %v4785 = vpop.f32.mrb[0].mxu0
  %v4786 = vadd.f32 %v4629, %v4785
  %v4787 = vpop.f32.mrb[0].mxu0
  %v4788 = vadd.f32 %v4629, %v4787
  %4789 = vmatprep.mubr.f32.mxu0 %v4640
  %4790 = vmatmul.mubr.f32.gmra.mrb[0].mxu0 %v3534
  %v4791 = vpop.f32.mrb[0].mxu0
  %v4792 = vadd.f32 %v4634, %v4791
  %v4793 = vpop.f32.mrb[0].mxu0
  %v4794 = vadd.f32 %v4634, %v4793
  %4795 = vdwg.mxu0
  %v4796 = vmax.f32 %v4709, 0.0
  %v4797 = vmax.f32 %v4711, 0.0
  %v4798 = vmax.f32 %v4786, 0.0
  %v4799 = vmax.f32 %v4788, 0.0
  %v4800 = vmax.f32 %v4715, 0.0
  %v4801 = vmax.f32 %v4717, 0.0
  %v4802 = vmax.f32 %v4792, 0.0
  %v4803 = vmax.f32 %v4794, 0.0
  %v4804 = vld [vmem:[%s12] sm:$0xff]
  %v4805 = vld [vmem:[%s12 + $0x8] sm:$0xff]
  %v4806 = vld [vmem:[%s13] sm:$0xff]
  %v4807 = vld [vmem:[%s13 + $0x8] sm:$0xff]
  %v4808 = vadd.f32 %v4796, %v4797
  %v4809 = vadd.f32 %v4808, %v4798
  %v4810 = vadd.f32 %v4809, %v4799
  %4811 = vadd.xlane.f32.xlu0 %v4810
  %v4812 = vpop.xlane.xlu0 %4811
  %v4813 = vadd.f32 %v4800, %v4801
  %v4814 = vadd.f32 %v4813, %v4802
  %v4815 = vadd.f32 %v4814, %v4803
  %4816 = vadd.xlane.f32.xlu0 %v4815
  %v4817 = vpop.xlane.xlu0 %4816
  %v4818 = vmul.f32 %v4812, 0.001953125
  %v4819 = vmul.f32 %v4817, 0.001953125
  %v4820 = vmul.f32 %v4796, %v4796
  %v4821 = vmul.f32 %v4797, %v4797
  %v4822 = vmul.f32 %v4798, %v4798
  %v4823 = vmul.f32 %v4799, %v4799
  %v4824 = vmul.f32 %v4800, %v4800
  %v4825 = vmul.f32 %v4801, %v4801
  %v4826 = vmul.f32 %v4802, %v4802
  %v4827 = vmul.f32 %v4803, %v4803
  %v4828 = vadd.f32 %v4820, %v4821
  %v4829 = vadd.f32 %v4828, %v4822
  %v4830 = vadd.f32 %v4829, %v4823
  %4831 = vadd.xlane.f32.xlu0 %v4830
  %v4832 = vpop.xlane.xlu0 %4831
  %v4833 = vadd.f32 %v4824, %v4825
  %v4834 = vadd.f32 %v4833, %v4826
  %v4835 = vadd.f32 %v4834, %v4827
  %4836 = vadd.xlane.f32.xlu0 %v4835
  %v4837 = vpop.xlane.xlu0 %4836
  %v4838 = vmul.f32 %v4832, 0.001953125
  %v4839 = vmul.f32 %v4837, 0.001953125
  %v4840 = vmul.f32 %v4818, %v4818
  %v4841 = vmul.f32 %v4819, %v4819
  %v4842 = vsub.f32 %v4838, %v4840
  %v4843 = vsub.f32 %v4839, %v4841
  %v4844 = vadd.f32 %v4842, 1e-05
  %v4845 = vadd.f32 %v4843, 1e-05
  %v4846 = vrsqrt.pop %v4844
  %v4847 = vrsqrt.pop %v4845
  %v4848 = vmul.f32 %v4846, %v4804
  %v4849 = vmul.f32 %v4847, %v4805
  %4851 = vset.pattern.permute.xlu0 0
  %4852 = vperm.xlu0 %4851, %v4848
  %v4853 = vpop.permute.xlu0 %4852
  %4856 = vset.pattern.permute.xlu0 0
  %4857 = vperm.xlu0 %4856, %v4849
  %v4858 = vpop.permute.xlu0 %4857
  %v4860 = vmul.f32 %v4796, %v4853
  %v4861 = vmul.f32 %v4797, %v4853
  %v4862 = vmul.f32 %v4798, %v4853
  %v4863 = vmul.f32 %v4799, %v4853
  %v4864 = vmul.f32 %v4800, %v4858
  %v4865 = vmul.f32 %v4801, %v4858
  %v4866 = vmul.f32 %v4802, %v4858
  %v4867 = vmul.f32 %v4803, %v4858
  %v4868 = vmul.f32 %v4818, %v4848
  %v4869 = vmul.f32 %v4819, %v4849
  %v4870 = vsub.f32 %v4806, %v4868
  %v4871 = vsub.f32 %v4807, %v4869
  %4873 = vset.pattern.permute.xlu0 0
  %4874 = vperm.xlu0 %4873, %v4870
  %v4875 = vpop.permute.xlu0 %4874
  %4878 = vset.pattern.permute.xlu0 0
  %4879 = vperm.xlu0 %4878, %v4871
  %v4880 = vpop.permute.xlu0 %4879
  %v4882 = vadd.f32 %v4860, %v4875
  %v4883 = vadd.f32 %v4861, %v4875
  %v4884 = vadd.f32 %v4862, %v4875
  %v4885 = vadd.f32 %v4863, %v4875
  %v4886 = vadd.f32 %v4864, %v4880
  %v4887 = vadd.f32 %v4865, %v4880
  %v4888 = vadd.f32 %v4866, %v4880
  %v4889 = vadd.f32 %v4867, %v4880
  %s4890 = scalar_lea.vmem %s10, 32
  %v4891 = vld [vmem:[%s4890] sm:$0xff]
  %v4892 = vld [vmem:[%s4890 + $0x8] sm:$0xff]
  %v4893 = vld [vmem:[%s4890 + $0x10] sm:$0xff]
  %v4894 = vld [vmem:[%s4890 + $0x18] sm:$0xff]
  %s4895 = scalar_lea.vmem %s11, 16
  %v4896 = vld [vmem:[%s4895] sm:$0xff]
  %v4897 = vld [vmem:[%s4895 + $0x8] sm:$0xff]
  %4898 = vst [vmem:[#allocation4 + $0x8] sm:$0xff] %v3524
  %4899 = vst [vmem:[#allocation4 + $0x10] sm:$0xff] %v3525
  %4900 = vst [vmem:[#allocation4 + $0x18] sm:$0xff] %v3526
  %4901 = vst [vmem:[#allocation4 + $0x20] sm:$0xff] %v3527
  %4902 = vst [vmem:[#allocation4 + $0x38] sm:$0xff] %v3528
  %4903 = vst [vmem:[#allocation4 + $0x40] sm:$0xff] %v3529
  %4904 = vst [vmem:[#allocation4 + $0x48] sm:$0xff] %v3530
  %4905 = vst [vmem:[#allocation4 + $0x50] sm:$0xff] %v3531
  %v4906 = vld [vmem:[#allocation4] sm:$0xff]
  %v4907 = vld [vmem:[#allocation4 + $0x8] sm:$0xff]
  %v4908 = vld [vmem:[#allocation4 + $0x10] sm:$0xff]
  %v4909 = vld [vmem:[#allocation4 + $0x18] sm:$0xff]
  %v4910 = vld [vmem:[#allocation4 + $0x20] sm:$0xff]
  %v4911 = vld [vmem:[#allocation4 + $0x30] sm:$0xff]
  %v4912 = vld [vmem:[#allocation4 + $0x38] sm:$0xff]
  %v4913 = vld [vmem:[#allocation4 + $0x40] sm:$0xff]
  %v4914 = vld [vmem:[#allocation4 + $0x48] sm:$0xff]
  %v4915 = vld [vmem:[#allocation4 + $0x50] sm:$0xff]
  %v4916 = vld [vmem:[%s0] sm:$0xff]
  %v4917 = vld [vmem:[%s0 + $0x8] sm:$0xff]
  %v4918 = vld [vmem:[%s0 + $0x10] sm:$0xff]
  %v4919 = vld [vmem:[%s0 + $0x18] sm:$0xff]
  %v4920 = vld [vmem:[%s0 + $0x20] sm:$0xff]
  %v4921 = vld [vmem:[%s0 + $0x28] sm:$0xff]
  %v4922 = vld [vmem:[%s0 + $0x30] sm:$0xff]
  %v4923 = vld [vmem:[%s0 + $0x38] sm:$0xff]
  %4932 = vrot.lane.b32.xlu0 %v4916, 111
  %v4933 = vpop.permute.xlu0 %4932
  %4934 = vrot.lane.b32.xlu0 %v4917, 111
  %v4935 = vpop.permute.xlu0 %4934
  %4936 = vrot.lane.b32.xlu0 %v4918, 111
  %v4937 = vpop.permute.xlu0 %4936
  %4938 = vrot.lane.b32.xlu0 %v4919, 111
  %v4939 = vpop.permute.xlu0 %4938
  %4940 = vrot.lane.b32.xlu0 %v4920, 111
  %v4941 = vpop.permute.xlu0 %4940
  %4942 = vrot.lane.b32.xlu0 %v4921, 111
  %v4943 = vpop.permute.xlu0 %4942
  %4944 = vrot.lane.b32.xlu0 %v4922, 111
  %v4945 = vpop.permute.xlu0 %4944
  %4946 = vrot.lane.b32.xlu0 %v4923, 111
  %v4947 = vpop.permute.xlu0 %4946
  %v4948 = vsel %vm278, %v4933, %v4935
  %v4949 = vsel %vm278, %v4935, %v4937
  %v4950 = vsel %vm278, %v4937, %v4939
  %v4951 = vsel %vm278, %v4941, %v4943
  %v4952 = vsel %vm278, %v4943, %v4945
  %v4953 = vsel %vm278, %v4945, %v4947
  %v4964 = vmul.f32 %v4906, %v4933
  %v4965 = vmul.f32 %v4907, %v4948
  %v4966 = vmul.f32 %v4908, %v4949
  %v4967 = vmul.f32 %v4909, %v4950
  %v4968 = vmul.f32 %v4910, %v4939
  %v4969 = vmul.f32 %v4911, %v4941
  %v4970 = vmul.f32 %v4912, %v4951
  %v4971 = vmul.f32 %v4913, %v4952
  %v4972 = vmul.f32 %v4914, %v4953
  %v4973 = vmul.f32 %v4915, %v4947
  %4984 = vrot.lane.b32.xlu0 %v4964, 17
  %v4985 = vpop.permute.xlu0 %4984
  %4986 = vrot.lane.b32.xlu0 %v4965, 17
  %v4987 = vpop.permute.xlu0 %4986
  %4988 = vrot.lane.b32.xlu0 %v4966, 17
  %v4989 = vpop.permute.xlu0 %4988
  %4990 = vrot.lane.b32.xlu0 %v4967, 17
  %v4991 = vpop.permute.xlu0 %4990
  %4992 = vrot.lane.b32.xlu0 %v4968, 17
  %v4993 = vpop.permute.xlu0 %4992
  %4994 = vrot.lane.b32.xlu0 %v4969, 17
  %v4995 = vpop.permute.xlu0 %4994
  %4996 = vrot.lane.b32.xlu0 %v4970, 17
  %v4997 = vpop.permute.xlu0 %4996
  %4998 = vrot.lane.b32.xlu0 %v4971, 17
  %v4999 = vpop.permute.xlu0 %4998
  %5000 = vrot.lane.b32.xlu0 %v4972, 17
  %v5001 = vpop.permute.xlu0 %5000
  %5002 = vrot.lane.b32.xlu0 %v4973, 17
  %v5003 = vpop.permute.xlu0 %5002
  %v5004 = vsel %vm307, %v4985, %v4987
  %v5005 = vsel %vm307, %v4987, %v4989
  %v5006 = vsel %vm307, %v4989, %v4991
  %v5007 = vsel %vm307, %v4991, %v4993
  %v5008 = vsel %vm307, %v4995, %v4997
  %v5009 = vsel %vm307, %v4997, %v4999
  %v5010 = vsel %vm307, %v4999, %v5001
  %v5011 = vsel %vm307, %v5001, %v5003
  %5020 = vst [vmem:[#allocation5] sm:$0xff] %v5004
  %5021 = vst [vmem:[#allocation5 + $0x8] sm:$0xff] %v5005
  %5022 = vst [vmem:[#allocation5 + $0x10] sm:$0xff] %v5006
  %5023 = vst [vmem:[#allocation5 + $0x18] sm:$0xff] %v5007
  %5024 = vst [vmem:[#allocation5 + $0x20] sm:$0xff] %v5008
  %5025 = vst [vmem:[#allocation5 + $0x28] sm:$0xff] %v5009
  %5026 = vst [vmem:[#allocation5 + $0x30] sm:$0xff] %v5010
  %5027 = vst [vmem:[#allocation5 + $0x38] sm:$0xff] %v5011
  %v5028 = vld [vmem:[#allocation4] sm:$0xff]
  %v5029 = vld [vmem:[#allocation4 + $0x8] sm:$0xff]
  %v5030 = vld [vmem:[#allocation4 + $0x10] sm:$0xff]
  %v5031 = vld [vmem:[#allocation4 + $0x18] sm:$0xff]
  %v5032 = vld [vmem:[#allocation4 + $0x20] sm:$0xff]
  %v5033 = vld [vmem:[#allocation4 + $0x30] sm:$0xff]
  %v5034 = vld [vmem:[#allocation4 + $0x38] sm:$0xff]
  %v5035 = vld [vmem:[#allocation4 + $0x40] sm:$0xff]
  %v5036 = vld [vmem:[#allocation4 + $0x48] sm:$0xff]
  %v5037 = vld [vmem:[#allocation4 + $0x50] sm:$0xff]
  %v5038 = vld [vmem:[%s0 + $0x40] sm:$0xff]
  %v5039 = vld [vmem:[%s0 + $0x48] sm:$0xff]
  %v5040 = vld [vmem:[%s0 + $0x50] sm:$0xff]
  %v5041 = vld [vmem:[%s0 + $0x58] sm:$0xff]
  %v5042 = vld [vmem:[%s0 + $0x60] sm:$0xff]
  %v5043 = vld [vmem:[%s0 + $0x68] sm:$0xff]
  %v5044 = vld [vmem:[%s0 + $0x70] sm:$0xff]
  %v5045 = vld [vmem:[%s0 + $0x78] sm:$0xff]
  %5054 = vrot.lane.b32.xlu0 %v5038, 112
  %v5055 = vpop.permute.xlu0 %5054
  %5056 = vrot.lane.b32.xlu0 %v5039, 112
  %v5057 = vpop.permute.xlu0 %5056
  %5058 = vrot.lane.b32.xlu0 %v5040, 112
  %v5059 = vpop.permute.xlu0 %5058
  %5060 = vrot.lane.b32.xlu0 %v5041, 112
  %v5061 = vpop.permute.xlu0 %5060
  %5062 = vrot.lane.b32.xlu0 %v5042, 112
  %v5063 = vpop.permute.xlu0 %5062
  %5064 = vrot.lane.b32.xlu0 %v5043, 112
  %v5065 = vpop.permute.xlu0 %5064
  %5066 = vrot.lane.b32.xlu0 %v5044, 112
  %v5067 = vpop.permute.xlu0 %5066
  %5068 = vrot.lane.b32.xlu0 %v5045, 112
  %v5069 = vpop.permute.xlu0 %5068
  %v5070 = vsel %vm341, %v5055, %v5057
  %v5071 = vsel %vm341, %v5057, %v5059
  %v5072 = vsel %vm341, %v5059, %v5061
  %v5073 = vsel %vm341, %v5063, %v5065
  %v5074 = vsel %vm341, %v5065, %v5067
  %v5075 = vsel %vm341, %v5067, %v5069
  %v5086 = vmul.f32 %v5028, %v5055
  %v5087 = vmul.f32 %v5029, %v5070
  %v5088 = vmul.f32 %v5030, %v5071
  %v5089 = vmul.f32 %v5031, %v5072
  %v5090 = vmul.f32 %v5032, %v5061
  %v5091 = vmul.f32 %v5033, %v5063
  %v5092 = vmul.f32 %v5034, %v5073
  %v5093 = vmul.f32 %v5035, %v5074
  %v5094 = vmul.f32 %v5036, %v5075
  %v5095 = vmul.f32 %v5037, %v5069
  %5106 = vrot.lane.b32.xlu0 %v5086, 16
  %v5107 = vpop.permute.xlu0 %5106
  %5108 = vrot.lane.b32.xlu0 %v5087, 16
  %v5109 = vpop.permute.xlu0 %5108
  %5110 = vrot.lane.b32.xlu0 %v5088, 16
  %v5111 = vpop.permute.xlu0 %5110
  %5112 = vrot.lane.b32.xlu0 %v5089, 16
  %v5113 = vpop.permute.xlu0 %5112
  %5114 = vrot.lane.b32.xlu0 %v5090, 16
  %v5115 = vpop.permute.xlu0 %5114
  %5116 = vrot.lane.b32.xlu0 %v5091, 16
  %v5117 = vpop.permute.xlu0 %5116
  %5118 = vrot.lane.b32.xlu0 %v5092, 16
  %v5119 = vpop.permute.xlu0 %5118
  %5120 = vrot.lane.b32.xlu0 %v5093, 16
  %v5121 = vpop.permute.xlu0 %5120
  %5122 = vrot.lane.b32.xlu0 %v5094, 16
  %v5123 = vpop.permute.xlu0 %5122
  %5124 = vrot.lane.b32.xlu0 %v5095, 16
  %v5125 = vpop.permute.xlu0 %5124
  %v5126 = vsel %vm370, %v5107, %v5109
  %v5127 = vsel %vm370, %v5109, %v5111
  %v5128 = vsel %vm370, %v5111, %v5113
  %v5129 = vsel %vm370, %v5113, %v5115
  %v5130 = vsel %vm370, %v5117, %v5119
  %v5131 = vsel %vm370, %v5119, %v5121
  %v5132 = vsel %vm370, %v5121, %v5123
  %v5133 = vsel %vm370, %v5123, %v5125
  %5142 = vst [vmem:[#allocation5 + $0x40] sm:$0xff] %v5126
  %5143 = vst [vmem:[#allocation5 + $0x48] sm:$0xff] %v5127
  %5144 = vst [vmem:[#allocation5 + $0x50] sm:$0xff] %v5128
  %5145 = vst [vmem:[#allocation5 + $0x58] sm:$0xff] %v5129
  %5146 = vst [vmem:[#allocation5 + $0x60] sm:$0xff] %v5130
  %5147 = vst [vmem:[#allocation5 + $0x68] sm:$0xff] %v5131
  %5148 = vst [vmem:[#allocation5 + $0x70] sm:$0xff] %v5132
  %5149 = vst [vmem:[#allocation5 + $0x78] sm:$0xff] %v5133
  %v5150 = vld [vmem:[#allocation4] sm:$0xff]
  %v5151 = vld [vmem:[#allocation4 + $0x8] sm:$0xff]
  %v5152 = vld [vmem:[#allocation4 + $0x10] sm:$0xff]
  %v5153 = vld [vmem:[#allocation4 + $0x18] sm:$0xff]
  %v5154 = vld [vmem:[#allocation4 + $0x20] sm:$0xff]
  %v5155 = vld [vmem:[#allocation4 + $0x30] sm:$0xff]
  %v5156 = vld [vmem:[#allocation4 + $0x38] sm:$0xff]
  %v5157 = vld [vmem:[#allocation4 + $0x40] sm:$0xff]
  %v5158 = vld [vmem:[#allocation4 + $0x48] sm:$0xff]
  %v5159 = vld [vmem:[#allocation4 + $0x50] sm:$0xff]
  %v5160 = vld [vmem:[%s0 + $0x80] sm:$0xff]
  %v5161 = vld [vmem:[%s0 + $0x88] sm:$0xff]
  %v5162 = vld [vmem:[%s0 + $0x90] sm:$0xff]
  %v5163 = vld [vmem:[%s0 + $0x98] sm:$0xff]
  %v5164 = vld [vmem:[%s0 + $0xa0] sm:$0xff]
  %v5165 = vld [vmem:[%s0 + $0xa8] sm:$0xff]
  %v5166 = vld [vmem:[%s0 + $0xb0] sm:$0xff]
  %v5167 = vld [vmem:[%s0 + $0xb8] sm:$0xff]
  %5176 = vrot.lane.b32.xlu0 %v5160, 113
  %v5177 = vpop.permute.xlu0 %5176
  %5178 = vrot.lane.b32.xlu0 %v5161, 113
  %v5179 = vpop.permute.xlu0 %5178
  %5180 = vrot.lane.b32.xlu0 %v5162, 113
  %v5181 = vpop.permute.xlu0 %5180
  %5182 = vrot.lane.b32.xlu0 %v5163, 113
  %v5183 = vpop.permute.xlu0 %5182
  %5184 = vrot.lane.b32.xlu0 %v5164, 113
  %v5185 = vpop.permute.xlu0 %5184
  %5186 = vrot.lane.b32.xlu0 %v5165, 113
  %v5187 = vpop.permute.xlu0 %5186
  %5188 = vrot.lane.b32.xlu0 %v5166, 113
  %v5189 = vpop.permute.xlu0 %5188
  %5190 = vrot.lane.b32.xlu0 %v5167, 113
  %v5191 = vpop.permute.xlu0 %5190
  %v5192 = vsel %vm404, %v5177, %v5179
  %v5193 = vsel %vm404, %v5179, %v5181
  %v5194 = vsel %vm404, %v5181, %v5183
  %v5195 = vsel %vm404, %v5185, %v5187
  %v5196 = vsel %vm404, %v5187, %v5189
  %v5197 = vsel %vm404, %v5189, %v5191
  %v5208 = vmul.f32 %v5150, %v5177
  %v5209 = vmul.f32 %v5151, %v5192
  %v5210 = vmul.f32 %v5152, %v5193
  %v5211 = vmul.f32 %v5153, %v5194
  %v5212 = vmul.f32 %v5154, %v5183
  %v5213 = vmul.f32 %v5155, %v5185
  %v5214 = vmul.f32 %v5156, %v5195
  %v5215 = vmul.f32 %v5157, %v5196
  %v5216 = vmul.f32 %v5158, %v5197
  %v5217 = vmul.f32 %v5159, %v5191
  %5228 = vrot.lane.b32.xlu0 %v5208, 15
  %v5229 = vpop.permute.xlu0 %5228
  %5230 = vrot.lane.b32.xlu0 %v5209, 15
  %v5231 = vpop.permute.xlu0 %5230
  %5232 = vrot.lane.b32.xlu0 %v5210, 15
  %v5233 = vpop.permute.xlu0 %5232
  %5234 = vrot.lane.b32.xlu0 %v5211, 15
  %v5235 = vpop.permute.xlu0 %5234
  %5236 = vrot.lane.b32.xlu0 %v5212, 15
  %v5237 = vpop.permute.xlu0 %5236
  %5238 = vrot.lane.b32.xlu0 %v5213, 15
  %v5239 = vpop.permute.xlu0 %5238
  %5240 = vrot.lane.b32.xlu0 %v5214, 15
  %v5241 = vpop.permute.xlu0 %5240
  %5242 = vrot.lane.b32.xlu0 %v5215, 15
  %v5243 = vpop.permute.xlu0 %5242
  %5244 = vrot.lane.b32.xlu0 %v5216, 15
  %v5245 = vpop.permute.xlu0 %5244
  %5246 = vrot.lane.b32.xlu0 %v5217, 15
  %v5247 = vpop.permute.xlu0 %5246
  %v5248 = vsel %vm433, %v5229, %v5231
  %v5249 = vsel %vm433, %v5231, %v5233
  %v5250 = vsel %vm433, %v5233, %v5235
  %v5251 = vsel %vm433, %v5235, %v5237
  %v5252 = vsel %vm433, %v5239, %v5241
  %v5253 = vsel %vm433, %v5241, %v5243
  %v5254 = vsel %vm433, %v5243, %v5245
  %v5255 = vsel %vm433, %v5245, %v5247
  %5264 = vst [vmem:[#allocation5 + $0x80] sm:$0xff] %v5248
  %5265 = vst [vmem:[#allocation5 + $0x88] sm:$0xff] %v5249
  %5266 = vst [vmem:[#allocation5 + $0x90] sm:$0xff] %v5250
  %5267 = vst [vmem:[#allocation5 + $0x98] sm:$0xff] %v5251
  %5268 = vst [vmem:[#allocation5 + $0xa0] sm:$0xff] %v5252
  %5269 = vst [vmem:[#allocation5 + $0xa8] sm:$0xff] %v5253
  %5270 = vst [vmem:[#allocation5 + $0xb0] sm:$0xff] %v5254
  %5271 = vst [vmem:[#allocation5 + $0xb8] sm:$0xff] %v5255
  %v5272 = vld [vmem:[#allocation4] sm:$0xff]
  %v5273 = vld [vmem:[#allocation4 + $0x8] sm:$0xff]
  %v5274 = vld [vmem:[#allocation4 + $0x10] sm:$0xff]
  %v5275 = vld [vmem:[#allocation4 + $0x18] sm:$0xff]
  %v5276 = vld [vmem:[#allocation4 + $0x20] sm:$0xff]
  %v5277 = vld [vmem:[#allocation4 + $0x30] sm:$0xff]
  %v5278 = vld [vmem:[#allocation4 + $0x38] sm:$0xff]
  %v5279 = vld [vmem:[#allocation4 + $0x40] sm:$0xff]
  %v5280 = vld [vmem:[#allocation4 + $0x48] sm:$0xff]
  %v5281 = vld [vmem:[#allocation4 + $0x50] sm:$0xff]
  %v5282 = vld [vmem:[%s0 + $0xc0] sm:$0xff]
  %v5283 = vld [vmem:[%s0 + $0xc8] sm:$0xff]
  %v5284 = vld [vmem:[%s0 + $0xd0] sm:$0xff]
  %v5285 = vld [vmem:[%s0 + $0xd8] sm:$0xff]
  %v5286 = vld [vmem:[%s0 + $0xe0] sm:$0xff]
  %v5287 = vld [vmem:[%s0 + $0xe8] sm:$0xff]
  %v5288 = vld [vmem:[%s0 + $0xf0] sm:$0xff]
  %v5289 = vld [vmem:[%s0 + $0xf8] sm:$0xff]
  %5298 = vrot.lane.b32.xlu0 %v5282, 127
  %v5299 = vpop.permute.xlu0 %5298
  %5300 = vrot.lane.b32.xlu0 %v5283, 127
  %v5301 = vpop.permute.xlu0 %5300
  %5302 = vrot.lane.b32.xlu0 %v5284, 127
  %v5303 = vpop.permute.xlu0 %5302
  %5304 = vrot.lane.b32.xlu0 %v5285, 127
  %v5305 = vpop.permute.xlu0 %5304
  %5306 = vrot.lane.b32.xlu0 %v5286, 127
  %v5307 = vpop.permute.xlu0 %5306
  %5308 = vrot.lane.b32.xlu0 %v5287, 127
  %v5309 = vpop.permute.xlu0 %5308
  %5310 = vrot.lane.b32.xlu0 %v5288, 127
  %v5311 = vpop.permute.xlu0 %5310
  %5312 = vrot.lane.b32.xlu0 %v5289, 127
  %v5313 = vpop.permute.xlu0 %5312
  %v5314 = vsel %vm467, %v5299, %v5301
  %v5315 = vsel %vm467, %v5301, %v5303
  %v5316 = vsel %vm467, %v5303, %v5305
  %v5317 = vsel %vm467, %v5307, %v5309
  %v5318 = vsel %vm467, %v5309, %v5311
  %v5319 = vsel %vm467, %v5311, %v5313
  %v5330 = vmul.f32 %v5272, %v5299
  %v5331 = vmul.f32 %v5273, %v5314
  %v5332 = vmul.f32 %v5274, %v5315
  %v5333 = vmul.f32 %v5275, %v5316
  %v5334 = vmul.f32 %v5276, %v5305
  %v5335 = vmul.f32 %v5277, %v5307
  %v5336 = vmul.f32 %v5278, %v5317
  %v5337 = vmul.f32 %v5279, %v5318
  %v5338 = vmul.f32 %v5280, %v5319
  %v5339 = vmul.f32 %v5281, %v5313
  %5350 = vrot.lane.b32.xlu0 %v5330, 1
  %v5351 = vpop.permute.xlu0 %5350
  %5352 = vrot.lane.b32.xlu0 %v5331, 1
  %v5353 = vpop.permute.xlu0 %5352
  %5354 = vrot.lane.b32.xlu0 %v5332, 1
  %v5355 = vpop.permute.xlu0 %5354
  %5356 = vrot.lane.b32.xlu0 %v5333, 1
  %v5357 = vpop.permute.xlu0 %5356
  %5358 = vrot.lane.b32.xlu0 %v5334, 1
  %v5359 = vpop.permute.xlu0 %5358
  %5360 = vrot.lane.b32.xlu0 %v5335, 1
  %v5361 = vpop.permute.xlu0 %5360
  %5362 = vrot.lane.b32.xlu0 %v5336, 1
  %v5363 = vpop.permute.xlu0 %5362
  %5364 = vrot.lane.b32.xlu0 %v5337, 1
  %v5365 = vpop.permute.xlu0 %5364
  %5366 = vrot.lane.b32.xlu0 %v5338, 1
  %v5367 = vpop.permute.xlu0 %5366
  %5368 = vrot.lane.b32.xlu0 %v5339, 1
  %v5369 = vpop.permute.xlu0 %5368
  %v5370 = vsel %vm496, %v5351, %v5353
  %v5371 = vsel %vm496, %v5353, %v5355
  %v5372 = vsel %vm496, %v5355, %v5357
  %v5373 = vsel %vm496, %v5357, %v5359
  %v5374 = vsel %vm496, %v5361, %v5363
  %v5375 = vsel %vm496, %v5363, %v5365
  %v5376 = vsel %vm496, %v5365, %v5367
  %v5377 = vsel %vm496, %v5367, %v5369
  %5386 = vst [vmem:[#allocation5 + $0xc0] sm:$0xff] %v5370
  %5387 = vst [vmem:[#allocation5 + $0xc8] sm:$0xff] %v5371
  %5388 = vst [vmem:[#allocation5 + $0xd0] sm:$0xff] %v5372
  %5389 = vst [vmem:[#allocation5 + $0xd8] sm:$0xff] %v5373
  %5390 = vst [vmem:[#allocation5 + $0xe0] sm:$0xff] %v5374
  %5391 = vst [vmem:[#allocation5 + $0xe8] sm:$0xff] %v5375
  %5392 = vst [vmem:[#allocation5 + $0xf0] sm:$0xff] %v5376
  %5393 = vst [vmem:[#allocation5 + $0xf8] sm:$0xff] %v5377
  %v5394 = vld [vmem:[#allocation4 + $0x8] sm:$0xff]
  %v5395 = vld [vmem:[#allocation4 + $0x10] sm:$0xff]
  %v5396 = vld [vmem:[#allocation4 + $0x18] sm:$0xff]
  %v5397 = vld [vmem:[#allocation4 + $0x20] sm:$0xff]
  %v5398 = vld [vmem:[#allocation4 + $0x38] sm:$0xff]
  %v5399 = vld [vmem:[#allocation4 + $0x40] sm:$0xff]
  %v5400 = vld [vmem:[#allocation4 + $0x48] sm:$0xff]
  %v5401 = vld [vmem:[#allocation4 + $0x50] sm:$0xff]
  %v5402 = vld [vmem:[%s0 + $0x100] sm:$0xff]
  %v5403 = vld [vmem:[%s0 + $0x108] sm:$0xff]
  %v5404 = vld [vmem:[%s0 + $0x110] sm:$0xff]
  %v5405 = vld [vmem:[%s0 + $0x118] sm:$0xff]
  %v5406 = vld [vmem:[%s0 + $0x120] sm:$0xff]
  %v5407 = vld [vmem:[%s0 + $0x128] sm:$0xff]
  %v5408 = vld [vmem:[%s0 + $0x130] sm:$0xff]
  %v5409 = vld [vmem:[%s0 + $0x138] sm:$0xff]
  %v5410 = vmul.f32 %v5394, %v5402
  %v5411 = vmul.f32 %v5395, %v5403
  %v5412 = vmul.f32 %v5396, %v5404
  %v5413 = vmul.f32 %v5397, %v5405
  %v5414 = vmul.f32 %v5398, %v5406
  %v5415 = vmul.f32 %v5399, %v5407
  %v5416 = vmul.f32 %v5400, %v5408
  %v5417 = vmul.f32 %v5401, %v5409
  %5418 = vst [vmem:[#allocation5 + $0x100] sm:$0xff] %v5410
  %5419 = vst [vmem:[#allocation5 + $0x108] sm:$0xff] %v5411
  %5420 = vst [vmem:[#allocation5 + $0x110] sm:$0xff] %v5412
  %5421 = vst [vmem:[#allocation5 + $0x118] sm:$0xff] %v5413
  %5422 = vst [vmem:[#allocation5 + $0x120] sm:$0xff] %v5414
  %5423 = vst [vmem:[#allocation5 + $0x128] sm:$0xff] %v5415
  %5424 = vst [vmem:[#allocation5 + $0x130] sm:$0xff] %v5416
  %5425 = vst [vmem:[#allocation5 + $0x138] sm:$0xff] %v5417
  %v5426 = vld [vmem:[#allocation4 + $0x8] sm:$0xff]
  %v5427 = vld [vmem:[#allocation4 + $0x10] sm:$0xff]
  %v5428 = vld [vmem:[#allocation4 + $0x18] sm:$0xff]
  %v5429 = vld [vmem:[#allocation4 + $0x20] sm:$0xff]
  %v5430 = vld [vmem:[#allocation4 + $0x28] sm:$0xff]
  %v5431 = vld [vmem:[#allocation4 + $0x38] sm:$0xff]
  %v5432 = vld [vmem:[#allocation4 + $0x40] sm:$0xff]
  %v5433 = vld [vmem:[#allocation4 + $0x48] sm:$0xff]
  %v5434 = vld [vmem:[#allocation4 + $0x50] sm:$0xff]
  %v5435 = vld [vmem:[#allocation4 + $0x58] sm:$0xff]
  %v5436 = vld [vmem:[%s0 + $0x140] sm:$0xff]
  %v5437 = vld [vmem:[%s0 + $0x148] sm:$0xff]
  %v5438 = vld [vmem:[%s0 + $0x150] sm:$0xff]
  %v5439 = vld [vmem:[%s0 + $0x158] sm:$0xff]
  %v5440 = vld [vmem:[%s0 + $0x160] sm:$0xff]
  %v5441 = vld [vmem:[%s0 + $0x168] sm:$0xff]
  %v5442 = vld [vmem:[%s0 + $0x170] sm:$0xff]
  %v5443 = vld [vmem:[%s0 + $0x178] sm:$0xff]
  %5452 = vrot.lane.b32.xlu0 %v5436, 1
  %v5453 = vpop.permute.xlu0 %5452
  %5454 = vrot.lane.b32.xlu0 %v5437, 1
  %v5455 = vpop.permute.xlu0 %5454
  %5456 = vrot.lane.b32.xlu0 %v5438, 1
  %v5457 = vpop.permute.xlu0 %5456
  %5458 = vrot.lane.b32.xlu0 %v5439, 1
  %v5459 = vpop.permute.xlu0 %5458
  %5460 = vrot.lane.b32.xlu0 %v5440, 1
  %v5461 = vpop.permute.xlu0 %5460
  %5462 = vrot.lane.b32.xlu0 %v5441, 1
  %v5463 = vpop.permute.xlu0 %5462
  %5464 = vrot.lane.b32.xlu0 %v5442, 1
  %v5465 = vpop.permute.xlu0 %5464
  %5466 = vrot.lane.b32.xlu0 %v5443, 1
  %v5467 = vpop.permute.xlu0 %5466
  %v5468 = vsel %vm496, %v5453, %v5455
  %v5469 = vsel %vm496, %v5455, %v5457
  %v5470 = vsel %vm496, %v5457, %v5459
  %v5471 = vsel %vm496, %v5461, %v5463
  %v5472 = vsel %vm496, %v5463, %v5465
  %v5473 = vsel %vm496, %v5465, %v5467
  %v5484 = vmul.f32 %v5426, %v5453
  %v5485 = vmul.f32 %v5427, %v5468
  %v5486 = vmul.f32 %v5428, %v5469
  %v5487 = vmul.f32 %v5429, %v5470
  %v5488 = vmul.f32 %v5430, %v5459
  %v5489 = vmul.f32 %v5431, %v5461
  %v5490 = vmul.f32 %v5432, %v5471
  %v5491 = vmul.f32 %v5433, %v5472
  %v5492 = vmul.f32 %v5434, %v5473
  %v5493 = vmul.f32 %v5435, %v5467
  %5504 = vrot.lane.b32.xlu0 %v5484, 127
  %v5505 = vpop.permute.xlu0 %5504
  %5506 = vrot.lane.b32.xlu0 %v5485, 127
  %v5507 = vpop.permute.xlu0 %5506
  %5508 = vrot.lane.b32.xlu0 %v5486, 127
  %v5509 = vpop.permute.xlu0 %5508
  %5510 = vrot.lane.b32.xlu0 %v5487, 127
  %v5511 = vpop.permute.xlu0 %5510
  %5512 = vrot.lane.b32.xlu0 %v5488, 127
  %v5513 = vpop.permute.xlu0 %5512
  %5514 = vrot.lane.b32.xlu0 %v5489, 127
  %v5515 = vpop.permute.xlu0 %5514
  %5516 = vrot.lane.b32.xlu0 %v5490, 127
  %v5517 = vpop.permute.xlu0 %5516
  %5518 = vrot.lane.b32.xlu0 %v5491, 127
  %v5519 = vpop.permute.xlu0 %5518
  %5520 = vrot.lane.b32.xlu0 %v5492, 127
  %v5521 = vpop.permute.xlu0 %5520
  %5522 = vrot.lane.b32.xlu0 %v5493, 127
  %v5523 = vpop.permute.xlu0 %5522
  %v5524 = vsel %vm467, %v5505, %v5507
  %v5525 = vsel %vm467, %v5507, %v5509
  %v5526 = vsel %vm467, %v5509, %v5511
  %v5527 = vsel %vm467, %v5511, %v5513
  %v5528 = vsel %vm467, %v5515, %v5517
  %v5529 = vsel %vm467, %v5517, %v5519
  %v5530 = vsel %vm467, %v5519, %v5521
  %v5531 = vsel %vm467, %v5521, %v5523
  %5540 = vst [vmem:[#allocation5 + $0x140] sm:$0xff] %v5524
  %5541 = vst [vmem:[#allocation5 + $0x148] sm:$0xff] %v5525
  %5542 = vst [vmem:[#allocation5 + $0x150] sm:$0xff] %v5526
  %5543 = vst [vmem:[#allocation5 + $0x158] sm:$0xff] %v5527
  %5544 = vst [vmem:[#allocation5 + $0x160] sm:$0xff] %v5528
  %5545 = vst [vmem:[#allocation5 + $0x168] sm:$0xff] %v5529
  %5546 = vst [vmem:[#allocation5 + $0x170] sm:$0xff] %v5530
  %5547 = vst [vmem:[#allocation5 + $0x178] sm:$0xff] %v5531
  %v5548 = vld [vmem:[#allocation4 + $0x8] sm:$0xff]
  %v5549 = vld [vmem:[#allocation4 + $0x10] sm:$0xff]
  %v5550 = vld [vmem:[#allocation4 + $0x18] sm:$0xff]
  %v5551 = vld [vmem:[#allocation4 + $0x20] sm:$0xff]
  %v5552 = vld [vmem:[#allocation4 + $0x28] sm:$0xff]
  %v5553 = vld [vmem:[#allocation4 + $0x38] sm:$0xff]
  %v5554 = vld [vmem:[#allocation4 + $0x40] sm:$0xff]
  %v5555 = vld [vmem:[#allocation4 + $0x48] sm:$0xff]
  %v5556 = vld [vmem:[#allocation4 + $0x50] sm:$0xff]
  %v5557 = vld [vmem:[#allocation4 + $0x58] sm:$0xff]
  %v5558 = vld [vmem:[%s0 + $0x180] sm:$0xff]
  %v5559 = vld [vmem:[%s0 + $0x188] sm:$0xff]
  %v5560 = vld [vmem:[%s0 + $0x190] sm:$0xff]
  %v5561 = vld [vmem:[%s0 + $0x198] sm:$0xff]
  %v5562 = vld [vmem:[%s0 + $0x1a0] sm:$0xff]
  %v5563 = vld [vmem:[%s0 + $0x1a8] sm:$0xff]
  %v5564 = vld [vmem:[%s0 + $0x1b0] sm:$0xff]
  %v5565 = vld [vmem:[%s0 + $0x1b8] sm:$0xff]
  %5574 = vrot.lane.b32.xlu0 %v5558, 15
  %v5575 = vpop.permute.xlu0 %5574
  %5576 = vrot.lane.b32.xlu0 %v5559, 15
  %v5577 = vpop.permute.xlu0 %5576
  %5578 = vrot.lane.b32.xlu0 %v5560, 15
  %v5579 = vpop.permute.xlu0 %5578
  %5580 = vrot.lane.b32.xlu0 %v5561, 15
  %v5581 = vpop.permute.xlu0 %5580
  %5582 = vrot.lane.b32.xlu0 %v5562, 15
  %v5583 = vpop.permute.xlu0 %5582
  %5584 = vrot.lane.b32.xlu0 %v5563, 15
  %v5585 = vpop.permute.xlu0 %5584
  %5586 = vrot.lane.b32.xlu0 %v5564, 15
  %v5587 = vpop.permute.xlu0 %5586
  %5588 = vrot.lane.b32.xlu0 %v5565, 15
  %v5589 = vpop.permute.xlu0 %5588
  %v5590 = vsel %vm433, %v5575, %v5577
  %v5591 = vsel %vm433, %v5577, %v5579
  %v5592 = vsel %vm433, %v5579, %v5581
  %v5593 = vsel %vm433, %v5583, %v5585
  %v5594 = vsel %vm433, %v5585, %v5587
  %v5595 = vsel %vm433, %v5587, %v5589
  %v5606 = vmul.f32 %v5548, %v5575
  %v5607 = vmul.f32 %v5549, %v5590
  %v5608 = vmul.f32 %v5550, %v5591
  %v5609 = vmul.f32 %v5551, %v5592
  %v5610 = vmul.f32 %v5552, %v5581
  %v5611 = vmul.f32 %v5553, %v5583
  %v5612 = vmul.f32 %v5554, %v5593
  %v5613 = vmul.f32 %v5555, %v5594
  %v5614 = vmul.f32 %v5556, %v5595
  %v5615 = vmul.f32 %v5557, %v5589
  %5626 = vrot.lane.b32.xlu0 %v5606, 113
  %v5627 = vpop.permute.xlu0 %5626
  %5628 = vrot.lane.b32.xlu0 %v5607, 113
  %v5629 = vpop.permute.xlu0 %5628
  %5630 = vrot.lane.b32.xlu0 %v5608, 113
  %v5631 = vpop.permute.xlu0 %5630
  %5632 = vrot.lane.b32.xlu0 %v5609, 113
  %v5633 = vpop.permute.xlu0 %5632
  %5634 = vrot.lane.b32.xlu0 %v5610, 113
  %v5635 = vpop.permute.xlu0 %5634
  %5636 = vrot.lane.b32.xlu0 %v5611, 113
  %v5637 = vpop.permute.xlu0 %5636
  %5638 = vrot.lane.b32.xlu0 %v5612, 113
  %v5639 = vpop.permute.xlu0 %5638
  %5640 = vrot.lane.b32.xlu0 %v5613, 113
  %v5641 = vpop.permute.xlu0 %5640
  %5642 = vrot.lane.b32.xlu0 %v5614, 113
  %v5643 = vpop.permute.xlu0 %5642
  %5644 = vrot.lane.b32.xlu0 %v5615, 113
  %v5645 = vpop.permute.xlu0 %5644
  %v5646 = vsel %vm404, %v5627, %v5629
  %v5647 = vsel %vm404, %v5629, %v5631
  %v5648 = vsel %vm404, %v5631, %v5633
  %v5649 = vsel %vm404, %v5633, %v5635
  %v5650 = vsel %vm404, %v5637, %v5639
  %v5651 = vsel %vm404, %v5639, %v5641
  %v5652 = vsel %vm404, %v5641, %v5643
  %v5653 = vsel %vm404, %v5643, %v5645
  %5662 = vst [vmem:[#allocation5 + $0x180] sm:$0xff] %v5646
  %5663 = vst [vmem:[#allocation5 + $0x188] sm:$0xff] %v5647
  %5664 = vst [vmem:[#allocation5 + $0x190] sm:$0xff] %v5648
  %5665 = vst [vmem:[#allocation5 + $0x198] sm:$0xff] %v5649
  %5666 = vst [vmem:[#allocation5 + $0x1a0] sm:$0xff] %v5650
  %5667 = vst [vmem:[#allocation5 + $0x1a8] sm:$0xff] %v5651
  %5668 = vst [vmem:[#allocation5 + $0x1b0] sm:$0xff] %v5652
  %5669 = vst [vmem:[#allocation5 + $0x1b8] sm:$0xff] %v5653
  %v5670 = vld [vmem:[#allocation4 + $0x8] sm:$0xff]
  %v5671 = vld [vmem:[#allocation4 + $0x10] sm:$0xff]
  %v5672 = vld [vmem:[#allocation4 + $0x18] sm:$0xff]
  %v5673 = vld [vmem:[#allocation4 + $0x20] sm:$0xff]
  %v5674 = vld [vmem:[#allocation4 + $0x28] sm:$0xff]
  %v5675 = vld [vmem:[#allocation4 + $0x38] sm:$0xff]
  %v5676 = vld [vmem:[#allocation4 + $0x40] sm:$0xff]
  %v5677 = vld [vmem:[#allocation4 + $0x48] sm:$0xff]
  %v5678 = vld [vmem:[#allocation4 + $0x50] sm:$0xff]
  %v5679 = vld [vmem:[#allocation4 + $0x58] sm:$0xff]
  %v5680 = vld [vmem:[%s0 + $0x1c0] sm:$0xff]
  %v5681 = vld [vmem:[%s0 + $0x1c8] sm:$0xff]
  %v5682 = vld [vmem:[%s0 + $0x1d0] sm:$0xff]
  %v5683 = vld [vmem:[%s0 + $0x1d8] sm:$0xff]
  %v5684 = vld [vmem:[%s0 + $0x1e0] sm:$0xff]
  %v5685 = vld [vmem:[%s0 + $0x1e8] sm:$0xff]
  %v5686 = vld [vmem:[%s0 + $0x1f0] sm:$0xff]
  %v5687 = vld [vmem:[%s0 + $0x1f8] sm:$0xff]
  %5696 = vrot.lane.b32.xlu0 %v5680, 16
  %v5697 = vpop.permute.xlu0 %5696
  %5698 = vrot.lane.b32.xlu0 %v5681, 16
  %v5699 = vpop.permute.xlu0 %5698
  %5700 = vrot.lane.b32.xlu0 %v5682, 16
  %v5701 = vpop.permute.xlu0 %5700
  %5702 = vrot.lane.b32.xlu0 %v5683, 16
  %v5703 = vpop.permute.xlu0 %5702
  %5704 = vrot.lane.b32.xlu0 %v5684, 16
  %v5705 = vpop.permute.xlu0 %5704
  %5706 = vrot.lane.b32.xlu0 %v5685, 16
  %v5707 = vpop.permute.xlu0 %5706
  %5708 = vrot.lane.b32.xlu0 %v5686, 16
  %v5709 = vpop.permute.xlu0 %5708
  %5710 = vrot.lane.b32.xlu0 %v5687, 16
  %v5711 = vpop.permute.xlu0 %5710
  %v5712 = vsel %vm370, %v5697, %v5699
  %v5713 = vsel %vm370, %v5699, %v5701
  %v5714 = vsel %vm370, %v5701, %v5703
  %v5715 = vsel %vm370, %v5705, %v5707
  %v5716 = vsel %vm370, %v5707, %v5709
  %v5717 = vsel %vm370, %v5709, %v5711
  %v5728 = vmul.f32 %v5670, %v5697
  %v5729 = vmul.f32 %v5671, %v5712
  %v5730 = vmul.f32 %v5672, %v5713
  %v5731 = vmul.f32 %v5673, %v5714
  %v5732 = vmul.f32 %v5674, %v5703
  %v5733 = vmul.f32 %v5675, %v5705
  %v5734 = vmul.f32 %v5676, %v5715
  %v5735 = vmul.f32 %v5677, %v5716
  %v5736 = vmul.f32 %v5678, %v5717
  %v5737 = vmul.f32 %v5679, %v5711
  %5748 = vrot.lane.b32.xlu0 %v5728, 112
  %v5749 = vpop.permute.xlu0 %5748
  %5750 = vrot.lane.b32.xlu0 %v5729, 112
  %v5751 = vpop.permute.xlu0 %5750
  %5752 = vrot.lane.b32.xlu0 %v5730, 112
  %v5753 = vpop.permute.xlu0 %5752
  %5754 = vrot.lane.b32.xlu0 %v5731, 112
  %v5755 = vpop.permute.xlu0 %5754
  %5756 = vrot.lane.b32.xlu0 %v5732, 112
  %v5757 = vpop.permute.xlu0 %5756
  %5758 = vrot.lane.b32.xlu0 %v5733, 112
  %v5759 = vpop.permute.xlu0 %5758
  %5760 = vrot.lane.b32.xlu0 %v5734, 112
  %v5761 = vpop.permute.xlu0 %5760
  %5762 = vrot.lane.b32.xlu0 %v5735, 112
  %v5763 = vpop.permute.xlu0 %5762
  %5764 = vrot.lane.b32.xlu0 %v5736, 112
  %v5765 = vpop.permute.xlu0 %5764
  %5766 = vrot.lane.b32.xlu0 %v5737, 112
  %v5767 = vpop.permute.xlu0 %5766
  %v5768 = vsel %vm341, %v5749, %v5751
  %v5769 = vsel %vm341, %v5751, %v5753
  %v5770 = vsel %vm341, %v5753, %v5755
  %v5771 = vsel %vm341, %v5755, %v5757
  %v5772 = vsel %vm341, %v5759, %v5761
  %v5773 = vsel %vm341, %v5761, %v5763
  %v5774 = vsel %vm341, %v5763, %v5765
  %v5775 = vsel %vm341, %v5765, %v5767
  %5784 = vst [vmem:[#allocation5 + $0x1c0] sm:$0xff] %v5768
  %5785 = vst [vmem:[#allocation5 + $0x1c8] sm:$0xff] %v5769
  %5786 = vst [vmem:[#allocation5 + $0x1d0] sm:$0xff] %v5770
  %5787 = vst [vmem:[#allocation5 + $0x1d8] sm:$0xff] %v5771
  %5788 = vst [vmem:[#allocation5 + $0x1e0] sm:$0xff] %v5772
  %5789 = vst [vmem:[#allocation5 + $0x1e8] sm:$0xff] %v5773
  %5790 = vst [vmem:[#allocation5 + $0x1f0] sm:$0xff] %v5774
  %5791 = vst [vmem:[#allocation5 + $0x1f8] sm:$0xff] %v5775
  %v5792 = vld [vmem:[#allocation4 + $0x8] sm:$0xff]
  %v5793 = vld [vmem:[#allocation4 + $0x10] sm:$0xff]
  %v5794 = vld [vmem:[#allocation4 + $0x18] sm:$0xff]
  %v5795 = vld [vmem:[#allocation4 + $0x20] sm:$0xff]
  %v5796 = vld [vmem:[#allocation4 + $0x28] sm:$0xff]
  %v5797 = vld [vmem:[#allocation4 + $0x38] sm:$0xff]
  %v5798 = vld [vmem:[#allocation4 + $0x40] sm:$0xff]
  %v5799 = vld [vmem:[#allocation4 + $0x48] sm:$0xff]
  %v5800 = vld [vmem:[#allocation4 + $0x50] sm:$0xff]
  %v5801 = vld [vmem:[#allocation4 + $0x58] sm:$0xff]
  %v5802 = vld [vmem:[%s0 + $0x200] sm:$0xff]
  %v5803 = vld [vmem:[%s0 + $0x208] sm:$0xff]
  %v5804 = vld [vmem:[%s0 + $0x210] sm:$0xff]
  %v5805 = vld [vmem:[%s0 + $0x218] sm:$0xff]
  %v5806 = vld [vmem:[%s0 + $0x220] sm:$0xff]
  %v5807 = vld [vmem:[%s0 + $0x228] sm:$0xff]
  %v5808 = vld [vmem:[%s0 + $0x230] sm:$0xff]
  %v5809 = vld [vmem:[%s0 + $0x238] sm:$0xff]
  %5818 = vrot.lane.b32.xlu0 %v5802, 17
  %v5819 = vpop.permute.xlu0 %5818
  %5820 = vrot.lane.b32.xlu0 %v5803, 17
  %v5821 = vpop.permute.xlu0 %5820
  %5822 = vrot.lane.b32.xlu0 %v5804, 17
  %v5823 = vpop.permute.xlu0 %5822
  %5824 = vrot.lane.b32.xlu0 %v5805, 17
  %v5825 = vpop.permute.xlu0 %5824
  %5826 = vrot.lane.b32.xlu0 %v5806, 17
  %v5827 = vpop.permute.xlu0 %5826
  %5828 = vrot.lane.b32.xlu0 %v5807, 17
  %v5829 = vpop.permute.xlu0 %5828
  %5830 = vrot.lane.b32.xlu0 %v5808, 17
  %v5831 = vpop.permute.xlu0 %5830
  %5832 = vrot.lane.b32.xlu0 %v5809, 17
  %v5833 = vpop.permute.xlu0 %5832
  %v5834 = vsel %vm307, %v5819, %v5821
  %v5835 = vsel %vm307, %v5821, %v5823
  %v5836 = vsel %vm307, %v5823, %v5825
  %v5837 = vsel %vm307, %v5827, %v5829
  %v5838 = vsel %vm307, %v5829, %v5831
  %v5839 = vsel %vm307, %v5831, %v5833
  %v5850 = vmul.f32 %v5792, %v5819
  %v5851 = vmul.f32 %v5793, %v5834
  %v5852 = vmul.f32 %v5794, %v5835
  %v5853 = vmul.f32 %v5795, %v5836
  %v5854 = vmul.f32 %v5796, %v5825
  %v5855 = vmul.f32 %v5797, %v5827
  %v5856 = vmul.f32 %v5798, %v5837
  %v5857 = vmul.f32 %v5799, %v5838
  %v5858 = vmul.f32 %v5800, %v5839
  %v5859 = vmul.f32 %v5801, %v5833
  %5870 = vrot.lane.b32.xlu0 %v5850, 111
  %v5871 = vpop.permute.xlu0 %5870
  %5872 = vrot.lane.b32.xlu0 %v5851, 111
  %v5873 = vpop.permute.xlu0 %5872
  %5874 = vrot.lane.b32.xlu0 %v5852, 111
  %v5875 = vpop.permute.xlu0 %5874
  %5876 = vrot.lane.b32.xlu0 %v5853, 111
  %v5877 = vpop.permute.xlu0 %5876
  %5878 = vrot.lane.b32.xlu0 %v5854, 111
  %v5879 = vpop.permute.xlu0 %5878
  %5880 = vrot.lane.b32.xlu0 %v5855, 111
  %v5881 = vpop.permute.xlu0 %5880
  %5882 = vrot.lane.b32.xlu0 %v5856, 111
  %v5883 = vpop.permute.xlu0 %5882
  %5884 = vrot.lane.b32.xlu0 %v5857, 111
  %v5885 = vpop.permute.xlu0 %5884
  %5886 = vrot.lane.b32.xlu0 %v5858, 111
  %v5887 = vpop.permute.xlu0 %5886
  %5888 = vrot.lane.b32.xlu0 %v5859, 111
  %v5889 = vpop.permute.xlu0 %5888
  %v5890 = vsel %vm278, %v5871, %v5873
  %v5891 = vsel %vm278, %v5873, %v5875
  %v5892 = vsel %vm278, %v5875, %v5877
  %v5893 = vsel %vm278, %v5877, %v5879
  %v5894 = vsel %vm278, %v5881, %v5883
  %v5895 = vsel %vm278, %v5883, %v5885
  %v5896 = vsel %vm278, %v5885, %v5887
  %v5897 = vsel %vm278, %v5887, %v5889
  %5906 = vst [vmem:[#allocation5 + $0x200] sm:$0xff] %v5890
  %5907 = vst [vmem:[#allocation5 + $0x208] sm:$0xff] %v5891
  %5908 = vst [vmem:[#allocation5 + $0x210] sm:$0xff] %v5892
  %5909 = vst [vmem:[#allocation5 + $0x218] sm:$0xff] %v5893
  %5910 = vst [vmem:[#allocation5 + $0x220] sm:$0xff] %v5894
  %5911 = vst [vmem:[#allocation5 + $0x228] sm:$0xff] %v5895
  %5912 = vst [vmem:[#allocation5 + $0x230] sm:$0xff] %v5896
  %5913 = vst [vmem:[#allocation5 + $0x238] sm:$0xff] %v5897
  %v5914 = vld [vmem:[#allocation5] sm:$0xff]
  %v5915 = vld [vmem:[#allocation5 + $0x8] sm:$0xff]
  %v5916 = vld [vmem:[#allocation5 + $0x10] sm:$0xff]
  %v5917 = vld [vmem:[#allocation5 + $0x18] sm:$0xff]
  %v5918 = vld [vmem:[#allocation5 + $0x20] sm:$0xff]
  %v5919 = vld [vmem:[#allocation5 + $0x28] sm:$0xff]
  %v5920 = vld [vmem:[#allocation5 + $0x30] sm:$0xff]
  %v5921 = vld [vmem:[#allocation5 + $0x38] sm:$0xff]
  %v5922 = vld [vmem:[#allocation5 + $0x40] sm:$0xff]
  %v5923 = vld [vmem:[#allocation5 + $0x48] sm:$0xff]
  %v5924 = vld [vmem:[#allocation5 + $0x50] sm:$0xff]
  %v5925 = vld [vmem:[#allocation5 + $0x58] sm:$0xff]
  %v5926 = vld [vmem:[#allocation5 + $0x60] sm:$0xff]
  %v5927 = vld [vmem:[#allocation5 + $0x68] sm:$0xff]
  %v5928 = vld [vmem:[#allocation5 + $0x70] sm:$0xff]
  %v5929 = vld [vmem:[#allocation5 + $0x78] sm:$0xff]
  %v5930 = vld [vmem:[#allocation5 + $0x80] sm:$0xff]
  %v5931 = vld [vmem:[#allocation5 + $0x88] sm:$0xff]
  %v5932 = vld [vmem:[#allocation5 + $0x90] sm:$0xff]
  %v5933 = vld [vmem:[#allocation5 + $0x98] sm:$0xff]
  %v5934 = vld [vmem:[#allocation5 + $0xa0] sm:$0xff]
  %v5935 = vld [vmem:[#allocation5 + $0xa8] sm:$0xff]
  %v5936 = vld [vmem:[#allocation5 + $0xb0] sm:$0xff]
  %v5937 = vld [vmem:[#allocation5 + $0xb8] sm:$0xff]
  %v5938 = vld [vmem:[#allocation5 + $0xc0] sm:$0xff]
  %v5939 = vld [vmem:[#allocation5 + $0xc8] sm:$0xff]
  %v5940 = vld [vmem:[#allocation5 + $0xd0] sm:$0xff]
  %v5941 = vld [vmem:[#allocation5 + $0xd8] sm:$0xff]
  %v5942 = vld [vmem:[#allocation5 + $0xe0] sm:$0xff]
  %v5943 = vld [vmem:[#allocation5 + $0xe8] sm:$0xff]
  %v5944 = vld [vmem:[#allocation5 + $0xf0] sm:$0xff]
  %v5945 = vld [vmem:[#allocation5 + $0xf8] sm:$0xff]
  %v5946 = vld [vmem:[#allocation5 + $0x100] sm:$0xff]
  %v5947 = vld [vmem:[#allocation5 + $0x108] sm:$0xff]
  %v5948 = vld [vmem:[#allocation5 + $0x110] sm:$0xff]
  %v5949 = vld [vmem:[#allocation5 + $0x118] sm:$0xff]
  %v5950 = vld [vmem:[#allocation5 + $0x120] sm:$0xff]
  %v5951 = vld [vmem:[#allocation5 + $0x128] sm:$0xff]
  %v5952 = vld [vmem:[#allocation5 + $0x130] sm:$0xff]
  %v5953 = vld [vmem:[#allocation5 + $0x138] sm:$0xff]
  %v5954 = vld [vmem:[#allocation5 + $0x140] sm:$0xff]
  %v5955 = vld [vmem:[#allocation5 + $0x148] sm:$0xff]
  %v5956 = vld [vmem:[#allocation5 + $0x150] sm:$0xff]
  %v5957 = vld [vmem:[#allocation5 + $0x158] sm:$0xff]
  %v5958 = vld [vmem:[#allocation5 + $0x160] sm:$0xff]
  %v5959 = vld [vmem:[#allocation5 + $0x168] sm:$0xff]
  %v5960 = vld [vmem:[#allocation5 + $0x170] sm:$0xff]
  %v5961 = vld [vmem:[#allocation5 + $0x178] sm:$0xff]
  %v5962 = vld [vmem:[#allocation5 + $0x180] sm:$0xff]
  %v5963 = vld [vmem:[#allocation5 + $0x188] sm:$0xff]
  %v5964 = vld [vmem:[#allocation5 + $0x190] sm:$0xff]
  %v5965 = vld [vmem:[#allocation5 + $0x198] sm:$0xff]
  %v5966 = vld [vmem:[#allocation5 + $0x1a0] sm:$0xff]
  %v5967 = vld [vmem:[#allocation5 + $0x1a8] sm:$0xff]
  %v5968 = vld [vmem:[#allocation5 + $0x1b0] sm:$0xff]
  %v5969 = vld [vmem:[#allocation5 + $0x1b8] sm:$0xff]
  %v5970 = vld [vmem:[#allocation5 + $0x1c0] sm:$0xff]
  %v5971 = vld [vmem:[#allocation5 + $0x1c8] sm:$0xff]
  %v5972 = vld [vmem:[#allocation5 + $0x1d0] sm:$0xff]
  %v5973 = vld [vmem:[#allocation5 + $0x1d8] sm:$0xff]
  %v5974 = vld [vmem:[#allocation5 + $0x1e0] sm:$0xff]
  %v5975 = vld [vmem:[#allocation5 + $0x1e8] sm:$0xff]
  %v5976 = vld [vmem:[#allocation5 + $0x1f0] sm:$0xff]
  %v5977 = vld [vmem:[#allocation5 + $0x1f8] sm:$0xff]
  %v5978 = vld [vmem:[#allocation5 + $0x200] sm:$0xff]
  %v5979 = vld [vmem:[#allocation5 + $0x208] sm:$0xff]
  %v5980 = vld [vmem:[#allocation5 + $0x210] sm:$0xff]
  %v5981 = vld [vmem:[#allocation5 + $0x218] sm:$0xff]
  %v5982 = vld [vmem:[#allocation5 + $0x220] sm:$0xff]
  %v5983 = vld [vmem:[#allocation5 + $0x228] sm:$0xff]
  %v5984 = vld [vmem:[#allocation5 + $0x230] sm:$0xff]
  %v5985 = vld [vmem:[#allocation5 + $0x238] sm:$0xff]
  %5987 = vset.pattern.permute.xlu0 0
  %5988 = vperm.xlu0 %5987, %v4896
  %v5989 = vpop.permute.xlu0 %5988
  %5992 = vset.pattern.permute.xlu0 0
  %5993 = vperm.xlu0 %5992, %v4897
  %v5994 = vpop.permute.xlu0 %5993
  %v5997 = vsel %vm370, %v4892, 0
  %v6000 = vsel %vm370, %v4894, 0
  %6002 = vmatprep.subr.mxu0 %v5915
  %6003 = vmatpush1.msra.mxu0 %v5914
  %6004 = vmatprep.subr.mxu0 %v5919
  %6005 = vmatpush1.msra.mxu0 %v5918
  %6006 = vmatprep.subr.mxu0 %v5923
  %6007 = vmatpush1.msra.mxu0 %v5922
  %6008 = vmatprep.subr.mxu0 %v5927
  %6009 = vmatpush1.msra.mxu0 %v5926
  %6010 = vmatprep.subr.mxu0 %v5931
  %6011 = vmatpush1.msra.mxu0 %v5930
  %6012 = vmatprep.subr.mxu0 %v5935
  %6013 = vmatpush1.msra.mxu0 %v5934
  %6014 = vmatprep.subr.mxu0 %v5939
  %6015 = vmatpush1.msra.mxu0 %v5938
  %6016 = vmatprep.subr.mxu0 %v5943
  %6017 = vmatpush1.msra.mxu0 %v5942
  %6018 = vmatprep.subr.mxu0 %v5947
  %6019 = vmatpush1.msra.mxu0 %v5946
  %6020 = vmatprep.subr.mxu0 %v5951
  %6021 = vmatpush1.msra.mxu0 %v5950
  %6022 = vmatprep.subr.mxu0 %v5955
  %6023 = vmatpush1.msra.mxu0 %v5954
  %6024 = vmatprep.subr.mxu0 %v5959
  %6025 = vmatpush1.msra.mxu0 %v5958
  %6026 = vmatprep.subr.mxu0 %v5963
  %6027 = vmatpush1.msra.mxu0 %v5962
  %6028 = vmatprep.subr.mxu0 %v5967
  %6029 = vmatpush1.msra.mxu0 %v5966
  %6030 = vmatprep.subr.mxu0 %v5971
  %6031 = vmatpush1.msra.mxu0 %v5970
  %6032 = vmatprep.subr.mxu0 %v5975
  %6033 = vmatpush1.msra.mxu0 %v5974
  %6034 = vmatprep.subr.mxu0 %v5979
  %6035 = vmatpush1.msra.mxu0 %v5978
  %6036 = vmatprep.subr.mxu0 %v5983
  %6037 = vmatpush1.msra.mxu0 %v5982
  %6038 = vmatprep.subr.mxu0 0.0
  %6039 = vmatpush1.msra.mxu0 0.0
  %6040 = vmatprep.subr.mxu0 0.0
  %6041 = vmatpush1.msra.mxu0 0.0
  %6042 = vmatprep.subr.mxu0 0.0
  %6043 = vmatpush1.msra.mxu0 0.0
  %6044 = vmatprep.subr.mxu0 0.0
  %6045 = vmatpush1.msra.mxu0 0.0
  %6046 = vmatprep.subr.mxu0 0.0
  %6047 = vmatpush1.msra.mxu0 0.0
  %6048 = vmatprep.subr.mxu0 0.0
  %6049 = vmatpush1.msra.mxu0 0.0
  %6050 = vmatprep.subr.mxu0 0.0
  %6051 = vmatpush1.msra.mxu0 0.0
  %6052 = vmatprep.subr.mxu0 0.0
  %6053 = vmatpush1.msra.mxu0 0.0
  %6054 = vmatprep.subr.mxu0 0.0
  %6055 = vmatpush1.msra.mxu0 0.0
  %6056 = vmatprep.subr.mxu0 0.0
  %6057 = vmatpush1.msra.mxu0 0.0
  %6058 = vmatprep.subr.mxu0 0.0
  %6059 = vmatpush1.msra.mxu0 0.0
  %6060 = vmatprep.subr.mxu0 0.0
  %6061 = vmatpush1.msra.mxu0 0.0
  %6062 = vmatprep.subr.mxu0 0.0
  %6063 = vmatpush1.msra.mxu0 0.0
  %6064 = vmatprep.subr.mxu0 0.0
  %6065 = vmatpush1.msra.mxu0 0.0
  %6066 = vmatprep.mubr.f32.mxu0 %v5997
  %6067 = vmatmul.mubr.f32.gmra.mrb[0].mxu0 %v4891
  %v6068 = vpop.f32.mrb[0].mxu0
  %v6069 = vadd.f32 %v5989, %v6068
  %v6070 = vpop.f32.mrb[0].mxu0
  %v6071 = vadd.f32 %v5989, %v6070
  %6072 = vmatprep.mubr.f32.mxu0 %v6000
  %6073 = vmatmul.mubr.f32.gmra.mrb[0].mxu0 %v4893
  %v6074 = vpop.f32.mrb[0].mxu0
  %v6075 = vadd.f32 %v5994, %v6074
  %v6076 = vpop.f32.mrb[0].mxu0
  %v6077 = vadd.f32 %v5994, %v6076
  %6078 = vdwg.mxu0
  %6079 = vmatprep.subr.mxu0 %v5917
  %6080 = vmatpush1.msra.mxu0 %v5916
  %6081 = vmatprep.subr.mxu0 %v5921
  %6082 = vmatpush1.msra.mxu0 %v5920
  %6083 = vmatprep.subr.mxu0 %v5925
  %6084 = vmatpush1.msra.mxu0 %v5924
  %6085 = vmatprep.subr.mxu0 %v5929
  %6086 = vmatpush1.msra.mxu0 %v5928
  %6087 = vmatprep.subr.mxu0 %v5933
  %6088 = vmatpush1.msra.mxu0 %v5932
  %6089 = vmatprep.subr.mxu0 %v5937
  %6090 = vmatpush1.msra.mxu0 %v5936
  %6091 = vmatprep.subr.mxu0 %v5941
  %6092 = vmatpush1.msra.mxu0 %v5940
  %6093 = vmatprep.subr.mxu0 %v5945
  %6094 = vmatpush1.msra.mxu0 %v5944
  %6095 = vmatprep.subr.mxu0 %v5949
  %6096 = vmatpush1.msra.mxu0 %v5948
  %6097 = vmatprep.subr.mxu0 %v5953
  %6098 = vmatpush1.msra.mxu0 %v5952
  %6099 = vmatprep.subr.mxu0 %v5957
  %6100 = vmatpush1.msra.mxu0 %v5956
  %6101 = vmatprep.subr.mxu0 %v5961
  %6102 = vmatpush1.msra.mxu0 %v5960
  %6103 = vmatprep.subr.mxu0 %v5965
  %6104 = vmatpush1.msra.mxu0 %v5964
  %6105 = vmatprep.subr.mxu0 %v5969
  %6106 = vmatpush1.msra.mxu0 %v5968
  %6107 = vmatprep.subr.mxu0 %v5973
  %6108 = vmatpush1.msra.mxu0 %v5972
  %6109 = vmatprep.subr.mxu0 %v5977
  %6110 = vmatpush1.msra.mxu0 %v5976
  %6111 = vmatprep.subr.mxu0 %v5981
  %6112 = vmatpush1.msra.mxu0 %v5980
  %6113 = vmatprep.subr.mxu0 %v5985
  %6114 = vmatpush1.msra.mxu0 %v5984
  %6115 = vmatprep.subr.mxu0 0.0
  %6116 = vmatpush1.msra.mxu0 0.0
  %6117 = vmatprep.subr.mxu0 0.0
  %6118 = vmatpush1.msra.mxu0 0.0
  %6119 = vmatprep.subr.mxu0 0.0
  %6120 = vmatpush1.msra.mxu0 0.0
  %6121 = vmatprep.subr.mxu0 0.0
  %6122 = vmatpush1.msra.mxu0 0.0
  %6123 = vmatprep.subr.mxu0 0.0
  %6124 = vmatpush1.msra.mxu0 0.0
  %6125 = vmatprep.subr.mxu0 0.0
  %6126 = vmatpush1.msra.mxu0 0.0
  %6127 = vmatprep.subr.mxu0 0.0
  %6128 = vmatpush1.msra.mxu0 0.0
  %6129 = vmatprep.subr.mxu0 0.0
  %6130 = vmatpush1.msra.mxu0 0.0
  %6131 = vmatprep.subr.mxu0 0.0
  %6132 = vmatpush1.msra.mxu0 0.0
  %6133 = vmatprep.subr.mxu0 0.0
  %6134 = vmatpush1.msra.mxu0 0.0
  %6135 = vmatprep.subr.mxu0 0.0
  %6136 = vmatpush1.msra.mxu0 0.0
  %6137 = vmatprep.subr.mxu0 0.0
  %6138 = vmatpush1.msra.mxu0 0.0
  %6139 = vmatprep.subr.mxu0 0.0
  %6140 = vmatpush1.msra.mxu0 0.0
  %6141 = vmatprep.subr.mxu0 0.0
  %6142 = vmatpush1.msra.mxu0 0.0
  %6143 = vmatprep.mubr.f32.mxu0 %v5997
  %6144 = vmatmul.mubr.f32.gmra.mrb[0].mxu0 %v4891
  %v6145 = vpop.f32.mrb[0].mxu0
  %v6146 = vadd.f32 %v5989, %v6145
  %v6147 = vpop.f32.mrb[0].mxu0
  %v6148 = vadd.f32 %v5989, %v6147
  %6149 = vmatprep.mubr.f32.mxu0 %v6000
  %6150 = vmatmul.mubr.f32.gmra.mrb[0].mxu0 %v4893
  %v6151 = vpop.f32.mrb[0].mxu0
  %v6152 = vadd.f32 %v5994, %v6151
  %v6153 = vpop.f32.mrb[0].mxu0
  %v6154 = vadd.f32 %v5994, %v6153
  %6155 = vdwg.mxu0
  %v6156 = vmax.f32 %v6069, 0.0
  %v6157 = vmax.f32 %v6071, 0.0
  %v6158 = vmax.f32 %v6146, 0.0
  %v6159 = vmax.f32 %v6148, 0.0
  %v6160 = vmax.f32 %v6075, 0.0
  %v6161 = vmax.f32 %v6077, 0.0
  %v6162 = vmax.f32 %v6152, 0.0
  %v6163 = vmax.f32 %v6154, 0.0
  %s6164 = scalar_lea.vmem %s12, 16
  %v6165 = vld [vmem:[%s6164] sm:$0xff]
  %v6166 = vld [vmem:[%s6164 + $0x8] sm:$0xff]
  %s6167 = scalar_lea.vmem %s13, 16
  %v6168 = vld [vmem:[%s6167] sm:$0xff]
  %v6169 = vld [vmem:[%s6167 + $0x8] sm:$0xff]
  %v6170 = vadd.f32 %v6156, %v6157
  %v6171 = vadd.f32 %v6170, %v6158
  %v6172 = vadd.f32 %v6171, %v6159
  %6173 = vadd.xlane.f32.xlu0 %v6172
  %v6174 = vpop.xlane.xlu0 %6173
  %v6175 = vadd.f32 %v6160, %v6161
  %v6176 = vadd.f32 %v6175, %v6162
  %v6177 = vadd.f32 %v6176, %v6163
  %6178 = vadd.xlane.f32.xlu0 %v6177
  %v6179 = vpop.xlane.xlu0 %6178
  %v6180 = vmul.f32 %v6174, 0.001953125
  %v6181 = vmul.f32 %v6179, 0.001953125
  %v6182 = vmul.f32 %v6156, %v6156
  %v6183 = vmul.f32 %v6157, %v6157
  %v6184 = vmul.f32 %v6158, %v6158
  %v6185 = vmul.f32 %v6159, %v6159
  %v6186 = vmul.f32 %v6160, %v6160
  %v6187 = vmul.f32 %v6161, %v6161
  %v6188 = vmul.f32 %v6162, %v6162
  %v6189 = vmul.f32 %v6163, %v6163
  %v6190 = vadd.f32 %v6182, %v6183
  %v6191 = vadd.f32 %v6190, %v6184
  %v6192 = vadd.f32 %v6191, %v6185
  %6193 = vadd.xlane.f32.xlu0 %v6192
  %v6194 = vpop.xlane.xlu0 %6193
  %v6195 = vadd.f32 %v6186, %v6187
  %v6196 = vadd.f32 %v6195, %v6188
  %v6197 = vadd.f32 %v6196, %v6189
  %6198 = vadd.xlane.f32.xlu0 %v6197
  %v6199 = vpop.xlane.xlu0 %6198
  %v6200 = vmul.f32 %v6194, 0.001953125
  %v6201 = vmul.f32 %v6199, 0.001953125
  %v6202 = vmul.f32 %v6180, %v6180
  %v6203 = vmul.f32 %v6181, %v6181
  %v6204 = vsub.f32 %v6200, %v6202
  %v6205 = vsub.f32 %v6201, %v6203
  %v6206 = vadd.f32 %v6204, 1e-05
  %v6207 = vadd.f32 %v6205, 1e-05
  %v6208 = vrsqrt.pop %v6206
  %v6209 = vrsqrt.pop %v6207
  %v6210 = vmul.f32 %v6208, %v6165
  %v6211 = vmul.f32 %v6209, %v6166
  %6213 = vset.pattern.permute.xlu0 0
  %6214 = vperm.xlu0 %6213, %v6210
  %v6215 = vpop.permute.xlu0 %6214
  %6218 = vset.pattern.permute.xlu0 0
  %6219 = vperm.xlu0 %6218, %v6211
  %v6220 = vpop.permute.xlu0 %6219
  %v6222 = vmul.f32 %v6156, %v6215
  %v6223 = vmul.f32 %v6157, %v6215
  %v6224 = vmul.f32 %v6158, %v6215
  %v6225 = vmul.f32 %v6159, %v6215
  %v6226 = vmul.f32 %v6160, %v6220
  %v6227 = vmul.f32 %v6161, %v6220
  %v6228 = vmul.f32 %v6162, %v6220
  %v6229 = vmul.f32 %v6163, %v6220
  %v6230 = vmul.f32 %v6180, %v6210
  %v6231 = vmul.f32 %v6181, %v6211
  %v6232 = vsub.f32 %v6168, %v6230
  %v6233 = vsub.f32 %v6169, %v6231
  %6235 = vset.pattern.permute.xlu0 0
  %6236 = vperm.xlu0 %6235, %v6232
  %v6237 = vpop.permute.xlu0 %6236
  %6240 = vset.pattern.permute.xlu0 0
  %6241 = vperm.xlu0 %6240, %v6233
  %v6242 = vpop.permute.xlu0 %6241
  %v6244 = vadd.f32 %v6222, %v6237
  %v6245 = vadd.f32 %v6223, %v6237
  %v6246 = vadd.f32 %v6224, %v6237
  %v6247 = vadd.f32 %v6225, %v6237
  %v6248 = vadd.f32 %v6226, %v6242
  %v6249 = vadd.f32 %v6227, %v6242
  %v6250 = vadd.f32 %v6228, %v6242
  %v6251 = vadd.f32 %v6229, %v6242
  %v6252 = vld [vmem:[%s14] sm:$0xff]
  %v6253 = vld [vmem:[%s14 + $0x8] sm:$0xff]
  %v6254 = vld [vmem:[%s15] sm:$0xff]
  %6255 = vst [vmem:[#allocation2 + $0x8] sm:$0xff] %v4882
  %6256 = vst [vmem:[#allocation2 + $0x10] sm:$0xff] %v4883
  %6257 = vst [vmem:[#allocation2 + $0x18] sm:$0xff] %v4884
  %6258 = vst [vmem:[#allocation2 + $0x20] sm:$0xff] %v4885
  %6259 = vst [vmem:[#allocation2 + $0x38] sm:$0xff] %v4886
  %6260 = vst [vmem:[#allocation2 + $0x40] sm:$0xff] %v4887
  %6261 = vst [vmem:[#allocation2 + $0x48] sm:$0xff] %v4888
  %6262 = vst [vmem:[#allocation2 + $0x50] sm:$0xff] %v4889
  %v6263 = vld [vmem:[#allocation2] sm:$0xff]
  %v6264 = vld [vmem:[#allocation2 + $0x8] sm:$0xff]
  %v6265 = vld [vmem:[#allocation2 + $0x10] sm:$0xff]
  %v6266 = vld [vmem:[#allocation2 + $0x18] sm:$0xff]
  %v6267 = vld [vmem:[#allocation2 + $0x20] sm:$0xff]
  %v6268 = vld [vmem:[#allocation2 + $0x30] sm:$0xff]
  %v6269 = vld [vmem:[#allocation2 + $0x38] sm:$0xff]
  %v6270 = vld [vmem:[#allocation2 + $0x40] sm:$0xff]
  %v6271 = vld [vmem:[#allocation2 + $0x48] sm:$0xff]
  %v6272 = vld [vmem:[#allocation2 + $0x50] sm:$0xff]
  %v6273 = vld [vmem:[%s0] sm:$0xff]
  %v6274 = vld [vmem:[%s0 + $0x8] sm:$0xff]
  %v6275 = vld [vmem:[%s0 + $0x10] sm:$0xff]
  %v6276 = vld [vmem:[%s0 + $0x18] sm:$0xff]
  %v6277 = vld [vmem:[%s0 + $0x20] sm:$0xff]
  %v6278 = vld [vmem:[%s0 + $0x28] sm:$0xff]
  %v6279 = vld [vmem:[%s0 + $0x30] sm:$0xff]
  %v6280 = vld [vmem:[%s0 + $0x38] sm:$0xff]
  %6289 = vrot.lane.b32.xlu0 %v6273, 111
  %v6290 = vpop.permute.xlu0 %6289
  %6291 = vrot.lane.b32.xlu0 %v6274, 111
  %v6292 = vpop.permute.xlu0 %6291
  %6293 = vrot.lane.b32.xlu0 %v6275, 111
  %v6294 = vpop.permute.xlu0 %6293
  %6295 = vrot.lane.b32.xlu0 %v6276, 111
  %v6296 = vpop.permute.xlu0 %6295
  %6297 = vrot.lane.b32.xlu0 %v6277, 111
  %v6298 = vpop.permute.xlu0 %6297
  %6299 = vrot.lane.b32.xlu0 %v6278, 111
  %v6300 = vpop.permute.xlu0 %6299
  %6301 = vrot.lane.b32.xlu0 %v6279, 111
  %v6302 = vpop.permute.xlu0 %6301
  %6303 = vrot.lane.b32.xlu0 %v6280, 111
  %v6304 = vpop.permute.xlu0 %6303
  %v6305 = vsel %vm278, %v6290, %v6292
  %v6306 = vsel %vm278, %v6292, %v6294
  %v6307 = vsel %vm278, %v6294, %v6296
  %v6308 = vsel %vm278, %v6298, %v6300
  %v6309 = vsel %vm278, %v6300, %v6302
  %v6310 = vsel %vm278, %v6302, %v6304
  %v6321 = vmul.f32 %v6263, %v6290
  %v6322 = vmul.f32 %v6264, %v6305
  %v6323 = vmul.f32 %v6265, %v6306
  %v6324 = vmul.f32 %v6266, %v6307
  %v6325 = vmul.f32 %v6267, %v6296
  %v6326 = vmul.f32 %v6268, %v6298
  %v6327 = vmul.f32 %v6269, %v6308
  %v6328 = vmul.f32 %v6270, %v6309
  %v6329 = vmul.f32 %v6271, %v6310
  %v6330 = vmul.f32 %v6272, %v6304
  %6341 = vrot.lane.b32.xlu0 %v6321, 17
  %v6342 = vpop.permute.xlu0 %6341
  %6343 = vrot.lane.b32.xlu0 %v6322, 17
  %v6344 = vpop.permute.xlu0 %6343
  %6345 = vrot.lane.b32.xlu0 %v6323, 17
  %v6346 = vpop.permute.xlu0 %6345
  %6347 = vrot.lane.b32.xlu0 %v6324, 17
  %v6348 = vpop.permute.xlu0 %6347
  %6349 = vrot.lane.b32.xlu0 %v6325, 17
  %v6350 = vpop.permute.xlu0 %6349
  %6351 = vrot.lane.b32.xlu0 %v6326, 17
  %v6352 = vpop.permute.xlu0 %6351
  %6353 = vrot.lane.b32.xlu0 %v6327, 17
  %v6354 = vpop.permute.xlu0 %6353
  %6355 = vrot.lane.b32.xlu0 %v6328, 17
  %v6356 = vpop.permute.xlu0 %6355
  %6357 = vrot.lane.b32.xlu0 %v6329, 17
  %v6358 = vpop.permute.xlu0 %6357
  %6359 = vrot.lane.b32.xlu0 %v6330, 17
  %v6360 = vpop.permute.xlu0 %6359
  %v6361 = vsel %vm307, %v6342, %v6344
  %v6362 = vsel %vm307, %v6344, %v6346
  %v6363 = vsel %vm307, %v6346, %v6348
  %v6364 = vsel %vm307, %v6348, %v6350
  %v6365 = vsel %vm307, %v6352, %v6354
  %v6366 = vsel %vm307, %v6354, %v6356
  %v6367 = vsel %vm307, %v6356, %v6358
  %v6368 = vsel %vm307, %v6358, %v6360
  %6377 = vst [vmem:[#allocation3] sm:$0xff] %v6361
  %6378 = vst [vmem:[#allocation3 + $0x8] sm:$0xff] %v6362
  %6379 = vst [vmem:[#allocation3 + $0x10] sm:$0xff] %v6363
  %6380 = vst [vmem:[#allocation3 + $0x18] sm:$0xff] %v6364
  %6381 = vst [vmem:[#allocation3 + $0x20] sm:$0xff] %v6365
  %6382 = vst [vmem:[#allocation3 + $0x28] sm:$0xff] %v6366
  %6383 = vst [vmem:[#allocation3 + $0x30] sm:$0xff] %v6367
  %6384 = vst [vmem:[#allocation3 + $0x38] sm:$0xff] %v6368
  %v6385 = vld [vmem:[#allocation2] sm:$0xff]
  %v6386 = vld [vmem:[#allocation2 + $0x8] sm:$0xff]
  %v6387 = vld [vmem:[#allocation2 + $0x10] sm:$0xff]
  %v6388 = vld [vmem:[#allocation2 + $0x18] sm:$0xff]
  %v6389 = vld [vmem:[#allocation2 + $0x20] sm:$0xff]
  %v6390 = vld [vmem:[#allocation2 + $0x30] sm:$0xff]
  %v6391 = vld [vmem:[#allocation2 + $0x38] sm:$0xff]
  %v6392 = vld [vmem:[#allocation2 + $0x40] sm:$0xff]
  %v6393 = vld [vmem:[#allocation2 + $0x48] sm:$0xff]
  %v6394 = vld [vmem:[#allocation2 + $0x50] sm:$0xff]
  %v6395 = vld [vmem:[%s0 + $0x40] sm:$0xff]
  %v6396 = vld [vmem:[%s0 + $0x48] sm:$0xff]
  %v6397 = vld [vmem:[%s0 + $0x50] sm:$0xff]
  %v6398 = vld [vmem:[%s0 + $0x58] sm:$0xff]
  %v6399 = vld [vmem:[%s0 + $0x60] sm:$0xff]
  %v6400 = vld [vmem:[%s0 + $0x68] sm:$0xff]
  %v6401 = vld [vmem:[%s0 + $0x70] sm:$0xff]
  %v6402 = vld [vmem:[%s0 + $0x78] sm:$0xff]
  %6411 = vrot.lane.b32.xlu0 %v6395, 112
  %v6412 = vpop.permute.xlu0 %6411
  %6413 = vrot.lane.b32.xlu0 %v6396, 112
  %v6414 = vpop.permute.xlu0 %6413
  %6415 = vrot.lane.b32.xlu0 %v6397, 112
  %v6416 = vpop.permute.xlu0 %6415
  %6417 = vrot.lane.b32.xlu0 %v6398, 112
  %v6418 = vpop.permute.xlu0 %6417
  %6419 = vrot.lane.b32.xlu0 %v6399, 112
  %v6420 = vpop.permute.xlu0 %6419
  %6421 = vrot.lane.b32.xlu0 %v6400, 112
  %v6422 = vpop.permute.xlu0 %6421
  %6423 = vrot.lane.b32.xlu0 %v6401, 112
  %v6424 = vpop.permute.xlu0 %6423
  %6425 = vrot.lane.b32.xlu0 %v6402, 112
  %v6426 = vpop.permute.xlu0 %6425
  %v6427 = vsel %vm341, %v6412, %v6414
  %v6428 = vsel %vm341, %v6414, %v6416
  %v6429 = vsel %vm341, %v6416, %v6418
  %v6430 = vsel %vm341, %v6420, %v6422
  %v6431 = vsel %vm341, %v6422, %v6424
  %v6432 = vsel %vm341, %v6424, %v6426
  %v6443 = vmul.f32 %v6385, %v6412
  %v6444 = vmul.f32 %v6386, %v6427
  %v6445 = vmul.f32 %v6387, %v6428
  %v6446 = vmul.f32 %v6388, %v6429
  %v6447 = vmul.f32 %v6389, %v6418
  %v6448 = vmul.f32 %v6390, %v6420
  %v6449 = vmul.f32 %v6391, %v6430
  %v6450 = vmul.f32 %v6392, %v6431
  %v6451 = vmul.f32 %v6393, %v6432
  %v6452 = vmul.f32 %v6394, %v6426
  %6463 = vrot.lane.b32.xlu0 %v6443, 16
  %v6464 = vpop.permute.xlu0 %6463
  %6465 = vrot.lane.b32.xlu0 %v6444, 16
  %v6466 = vpop.permute.xlu0 %6465
  %6467 = vrot.lane.b32.xlu0 %v6445, 16
  %v6468 = vpop.permute.xlu0 %6467
  %6469 = vrot.lane.b32.xlu0 %v6446, 16
  %v6470 = vpop.permute.xlu0 %6469
  %6471 = vrot.lane.b32.xlu0 %v6447, 16
  %v6472 = vpop.permute.xlu0 %6471
  %6473 = vrot.lane.b32.xlu0 %v6448, 16
  %v6474 = vpop.permute.xlu0 %6473
  %6475 = vrot.lane.b32.xlu0 %v6449, 16
  %v6476 = vpop.permute.xlu0 %6475
  %6477 = vrot.lane.b32.xlu0 %v6450, 16
  %v6478 = vpop.permute.xlu0 %6477
  %6479 = vrot.lane.b32.xlu0 %v6451, 16
  %v6480 = vpop.permute.xlu0 %6479
  %6481 = vrot.lane.b32.xlu0 %v6452, 16
  %v6482 = vpop.permute.xlu0 %6481
  %v6483 = vsel %vm370, %v6464, %v6466
  %v6484 = vsel %vm370, %v6466, %v6468
  %v6485 = vsel %vm370, %v6468, %v6470
  %v6486 = vsel %vm370, %v6470, %v6472
  %v6487 = vsel %vm370, %v6474, %v6476
  %v6488 = vsel %vm370, %v6476, %v6478
  %v6489 = vsel %vm370, %v6478, %v6480
  %v6490 = vsel %vm370, %v6480, %v6482
  %6499 = vst [vmem:[#allocation3 + $0x40] sm:$0xff] %v6483
  %6500 = vst [vmem:[#allocation3 + $0x48] sm:$0xff] %v6484
  %6501 = vst [vmem:[#allocation3 + $0x50] sm:$0xff] %v6485
  %6502 = vst [vmem:[#allocation3 + $0x58] sm:$0xff] %v6486
  %6503 = vst [vmem:[#allocation3 + $0x60] sm:$0xff] %v6487
  %6504 = vst [vmem:[#allocation3 + $0x68] sm:$0xff] %v6488
  %6505 = vst [vmem:[#allocation3 + $0x70] sm:$0xff] %v6489
  %6506 = vst [vmem:[#allocation3 + $0x78] sm:$0xff] %v6490
  %v6507 = vld [vmem:[#allocation2] sm:$0xff]
  %v6508 = vld [vmem:[#allocation2 + $0x8] sm:$0xff]
  %v6509 = vld [vmem:[#allocation2 + $0x10] sm:$0xff]
  %v6510 = vld [vmem:[#allocation2 + $0x18] sm:$0xff]
  %v6511 = vld [vmem:[#allocation2 + $0x20] sm:$0xff]
  %v6512 = vld [vmem:[#allocation2 + $0x30] sm:$0xff]
  %v6513 = vld [vmem:[#allocation2 + $0x38] sm:$0xff]
  %v6514 = vld [vmem:[#allocation2 + $0x40] sm:$0xff]
  %v6515 = vld [vmem:[#allocation2 + $0x48] sm:$0xff]
  %v6516 = vld [vmem:[#allocation2 + $0x50] sm:$0xff]
  %v6517 = vld [vmem:[%s0 + $0x80] sm:$0xff]
  %v6518 = vld [vmem:[%s0 + $0x88] sm:$0xff]
  %v6519 = vld [vmem:[%s0 + $0x90] sm:$0xff]
  %v6520 = vld [vmem:[%s0 + $0x98] sm:$0xff]
  %v6521 = vld [vmem:[%s0 + $0xa0] sm:$0xff]
  %v6522 = vld [vmem:[%s0 + $0xa8] sm:$0xff]
  %v6523 = vld [vmem:[%s0 + $0xb0] sm:$0xff]
  %v6524 = vld [vmem:[%s0 + $0xb8] sm:$0xff]
  %6533 = vrot.lane.b32.xlu0 %v6517, 113
  %v6534 = vpop.permute.xlu0 %6533
  %6535 = vrot.lane.b32.xlu0 %v6518, 113
  %v6536 = vpop.permute.xlu0 %6535
  %6537 = vrot.lane.b32.xlu0 %v6519, 113
  %v6538 = vpop.permute.xlu0 %6537
  %6539 = vrot.lane.b32.xlu0 %v6520, 113
  %v6540 = vpop.permute.xlu0 %6539
  %6541 = vrot.lane.b32.xlu0 %v6521, 113
  %v6542 = vpop.permute.xlu0 %6541
  %6543 = vrot.lane.b32.xlu0 %v6522, 113
  %v6544 = vpop.permute.xlu0 %6543
  %6545 = vrot.lane.b32.xlu0 %v6523, 113
  %v6546 = vpop.permute.xlu0 %6545
  %6547 = vrot.lane.b32.xlu0 %v6524, 113
  %v6548 = vpop.permute.xlu0 %6547
  %v6549 = vsel %vm404, %v6534, %v6536
  %v6550 = vsel %vm404, %v6536, %v6538
  %v6551 = vsel %vm404, %v6538, %v6540
  %v6552 = vsel %vm404, %v6542, %v6544
  %v6553 = vsel %vm404, %v6544, %v6546
  %v6554 = vsel %vm404, %v6546, %v6548
  %v6565 = vmul.f32 %v6507, %v6534
  %v6566 = vmul.f32 %v6508, %v6549
  %v6567 = vmul.f32 %v6509, %v6550
  %v6568 = vmul.f32 %v6510, %v6551
  %v6569 = vmul.f32 %v6511, %v6540
  %v6570 = vmul.f32 %v6512, %v6542
  %v6571 = vmul.f32 %v6513, %v6552
  %v6572 = vmul.f32 %v6514, %v6553
  %v6573 = vmul.f32 %v6515, %v6554
  %v6574 = vmul.f32 %v6516, %v6548
  %6585 = vrot.lane.b32.xlu0 %v6565, 15
  %v6586 = vpop.permute.xlu0 %6585
  %6587 = vrot.lane.b32.xlu0 %v6566, 15
  %v6588 = vpop.permute.xlu0 %6587
  %6589 = vrot.lane.b32.xlu0 %v6567, 15
  %v6590 = vpop.permute.xlu0 %6589
  %6591 = vrot.lane.b32.xlu0 %v6568, 15
  %v6592 = vpop.permute.xlu0 %6591
  %6593 = vrot.lane.b32.xlu0 %v6569, 15
  %v6594 = vpop.permute.xlu0 %6593
  %6595 = vrot.lane.b32.xlu0 %v6570, 15
  %v6596 = vpop.permute.xlu0 %6595
  %6597 = vrot.lane.b32.xlu0 %v6571, 15
  %v6598 = vpop.permute.xlu0 %6597
  %6599 = vrot.lane.b32.xlu0 %v6572, 15
  %v6600 = vpop.permute.xlu0 %6599
  %6601 = vrot.lane.b32.xlu0 %v6573, 15
  %v6602 = vpop.permute.xlu0 %6601
  %6603 = vrot.lane.b32.xlu0 %v6574, 15
  %v6604 = vpop.permute.xlu0 %6603
  %v6605 = vsel %vm433, %v6586, %v6588
  %v6606 = vsel %vm433, %v6588, %v6590
  %v6607 = vsel %vm433, %v6590, %v6592
  %v6608 = vsel %vm433, %v6592, %v6594
  %v6609 = vsel %vm433, %v6596, %v6598
  %v6610 = vsel %vm433, %v6598, %v6600
  %v6611 = vsel %vm433, %v6600, %v6602
  %v6612 = vsel %vm433, %v6602, %v6604
  %6621 = vst [vmem:[#allocation3 + $0x80] sm:$0xff] %v6605
  %6622 = vst [vmem:[#allocation3 + $0x88] sm:$0xff] %v6606
  %6623 = vst [vmem:[#allocation3 + $0x90] sm:$0xff] %v6607
  %6624 = vst [vmem:[#allocation3 + $0x98] sm:$0xff] %v6608
  %6625 = vst [vmem:[#allocation3 + $0xa0] sm:$0xff] %v6609
  %6626 = vst [vmem:[#allocation3 + $0xa8] sm:$0xff] %v6610
  %6627 = vst [vmem:[#allocation3 + $0xb0] sm:$0xff] %v6611
  %6628 = vst [vmem:[#allocation3 + $0xb8] sm:$0xff] %v6612
  %v6629 = vld [vmem:[#allocation2] sm:$0xff]
  %v6630 = vld [vmem:[#allocation2 + $0x8] sm:$0xff]
  %v6631 = vld [vmem:[#allocation2 + $0x10] sm:$0xff]
  %v6632 = vld [vmem:[#allocation2 + $0x18] sm:$0xff]
  %v6633 = vld [vmem:[#allocation2 + $0x20] sm:$0xff]
  %v6634 = vld [vmem:[#allocation2 + $0x30] sm:$0xff]
  %v6635 = vld [vmem:[#allocation2 + $0x38] sm:$0xff]
  %v6636 = vld [vmem:[#allocation2 + $0x40] sm:$0xff]
  %v6637 = vld [vmem:[#allocation2 + $0x48] sm:$0xff]
  %v6638 = vld [vmem:[#allocation2 + $0x50] sm:$0xff]
  %v6639 = vld [vmem:[%s0 + $0xc0] sm:$0xff]
  %v6640 = vld [vmem:[%s0 + $0xc8] sm:$0xff]
  %v6641 = vld [vmem:[%s0 + $0xd0] sm:$0xff]
  %v6642 = vld [vmem:[%s0 + $0xd8] sm:$0xff]
  %v6643 = vld [vmem:[%s0 + $0xe0] sm:$0xff]
  %v6644 = vld [vmem:[%s0 + $0xe8] sm:$0xff]
  %v6645 = vld [vmem:[%s0 + $0xf0] sm:$0xff]
  %v6646 = vld [vmem:[%s0 + $0xf8] sm:$0xff]
  %6655 = vrot.lane.b32.xlu0 %v6639, 127
  %v6656 = vpop.permute.xlu0 %6655
  %6657 = vrot.lane.b32.xlu0 %v6640, 127
  %v6658 = vpop.permute.xlu0 %6657
  %6659 = vrot.lane.b32.xlu0 %v6641, 127
  %v6660 = vpop.permute.xlu0 %6659
  %6661 = vrot.lane.b32.xlu0 %v6642, 127
  %v6662 = vpop.permute.xlu0 %6661
  %6663 = vrot.lane.b32.xlu0 %v6643, 127
  %v6664 = vpop.permute.xlu0 %6663
  %6665 = vrot.lane.b32.xlu0 %v6644, 127
  %v6666 = vpop.permute.xlu0 %6665
  %6667 = vrot.lane.b32.xlu0 %v6645, 127
  %v6668 = vpop.permute.xlu0 %6667
  %6669 = vrot.lane.b32.xlu0 %v6646, 127
  %v6670 = vpop.permute.xlu0 %6669
  %v6671 = vsel %vm467, %v6656, %v6658
  %v6672 = vsel %vm467, %v6658, %v6660
  %v6673 = vsel %vm467, %v6660, %v6662
  %v6674 = vsel %vm467, %v6664, %v6666
  %v6675 = vsel %vm467, %v6666, %v6668
  %v6676 = vsel %vm467, %v6668, %v6670
  %v6687 = vmul.f32 %v6629, %v6656
  %v6688 = vmul.f32 %v6630, %v6671
  %v6689 = vmul.f32 %v6631, %v6672
  %v6690 = vmul.f32 %v6632, %v6673
  %v6691 = vmul.f32 %v6633, %v6662
  %v6692 = vmul.f32 %v6634, %v6664
  %v6693 = vmul.f32 %v6635, %v6674
  %v6694 = vmul.f32 %v6636, %v6675
  %v6695 = vmul.f32 %v6637, %v6676
  %v6696 = vmul.f32 %v6638, %v6670
  %6707 = vrot.lane.b32.xlu0 %v6687, 1
  %v6708 = vpop.permute.xlu0 %6707
  %6709 = vrot.lane.b32.xlu0 %v6688, 1
  %v6710 = vpop.permute.xlu0 %6709
  %6711 = vrot.lane.b32.xlu0 %v6689, 1
  %v6712 = vpop.permute.xlu0 %6711
  %6713 = vrot.lane.b32.xlu0 %v6690, 1
  %v6714 = vpop.permute.xlu0 %6713
  %6715 = vrot.lane.b32.xlu0 %v6691, 1
  %v6716 = vpop.permute.xlu0 %6715
  %6717 = vrot.lane.b32.xlu0 %v6692, 1
  %v6718 = vpop.permute.xlu0 %6717
  %6719 = vrot.lane.b32.xlu0 %v6693, 1
  %v6720 = vpop.permute.xlu0 %6719
  %6721 = vrot.lane.b32.xlu0 %v6694, 1
  %v6722 = vpop.permute.xlu0 %6721
  %6723 = vrot.lane.b32.xlu0 %v6695, 1
  %v6724 = vpop.permute.xlu0 %6723
  %6725 = vrot.lane.b32.xlu0 %v6696, 1
  %v6726 = vpop.permute.xlu0 %6725
  %v6727 = vsel %vm496, %v6708, %v6710
  %v6728 = vsel %vm496, %v6710, %v6712
  %v6729 = vsel %vm496, %v6712, %v6714
  %v6730 = vsel %vm496, %v6714, %v6716
  %v6731 = vsel %vm496, %v6718, %v6720
  %v6732 = vsel %vm496, %v6720, %v6722
  %v6733 = vsel %vm496, %v6722, %v6724
  %v6734 = vsel %vm496, %v6724, %v6726
  %6743 = vst [vmem:[#allocation3 + $0xc0] sm:$0xff] %v6727
  %6744 = vst [vmem:[#allocation3 + $0xc8] sm:$0xff] %v6728
  %6745 = vst [vmem:[#allocation3 + $0xd0] sm:$0xff] %v6729
  %6746 = vst [vmem:[#allocation3 + $0xd8] sm:$0xff] %v6730
  %6747 = vst [vmem:[#allocation3 + $0xe0] sm:$0xff] %v6731
  %6748 = vst [vmem:[#allocation3 + $0xe8] sm:$0xff] %v6732
  %6749 = vst [vmem:[#allocation3 + $0xf0] sm:$0xff] %v6733
  %6750 = vst [vmem:[#allocation3 + $0xf8] sm:$0xff] %v6734
  %v6751 = vld [vmem:[#allocation2 + $0x8] sm:$0xff]
  %v6752 = vld [vmem:[#allocation2 + $0x10] sm:$0xff]
  %v6753 = vld [vmem:[#allocation2 + $0x18] sm:$0xff]
  %v6754 = vld [vmem:[#allocation2 + $0x20] sm:$0xff]
  %v6755 = vld [vmem:[#allocation2 + $0x38] sm:$0xff]
  %v6756 = vld [vmem:[#allocation2 + $0x40] sm:$0xff]
  %v6757 = vld [vmem:[#allocation2 + $0x48] sm:$0xff]
  %v6758 = vld [vmem:[#allocation2 + $0x50] sm:$0xff]
  %v6759 = vld [vmem:[%s0 + $0x100] sm:$0xff]
  %v6760 = vld [vmem:[%s0 + $0x108] sm:$0xff]
  %v6761 = vld [vmem:[%s0 + $0x110] sm:$0xff]
  %v6762 = vld [vmem:[%s0 + $0x118] sm:$0xff]
  %v6763 = vld [vmem:[%s0 + $0x120] sm:$0xff]
  %v6764 = vld [vmem:[%s0 + $0x128] sm:$0xff]
  %v6765 = vld [vmem:[%s0 + $0x130] sm:$0xff]
  %v6766 = vld [vmem:[%s0 + $0x138] sm:$0xff]
  %v6767 = vmul.f32 %v6751, %v6759
  %v6768 = vmul.f32 %v6752, %v6760
  %v6769 = vmul.f32 %v6753, %v6761
  %v6770 = vmul.f32 %v6754, %v6762
  %v6771 = vmul.f32 %v6755, %v6763
  %v6772 = vmul.f32 %v6756, %v6764
  %v6773 = vmul.f32 %v6757, %v6765
  %v6774 = vmul.f32 %v6758, %v6766
  %6775 = vst [vmem:[#allocation3 + $0x100] sm:$0xff] %v6767
  %6776 = vst [vmem:[#allocation3 + $0x108] sm:$0xff] %v6768
  %6777 = vst [vmem:[#allocation3 + $0x110] sm:$0xff] %v6769
  %6778 = vst [vmem:[#allocation3 + $0x118] sm:$0xff] %v6770
  %6779 = vst [vmem:[#allocation3 + $0x120] sm:$0xff] %v6771
  %6780 = vst [vmem:[#allocation3 + $0x128] sm:$0xff] %v6772
  %6781 = vst [vmem:[#allocation3 + $0x130] sm:$0xff] %v6773
  %6782 = vst [vmem:[#allocation3 + $0x138] sm:$0xff] %v6774
  %v6783 = vld [vmem:[#allocation2 + $0x8] sm:$0xff]
  %v6784 = vld [vmem:[#allocation2 + $0x10] sm:$0xff]
  %v6785 = vld [vmem:[#allocation2 + $0x18] sm:$0xff]
  %v6786 = vld [vmem:[#allocation2 + $0x20] sm:$0xff]
  %v6787 = vld [vmem:[#allocation2 + $0x28] sm:$0xff]
  %v6788 = vld [vmem:[#allocation2 + $0x38] sm:$0xff]
  %v6789 = vld [vmem:[#allocation2 + $0x40] sm:$0xff]
  %v6790 = vld [vmem:[#allocation2 + $0x48] sm:$0xff]
  %v6791 = vld [vmem:[#allocation2 + $0x50] sm:$0xff]
  %v6792 = vld [vmem:[#allocation2 + $0x58] sm:$0xff]
  %v6793 = vld [vmem:[%s0 + $0x140] sm:$0xff]
  %v6794 = vld [vmem:[%s0 + $0x148] sm:$0xff]
  %v6795 = vld [vmem:[%s0 + $0x150] sm:$0xff]
  %v6796 = vld [vmem:[%s0 + $0x158] sm:$0xff]
  %v6797 = vld [vmem:[%s0 + $0x160] sm:$0xff]
  %v6798 = vld [vmem:[%s0 + $0x168] sm:$0xff]
  %v6799 = vld [vmem:[%s0 + $0x170] sm:$0xff]
  %v6800 = vld [vmem:[%s0 + $0x178] sm:$0xff]
  %6809 = vrot.lane.b32.xlu0 %v6793, 1
  %v6810 = vpop.permute.xlu0 %6809
  %6811 = vrot.lane.b32.xlu0 %v6794, 1
  %v6812 = vpop.permute.xlu0 %6811
  %6813 = vrot.lane.b32.xlu0 %v6795, 1
  %v6814 = vpop.permute.xlu0 %6813
  %6815 = vrot.lane.b32.xlu0 %v6796, 1
  %v6816 = vpop.permute.xlu0 %6815
  %6817 = vrot.lane.b32.xlu0 %v6797, 1
  %v6818 = vpop.permute.xlu0 %6817
  %6819 = vrot.lane.b32.xlu0 %v6798, 1
  %v6820 = vpop.permute.xlu0 %6819
  %6821 = vrot.lane.b32.xlu0 %v6799, 1
  %v6822 = vpop.permute.xlu0 %6821
  %6823 = vrot.lane.b32.xlu0 %v6800, 1
  %v6824 = vpop.permute.xlu0 %6823
  %v6825 = vsel %vm496, %v6810, %v6812
  %v6826 = vsel %vm496, %v6812, %v6814
  %v6827 = vsel %vm496, %v6814, %v6816
  %v6828 = vsel %vm496, %v6818, %v6820
  %v6829 = vsel %vm496, %v6820, %v6822
  %v6830 = vsel %vm496, %v6822, %v6824
  %v6841 = vmul.f32 %v6783, %v6810
  %v6842 = vmul.f32 %v6784, %v6825
  %v6843 = vmul.f32 %v6785, %v6826
  %v6844 = vmul.f32 %v6786, %v6827
  %v6845 = vmul.f32 %v6787, %v6816
  %v6846 = vmul.f32 %v6788, %v6818
  %v6847 = vmul.f32 %v6789, %v6828
  %v6848 = vmul.f32 %v6790, %v6829
  %v6849 = vmul.f32 %v6791, %v6830
  %v6850 = vmul.f32 %v6792, %v6824
  %6861 = vrot.lane.b32.xlu0 %v6841, 127
  %v6862 = vpop.permute.xlu0 %6861
  %6863 = vrot.lane.b32.xlu0 %v6842, 127
  %v6864 = vpop.permute.xlu0 %6863
  %6865 = vrot.lane.b32.xlu0 %v6843, 127
  %v6866 = vpop.permute.xlu0 %6865
  %6867 = vrot.lane.b32.xlu0 %v6844, 127
  %v6868 = vpop.permute.xlu0 %6867
  %6869 = vrot.lane.b32.xlu0 %v6845, 127
  %v6870 = vpop.permute.xlu0 %6869
  %6871 = vrot.lane.b32.xlu0 %v6846, 127
  %v6872 = vpop.permute.xlu0 %6871
  %6873 = vrot.lane.b32.xlu0 %v6847, 127
  %v6874 = vpop.permute.xlu0 %6873
  %6875 = vrot.lane.b32.xlu0 %v6848, 127
  %v6876 = vpop.permute.xlu0 %6875
  %6877 = vrot.lane.b32.xlu0 %v6849, 127
  %v6878 = vpop.permute.xlu0 %6877
  %6879 = vrot.lane.b32.xlu0 %v6850, 127
  %v6880 = vpop.permute.xlu0 %6879
  %v6881 = vsel %vm467, %v6862, %v6864
  %v6882 = vsel %vm467, %v6864, %v6866
  %v6883 = vsel %vm467, %v6866, %v6868
  %v6884 = vsel %vm467, %v6868, %v6870
  %v6885 = vsel %vm467, %v6872, %v6874
  %v6886 = vsel %vm467, %v6874, %v6876
  %v6887 = vsel %vm467, %v6876, %v6878
  %v6888 = vsel %vm467, %v6878, %v6880
  %6897 = vst [vmem:[#allocation3 + $0x140] sm:$0xff] %v6881
  %6898 = vst [vmem:[#allocation3 + $0x148] sm:$0xff] %v6882
  %6899 = vst [vmem:[#allocation3 + $0x150] sm:$0xff] %v6883
  %6900 = vst [vmem:[#allocation3 + $0x158] sm:$0xff] %v6884
  %6901 = vst [vmem:[#allocation3 + $0x160] sm:$0xff] %v6885
  %6902 = vst [vmem:[#allocation3 + $0x168] sm:$0xff] %v6886
  %6903 = vst [vmem:[#allocation3 + $0x170] sm:$0xff] %v6887
  %6904 = vst [vmem:[#allocation3 + $0x178] sm:$0xff] %v6888
  %v6905 = vld [vmem:[#allocation2 + $0x8] sm:$0xff]
  %v6906 = vld [vmem:[#allocation2 + $0x10] sm:$0xff]
  %v6907 = vld [vmem:[#allocation2 + $0x18] sm:$0xff]
  %v6908 = vld [vmem:[#allocation2 + $0x20] sm:$0xff]
  %v6909 = vld [vmem:[#allocation2 + $0x28] sm:$0xff]
  %v6910 = vld [vmem:[#allocation2 + $0x38] sm:$0xff]
  %v6911 = vld [vmem:[#allocation2 + $0x40] sm:$0xff]
  %v6912 = vld [vmem:[#allocation2 + $0x48] sm:$0xff]
  %v6913 = vld [vmem:[#allocation2 + $0x50] sm:$0xff]
  %v6914 = vld [vmem:[#allocation2 + $0x58] sm:$0xff]
  %v6915 = vld [vmem:[%s0 + $0x180] sm:$0xff]
  %v6916 = vld [vmem:[%s0 + $0x188] sm:$0xff]
  %v6917 = vld [vmem:[%s0 + $0x190] sm:$0xff]
  %v6918 = vld [vmem:[%s0 + $0x198] sm:$0xff]
  %v6919 = vld [vmem:[%s0 + $0x1a0] sm:$0xff]
  %v6920 = vld [vmem:[%s0 + $0x1a8] sm:$0xff]
  %v6921 = vld [vmem:[%s0 + $0x1b0] sm:$0xff]
  %v6922 = vld [vmem:[%s0 + $0x1b8] sm:$0xff]
  %6931 = vrot.lane.b32.xlu0 %v6915, 15
  %v6932 = vpop.permute.xlu0 %6931
  %6933 = vrot.lane.b32.xlu0 %v6916, 15
  %v6934 = vpop.permute.xlu0 %6933
  %6935 = vrot.lane.b32.xlu0 %v6917, 15
  %v6936 = vpop.permute.xlu0 %6935
  %6937 = vrot.lane.b32.xlu0 %v6918, 15
  %v6938 = vpop.permute.xlu0 %6937
  %6939 = vrot.lane.b32.xlu0 %v6919, 15
  %v6940 = vpop.permute.xlu0 %6939
  %6941 = vrot.lane.b32.xlu0 %v6920, 15
  %v6942 = vpop.permute.xlu0 %6941
  %6943 = vrot.lane.b32.xlu0 %v6921, 15
  %v6944 = vpop.permute.xlu0 %6943
  %6945 = vrot.lane.b32.xlu0 %v6922, 15
  %v6946 = vpop.permute.xlu0 %6945
  %v6947 = vsel %vm433, %v6932, %v6934
  %v6948 = vsel %vm433, %v6934, %v6936
  %v6949 = vsel %vm433, %v6936, %v6938
  %v6950 = vsel %vm433, %v6940, %v6942
  %v6951 = vsel %vm433, %v6942, %v6944
  %v6952 = vsel %vm433, %v6944, %v6946
  %v6963 = vmul.f32 %v6905, %v6932
  %v6964 = vmul.f32 %v6906, %v6947
  %v6965 = vmul.f32 %v6907, %v6948
  %v6966 = vmul.f32 %v6908, %v6949
  %v6967 = vmul.f32 %v6909, %v6938
  %v6968 = vmul.f32 %v6910, %v6940
  %v6969 = vmul.f32 %v6911, %v6950
  %v6970 = vmul.f32 %v6912, %v6951
  %v6971 = vmul.f32 %v6913, %v6952
  %v6972 = vmul.f32 %v6914, %v6946
  %6983 = vrot.lane.b32.xlu0 %v6963, 113
  %v6984 = vpop.permute.xlu0 %6983
  %6985 = vrot.lane.b32.xlu0 %v6964, 113
  %v6986 = vpop.permute.xlu0 %6985
  %6987 = vrot.lane.b32.xlu0 %v6965, 113
  %v6988 = vpop.permute.xlu0 %6987
  %6989 = vrot.lane.b32.xlu0 %v6966, 113
  %v6990 = vpop.permute.xlu0 %6989
  %6991 = vrot.lane.b32.xlu0 %v6967, 113
  %v6992 = vpop.permute.xlu0 %6991
  %6993 = vrot.lane.b32.xlu0 %v6968, 113
  %v6994 = vpop.permute.xlu0 %6993
  %6995 = vrot.lane.b32.xlu0 %v6969, 113
  %v6996 = vpop.permute.xlu0 %6995
  %6997 = vrot.lane.b32.xlu0 %v6970, 113
  %v6998 = vpop.permute.xlu0 %6997
  %6999 = vrot.lane.b32.xlu0 %v6971, 113
  %v7000 = vpop.permute.xlu0 %6999
  %7001 = vrot.lane.b32.xlu0 %v6972, 113
  %v7002 = vpop.permute.xlu0 %7001
  %v7003 = vsel %vm404, %v6984, %v6986
  %v7004 = vsel %vm404, %v6986, %v6988
  %v7005 = vsel %vm404, %v6988, %v6990
  %v7006 = vsel %vm404, %v6990, %v6992
  %v7007 = vsel %vm404, %v6994, %v6996
  %v7008 = vsel %vm404, %v6996, %v6998
  %v7009 = vsel %vm404, %v6998, %v7000
  %v7010 = vsel %vm404, %v7000, %v7002
  %7019 = vst [vmem:[#allocation3 + $0x180] sm:$0xff] %v7003
  %7020 = vst [vmem:[#allocation3 + $0x188] sm:$0xff] %v7004
  %7021 = vst [vmem:[#allocation3 + $0x190] sm:$0xff] %v7005
  %7022 = vst [vmem:[#allocation3 + $0x198] sm:$0xff] %v7006
  %7023 = vst [vmem:[#allocation3 + $0x1a0] sm:$0xff] %v7007
  %7024 = vst [vmem:[#allocation3 + $0x1a8] sm:$0xff] %v7008
  %7025 = vst [vmem:[#allocation3 + $0x1b0] sm:$0xff] %v7009
  %7026 = vst [vmem:[#allocation3 + $0x1b8] sm:$0xff] %v7010
  %v7027 = vld [vmem:[#allocation2 + $0x8] sm:$0xff]
  %v7028 = vld [vmem:[#allocation2 + $0x10] sm:$0xff]
  %v7029 = vld [vmem:[#allocation2 + $0x18] sm:$0xff]
  %v7030 = vld [vmem:[#allocation2 + $0x20] sm:$0xff]
  %v7031 = vld [vmem:[#allocation2 + $0x28] sm:$0xff]
  %v7032 = vld [vmem:[#allocation2 + $0x38] sm:$0xff]
  %v7033 = vld [vmem:[#allocation2 + $0x40] sm:$0xff]
  %v7034 = vld [vmem:[#allocation2 + $0x48] sm:$0xff]
  %v7035 = vld [vmem:[#allocation2 + $0x50] sm:$0xff]
  %v7036 = vld [vmem:[#allocation2 + $0x58] sm:$0xff]
  %v7037 = vld [vmem:[%s0 + $0x1c0] sm:$0xff]
  %v7038 = vld [vmem:[%s0 + $0x1c8] sm:$0xff]
  %v7039 = vld [vmem:[%s0 + $0x1d0] sm:$0xff]
  %v7040 = vld [vmem:[%s0 + $0x1d8] sm:$0xff]
  %v7041 = vld [vmem:[%s0 + $0x1e0] sm:$0xff]
  %v7042 = vld [vmem:[%s0 + $0x1e8] sm:$0xff]
  %v7043 = vld [vmem:[%s0 + $0x1f0] sm:$0xff]
  %v7044 = vld [vmem:[%s0 + $0x1f8] sm:$0xff]
  %7053 = vrot.lane.b32.xlu0 %v7037, 16
  %v7054 = vpop.permute.xlu0 %7053
  %7055 = vrot.lane.b32.xlu0 %v7038, 16
  %v7056 = vpop.permute.xlu0 %7055
  %7057 = vrot.lane.b32.xlu0 %v7039, 16
  %v7058 = vpop.permute.xlu0 %7057
  %7059 = vrot.lane.b32.xlu0 %v7040, 16
  %v7060 = vpop.permute.xlu0 %7059
  %7061 = vrot.lane.b32.xlu0 %v7041, 16
  %v7062 = vpop.permute.xlu0 %7061
  %7063 = vrot.lane.b32.xlu0 %v7042, 16
  %v7064 = vpop.permute.xlu0 %7063
  %7065 = vrot.lane.b32.xlu0 %v7043, 16
  %v7066 = vpop.permute.xlu0 %7065
  %7067 = vrot.lane.b32.xlu0 %v7044, 16
  %v7068 = vpop.permute.xlu0 %7067
  %v7069 = vsel %vm370, %v7054, %v7056
  %v7070 = vsel %vm370, %v7056, %v7058
  %v7071 = vsel %vm370, %v7058, %v7060
  %v7072 = vsel %vm370, %v7062, %v7064
  %v7073 = vsel %vm370, %v7064, %v7066
  %v7074 = vsel %vm370, %v7066, %v7068
  %v7085 = vmul.f32 %v7027, %v7054
  %v7086 = vmul.f32 %v7028, %v7069
  %v7087 = vmul.f32 %v7029, %v7070
  %v7088 = vmul.f32 %v7030, %v7071
  %v7089 = vmul.f32 %v7031, %v7060
  %v7090 = vmul.f32 %v7032, %v7062
  %v7091 = vmul.f32 %v7033, %v7072
  %v7092 = vmul.f32 %v7034, %v7073
  %v7093 = vmul.f32 %v7035, %v7074
  %v7094 = vmul.f32 %v7036, %v7068
  %7105 = vrot.lane.b32.xlu0 %v7085, 112
  %v7106 = vpop.permute.xlu0 %7105
  %7107 = vrot.lane.b32.xlu0 %v7086, 112
  %v7108 = vpop.permute.xlu0 %7107
  %7109 = vrot.lane.b32.xlu0 %v7087, 112
  %v7110 = vpop.permute.xlu0 %7109
  %7111 = vrot.lane.b32.xlu0 %v7088, 112
  %v7112 = vpop.permute.xlu0 %7111
  %7113 = vrot.lane.b32.xlu0 %v7089, 112
  %v7114 = vpop.permute.xlu0 %7113
  %7115 = vrot.lane.b32.xlu0 %v7090, 112
  %v7116 = vpop.permute.xlu0 %7115
  %7117 = vrot.lane.b32.xlu0 %v7091, 112
  %v7118 = vpop.permute.xlu0 %7117
  %7119 = vrot.lane.b32.xlu0 %v7092, 112
  %v7120 = vpop.permute.xlu0 %7119
  %7121 = vrot.lane.b32.xlu0 %v7093, 112
  %v7122 = vpop.permute.xlu0 %7121
  %7123 = vrot.lane.b32.xlu0 %v7094, 112
  %v7124 = vpop.permute.xlu0 %7123
  %v7125 = vsel %vm341, %v7106, %v7108
  %v7126 = vsel %vm341, %v7108, %v7110
  %v7127 = vsel %vm341, %v7110, %v7112
  %v7128 = vsel %vm341, %v7112, %v7114
  %v7129 = vsel %vm341, %v7116, %v7118
  %v7130 = vsel %vm341, %v7118, %v7120
  %v7131 = vsel %vm341, %v7120, %v7122
  %v7132 = vsel %vm341, %v7122, %v7124
  %7141 = vst [vmem:[#allocation3 + $0x1c0] sm:$0xff] %v7125
  %7142 = vst [vmem:[#allocation3 + $0x1c8] sm:$0xff] %v7126
  %7143 = vst [vmem:[#allocation3 + $0x1d0] sm:$0xff] %v7127
  %7144 = vst [vmem:[#allocation3 + $0x1d8] sm:$0xff] %v7128
  %7145 = vst [vmem:[#allocation3 + $0x1e0] sm:$0xff] %v7129
  %7146 = vst [vmem:[#allocation3 + $0x1e8] sm:$0xff] %v7130
  %7147 = vst [vmem:[#allocation3 + $0x1f0] sm:$0xff] %v7131
  %7148 = vst [vmem:[#allocation3 + $0x1f8] sm:$0xff] %v7132
  %v7149 = vld [vmem:[#allocation2 + $0x8] sm:$0xff]
  %v7150 = vld [vmem:[#allocation2 + $0x10] sm:$0xff]
  %v7151 = vld [vmem:[#allocation2 + $0x18] sm:$0xff]
  %v7152 = vld [vmem:[#allocation2 + $0x20] sm:$0xff]
  %v7153 = vld [vmem:[#allocation2 + $0x28] sm:$0xff]
  %v7154 = vld [vmem:[#allocation2 + $0x38] sm:$0xff]
  %v7155 = vld [vmem:[#allocation2 + $0x40] sm:$0xff]
  %v7156 = vld [vmem:[#allocation2 + $0x48] sm:$0xff]
  %v7157 = vld [vmem:[#allocation2 + $0x50] sm:$0xff]
  %v7158 = vld [vmem:[#allocation2 + $0x58] sm:$0xff]
  %v7159 = vld [vmem:[%s0 + $0x200] sm:$0xff]
  %v7160 = vld [vmem:[%s0 + $0x208] sm:$0xff]
  %v7161 = vld [vmem:[%s0 + $0x210] sm:$0xff]
  %v7162 = vld [vmem:[%s0 + $0x218] sm:$0xff]
  %v7163 = vld [vmem:[%s0 + $0x220] sm:$0xff]
  %v7164 = vld [vmem:[%s0 + $0x228] sm:$0xff]
  %v7165 = vld [vmem:[%s0 + $0x230] sm:$0xff]
  %v7166 = vld [vmem:[%s0 + $0x238] sm:$0xff]
  %7175 = vrot.lane.b32.xlu0 %v7159, 17
  %v7176 = vpop.permute.xlu0 %7175
  %7177 = vrot.lane.b32.xlu0 %v7160, 17
  %v7178 = vpop.permute.xlu0 %7177
  %7179 = vrot.lane.b32.xlu0 %v7161, 17
  %v7180 = vpop.permute.xlu0 %7179
  %7181 = vrot.lane.b32.xlu0 %v7162, 17
  %v7182 = vpop.permute.xlu0 %7181
  %7183 = vrot.lane.b32.xlu0 %v7163, 17
  %v7184 = vpop.permute.xlu0 %7183
  %7185 = vrot.lane.b32.xlu0 %v7164, 17
  %v7186 = vpop.permute.xlu0 %7185
  %7187 = vrot.lane.b32.xlu0 %v7165, 17
  %v7188 = vpop.permute.xlu0 %7187
  %7189 = vrot.lane.b32.xlu0 %v7166, 17
  %v7190 = vpop.permute.xlu0 %7189
  %v7191 = vsel %vm307, %v7176, %v7178
  %v7192 = vsel %vm307, %v7178, %v7180
  %v7193 = vsel %vm307, %v7180, %v7182
  %v7194 = vsel %vm307, %v7184, %v7186
  %v7195 = vsel %vm307, %v7186, %v7188
  %v7196 = vsel %vm307, %v7188, %v7190
  %v7207 = vmul.f32 %v7149, %v7176
  %v7208 = vmul.f32 %v7150, %v7191
  %v7209 = vmul.f32 %v7151, %v7192
  %v7210 = vmul.f32 %v7152, %v7193
  %v7211 = vmul.f32 %v7153, %v7182
  %v7212 = vmul.f32 %v7154, %v7184
  %v7213 = vmul.f32 %v7155, %v7194
  %v7214 = vmul.f32 %v7156, %v7195
  %v7215 = vmul.f32 %v7157, %v7196
  %v7216 = vmul.f32 %v7158, %v7190
  %7227 = vrot.lane.b32.xlu0 %v7207, 111
  %v7228 = vpop.permute.xlu0 %7227
  %7229 = vrot.lane.b32.xlu0 %v7208, 111
  %v7230 = vpop.permute.xlu0 %7229
  %7231 = vrot.lane.b32.xlu0 %v7209, 111
  %v7232 = vpop.permute.xlu0 %7231
  %7233 = vrot.lane.b32.xlu0 %v7210, 111
  %v7234 = vpop.permute.xlu0 %7233
  %7235 = vrot.lane.b32.xlu0 %v7211, 111
  %v7236 = vpop.permute.xlu0 %7235
  %7237 = vrot.lane.b32.xlu0 %v7212, 111
  %v7238 = vpop.permute.xlu0 %7237
  %7239 = vrot.lane.b32.xlu0 %v7213, 111
  %v7240 = vpop.permute.xlu0 %7239
  %7241 = vrot.lane.b32.xlu0 %v7214, 111
  %v7242 = vpop.permute.xlu0 %7241
  %7243 = vrot.lane.b32.xlu0 %v7215, 111
  %v7244 = vpop.permute.xlu0 %7243
  %7245 = vrot.lane.b32.xlu0 %v7216, 111
  %v7246 = vpop.permute.xlu0 %7245
  %v7247 = vsel %vm278, %v7228, %v7230
  %v7248 = vsel %vm278, %v7230, %v7232
  %v7249 = vsel %vm278, %v7232, %v7234
  %v7250 = vsel %vm278, %v7234, %v7236
  %v7251 = vsel %vm278, %v7238, %v7240
  %v7252 = vsel %vm278, %v7240, %v7242
  %v7253 = vsel %vm278, %v7242, %v7244
  %v7254 = vsel %vm278, %v7244, %v7246
  %7263 = vst [vmem:[#allocation3 + $0x200] sm:$0xff] %v7247
  %7264 = vst [vmem:[#allocation3 + $0x208] sm:$0xff] %v7248
  %7265 = vst [vmem:[#allocation3 + $0x210] sm:$0xff] %v7249
  %7266 = vst [vmem:[#allocation3 + $0x218] sm:$0xff] %v7250
  %7267 = vst [vmem:[#allocation3 + $0x220] sm:$0xff] %v7251
  %7268 = vst [vmem:[#allocation3 + $0x228] sm:$0xff] %v7252
  %7269 = vst [vmem:[#allocation3 + $0x230] sm:$0xff] %v7253
  %7270 = vst [vmem:[#allocation3 + $0x238] sm:$0xff] %v7254
  %v7271 = vld [vmem:[#allocation3] sm:$0xff]
  %v7272 = vld [vmem:[#allocation3 + $0x8] sm:$0xff]
  %v7273 = vld [vmem:[#allocation3 + $0x10] sm:$0xff]
  %v7274 = vld [vmem:[#allocation3 + $0x18] sm:$0xff]
  %v7275 = vld [vmem:[#allocation3 + $0x20] sm:$0xff]
  %v7276 = vld [vmem:[#allocation3 + $0x28] sm:$0xff]
  %v7277 = vld [vmem:[#allocation3 + $0x30] sm:$0xff]
  %v7278 = vld [vmem:[#allocation3 + $0x38] sm:$0xff]
  %v7279 = vld [vmem:[#allocation3 + $0x40] sm:$0xff]
  %v7280 = vld [vmem:[#allocation3 + $0x48] sm:$0xff]
  %v7281 = vld [vmem:[#allocation3 + $0x50] sm:$0xff]
  %v7282 = vld [vmem:[#allocation3 + $0x58] sm:$0xff]
  %v7283 = vld [vmem:[#allocation3 + $0x60] sm:$0xff]
  %v7284 = vld [vmem:[#allocation3 + $0x68] sm:$0xff]
  %v7285 = vld [vmem:[#allocation3 + $0x70] sm:$0xff]
  %v7286 = vld [vmem:[#allocation3 + $0x78] sm:$0xff]
  %v7287 = vld [vmem:[#allocation3 + $0x80] sm:$0xff]
  %v7288 = vld [vmem:[#allocation3 + $0x88] sm:$0xff]
  %v7289 = vld [vmem:[#allocation3 + $0x90] sm:$0xff]
  %v7290 = vld [vmem:[#allocation3 + $0x98] sm:$0xff]
  %v7291 = vld [vmem:[#allocation3 + $0xa0] sm:$0xff]
  %v7292 = vld [vmem:[#allocation3 + $0xa8] sm:$0xff]
  %v7293 = vld [vmem:[#allocation3 + $0xb0] sm:$0xff]
  %v7294 = vld [vmem:[#allocation3 + $0xb8] sm:$0xff]
  %v7295 = vld [vmem:[#allocation3 + $0xc0] sm:$0xff]
  %v7296 = vld [vmem:[#allocation3 + $0xc8] sm:$0xff]
  %v7297 = vld [vmem:[#allocation3 + $0xd0] sm:$0xff]
  %v7298 = vld [vmem:[#allocation3 + $0xd8] sm:$0xff]
  %v7299 = vld [vmem:[#allocation3 + $0xe0] sm:$0xff]
  %v7300 = vld [vmem:[#allocation3 + $0xe8] sm:$0xff]
  %v7301 = vld [vmem:[#allocation3 + $0xf0] sm:$0xff]
  %v7302 = vld [vmem:[#allocation3 + $0xf8] sm:$0xff]
  %v7303 = vld [vmem:[#allocation3 + $0x100] sm:$0xff]
  %v7304 = vld [vmem:[#allocation3 + $0x108] sm:$0xff]
  %v7305 = vld [vmem:[#allocation3 + $0x110] sm:$0xff]
  %v7306 = vld [vmem:[#allocation3 + $0x118] sm:$0xff]
  %v7307 = vld [vmem:[#allocation3 + $0x120] sm:$0xff]
  %v7308 = vld [vmem:[#allocation3 + $0x128] sm:$0xff]
  %v7309 = vld [vmem:[#allocation3 + $0x130] sm:$0xff]
  %v7310 = vld [vmem:[#allocation3 + $0x138] sm:$0xff]
  %v7311 = vld [vmem:[#allocation3 + $0x140] sm:$0xff]
  %v7312 = vld [vmem:[#allocation3 + $0x148] sm:$0xff]
  %v7313 = vld [vmem:[#allocation3 + $0x150] sm:$0xff]
  %v7314 = vld [vmem:[#allocation3 + $0x158] sm:$0xff]
  %v7315 = vld [vmem:[#allocation3 + $0x160] sm:$0xff]
  %v7316 = vld [vmem:[#allocation3 + $0x168] sm:$0xff]
  %v7317 = vld [vmem:[#allocation3 + $0x170] sm:$0xff]
  %v7318 = vld [vmem:[#allocation3 + $0x178] sm:$0xff]
  %v7319 = vld [vmem:[#allocation3 + $0x180] sm:$0xff]
  %v7320 = vld [vmem:[#allocation3 + $0x188] sm:$0xff]
  %v7321 = vld [vmem:[#allocation3 + $0x190] sm:$0xff]
  %v7322 = vld [vmem:[#allocation3 + $0x198] sm:$0xff]
  %v7323 = vld [vmem:[#allocation3 + $0x1a0] sm:$0xff]
  %v7324 = vld [vmem:[#allocation3 + $0x1a8] sm:$0xff]
  %v7325 = vld [vmem:[#allocation3 + $0x1b0] sm:$0xff]
  %v7326 = vld [vmem:[#allocation3 + $0x1b8] sm:$0xff]
  %v7327 = vld [vmem:[#allocation3 + $0x1c0] sm:$0xff]
  %v7328 = vld [vmem:[#allocation3 + $0x1c8] sm:$0xff]
  %v7329 = vld [vmem:[#allocation3 + $0x1d0] sm:$0xff]
  %v7330 = vld [vmem:[#allocation3 + $0x1d8] sm:$0xff]
  %v7331 = vld [vmem:[#allocation3 + $0x1e0] sm:$0xff]
  %v7332 = vld [vmem:[#allocation3 + $0x1e8] sm:$0xff]
  %v7333 = vld [vmem:[#allocation3 + $0x1f0] sm:$0xff]
  %v7334 = vld [vmem:[#allocation3 + $0x1f8] sm:$0xff]
  %v7335 = vld [vmem:[#allocation3 + $0x200] sm:$0xff]
  %v7336 = vld [vmem:[#allocation3 + $0x208] sm:$0xff]
  %v7337 = vld [vmem:[#allocation3 + $0x210] sm:$0xff]
  %v7338 = vld [vmem:[#allocation3 + $0x218] sm:$0xff]
  %v7339 = vld [vmem:[#allocation3 + $0x220] sm:$0xff]
  %v7340 = vld [vmem:[#allocation3 + $0x228] sm:$0xff]
  %v7341 = vld [vmem:[#allocation3 + $0x230] sm:$0xff]
  %v7342 = vld [vmem:[#allocation3 + $0x238] sm:$0xff]
  %7344 = vset.pattern.permute.xlu0 0
  %7345 = vperm.xlu0 %7344, %v6254
  %v7346 = vpop.permute.xlu0 %7345
  %v7349 = vsel %vm370, %v6253, 0
  %7351 = vmatprep.subr.mxu0 %v7272
  %7352 = vmatpush1.msra.mxu0 %v7271
  %7353 = vmatprep.subr.mxu0 %v7276
  %7354 = vmatpush1.msra.mxu0 %v7275
  %7355 = vmatprep.subr.mxu0 %v7280
  %7356 = vmatpush1.msra.mxu0 %v7279
  %7357 = vmatprep.subr.mxu0 %v7284
  %7358 = vmatpush1.msra.mxu0 %v7283
  %7359 = vmatprep.subr.mxu0 %v7288
  %7360 = vmatpush1.msra.mxu0 %v7287
  %7361 = vmatprep.subr.mxu0 %v7292
  %7362 = vmatpush1.msra.mxu0 %v7291
  %7363 = vmatprep.subr.mxu0 %v7296
  %7364 = vmatpush1.msra.mxu0 %v7295
  %7365 = vmatprep.subr.mxu0 %v7300
  %7366 = vmatpush1.msra.mxu0 %v7299
  %7367 = vmatprep.subr.mxu0 %v7304
  %7368 = vmatpush1.msra.mxu0 %v7303
  %7369 = vmatprep.subr.mxu0 %v7308
  %7370 = vmatpush1.msra.mxu0 %v7307
  %7371 = vmatprep.subr.mxu0 %v7312
  %7372 = vmatpush1.msra.mxu0 %v7311
  %7373 = vmatprep.subr.mxu0 %v7316
  %7374 = vmatpush1.msra.mxu0 %v7315
  %7375 = vmatprep.subr.mxu0 %v7320
  %7376 = vmatpush1.msra.mxu0 %v7319
  %7377 = vmatprep.subr.mxu0 %v7324
  %7378 = vmatpush1.msra.mxu0 %v7323
  %7379 = vmatprep.subr.mxu0 %v7328
  %7380 = vmatpush1.msra.mxu0 %v7327
  %7381 = vmatprep.subr.mxu0 %v7332
  %7382 = vmatpush1.msra.mxu0 %v7331
  %7383 = vmatprep.subr.mxu0 %v7336
  %7384 = vmatpush1.msra.mxu0 %v7335
  %7385 = vmatprep.subr.mxu0 %v7340
  %7386 = vmatpush1.msra.mxu0 %v7339
  %7387 = vmatprep.subr.mxu0 0.0
  %7388 = vmatpush1.msra.mxu0 0.0
  %7389 = vmatprep.subr.mxu0 0.0
  %7390 = vmatpush1.msra.mxu0 0.0
  %7391 = vmatprep.subr.mxu0 0.0
  %7392 = vmatpush1.msra.mxu0 0.0
  %7393 = vmatprep.subr.mxu0 0.0
  %7394 = vmatpush1.msra.mxu0 0.0
  %7395 = vmatprep.subr.mxu0 0.0
  %7396 = vmatpush1.msra.mxu0 0.0
  %7397 = vmatprep.subr.mxu0 0.0
  %7398 = vmatpush1.msra.mxu0 0.0
  %7399 = vmatprep.subr.mxu0 0.0
  %7400 = vmatpush1.msra.mxu0 0.0
  %7401 = vmatprep.subr.mxu0 0.0
  %7402 = vmatpush1.msra.mxu0 0.0
  %7403 = vmatprep.subr.mxu0 0.0
  %7404 = vmatpush1.msra.mxu0 0.0
  %7405 = vmatprep.subr.mxu0 0.0
  %7406 = vmatpush1.msra.mxu0 0.0
  %7407 = vmatprep.subr.mxu0 0.0
  %7408 = vmatpush1.msra.mxu0 0.0
  %7409 = vmatprep.subr.mxu0 0.0
  %7410 = vmatpush1.msra.mxu0 0.0
  %7411 = vmatprep.subr.mxu0 0.0
  %7412 = vmatpush1.msra.mxu0 0.0
  %7413 = vmatprep.subr.mxu0 0.0
  %7414 = vmatpush1.msra.mxu0 0.0
  %7415 = vmatprep.mubr.f32.mxu0 %v7349
  %7416 = vmatmul.mubr.f32.gmra.mrb[0].mxu0 %v6252
  %v7417 = vpop.f32.mrb[0].mxu0
  %v7418 = vadd.f32 %v7346, %v7417
  %v7419 = vpop.f32.mrb[0].mxu0
  %v7420 = vadd.f32 %v7346, %v7419
  %7421 = vdwg.mxu0
  %7422 = vmatprep.subr.mxu0 %v7274
  %7423 = vmatpush1.msra.mxu0 %v7273
  %7424 = vmatprep.subr.mxu0 %v7278
  %7425 = vmatpush1.msra.mxu0 %v7277
  %7426 = vmatprep.subr.mxu0 %v7282
  %7427 = vmatpush1.msra.mxu0 %v7281
  %7428 = vmatprep.subr.mxu0 %v7286
  %7429 = vmatpush1.msra.mxu0 %v7285
  %7430 = vmatprep.subr.mxu0 %v7290
  %7431 = vmatpush1.msra.mxu0 %v7289
  %7432 = vmatprep.subr.mxu0 %v7294
  %7433 = vmatpush1.msra.mxu0 %v7293
  %7434 = vmatprep.subr.mxu0 %v7298
  %7435 = vmatpush1.msra.mxu0 %v7297
  %7436 = vmatprep.subr.mxu0 %v7302
  %7437 = vmatpush1.msra.mxu0 %v7301
  %7438 = vmatprep.subr.mxu0 %v7306
  %7439 = vmatpush1.msra.mxu0 %v7305
  %7440 = vmatprep.subr.mxu0 %v7310
  %7441 = vmatpush1.msra.mxu0 %v7309
  %7442 = vmatprep.subr.mxu0 %v7314
  %7443 = vmatpush1.msra.mxu0 %v7313
  %7444 = vmatprep.subr.mxu0 %v7318
  %7445 = vmatpush1.msra.mxu0 %v7317
  %7446 = vmatprep.subr.mxu0 %v7322
  %7447 = vmatpush1.msra.mxu0 %v7321
  %7448 = vmatprep.subr.mxu0 %v7326
  %7449 = vmatpush1.msra.mxu0 %v7325
  %7450 = vmatprep.subr.mxu0 %v7330
  %7451 = vmatpush1.msra.mxu0 %v7329
  %7452 = vmatprep.subr.mxu0 %v7334
  %7453 = vmatpush1.msra.mxu0 %v7333
  %7454 = vmatprep.subr.mxu0 %v7338
  %7455 = vmatpush1.msra.mxu0 %v7337
  %7456 = vmatprep.subr.mxu0 %v7342
  %7457 = vmatpush1.msra.mxu0 %v7341
  %7458 = vmatprep.subr.mxu0 0.0
  %7459 = vmatpush1.msra.mxu0 0.0
  %7460 = vmatprep.subr.mxu0 0.0
  %7461 = vmatpush1.msra.mxu0 0.0
  %7462 = vmatprep.subr.mxu0 0.0
  %7463 = vmatpush1.msra.mxu0 0.0
  %7464 = vmatprep.subr.mxu0 0.0
  %7465 = vmatpush1.msra.mxu0 0.0
  %7466 = vmatprep.subr.mxu0 0.0
  %7467 = vmatpush1.msra.mxu0 0.0
  %7468 = vmatprep.subr.mxu0 0.0
  %7469 = vmatpush1.msra.mxu0 0.0
  %7470 = vmatprep.subr.mxu0 0.0
  %7471 = vmatpush1.msra.mxu0 0.0
  %7472 = vmatprep.subr.mxu0 0.0
  %7473 = vmatpush1.msra.mxu0 0.0
  %7474 = vmatprep.subr.mxu0 0.0
  %7475 = vmatpush1.msra.mxu0 0.0
  %7476 = vmatprep.subr.mxu0 0.0
  %7477 = vmatpush1.msra.mxu0 0.0
  %7478 = vmatprep.subr.mxu0 0.0
  %7479 = vmatpush1.msra.mxu0 0.0
  %7480 = vmatprep.subr.mxu0 0.0
  %7481 = vmatpush1.msra.mxu0 0.0
  %7482 = vmatprep.subr.mxu0 0.0
  %7483 = vmatpush1.msra.mxu0 0.0
  %7484 = vmatprep.subr.mxu0 0.0
  %7485 = vmatpush1.msra.mxu0 0.0
  %7486 = vmatprep.mubr.f32.mxu0 %v7349
  %7487 = vmatmul.mubr.f32.gmra.mrb[0].mxu0 %v6252
  %v7488 = vpop.f32.mrb[0].mxu0
  %v7489 = vadd.f32 %v7346, %v7488
  %v7490 = vpop.f32.mrb[0].mxu0
  %v7491 = vadd.f32 %v7346, %v7490
  %7492 = vdwg.mxu0
  %v7493 = vmax.f32 %v7418, 0.0
  %v7494 = vmax.f32 %v7420, 0.0
  %v7495 = vmax.f32 %v7489, 0.0
  %v7496 = vmax.f32 %v7491, 0.0
  %v7497 = vld [vmem:[%s16] sm:$0xff]
  %v7498 = vld [vmem:[%s17] sm:$0xff]
  %v7499 = vadd.f32 %v7493, %v7494
  %v7500 = vadd.f32 %v7499, %v7495
  %v7501 = vadd.f32 %v7500, %v7496
  %7502 = vadd.xlane.f32.xlu0 %v7501
  %v7503 = vpop.xlane.xlu0 %7502
  %v7504 = vmul.f32 %v7503, 0.001953125
  %v7505 = vmul.f32 %v7493, %v7493
  %v7506 = vmul.f32 %v7494, %v7494
  %v7507 = vmul.f32 %v7495, %v7495
  %v7508 = vmul.f32 %v7496, %v7496
  %v7509 = vadd.f32 %v7505, %v7506
  %v7510 = vadd.f32 %v7509, %v7507
  %v7511 = vadd.f32 %v7510, %v7508
  %7512 = vadd.xlane.f32.xlu0 %v7511
  %v7513 = vpop.xlane.xlu0 %7512
  %v7514 = vmul.f32 %v7513, 0.001953125
  %v7515 = vmul.f32 %v7504, %v7504
  %v7516 = vsub.f32 %v7514, %v7515
  %v7517 = vadd.f32 %v7516, 1e-05
  %v7518 = vrsqrt.pop %v7517
  %v7519 = vmul.f32 %v7518, %v7497
  %7521 = vset.pattern.permute.xlu0 0
  %7522 = vperm.xlu0 %7521, %v7519
  %v7523 = vpop.permute.xlu0 %7522
  %v7525 = vmul.f32 %v7493, %v7523
  %v7526 = vmul.f32 %v7494, %v7523
  %v7527 = vmul.f32 %v7495, %v7523
  %v7528 = vmul.f32 %v7496, %v7523
  %v7529 = vmul.f32 %v7504, %v7519
  %v7530 = vsub.f32 %v7498, %v7529
  %7532 = vset.pattern.permute.xlu0 0
  %7533 = vperm.xlu0 %7532, %v7530
  %v7534 = vpop.permute.xlu0 %7533
  %v7536 = vadd.f32 %v7525, %v7534
  %v7537 = vadd.f32 %v7526, %v7534
  %v7538 = vadd.f32 %v7527, %v7534
  %v7539 = vadd.f32 %v7528, %v7534
  %s7540 = scalar_lea.vmem %s14, 16
  %v7541 = vld [vmem:[%s7540] sm:$0xff]
  %v7542 = vld [vmem:[%s7540 + $0x8] sm:$0xff]
  %s7543 = scalar_lea.vmem %s15, 8
  %v7544 = vld [vmem:[%s7543] sm:$0xff]
  %7545 = vst [vmem:[#allocation4 + $0x8] sm:$0xff] %v6244
  %7546 = vst [vmem:[#allocation4 + $0x10] sm:$0xff] %v6245
  %7547 = vst [vmem:[#allocation4 + $0x18] sm:$0xff] %v6246
  %7548 = vst [vmem:[#allocation4 + $0x20] sm:$0xff] %v6247
  %7549 = vst [vmem:[#allocation4 + $0x38] sm:$0xff] %v6248
  %7550 = vst [vmem:[#allocation4 + $0x40] sm:$0xff] %v6249
  %7551 = vst [vmem:[#allocation4 + $0x48] sm:$0xff] %v6250
  %7552 = vst [vmem:[#allocation4 + $0x50] sm:$0xff] %v6251
  %v7553 = vld [vmem:[#allocation4] sm:$0xff]
  %v7554 = vld [vmem:[#allocation4 + $0x8] sm:$0xff]
  %v7555 = vld [vmem:[#allocation4 + $0x10] sm:$0xff]
  %v7556 = vld [vmem:[#allocation4 + $0x18] sm:$0xff]
  %v7557 = vld [vmem:[#allocation4 + $0x20] sm:$0xff]
  %v7558 = vld [vmem:[#allocation4 + $0x30] sm:$0xff]
  %v7559 = vld [vmem:[#allocation4 + $0x38] sm:$0xff]
  %v7560 = vld [vmem:[#allocation4 + $0x40] sm:$0xff]
  %v7561 = vld [vmem:[#allocation4 + $0x48] sm:$0xff]
  %v7562 = vld [vmem:[#allocation4 + $0x50] sm:$0xff]
  %v7563 = vld [vmem:[%s0] sm:$0xff]
  %v7564 = vld [vmem:[%s0 + $0x8] sm:$0xff]
  %v7565 = vld [vmem:[%s0 + $0x10] sm:$0xff]
  %v7566 = vld [vmem:[%s0 + $0x18] sm:$0xff]
  %v7567 = vld [vmem:[%s0 + $0x20] sm:$0xff]
  %v7568 = vld [vmem:[%s0 + $0x28] sm:$0xff]
  %v7569 = vld [vmem:[%s0 + $0x30] sm:$0xff]
  %v7570 = vld [vmem:[%s0 + $0x38] sm:$0xff]
  %7579 = vrot.lane.b32.xlu0 %v7563, 111
  %v7580 = vpop.permute.xlu0 %7579
  %7581 = vrot.lane.b32.xlu0 %v7564, 111
  %v7582 = vpop.permute.xlu0 %7581
  %7583 = vrot.lane.b32.xlu0 %v7565, 111
  %v7584 = vpop.permute.xlu0 %7583
  %7585 = vrot.lane.b32.xlu0 %v7566, 111
  %v7586 = vpop.permute.xlu0 %7585
  %7587 = vrot.lane.b32.xlu0 %v7567, 111
  %v7588 = vpop.permute.xlu0 %7587
  %7589 = vrot.lane.b32.xlu0 %v7568, 111
  %v7590 = vpop.permute.xlu0 %7589
  %7591 = vrot.lane.b32.xlu0 %v7569, 111
  %v7592 = vpop.permute.xlu0 %7591
  %7593 = vrot.lane.b32.xlu0 %v7570, 111
  %v7594 = vpop.permute.xlu0 %7593
  %v7595 = vsel %vm278, %v7580, %v7582
  %v7596 = vsel %vm278, %v7582, %v7584
  %v7597 = vsel %vm278, %v7584, %v7586
  %v7598 = vsel %vm278, %v7588, %v7590
  %v7599 = vsel %vm278, %v7590, %v7592
  %v7600 = vsel %vm278, %v7592, %v7594
  %v7611 = vmul.f32 %v7553, %v7580
  %v7612 = vmul.f32 %v7554, %v7595
  %v7613 = vmul.f32 %v7555, %v7596
  %v7614 = vmul.f32 %v7556, %v7597
  %v7615 = vmul.f32 %v7557, %v7586
  %v7616 = vmul.f32 %v7558, %v7588
  %v7617 = vmul.f32 %v7559, %v7598
  %v7618 = vmul.f32 %v7560, %v7599
  %v7619 = vmul.f32 %v7561, %v7600
  %v7620 = vmul.f32 %v7562, %v7594
  %7631 = vrot.lane.b32.xlu0 %v7611, 17
  %v7632 = vpop.permute.xlu0 %7631
  %7633 = vrot.lane.b32.xlu0 %v7612, 17
  %v7634 = vpop.permute.xlu0 %7633
  %7635 = vrot.lane.b32.xlu0 %v7613, 17
  %v7636 = vpop.permute.xlu0 %7635
  %7637 = vrot.lane.b32.xlu0 %v7614, 17
  %v7638 = vpop.permute.xlu0 %7637
  %7639 = vrot.lane.b32.xlu0 %v7615, 17
  %v7640 = vpop.permute.xlu0 %7639
  %7641 = vrot.lane.b32.xlu0 %v7616, 17
  %v7642 = vpop.permute.xlu0 %7641
  %7643 = vrot.lane.b32.xlu0 %v7617, 17
  %v7644 = vpop.permute.xlu0 %7643
  %7645 = vrot.lane.b32.xlu0 %v7618, 17
  %v7646 = vpop.permute.xlu0 %7645
  %7647 = vrot.lane.b32.xlu0 %v7619, 17
  %v7648 = vpop.permute.xlu0 %7647
  %7649 = vrot.lane.b32.xlu0 %v7620, 17
  %v7650 = vpop.permute.xlu0 %7649
  %v7651 = vsel %vm307, %v7632, %v7634
  %v7652 = vsel %vm307, %v7634, %v7636
  %v7653 = vsel %vm307, %v7636, %v7638
  %v7654 = vsel %vm307, %v7638, %v7640
  %v7655 = vsel %vm307, %v7642, %v7644
  %v7656 = vsel %vm307, %v7644, %v7646
  %v7657 = vsel %vm307, %v7646, %v7648
  %v7658 = vsel %vm307, %v7648, %v7650
  %7667 = vst [vmem:[#allocation5] sm:$0xff] %v7651
  %7668 = vst [vmem:[#allocation5 + $0x8] sm:$0xff] %v7652
  %7669 = vst [vmem:[#allocation5 + $0x10] sm:$0xff] %v7653
  %7670 = vst [vmem:[#allocation5 + $0x18] sm:$0xff] %v7654
  %7671 = vst [vmem:[#allocation5 + $0x20] sm:$0xff] %v7655
  %7672 = vst [vmem:[#allocation5 + $0x28] sm:$0xff] %v7656
  %7673 = vst [vmem:[#allocation5 + $0x30] sm:$0xff] %v7657
  %7674 = vst [vmem:[#allocation5 + $0x38] sm:$0xff] %v7658
  %v7675 = vld [vmem:[#allocation4] sm:$0xff]
  %v7676 = vld [vmem:[#allocation4 + $0x8] sm:$0xff]
  %v7677 = vld [vmem:[#allocation4 + $0x10] sm:$0xff]
  %v7678 = vld [vmem:[#allocation4 + $0x18] sm:$0xff]
  %v7679 = vld [vmem:[#allocation4 + $0x20] sm:$0xff]
  %v7680 = vld [vmem:[#allocation4 + $0x30] sm:$0xff]
  %v7681 = vld [vmem:[#allocation4 + $0x38] sm:$0xff]
  %v7682 = vld [vmem:[#allocation4 + $0x40] sm:$0xff]
  %v7683 = vld [vmem:[#allocation4 + $0x48] sm:$0xff]
  %v7684 = vld [vmem:[#allocation4 + $0x50] sm:$0xff]
  %v7685 = vld [vmem:[%s0 + $0x40] sm:$0xff]
  %v7686 = vld [vmem:[%s0 + $0x48] sm:$0xff]
  %v7687 = vld [vmem:[%s0 + $0x50] sm:$0xff]
  %v7688 = vld [vmem:[%s0 + $0x58] sm:$0xff]
  %v7689 = vld [vmem:[%s0 + $0x60] sm:$0xff]
  %v7690 = vld [vmem:[%s0 + $0x68] sm:$0xff]
  %v7691 = vld [vmem:[%s0 + $0x70] sm:$0xff]
  %v7692 = vld [vmem:[%s0 + $0x78] sm:$0xff]
  %7701 = vrot.lane.b32.xlu0 %v7685, 112
  %v7702 = vpop.permute.xlu0 %7701
  %7703 = vrot.lane.b32.xlu0 %v7686, 112
  %v7704 = vpop.permute.xlu0 %7703
  %7705 = vrot.lane.b32.xlu0 %v7687, 112
  %v7706 = vpop.permute.xlu0 %7705
  %7707 = vrot.lane.b32.xlu0 %v7688, 112
  %v7708 = vpop.permute.xlu0 %7707
  %7709 = vrot.lane.b32.xlu0 %v7689, 112
  %v7710 = vpop.permute.xlu0 %7709
  %7711 = vrot.lane.b32.xlu0 %v7690, 112
  %v7712 = vpop.permute.xlu0 %7711
  %7713 = vrot.lane.b32.xlu0 %v7691, 112
  %v7714 = vpop.permute.xlu0 %7713
  %7715 = vrot.lane.b32.xlu0 %v7692, 112
  %v7716 = vpop.permute.xlu0 %7715
  %v7717 = vsel %vm341, %v7702, %v7704
  %v7718 = vsel %vm341, %v7704, %v7706
  %v7719 = vsel %vm341, %v7706, %v7708
  %v7720 = vsel %vm341, %v7710, %v7712
  %v7721 = vsel %vm341, %v7712, %v7714
  %v7722 = vsel %vm341, %v7714, %v7716
  %v7733 = vmul.f32 %v7675, %v7702
  %v7734 = vmul.f32 %v7676, %v7717
  %v7735 = vmul.f32 %v7677, %v7718
  %v7736 = vmul.f32 %v7678, %v7719
  %v7737 = vmul.f32 %v7679, %v7708
  %v7738 = vmul.f32 %v7680, %v7710
  %v7739 = vmul.f32 %v7681, %v7720
  %v7740 = vmul.f32 %v7682, %v7721
  %v7741 = vmul.f32 %v7683, %v7722
  %v7742 = vmul.f32 %v7684, %v7716
  %7753 = vrot.lane.b32.xlu0 %v7733, 16
  %v7754 = vpop.permute.xlu0 %7753
  %7755 = vrot.lane.b32.xlu0 %v7734, 16
  %v7756 = vpop.permute.xlu0 %7755
  %7757 = vrot.lane.b32.xlu0 %v7735, 16
  %v7758 = vpop.permute.xlu0 %7757
  %7759 = vrot.lane.b32.xlu0 %v7736, 16
  %v7760 = vpop.permute.xlu0 %7759
  %7761 = vrot.lane.b32.xlu0 %v7737, 16
  %v7762 = vpop.permute.xlu0 %7761
  %7763 = vrot.lane.b32.xlu0 %v7738, 16
  %v7764 = vpop.permute.xlu0 %7763
  %7765 = vrot.lane.b32.xlu0 %v7739, 16
  %v7766 = vpop.permute.xlu0 %7765
  %7767 = vrot.lane.b32.xlu0 %v7740, 16
  %v7768 = vpop.permute.xlu0 %7767
  %7769 = vrot.lane.b32.xlu0 %v7741, 16
  %v7770 = vpop.permute.xlu0 %7769
  %7771 = vrot.lane.b32.xlu0 %v7742, 16
  %v7772 = vpop.permute.xlu0 %7771
  %v7773 = vsel %vm370, %v7754, %v7756
  %v7774 = vsel %vm370, %v7756, %v7758
  %v7775 = vsel %vm370, %v7758, %v7760
  %v7776 = vsel %vm370, %v7760, %v7762
  %v7777 = vsel %vm370, %v7764, %v7766
  %v7778 = vsel %vm370, %v7766, %v7768
  %v7779 = vsel %vm370, %v7768, %v7770
  %v7780 = vsel %vm370, %v7770, %v7772
  %7789 = vst [vmem:[#allocation5 + $0x40] sm:$0xff] %v7773
  %7790 = vst [vmem:[#allocation5 + $0x48] sm:$0xff] %v7774
  %7791 = vst [vmem:[#allocation5 + $0x50] sm:$0xff] %v7775
  %7792 = vst [vmem:[#allocation5 + $0x58] sm:$0xff] %v7776
  %7793 = vst [vmem:[#allocation5 + $0x60] sm:$0xff] %v7777
  %7794 = vst [vmem:[#allocation5 + $0x68] sm:$0xff] %v7778
  %7795 = vst [vmem:[#allocation5 + $0x70] sm:$0xff] %v7779
  %7796 = vst [vmem:[#allocation5 + $0x78] sm:$0xff] %v7780
  %v7797 = vld [vmem:[#allocation4] sm:$0xff]
  %v7798 = vld [vmem:[#allocation4 + $0x8] sm:$0xff]
  %v7799 = vld [vmem:[#allocation4 + $0x10] sm:$0xff]
  %v7800 = vld [vmem:[#allocation4 + $0x18] sm:$0xff]
  %v7801 = vld [vmem:[#allocation4 + $0x20] sm:$0xff]
  %v7802 = vld [vmem:[#allocation4 + $0x30] sm:$0xff]
  %v7803 = vld [vmem:[#allocation4 + $0x38] sm:$0xff]
  %v7804 = vld [vmem:[#allocation4 + $0x40] sm:$0xff]
  %v7805 = vld [vmem:[#allocation4 + $0x48] sm:$0xff]
  %v7806 = vld [vmem:[#allocation4 + $0x50] sm:$0xff]
  %v7807 = vld [vmem:[%s0 + $0x80] sm:$0xff]
  %v7808 = vld [vmem:[%s0 + $0x88] sm:$0xff]
  %v7809 = vld [vmem:[%s0 + $0x90] sm:$0xff]
  %v7810 = vld [vmem:[%s0 + $0x98] sm:$0xff]
  %v7811 = vld [vmem:[%s0 + $0xa0] sm:$0xff]
  %v7812 = vld [vmem:[%s0 + $0xa8] sm:$0xff]
  %v7813 = vld [vmem:[%s0 + $0xb0] sm:$0xff]
  %v7814 = vld [vmem:[%s0 + $0xb8] sm:$0xff]
  %7823 = vrot.lane.b32.xlu0 %v7807, 113
  %v7824 = vpop.permute.xlu0 %7823
  %7825 = vrot.lane.b32.xlu0 %v7808, 113
  %v7826 = vpop.permute.xlu0 %7825
  %7827 = vrot.lane.b32.xlu0 %v7809, 113
  %v7828 = vpop.permute.xlu0 %7827
  %7829 = vrot.lane.b32.xlu0 %v7810, 113
  %v7830 = vpop.permute.xlu0 %7829
  %7831 = vrot.lane.b32.xlu0 %v7811, 113
  %v7832 = vpop.permute.xlu0 %7831
  %7833 = vrot.lane.b32.xlu0 %v7812, 113
  %v7834 = vpop.permute.xlu0 %7833
  %7835 = vrot.lane.b32.xlu0 %v7813, 113
  %v7836 = vpop.permute.xlu0 %7835
  %7837 = vrot.lane.b32.xlu0 %v7814, 113
  %v7838 = vpop.permute.xlu0 %7837
  %v7839 = vsel %vm404, %v7824, %v7826
  %v7840 = vsel %vm404, %v7826, %v7828
  %v7841 = vsel %vm404, %v7828, %v7830
  %v7842 = vsel %vm404, %v7832, %v7834
  %v7843 = vsel %vm404, %v7834, %v7836
  %v7844 = vsel %vm404, %v7836, %v7838
  %v7855 = vmul.f32 %v7797, %v7824
  %v7856 = vmul.f32 %v7798, %v7839
  %v7857 = vmul.f32 %v7799, %v7840
  %v7858 = vmul.f32 %v7800, %v7841
  %v7859 = vmul.f32 %v7801, %v7830
  %v7860 = vmul.f32 %v7802, %v7832
  %v7861 = vmul.f32 %v7803, %v7842
  %v7862 = vmul.f32 %v7804, %v7843
  %v7863 = vmul.f32 %v7805, %v7844
  %v7864 = vmul.f32 %v7806, %v7838
  %7875 = vrot.lane.b32.xlu0 %v7855, 15
  %v7876 = vpop.permute.xlu0 %7875
  %7877 = vrot.lane.b32.xlu0 %v7856, 15
  %v7878 = vpop.permute.xlu0 %7877
  %7879 = vrot.lane.b32.xlu0 %v7857, 15
  %v7880 = vpop.permute.xlu0 %7879
  %7881 = vrot.lane.b32.xlu0 %v7858, 15
  %v7882 = vpop.permute.xlu0 %7881
  %7883 = vrot.lane.b32.xlu0 %v7859, 15
  %v7884 = vpop.permute.xlu0 %7883
  %7885 = vrot.lane.b32.xlu0 %v7860, 15
  %v7886 = vpop.permute.xlu0 %7885
  %7887 = vrot.lane.b32.xlu0 %v7861, 15
  %v7888 = vpop.permute.xlu0 %7887
  %7889 = vrot.lane.b32.xlu0 %v7862, 15
  %v7890 = vpop.permute.xlu0 %7889
  %7891 = vrot.lane.b32.xlu0 %v7863, 15
  %v7892 = vpop.permute.xlu0 %7891
  %7893 = vrot.lane.b32.xlu0 %v7864, 15
  %v7894 = vpop.permute.xlu0 %7893
  %v7895 = vsel %vm433, %v7876, %v7878
  %v7896 = vsel %vm433, %v7878, %v7880
  %v7897 = vsel %vm433, %v7880, %v7882
  %v7898 = vsel %vm433, %v7882, %v7884
  %v7899 = vsel %vm433, %v7886, %v7888
  %v7900 = vsel %vm433, %v7888, %v7890
  %v7901 = vsel %vm433, %v7890, %v7892
  %v7902 = vsel %vm433, %v7892, %v7894
  %7911 = vst [vmem:[#allocation5 + $0x80] sm:$0xff] %v7895
  %7912 = vst [vmem:[#allocation5 + $0x88] sm:$0xff] %v7896
  %7913 = vst [vmem:[#allocation5 + $0x90] sm:$0xff] %v7897
  %7914 = vst [vmem:[#allocation5 + $0x98] sm:$0xff] %v7898
  %7915 = vst [vmem:[#allocation5 + $0xa0] sm:$0xff] %v7899
  %7916 = vst [vmem:[#allocation5 + $0xa8] sm:$0xff] %v7900
  %7917 = vst [vmem:[#allocation5 + $0xb0] sm:$0xff] %v7901
  %7918 = vst [vmem:[#allocation5 + $0xb8] sm:$0xff] %v7902
  %v7919 = vld [vmem:[#allocation4] sm:$0xff]
  %v7920 = vld [vmem:[#allocation4 + $0x8] sm:$0xff]
  %v7921 = vld [vmem:[#allocation4 + $0x10] sm:$0xff]
  %v7922 = vld [vmem:[#allocation4 + $0x18] sm:$0xff]
  %v7923 = vld [vmem:[#allocation4 + $0x20] sm:$0xff]
  %v7924 = vld [vmem:[#allocation4 + $0x30] sm:$0xff]
  %v7925 = vld [vmem:[#allocation4 + $0x38] sm:$0xff]
  %v7926 = vld [vmem:[#allocation4 + $0x40] sm:$0xff]
  %v7927 = vld [vmem:[#allocation4 + $0x48] sm:$0xff]
  %v7928 = vld [vmem:[#allocation4 + $0x50] sm:$0xff]
  %v7929 = vld [vmem:[%s0 + $0xc0] sm:$0xff]
  %v7930 = vld [vmem:[%s0 + $0xc8] sm:$0xff]
  %v7931 = vld [vmem:[%s0 + $0xd0] sm:$0xff]
  %v7932 = vld [vmem:[%s0 + $0xd8] sm:$0xff]
  %v7933 = vld [vmem:[%s0 + $0xe0] sm:$0xff]
  %v7934 = vld [vmem:[%s0 + $0xe8] sm:$0xff]
  %v7935 = vld [vmem:[%s0 + $0xf0] sm:$0xff]
  %v7936 = vld [vmem:[%s0 + $0xf8] sm:$0xff]
  %7945 = vrot.lane.b32.xlu0 %v7929, 127
  %v7946 = vpop.permute.xlu0 %7945
  %7947 = vrot.lane.b32.xlu0 %v7930, 127
  %v7948 = vpop.permute.xlu0 %7947
  %7949 = vrot.lane.b32.xlu0 %v7931, 127
  %v7950 = vpop.permute.xlu0 %7949
  %7951 = vrot.lane.b32.xlu0 %v7932, 127
  %v7952 = vpop.permute.xlu0 %7951
  %7953 = vrot.lane.b32.xlu0 %v7933, 127
  %v7954 = vpop.permute.xlu0 %7953
  %7955 = vrot.lane.b32.xlu0 %v7934, 127
  %v7956 = vpop.permute.xlu0 %7955
  %7957 = vrot.lane.b32.xlu0 %v7935, 127
  %v7958 = vpop.permute.xlu0 %7957
  %7959 = vrot.lane.b32.xlu0 %v7936, 127
  %v7960 = vpop.permute.xlu0 %7959
  %v7961 = vsel %vm467, %v7946, %v7948
  %v7962 = vsel %vm467, %v7948, %v7950
  %v7963 = vsel %vm467, %v7950, %v7952
  %v7964 = vsel %vm467, %v7954, %v7956
  %v7965 = vsel %vm467, %v7956, %v7958
  %v7966 = vsel %vm467, %v7958, %v7960
  %v7977 = vmul.f32 %v7919, %v7946
  %v7978 = vmul.f32 %v7920, %v7961
  %v7979 = vmul.f32 %v7921, %v7962
  %v7980 = vmul.f32 %v7922, %v7963
  %v7981 = vmul.f32 %v7923, %v7952
  %v7982 = vmul.f32 %v7924, %v7954
  %v7983 = vmul.f32 %v7925, %v7964
  %v7984 = vmul.f32 %v7926, %v7965
  %v7985 = vmul.f32 %v7927, %v7966
  %v7986 = vmul.f32 %v7928, %v7960
  %7997 = vrot.lane.b32.xlu0 %v7977, 1
  %v7998 = vpop.permute.xlu0 %7997
  %7999 = vrot.lane.b32.xlu0 %v7978, 1
  %v8000 = vpop.permute.xlu0 %7999
  %8001 = vrot.lane.b32.xlu0 %v7979, 1
  %v8002 = vpop.permute.xlu0 %8001
  %8003 = vrot.lane.b32.xlu0 %v7980, 1
  %v8004 = vpop.permute.xlu0 %8003
  %8005 = vrot.lane.b32.xlu0 %v7981, 1
  %v8006 = vpop.permute.xlu0 %8005
  %8007 = vrot.lane.b32.xlu0 %v7982, 1
  %v8008 = vpop.permute.xlu0 %8007
  %8009 = vrot.lane.b32.xlu0 %v7983, 1
  %v8010 = vpop.permute.xlu0 %8009
  %8011 = vrot.lane.b32.xlu0 %v7984, 1
  %v8012 = vpop.permute.xlu0 %8011
  %8013 = vrot.lane.b32.xlu0 %v7985, 1
  %v8014 = vpop.permute.xlu0 %8013
  %8015 = vrot.lane.b32.xlu0 %v7986, 1
  %v8016 = vpop.permute.xlu0 %8015
  %v8017 = vsel %vm496, %v7998, %v8000
  %v8018 = vsel %vm496, %v8000, %v8002
  %v8019 = vsel %vm496, %v8002, %v8004
  %v8020 = vsel %vm496, %v8004, %v8006
  %v8021 = vsel %vm496, %v8008, %v8010
  %v8022 = vsel %vm496, %v8010, %v8012
  %v8023 = vsel %vm496, %v8012, %v8014
  %v8024 = vsel %vm496, %v8014, %v8016
  %8033 = vst [vmem:[#allocation5 + $0xc0] sm:$0xff] %v8017
  %8034 = vst [vmem:[#allocation5 + $0xc8] sm:$0xff] %v8018
  %8035 = vst [vmem:[#allocation5 + $0xd0] sm:$0xff] %v8019
  %8036 = vst [vmem:[#allocation5 + $0xd8] sm:$0xff] %v8020
  %8037 = vst [vmem:[#allocation5 + $0xe0] sm:$0xff] %v8021
  %8038 = vst [vmem:[#allocation5 + $0xe8] sm:$0xff] %v8022
  %8039 = vst [vmem:[#allocation5 + $0xf0] sm:$0xff] %v8023
  %8040 = vst [vmem:[#allocation5 + $0xf8] sm:$0xff] %v8024
  %v8041 = vld [vmem:[#allocation4 + $0x8] sm:$0xff]
  %v8042 = vld [vmem:[#allocation4 + $0x10] sm:$0xff]
  %v8043 = vld [vmem:[#allocation4 + $0x18] sm:$0xff]
  %v8044 = vld [vmem:[#allocation4 + $0x20] sm:$0xff]
  %v8045 = vld [vmem:[#allocation4 + $0x38] sm:$0xff]
  %v8046 = vld [vmem:[#allocation4 + $0x40] sm:$0xff]
  %v8047 = vld [vmem:[#allocation4 + $0x48] sm:$0xff]
  %v8048 = vld [vmem:[#allocation4 + $0x50] sm:$0xff]
  %v8049 = vld [vmem:[%s0 + $0x100] sm:$0xff]
  %v8050 = vld [vmem:[%s0 + $0x108] sm:$0xff]
  %v8051 = vld [vmem:[%s0 + $0x110] sm:$0xff]
  %v8052 = vld [vmem:[%s0 + $0x118] sm:$0xff]
  %v8053 = vld [vmem:[%s0 + $0x120] sm:$0xff]
  %v8054 = vld [vmem:[%s0 + $0x128] sm:$0xff]
  %v8055 = vld [vmem:[%s0 + $0x130] sm:$0xff]
  %v8056 = vld [vmem:[%s0 + $0x138] sm:$0xff]
  %v8057 = vmul.f32 %v8041, %v8049
  %v8058 = vmul.f32 %v8042, %v8050
  %v8059 = vmul.f32 %v8043, %v8051
  %v8060 = vmul.f32 %v8044, %v8052
  %v8061 = vmul.f32 %v8045, %v8053
  %v8062 = vmul.f32 %v8046, %v8054
  %v8063 = vmul.f32 %v8047, %v8055
  %v8064 = vmul.f32 %v8048, %v8056
  %8065 = vst [vmem:[#allocation5 + $0x100] sm:$0xff] %v8057
  %8066 = vst [vmem:[#allocation5 + $0x108] sm:$0xff] %v8058
  %8067 = vst [vmem:[#allocation5 + $0x110] sm:$0xff] %v8059
  %8068 = vst [vmem:[#allocation5 + $0x118] sm:$0xff] %v8060
  %8069 = vst [vmem:[#allocation5 + $0x120] sm:$0xff] %v8061
  %8070 = vst [vmem:[#allocation5 + $0x128] sm:$0xff] %v8062
  %8071 = vst [vmem:[#allocation5 + $0x130] sm:$0xff] %v8063
  %8072 = vst [vmem:[#allocation5 + $0x138] sm:$0xff] %v8064
  %v8073 = vld [vmem:[#allocation4 + $0x8] sm:$0xff]
  %v8074 = vld [vmem:[#allocation4 + $0x10] sm:$0xff]
  %v8075 = vld [vmem:[#allocation4 + $0x18] sm:$0xff]
  %v8076 = vld [vmem:[#allocation4 + $0x20] sm:$0xff]
  %v8077 = vld [vmem:[#allocation4 + $0x28] sm:$0xff]
  %v8078 = vld [vmem:[#allocation4 + $0x38] sm:$0xff]
  %v8079 = vld [vmem:[#allocation4 + $0x40] sm:$0xff]
  %v8080 = vld [vmem:[#allocation4 + $0x48] sm:$0xff]
  %v8081 = vld [vmem:[#allocation4 + $0x50] sm:$0xff]
  %v8082 = vld [vmem:[#allocation4 + $0x58] sm:$0xff]
  %v8083 = vld [vmem:[%s0 + $0x140] sm:$0xff]
  %v8084 = vld [vmem:[%s0 + $0x148] sm:$0xff]
  %v8085 = vld [vmem:[%s0 + $0x150] sm:$0xff]
  %v8086 = vld [vmem:[%s0 + $0x158] sm:$0xff]
  %v8087 = vld [vmem:[%s0 + $0x160] sm:$0xff]
  %v8088 = vld [vmem:[%s0 + $0x168] sm:$0xff]
  %v8089 = vld [vmem:[%s0 + $0x170] sm:$0xff]
  %v8090 = vld [vmem:[%s0 + $0x178] sm:$0xff]
  %8099 = vrot.lane.b32.xlu0 %v8083, 1
  %v8100 = vpop.permute.xlu0 %8099
  %8101 = vrot.lane.b32.xlu0 %v8084, 1
  %v8102 = vpop.permute.xlu0 %8101
  %8103 = vrot.lane.b32.xlu0 %v8085, 1
  %v8104 = vpop.permute.xlu0 %8103
  %8105 = vrot.lane.b32.xlu0 %v8086, 1
  %v8106 = vpop.permute.xlu0 %8105
  %8107 = vrot.lane.b32.xlu0 %v8087, 1
  %v8108 = vpop.permute.xlu0 %8107
  %8109 = vrot.lane.b32.xlu0 %v8088, 1
  %v8110 = vpop.permute.xlu0 %8109
  %8111 = vrot.lane.b32.xlu0 %v8089, 1
  %v8112 = vpop.permute.xlu0 %8111
  %8113 = vrot.lane.b32.xlu0 %v8090, 1
  %v8114 = vpop.permute.xlu0 %8113
  %v8115 = vsel %vm496, %v8100, %v8102
  %v8116 = vsel %vm496, %v8102, %v8104
  %v8117 = vsel %vm496, %v8104, %v8106
  %v8118 = vsel %vm496, %v8108, %v8110
  %v8119 = vsel %vm496, %v8110, %v8112
  %v8120 = vsel %vm496, %v8112, %v8114
  %v8131 = vmul.f32 %v8073, %v8100
  %v8132 = vmul.f32 %v8074, %v8115
  %v8133 = vmul.f32 %v8075, %v8116
  %v8134 = vmul.f32 %v8076, %v8117
  %v8135 = vmul.f32 %v8077, %v8106
  %v8136 = vmul.f32 %v8078, %v8108
  %v8137 = vmul.f32 %v8079, %v8118
  %v8138 = vmul.f32 %v8080, %v8119
  %v8139 = vmul.f32 %v8081, %v8120
  %v8140 = vmul.f32 %v8082, %v8114
  %8151 = vrot.lane.b32.xlu0 %v8131, 127
  %v8152 = vpop.permute.xlu0 %8151
  %8153 = vrot.lane.b32.xlu0 %v8132, 127
  %v8154 = vpop.permute.xlu0 %8153
  %8155 = vrot.lane.b32.xlu0 %v8133, 127
  %v8156 = vpop.permute.xlu0 %8155
  %8157 = vrot.lane.b32.xlu0 %v8134, 127
  %v8158 = vpop.permute.xlu0 %8157
  %8159 = vrot.lane.b32.xlu0 %v8135, 127
  %v8160 = vpop.permute.xlu0 %8159
  %8161 = vrot.lane.b32.xlu0 %v8136, 127
  %v8162 = vpop.permute.xlu0 %8161
  %8163 = vrot.lane.b32.xlu0 %v8137, 127
  %v8164 = vpop.permute.xlu0 %8163
  %8165 = vrot.lane.b32.xlu0 %v8138, 127
  %v8166 = vpop.permute.xlu0 %8165
  %8167 = vrot.lane.b32.xlu0 %v8139, 127
  %v8168 = vpop.permute.xlu0 %8167
  %8169 = vrot.lane.b32.xlu0 %v8140, 127
  %v8170 = vpop.permute.xlu0 %8169
  %v8171 = vsel %vm467, %v8152, %v8154
  %v8172 = vsel %vm467, %v8154, %v8156
  %v8173 = vsel %vm467, %v8156, %v8158
  %v8174 = vsel %vm467, %v8158, %v8160
  %v8175 = vsel %vm467, %v8162, %v8164
  %v8176 = vsel %vm467, %v8164, %v8166
  %v8177 = vsel %vm467, %v8166, %v8168
  %v8178 = vsel %vm467, %v8168, %v8170
  %8187 = vst [vmem:[#allocation5 + $0x140] sm:$0xff] %v8171
  %8188 = vst [vmem:[#allocation5 + $0x148] sm:$0xff] %v8172
  %8189 = vst [vmem:[#allocation5 + $0x150] sm:$0xff] %v8173
  %8190 = vst [vmem:[#allocation5 + $0x158] sm:$0xff] %v8174
  %8191 = vst [vmem:[#allocation5 + $0x160] sm:$0xff] %v8175
  %8192 = vst [vmem:[#allocation5 + $0x168] sm:$0xff] %v8176
  %8193 = vst [vmem:[#allocation5 + $0x170] sm:$0xff] %v8177
  %8194 = vst [vmem:[#allocation5 + $0x178] sm:$0xff] %v8178
  %v8195 = vld [vmem:[#allocation4 + $0x8] sm:$0xff]
  %v8196 = vld [vmem:[#allocation4 + $0x10] sm:$0xff]
  %v8197 = vld [vmem:[#allocation4 + $0x18] sm:$0xff]
  %v8198 = vld [vmem:[#allocation4 + $0x20] sm:$0xff]
  %v8199 = vld [vmem:[#allocation4 + $0x28] sm:$0xff]
  %v8200 = vld [vmem:[#allocation4 + $0x38] sm:$0xff]
  %v8201 = vld [vmem:[#allocation4 + $0x40] sm:$0xff]
  %v8202 = vld [vmem:[#allocation4 + $0x48] sm:$0xff]
  %v8203 = vld [vmem:[#allocation4 + $0x50] sm:$0xff]
  %v8204 = vld [vmem:[#allocation4 + $0x58] sm:$0xff]
  %v8205 = vld [vmem:[%s0 + $0x180] sm:$0xff]
  %v8206 = vld [vmem:[%s0 + $0x188] sm:$0xff]
  %v8207 = vld [vmem:[%s0 + $0x190] sm:$0xff]
  %v8208 = vld [vmem:[%s0 + $0x198] sm:$0xff]
  %v8209 = vld [vmem:[%s0 + $0x1a0] sm:$0xff]
  %v8210 = vld [vmem:[%s0 + $0x1a8] sm:$0xff]
  %v8211 = vld [vmem:[%s0 + $0x1b0] sm:$0xff]
  %v8212 = vld [vmem:[%s0 + $0x1b8] sm:$0xff]
  %8221 = vrot.lane.b32.xlu0 %v8205, 15
  %v8222 = vpop.permute.xlu0 %8221
  %8223 = vrot.lane.b32.xlu0 %v8206, 15
  %v8224 = vpop.permute.xlu0 %8223
  %8225 = vrot.lane.b32.xlu0 %v8207, 15
  %v8226 = vpop.permute.xlu0 %8225
  %8227 = vrot.lane.b32.xlu0 %v8208, 15
  %v8228 = vpop.permute.xlu0 %8227
  %8229 = vrot.lane.b32.xlu0 %v8209, 15
  %v8230 = vpop.permute.xlu0 %8229
  %8231 = vrot.lane.b32.xlu0 %v8210, 15
  %v8232 = vpop.permute.xlu0 %8231
  %8233 = vrot.lane.b32.xlu0 %v8211, 15
  %v8234 = vpop.permute.xlu0 %8233
  %8235 = vrot.lane.b32.xlu0 %v8212, 15
  %v8236 = vpop.permute.xlu0 %8235
  %v8237 = vsel %vm433, %v8222, %v8224
  %v8238 = vsel %vm433, %v8224, %v8226
  %v8239 = vsel %vm433, %v8226, %v8228
  %v8240 = vsel %vm433, %v8230, %v8232
  %v8241 = vsel %vm433, %v8232, %v8234
  %v8242 = vsel %vm433, %v8234, %v8236
  %v8253 = vmul.f32 %v8195, %v8222
  %v8254 = vmul.f32 %v8196, %v8237
  %v8255 = vmul.f32 %v8197, %v8238
  %v8256 = vmul.f32 %v8198, %v8239
  %v8257 = vmul.f32 %v8199, %v8228
  %v8258 = vmul.f32 %v8200, %v8230
  %v8259 = vmul.f32 %v8201, %v8240
  %v8260 = vmul.f32 %v8202, %v8241
  %v8261 = vmul.f32 %v8203, %v8242
  %v8262 = vmul.f32 %v8204, %v8236
  %8273 = vrot.lane.b32.xlu0 %v8253, 113
  %v8274 = vpop.permute.xlu0 %8273
  %8275 = vrot.lane.b32.xlu0 %v8254, 113
  %v8276 = vpop.permute.xlu0 %8275
  %8277 = vrot.lane.b32.xlu0 %v8255, 113
  %v8278 = vpop.permute.xlu0 %8277
  %8279 = vrot.lane.b32.xlu0 %v8256, 113
  %v8280 = vpop.permute.xlu0 %8279
  %8281 = vrot.lane.b32.xlu0 %v8257, 113
  %v8282 = vpop.permute.xlu0 %8281
  %8283 = vrot.lane.b32.xlu0 %v8258, 113
  %v8284 = vpop.permute.xlu0 %8283
  %8285 = vrot.lane.b32.xlu0 %v8259, 113
  %v8286 = vpop.permute.xlu0 %8285
  %8287 = vrot.lane.b32.xlu0 %v8260, 113
  %v8288 = vpop.permute.xlu0 %8287
  %8289 = vrot.lane.b32.xlu0 %v8261, 113
  %v8290 = vpop.permute.xlu0 %8289
  %8291 = vrot.lane.b32.xlu0 %v8262, 113
  %v8292 = vpop.permute.xlu0 %8291
  %v8293 = vsel %vm404, %v8274, %v8276
  %v8294 = vsel %vm404, %v8276, %v8278
  %v8295 = vsel %vm404, %v8278, %v8280
  %v8296 = vsel %vm404, %v8280, %v8282
  %v8297 = vsel %vm404, %v8284, %v8286
  %v8298 = vsel %vm404, %v8286, %v8288
  %v8299 = vsel %vm404, %v8288, %v8290
  %v8300 = vsel %vm404, %v8290, %v8292
  %8309 = vst [vmem:[#allocation5 + $0x180] sm:$0xff] %v8293
  %8310 = vst [vmem:[#allocation5 + $0x188] sm:$0xff] %v8294
  %8311 = vst [vmem:[#allocation5 + $0x190] sm:$0xff] %v8295
  %8312 = vst [vmem:[#allocation5 + $0x198] sm:$0xff] %v8296
  %8313 = vst [vmem:[#allocation5 + $0x1a0] sm:$0xff] %v8297
  %8314 = vst [vmem:[#allocation5 + $0x1a8] sm:$0xff] %v8298
  %8315 = vst [vmem:[#allocation5 + $0x1b0] sm:$0xff] %v8299
  %8316 = vst [vmem:[#allocation5 + $0x1b8] sm:$0xff] %v8300
  %v8317 = vld [vmem:[#allocation4 + $0x8] sm:$0xff]
  %v8318 = vld [vmem:[#allocation4 + $0x10] sm:$0xff]
  %v8319 = vld [vmem:[#allocation4 + $0x18] sm:$0xff]
  %v8320 = vld [vmem:[#allocation4 + $0x20] sm:$0xff]
  %v8321 = vld [vmem:[#allocation4 + $0x28] sm:$0xff]
  %v8322 = vld [vmem:[#allocation4 + $0x38] sm:$0xff]
  %v8323 = vld [vmem:[#allocation4 + $0x40] sm:$0xff]
  %v8324 = vld [vmem:[#allocation4 + $0x48] sm:$0xff]
  %v8325 = vld [vmem:[#allocation4 + $0x50] sm:$0xff]
  %v8326 = vld [vmem:[#allocation4 + $0x58] sm:$0xff]
  %v8327 = vld [vmem:[%s0 + $0x1c0] sm:$0xff]
  %v8328 = vld [vmem:[%s0 + $0x1c8] sm:$0xff]
  %v8329 = vld [vmem:[%s0 + $0x1d0] sm:$0xff]
  %v8330 = vld [vmem:[%s0 + $0x1d8] sm:$0xff]
  %v8331 = vld [vmem:[%s0 + $0x1e0] sm:$0xff]
  %v8332 = vld [vmem:[%s0 + $0x1e8] sm:$0xff]
  %v8333 = vld [vmem:[%s0 + $0x1f0] sm:$0xff]
  %v8334 = vld [vmem:[%s0 + $0x1f8] sm:$0xff]
  %8343 = vrot.lane.b32.xlu0 %v8327, 16
  %v8344 = vpop.permute.xlu0 %8343
  %8345 = vrot.lane.b32.xlu0 %v8328, 16
  %v8346 = vpop.permute.xlu0 %8345
  %8347 = vrot.lane.b32.xlu0 %v8329, 16
  %v8348 = vpop.permute.xlu0 %8347
  %8349 = vrot.lane.b32.xlu0 %v8330, 16
  %v8350 = vpop.permute.xlu0 %8349
  %8351 = vrot.lane.b32.xlu0 %v8331, 16
  %v8352 = vpop.permute.xlu0 %8351
  %8353 = vrot.lane.b32.xlu0 %v8332, 16
  %v8354 = vpop.permute.xlu0 %8353
  %8355 = vrot.lane.b32.xlu0 %v8333, 16
  %v8356 = vpop.permute.xlu0 %8355
  %8357 = vrot.lane.b32.xlu0 %v8334, 16
  %v8358 = vpop.permute.xlu0 %8357
  %v8359 = vsel %vm370, %v8344, %v8346
  %v8360 = vsel %vm370, %v8346, %v8348
  %v8361 = vsel %vm370, %v8348, %v8350
  %v8362 = vsel %vm370, %v8352, %v8354
  %v8363 = vsel %vm370, %v8354, %v8356
  %v8364 = vsel %vm370, %v8356, %v8358
  %v8375 = vmul.f32 %v8317, %v8344
  %v8376 = vmul.f32 %v8318, %v8359
  %v8377 = vmul.f32 %v8319, %v8360
  %v8378 = vmul.f32 %v8320, %v8361
  %v8379 = vmul.f32 %v8321, %v8350
  %v8380 = vmul.f32 %v8322, %v8352
  %v8381 = vmul.f32 %v8323, %v8362
  %v8382 = vmul.f32 %v8324, %v8363
  %v8383 = vmul.f32 %v8325, %v8364
  %v8384 = vmul.f32 %v8326, %v8358
  %8395 = vrot.lane.b32.xlu0 %v8375, 112
  %v8396 = vpop.permute.xlu0 %8395
  %8397 = vrot.lane.b32.xlu0 %v8376, 112
  %v8398 = vpop.permute.xlu0 %8397
  %8399 = vrot.lane.b32.xlu0 %v8377, 112
  %v8400 = vpop.permute.xlu0 %8399
  %8401 = vrot.lane.b32.xlu0 %v8378, 112
  %v8402 = vpop.permute.xlu0 %8401
  %8403 = vrot.lane.b32.xlu0 %v8379, 112
  %v8404 = vpop.permute.xlu0 %8403
  %8405 = vrot.lane.b32.xlu0 %v8380, 112
  %v8406 = vpop.permute.xlu0 %8405
  %8407 = vrot.lane.b32.xlu0 %v8381, 112
  %v8408 = vpop.permute.xlu0 %8407
  %8409 = vrot.lane.b32.xlu0 %v8382, 112
  %v8410 = vpop.permute.xlu0 %8409
  %8411 = vrot.lane.b32.xlu0 %v8383, 112
  %v8412 = vpop.permute.xlu0 %8411
  %8413 = vrot.lane.b32.xlu0 %v8384, 112
  %v8414 = vpop.permute.xlu0 %8413
  %v8415 = vsel %vm341, %v8396, %v8398
  %v8416 = vsel %vm341, %v8398, %v8400
  %v8417 = vsel %vm341, %v8400, %v8402
  %v8418 = vsel %vm341, %v8402, %v8404
  %v8419 = vsel %vm341, %v8406, %v8408
  %v8420 = vsel %vm341, %v8408, %v8410
  %v8421 = vsel %vm341, %v8410, %v8412
  %v8422 = vsel %vm341, %v8412, %v8414
  %8431 = vst [vmem:[#allocation5 + $0x1c0] sm:$0xff] %v8415
  %8432 = vst [vmem:[#allocation5 + $0x1c8] sm:$0xff] %v8416
  %8433 = vst [vmem:[#allocation5 + $0x1d0] sm:$0xff] %v8417
  %8434 = vst [vmem:[#allocation5 + $0x1d8] sm:$0xff] %v8418
  %8435 = vst [vmem:[#allocation5 + $0x1e0] sm:$0xff] %v8419
  %8436 = vst [vmem:[#allocation5 + $0x1e8] sm:$0xff] %v8420
  %8437 = vst [vmem:[#allocation5 + $0x1f0] sm:$0xff] %v8421
  %8438 = vst [vmem:[#allocation5 + $0x1f8] sm:$0xff] %v8422
  %v8439 = vld [vmem:[#allocation4 + $0x8] sm:$0xff]
  %v8440 = vld [vmem:[#allocation4 + $0x10] sm:$0xff]
  %v8441 = vld [vmem:[#allocation4 + $0x18] sm:$0xff]
  %v8442 = vld [vmem:[#allocation4 + $0x20] sm:$0xff]
  %v8443 = vld [vmem:[#allocation4 + $0x28] sm:$0xff]
  %v8444 = vld [vmem:[#allocation4 + $0x38] sm:$0xff]
  %v8445 = vld [vmem:[#allocation4 + $0x40] sm:$0xff]
  %v8446 = vld [vmem:[#allocation4 + $0x48] sm:$0xff]
  %v8447 = vld [vmem:[#allocation4 + $0x50] sm:$0xff]
  %v8448 = vld [vmem:[#allocation4 + $0x58] sm:$0xff]
  %v8449 = vld [vmem:[%s0 + $0x200] sm:$0xff]
  %v8450 = vld [vmem:[%s0 + $0x208] sm:$0xff]
  %v8451 = vld [vmem:[%s0 + $0x210] sm:$0xff]
  %v8452 = vld [vmem:[%s0 + $0x218] sm:$0xff]
  %v8453 = vld [vmem:[%s0 + $0x220] sm:$0xff]
  %v8454 = vld [vmem:[%s0 + $0x228] sm:$0xff]
  %v8455 = vld [vmem:[%s0 + $0x230] sm:$0xff]
  %v8456 = vld [vmem:[%s0 + $0x238] sm:$0xff]
  %8465 = vrot.lane.b32.xlu0 %v8449, 17
  %v8466 = vpop.permute.xlu0 %8465
  %8467 = vrot.lane.b32.xlu0 %v8450, 17
  %v8468 = vpop.permute.xlu0 %8467
  %8469 = vrot.lane.b32.xlu0 %v8451, 17
  %v8470 = vpop.permute.xlu0 %8469
  %8471 = vrot.lane.b32.xlu0 %v8452, 17
  %v8472 = vpop.permute.xlu0 %8471
  %8473 = vrot.lane.b32.xlu0 %v8453, 17
  %v8474 = vpop.permute.xlu0 %8473
  %8475 = vrot.lane.b32.xlu0 %v8454, 17
  %v8476 = vpop.permute.xlu0 %8475
  %8477 = vrot.lane.b32.xlu0 %v8455, 17
  %v8478 = vpop.permute.xlu0 %8477
  %8479 = vrot.lane.b32.xlu0 %v8456, 17
  %v8480 = vpop.permute.xlu0 %8479
  %v8481 = vsel %vm307, %v8466, %v8468
  %v8482 = vsel %vm307, %v8468, %v8470
  %v8483 = vsel %vm307, %v8470, %v8472
  %v8484 = vsel %vm307, %v8474, %v8476
  %v8485 = vsel %vm307, %v8476, %v8478
  %v8486 = vsel %vm307, %v8478, %v8480
  %v8497 = vmul.f32 %v8439, %v8466
  %v8498 = vmul.f32 %v8440, %v8481
  %v8499 = vmul.f32 %v8441, %v8482
  %v8500 = vmul.f32 %v8442, %v8483
  %v8501 = vmul.f32 %v8443, %v8472
  %v8502 = vmul.f32 %v8444, %v8474
  %v8503 = vmul.f32 %v8445, %v8484
  %v8504 = vmul.f32 %v8446, %v8485
  %v8505 = vmul.f32 %v8447, %v8486
  %v8506 = vmul.f32 %v8448, %v8480
  %8517 = vrot.lane.b32.xlu0 %v8497, 111
  %v8518 = vpop.permute.xlu0 %8517
  %8519 = vrot.lane.b32.xlu0 %v8498, 111
  %v8520 = vpop.permute.xlu0 %8519
  %8521 = vrot.lane.b32.xlu0 %v8499, 111
  %v8522 = vpop.permute.xlu0 %8521
  %8523 = vrot.lane.b32.xlu0 %v8500, 111
  %v8524 = vpop.permute.xlu0 %8523
  %8525 = vrot.lane.b32.xlu0 %v8501, 111
  %v8526 = vpop.permute.xlu0 %8525
  %8527 = vrot.lane.b32.xlu0 %v8502, 111
  %v8528 = vpop.permute.xlu0 %8527
  %8529 = vrot.lane.b32.xlu0 %v8503, 111
  %v8530 = vpop.permute.xlu0 %8529
  %8531 = vrot.lane.b32.xlu0 %v8504, 111
  %v8532 = vpop.permute.xlu0 %8531
  %8533 = vrot.lane.b32.xlu0 %v8505, 111
  %v8534 = vpop.permute.xlu0 %8533
  %8535 = vrot.lane.b32.xlu0 %v8506, 111
  %v8536 = vpop.permute.xlu0 %8535
  %v8537 = vsel %vm278, %v8518, %v8520
  %v8538 = vsel %vm278, %v8520, %v8522
  %v8539 = vsel %vm278, %v8522, %v8524
  %v8540 = vsel %vm278, %v8524, %v8526
  %v8541 = vsel %vm278, %v8528, %v8530
  %v8542 = vsel %vm278, %v8530, %v8532
  %v8543 = vsel %vm278, %v8532, %v8534
  %v8544 = vsel %vm278, %v8534, %v8536
  %8553 = vst [vmem:[#allocation5 + $0x200] sm:$0xff] %v8537
  %8554 = vst [vmem:[#allocation5 + $0x208] sm:$0xff] %v8538
  %8555 = vst [vmem:[#allocation5 + $0x210] sm:$0xff] %v8539
  %8556 = vst [vmem:[#allocation5 + $0x218] sm:$0xff] %v8540
  %8557 = vst [vmem:[#allocation5 + $0x220] sm:$0xff] %v8541
  %8558 = vst [vmem:[#allocation5 + $0x228] sm:$0xff] %v8542
  %8559 = vst [vmem:[#allocation5 + $0x230] sm:$0xff] %v8543
  %8560 = vst [vmem:[#allocation5 + $0x238] sm:$0xff] %v8544
  %v8561 = vld [vmem:[#allocation5] sm:$0xff]
  %v8562 = vld [vmem:[#allocation5 + $0x8] sm:$0xff]
  %v8563 = vld [vmem:[#allocation5 + $0x10] sm:$0xff]
  %v8564 = vld [vmem:[#allocation5 + $0x18] sm:$0xff]
  %v8565 = vld [vmem:[#allocation5 + $0x20] sm:$0xff]
  %v8566 = vld [vmem:[#allocation5 + $0x28] sm:$0xff]
  %v8567 = vld [vmem:[#allocation5 + $0x30] sm:$0xff]
  %v8568 = vld [vmem:[#allocation5 + $0x38] sm:$0xff]
  %v8569 = vld [vmem:[#allocation5 + $0x40] sm:$0xff]
  %v8570 = vld [vmem:[#allocation5 + $0x48] sm:$0xff]
  %v8571 = vld [vmem:[#allocation5 + $0x50] sm:$0xff]
  %v8572 = vld [vmem:[#allocation5 + $0x58] sm:$0xff]
  %v8573 = vld [vmem:[#allocation5 + $0x60] sm:$0xff]
  %v8574 = vld [vmem:[#allocation5 + $0x68] sm:$0xff]
  %v8575 = vld [vmem:[#allocation5 + $0x70] sm:$0xff]
  %v8576 = vld [vmem:[#allocation5 + $0x78] sm:$0xff]
  %v8577 = vld [vmem:[#allocation5 + $0x80] sm:$0xff]
  %v8578 = vld [vmem:[#allocation5 + $0x88] sm:$0xff]
  %v8579 = vld [vmem:[#allocation5 + $0x90] sm:$0xff]
  %v8580 = vld [vmem:[#allocation5 + $0x98] sm:$0xff]
  %v8581 = vld [vmem:[#allocation5 + $0xa0] sm:$0xff]
  %v8582 = vld [vmem:[#allocation5 + $0xa8] sm:$0xff]
  %v8583 = vld [vmem:[#allocation5 + $0xb0] sm:$0xff]
  %v8584 = vld [vmem:[#allocation5 + $0xb8] sm:$0xff]
  %v8585 = vld [vmem:[#allocation5 + $0xc0] sm:$0xff]
  %v8586 = vld [vmem:[#allocation5 + $0xc8] sm:$0xff]
  %v8587 = vld [vmem:[#allocation5 + $0xd0] sm:$0xff]
  %v8588 = vld [vmem:[#allocation5 + $0xd8] sm:$0xff]
  %v8589 = vld [vmem:[#allocation5 + $0xe0] sm:$0xff]
  %v8590 = vld [vmem:[#allocation5 + $0xe8] sm:$0xff]
  %v8591 = vld [vmem:[#allocation5 + $0xf0] sm:$0xff]
  %v8592 = vld [vmem:[#allocation5 + $0xf8] sm:$0xff]
  %v8593 = vld [vmem:[#allocation5 + $0x100] sm:$0xff]
  %v8594 = vld [vmem:[#allocation5 + $0x108] sm:$0xff]
  %v8595 = vld [vmem:[#allocation5 + $0x110] sm:$0xff]
  %v8596 = vld [vmem:[#allocation5 + $0x118] sm:$0xff]
  %v8597 = vld [vmem:[#allocation5 + $0x120] sm:$0xff]
  %v8598 = vld [vmem:[#allocation5 + $0x128] sm:$0xff]
  %v8599 = vld [vmem:[#allocation5 + $0x130] sm:$0xff]
  %v8600 = vld [vmem:[#allocation5 + $0x138] sm:$0xff]
  %v8601 = vld [vmem:[#allocation5 + $0x140] sm:$0xff]
  %v8602 = vld [vmem:[#allocation5 + $0x148] sm:$0xff]
  %v8603 = vld [vmem:[#allocation5 + $0x150] sm:$0xff]
  %v8604 = vld [vmem:[#allocation5 + $0x158] sm:$0xff]
  %v8605 = vld [vmem:[#allocation5 + $0x160] sm:$0xff]
  %v8606 = vld [vmem:[#allocation5 + $0x168] sm:$0xff]
  %v8607 = vld [vmem:[#allocation5 + $0x170] sm:$0xff]
  %v8608 = vld [vmem:[#allocation5 + $0x178] sm:$0xff]
  %v8609 = vld [vmem:[#allocation5 + $0x180] sm:$0xff]
  %v8610 = vld [vmem:[#allocation5 + $0x188] sm:$0xff]
  %v8611 = vld [vmem:[#allocation5 + $0x190] sm:$0xff]
  %v8612 = vld [vmem:[#allocation5 + $0x198] sm:$0xff]
  %v8613 = vld [vmem:[#allocation5 + $0x1a0] sm:$0xff]
  %v8614 = vld [vmem:[#allocation5 + $0x1a8] sm:$0xff]
  %v8615 = vld [vmem:[#allocation5 + $0x1b0] sm:$0xff]
  %v8616 = vld [vmem:[#allocation5 + $0x1b8] sm:$0xff]
  %v8617 = vld [vmem:[#allocation5 + $0x1c0] sm:$0xff]
  %v8618 = vld [vmem:[#allocation5 + $0x1c8] sm:$0xff]
  %v8619 = vld [vmem:[#allocation5 + $0x1d0] sm:$0xff]
  %v8620 = vld [vmem:[#allocation5 + $0x1d8] sm:$0xff]
  %v8621 = vld [vmem:[#allocation5 + $0x1e0] sm:$0xff]
  %v8622 = vld [vmem:[#allocation5 + $0x1e8] sm:$0xff]
  %v8623 = vld [vmem:[#allocation5 + $0x1f0] sm:$0xff]
  %v8624 = vld [vmem:[#allocation5 + $0x1f8] sm:$0xff]
  %v8625 = vld [vmem:[#allocation5 + $0x200] sm:$0xff]
  %v8626 = vld [vmem:[#allocation5 + $0x208] sm:$0xff]
  %v8627 = vld [vmem:[#allocation5 + $0x210] sm:$0xff]
  %v8628 = vld [vmem:[#allocation5 + $0x218] sm:$0xff]
  %v8629 = vld [vmem:[#allocation5 + $0x220] sm:$0xff]
  %v8630 = vld [vmem:[#allocation5 + $0x228] sm:$0xff]
  %v8631 = vld [vmem:[#allocation5 + $0x230] sm:$0xff]
  %v8632 = vld [vmem:[#allocation5 + $0x238] sm:$0xff]
  %8634 = vset.pattern.permute.xlu0 0
  %8635 = vperm.xlu0 %8634, %v7544
  %v8636 = vpop.permute.xlu0 %8635
  %v8639 = vsel %vm370, %v7542, 0
  %8641 = vmatprep.subr.mxu0 %v8562
  %8642 = vmatpush1.msra.mxu0 %v8561
  %8643 = vmatprep.subr.mxu0 %v8566
  %8644 = vmatpush1.msra.mxu0 %v8565
  %8645 = vmatprep.subr.mxu0 %v8570
  %8646 = vmatpush1.msra.mxu0 %v8569
  %8647 = vmatprep.subr.mxu0 %v8574
  %8648 = vmatpush1.msra.mxu0 %v8573
  %8649 = vmatprep.subr.mxu0 %v8578
  %8650 = vmatpush1.msra.mxu0 %v8577
  %8651 = vmatprep.subr.mxu0 %v8582
  %8652 = vmatpush1.msra.mxu0 %v8581
  %8653 = vmatprep.subr.mxu0 %v8586
  %8654 = vmatpush1.msra.mxu0 %v8585
  %8655 = vmatprep.subr.mxu0 %v8590
  %8656 = vmatpush1.msra.mxu0 %v8589
  %8657 = vmatprep.subr.mxu0 %v8594
  %8658 = vmatpush1.msra.mxu0 %v8593
  %8659 = vmatprep.subr.mxu0 %v8598
  %8660 = vmatpush1.msra.mxu0 %v8597
  %8661 = vmatprep.subr.mxu0 %v8602
  %8662 = vmatpush1.msra.mxu0 %v8601
  %8663 = vmatprep.subr.mxu0 %v8606
  %8664 = vmatpush1.msra.mxu0 %v8605
  %8665 = vmatprep.subr.mxu0 %v8610
  %8666 = vmatpush1.msra.mxu0 %v8609
  %8667 = vmatprep.subr.mxu0 %v8614
  %8668 = vmatpush1.msra.mxu0 %v8613
  %8669 = vmatprep.subr.mxu0 %v8618
  %8670 = vmatpush1.msra.mxu0 %v8617
  %8671 = vmatprep.subr.mxu0 %v8622
  %8672 = vmatpush1.msra.mxu0 %v8621
  %8673 = vmatprep.subr.mxu0 %v8626
  %8674 = vmatpush1.msra.mxu0 %v8625
  %8675 = vmatprep.subr.mxu0 %v8630
  %8676 = vmatpush1.msra.mxu0 %v8629
  %8677 = vmatprep.subr.mxu0 0.0
  %8678 = vmatpush1.msra.mxu0 0.0
  %8679 = vmatprep.subr.mxu0 0.0
  %8680 = vmatpush1.msra.mxu0 0.0
  %8681 = vmatprep.subr.mxu0 0.0
  %8682 = vmatpush1.msra.mxu0 0.0
  %8683 = vmatprep.subr.mxu0 0.0
  %8684 = vmatpush1.msra.mxu0 0.0
  %8685 = vmatprep.subr.mxu0 0.0
  %8686 = vmatpush1.msra.mxu0 0.0
  %8687 = vmatprep.subr.mxu0 0.0
  %8688 = vmatpush1.msra.mxu0 0.0
  %8689 = vmatprep.subr.mxu0 0.0
  %8690 = vmatpush1.msra.mxu0 0.0
  %8691 = vmatprep.subr.mxu0 0.0
  %8692 = vmatpush1.msra.mxu0 0.0
  %8693 = vmatprep.subr.mxu0 0.0
  %8694 = vmatpush1.msra.mxu0 0.0
  %8695 = vmatprep.subr.mxu0 0.0
  %8696 = vmatpush1.msra.mxu0 0.0
  %8697 = vmatprep.subr.mxu0 0.0
  %8698 = vmatpush1.msra.mxu0 0.0
  %8699 = vmatprep.subr.mxu0 0.0
  %8700 = vmatpush1.msra.mxu0 0.0
  %8701 = vmatprep.subr.mxu0 0.0
  %8702 = vmatpush1.msra.mxu0 0.0
  %8703 = vmatprep.subr.mxu0 0.0
  %8704 = vmatpush1.msra.mxu0 0.0
  %8705 = vmatprep.mubr.f32.mxu0 %v8639
  %8706 = vmatmul.mubr.f32.gmra.mrb[0].mxu0 %v7541
  %v8707 = vpop.f32.mrb[0].mxu0
  %v8708 = vadd.f32 %v8636, %v8707
  %v8709 = vpop.f32.mrb[0].mxu0
  %v8710 = vadd.f32 %v8636, %v8709
  %8711 = vdwg.mxu0
  %8712 = vmatprep.subr.mxu0 %v8564
  %8713 = vmatpush1.msra.mxu0 %v8563
  %8714 = vmatprep.subr.mxu0 %v8568
  %8715 = vmatpush1.msra.mxu0 %v8567
  %8716 = vmatprep.subr.mxu0 %v8572
  %8717 = vmatpush1.msra.mxu0 %v8571
  %8718 = vmatprep.subr.mxu0 %v8576
  %8719 = vmatpush1.msra.mxu0 %v8575
  %8720 = vmatprep.subr.mxu0 %v8580
  %8721 = vmatpush1.msra.mxu0 %v8579
  %8722 = vmatprep.subr.mxu0 %v8584
  %8723 = vmatpush1.msra.mxu0 %v8583
  %8724 = vmatprep.subr.mxu0 %v8588
  %8725 = vmatpush1.msra.mxu0 %v8587
  %8726 = vmatprep.subr.mxu0 %v8592
  %8727 = vmatpush1.msra.mxu0 %v8591
  %8728 = vmatprep.subr.mxu0 %v8596
  %8729 = vmatpush1.msra.mxu0 %v8595
  %8730 = vmatprep.subr.mxu0 %v8600
  %8731 = vmatpush1.msra.mxu0 %v8599
  %8732 = vmatprep.subr.mxu0 %v8604
  %8733 = vmatpush1.msra.mxu0 %v8603
  %8734 = vmatprep.subr.mxu0 %v8608
  %8735 = vmatpush1.msra.mxu0 %v8607
  %8736 = vmatprep.subr.mxu0 %v8612
  %8737 = vmatpush1.msra.mxu0 %v8611
  %8738 = vmatprep.subr.mxu0 %v8616
  %8739 = vmatpush1.msra.mxu0 %v8615
  %8740 = vmatprep.subr.mxu0 %v8620
  %8741 = vmatpush1.msra.mxu0 %v8619
  %8742 = vmatprep.subr.mxu0 %v8624
  %8743 = vmatpush1.msra.mxu0 %v8623
  %8744 = vmatprep.subr.mxu0 %v8628
  %8745 = vmatpush1.msra.mxu0 %v8627
  %8746 = vmatprep.subr.mxu0 %v8632
  %8747 = vmatpush1.msra.mxu0 %v8631
  %8748 = vmatprep.subr.mxu0 0.0
  %8749 = vmatpush1.msra.mxu0 0.0
  %8750 = vmatprep.subr.mxu0 0.0
  %8751 = vmatpush1.msra.mxu0 0.0
  %8752 = vmatprep.subr.mxu0 0.0
  %8753 = vmatpush1.msra.mxu0 0.0
  %8754 = vmatprep.subr.mxu0 0.0
  %8755 = vmatpush1.msra.mxu0 0.0
  %8756 = vmatprep.subr.mxu0 0.0
  %8757 = vmatpush1.msra.mxu0 0.0
  %8758 = vmatprep.subr.mxu0 0.0
  %8759 = vmatpush1.msra.mxu0 0.0
  %8760 = vmatprep.subr.mxu0 0.0
  %8761 = vmatpush1.msra.mxu0 0.0
  %8762 = vmatprep.subr.mxu0 0.0
  %8763 = vmatpush1.msra.mxu0 0.0
  %8764 = vmatprep.subr.mxu0 0.0
  %8765 = vmatpush1.msra.mxu0 0.0
  %8766 = vmatprep.subr.mxu0 0.0
  %8767 = vmatpush1.msra.mxu0 0.0
  %8768 = vmatprep.subr.mxu0 0.0
  %8769 = vmatpush1.msra.mxu0 0.0
  %8770 = vmatprep.subr.mxu0 0.0
  %8771 = vmatpush1.msra.mxu0 0.0
  %8772 = vmatprep.subr.mxu0 0.0
  %8773 = vmatpush1.msra.mxu0 0.0
  %8774 = vmatprep.subr.mxu0 0.0
  %8775 = vmatpush1.msra.mxu0 0.0
  %8776 = vmatprep.mubr.f32.mxu0 %v8639
  %8777 = vmatmul.mubr.f32.gmra.mrb[0].mxu0 %v7541
  %v8778 = vpop.f32.mrb[0].mxu0
  %v8779 = vadd.f32 %v8636, %v8778
  %v8780 = vpop.f32.mrb[0].mxu0
  %v8781 = vadd.f32 %v8636, %v8780
  %8782 = vdwg.mxu0
  %v8783 = vmax.f32 %v8708, 0.0
  %v8784 = vmax.f32 %v8710, 0.0
  %v8785 = vmax.f32 %v8779, 0.0
  %v8786 = vmax.f32 %v8781, 0.0
  %s8787 = scalar_lea.vmem %s16, 8
  %v8788 = vld [vmem:[%s8787] sm:$0xff]
  %s8789 = scalar_lea.vmem %s17, 8
  %v8790 = vld [vmem:[%s8789] sm:$0xff]
  %v8791 = vadd.f32 %v8783, %v8784
  %v8792 = vadd.f32 %v8791, %v8785
  %v8793 = vadd.f32 %v8792, %v8786
  %8794 = vadd.xlane.f32.xlu0 %v8793
  %v8795 = vpop.xlane.xlu0 %8794
  %v8796 = vmul.f32 %v8795, 0.001953125
  %v8797 = vmul.f32 %v8783, %v8783
  %v8798 = vmul.f32 %v8784, %v8784
  %v8799 = vmul.f32 %v8785, %v8785
  %v8800 = vmul.f32 %v8786, %v8786
  %v8801 = vadd.f32 %v8797, %v8798
  %v8802 = vadd.f32 %v8801, %v8799
  %v8803 = vadd.f32 %v8802, %v8800
  %8804 = vadd.xlane.f32.xlu0 %v8803
  %v8805 = vpop.xlane.xlu0 %8804
  %v8806 = vmul.f32 %v8805, 0.001953125
  %v8807 = vmul.f32 %v8796, %v8796
  %v8808 = vsub.f32 %v8806, %v8807
  %v8809 = vadd.f32 %v8808, 1e-05
  %v8810 = vrsqrt.pop %v8809
  %v8811 = vmul.f32 %v8810, %v8788
  %8813 = vset.pattern.permute.xlu0 0
  %8814 = vperm.xlu0 %8813, %v8811
  %v8815 = vpop.permute.xlu0 %8814
  %v8817 = vmul.f32 %v8783, %v8815
  %v8818 = vmul.f32 %v8784, %v8815
  %v8819 = vmul.f32 %v8785, %v8815
  %v8820 = vmul.f32 %v8786, %v8815
  %v8821 = vmul.f32 %v8796, %v8811
  %v8822 = vsub.f32 %v8790, %v8821
  %8824 = vset.pattern.permute.xlu0 0
  %8825 = vperm.xlu0 %8824, %v8822
  %v8826 = vpop.permute.xlu0 %8825
  %v8828 = vadd.f32 %v8817, %v8826
  %v8829 = vadd.f32 %v8818, %v8826
  %v8830 = vadd.f32 %v8819, %v8826
  %v8831 = vadd.f32 %v8820, %v8826
  %v8832 = vld [vmem:[%s18] sm:$0x7]
  %v8833 = vld [vmem:[%s19] sm:$0x7]
  %8835 = vset.pattern.permute.xlu0 0
  %8836 = vperm.xlu0 %8835, %v8833
  %v8837 = vpop.permute.xlu0 %8836
  %vm8839 = vcmask 64512
  %v8841 = vsel %vm8839, %v8832, 0
  %8843 = vmatprep.subr.mxu0 %v7537
  %8844 = vmatpush1.msra.mxu0 %v7536
  %8845 = vmatprep.subr.mxu0 0.0
  %8846 = vmatpush1.msra.mxu0 0.0
  %8847 = vmatprep.subr.mxu0 0.0
  %8848 = vmatpush1.msra.mxu0 0.0
  %8849 = vmatprep.subr.mxu0 0.0
  %8850 = vmatpush1.msra.mxu0 0.0
  %8851 = vmatprep.subr.mxu0 0.0
  %8852 = vmatpush1.msra.mxu0 0.0
  %8853 = vmatprep.subr.mxu0 0.0
  %8854 = vmatpush1.msra.mxu0 0.0
  %8855 = vmatprep.subr.mxu0 0.0
  %8856 = vmatpush1.msra.mxu0 0.0
  %8857 = vmatprep.subr.mxu0 0.0
  %8858 = vmatpush1.msra.mxu0 0.0
  %8859 = vmatprep.subr.mxu0 0.0
  %8860 = vmatpush1.msra.mxu0 0.0
  %8861 = vmatprep.subr.mxu0 0.0
  %8862 = vmatpush1.msra.mxu0 0.0
  %8863 = vmatprep.subr.mxu0 0.0
  %8864 = vmatpush1.msra.mxu0 0.0
  %8865 = vmatprep.subr.mxu0 0.0
  %8866 = vmatpush1.msra.mxu0 0.0
  %8867 = vmatprep.subr.mxu0 0.0
  %8868 = vmatpush1.msra.mxu0 0.0
  %8869 = vmatprep.subr.mxu0 0.0
  %8870 = vmatpush1.msra.mxu0 0.0
  %8871 = vmatprep.subr.mxu0 0.0
  %8872 = vmatpush1.msra.mxu0 0.0
  %8873 = vmatprep.subr.mxu0 0.0
  %8874 = vmatpush1.msra.mxu0 0.0
  %8875 = vmatprep.subr.mxu0 0.0
  %8876 = vmatpush1.msra.mxu0 0.0
  %8877 = vmatprep.subr.mxu0 0.0
  %8878 = vmatpush1.msra.mxu0 0.0
  %8879 = vmatprep.subr.mxu0 0.0
  %8880 = vmatpush1.msra.mxu0 0.0
  %8881 = vmatprep.subr.mxu0 0.0
  %8882 = vmatpush1.msra.mxu0 0.0
  %8883 = vmatprep.subr.mxu0 0.0
  %8884 = vmatpush1.msra.mxu0 0.0
  %8885 = vmatprep.subr.mxu0 0.0
  %8886 = vmatpush1.msra.mxu0 0.0
  %8887 = vmatprep.subr.mxu0 0.0
  %8888 = vmatpush1.msra.mxu0 0.0
  %8889 = vmatprep.subr.mxu0 0.0
  %8890 = vmatpush1.msra.mxu0 0.0
  %8891 = vmatprep.subr.mxu0 0.0
  %8892 = vmatpush1.msra.mxu0 0.0
  %8893 = vmatprep.subr.mxu0 0.0
  %8894 = vmatpush1.msra.mxu0 0.0
  %8895 = vmatprep.subr.mxu0 0.0
  %8896 = vmatpush1.msra.mxu0 0.0
  %8897 = vmatprep.subr.mxu0 0.0
  %8898 = vmatpush1.msra.mxu0 0.0
  %8899 = vmatprep.subr.mxu0 0.0
  %8900 = vmatpush1.msra.mxu0 0.0
  %8901 = vmatprep.subr.mxu0 0.0
  %8902 = vmatpush1.msra.mxu0 0.0
  %8903 = vmatprep.subr.mxu0 0.0
  %8904 = vmatpush1.msra.mxu0 0.0
  %8905 = vmatprep.subr.mxu0 0.0
  %8906 = vmatpush1.msra.mxu0 0.0
  %8907 = vmatprep.mubr.f32.mxu0 0.0
  %8908 = vmatmul.mubr.f32.gmra.mrb[0].mxu0 %v8841
  %v8909 = vpop.f32.mrb[0].mxu0
  %v8910 = vadd.f32 %v8837, %v8909
  %v8911 = vpop.f32.mrb[0].mxu0
  %v8912 = vadd.f32 %v8837, %v8911
  %8913 = vdwg.mxu0
  %8914 = vmatprep.subr.mxu0 %v7539
  %8915 = vmatpush1.msra.mxu0 %v7538
  %8916 = vmatprep.subr.mxu0 0.0
  %8917 = vmatpush1.msra.mxu0 0.0
  %8918 = vmatprep.subr.mxu0 0.0
  %8919 = vmatpush1.msra.mxu0 0.0
  %8920 = vmatprep.subr.mxu0 0.0
  %8921 = vmatpush1.msra.mxu0 0.0
  %8922 = vmatprep.subr.mxu0 0.0
  %8923 = vmatpush1.msra.mxu0 0.0
  %8924 = vmatprep.subr.mxu0 0.0
  %8925 = vmatpush1.msra.mxu0 0.0
  %8926 = vmatprep.subr.mxu0 0.0
  %8927 = vmatpush1.msra.mxu0 0.0
  %8928 = vmatprep.subr.mxu0 0.0
  %8929 = vmatpush1.msra.mxu0 0.0
  %8930 = vmatprep.subr.mxu0 0.0
  %8931 = vmatpush1.msra.mxu0 0.0
  %8932 = vmatprep.subr.mxu0 0.0
  %8933 = vmatpush1.msra.mxu0 0.0
  %8934 = vmatprep.subr.mxu0 0.0
  %8935 = vmatpush1.msra.mxu0 0.0
  %8936 = vmatprep.subr.mxu0 0.0
  %8937 = vmatpush1.msra.mxu0 0.0
  %8938 = vmatprep.subr.mxu0 0.0
  %8939 = vmatpush1.msra.mxu0 0.0
  %8940 = vmatprep.subr.mxu0 0.0
  %8941 = vmatpush1.msra.mxu0 0.0
  %8942 = vmatprep.subr.mxu0 0.0
  %8943 = vmatpush1.msra.mxu0 0.0
  %8944 = vmatprep.subr.mxu0 0.0
  %8945 = vmatpush1.msra.mxu0 0.0
  %8946 = vmatprep.subr.mxu0 0.0
  %8947 = vmatpush1.msra.mxu0 0.0
  %8948 = vmatprep.subr.mxu0 0.0
  %8949 = vmatpush1.msra.mxu0 0.0
  %8950 = vmatprep.subr.mxu0 0.0
  %8951 = vmatpush1.msra.mxu0 0.0
  %8952 = vmatprep.subr.mxu0 0.0
  %8953 = vmatpush1.msra.mxu0 0.0
  %8954 = vmatprep.subr.mxu0 0.0
  %8955 = vmatpush1.msra.mxu0 0.0
  %8956 = vmatprep.subr.mxu0 0.0
  %8957 = vmatpush1.msra.mxu0 0.0
  %8958 = vmatprep.subr.mxu0 0.0
  %8959 = vmatpush1.msra.mxu0 0.0
  %8960 = vmatprep.subr.mxu0 0.0
  %8961 = vmatpush1.msra.mxu0 0.0
  %8962 = vmatprep.subr.mxu0 0.0
  %8963 = vmatpush1.msra.mxu0 0.0
  %8964 = vmatprep.subr.mxu0 0.0
  %8965 = vmatpush1.msra.mxu0 0.0
  %8966 = vmatprep.subr.mxu0 0.0
  %8967 = vmatpush1.msra.mxu0 0.0
  %8968 = vmatprep.subr.mxu0 0.0
  %8969 = vmatpush1.msra.mxu0 0.0
  %8970 = vmatprep.subr.mxu0 0.0
  %8971 = vmatpush1.msra.mxu0 0.0
  %8972 = vmatprep.subr.mxu0 0.0
  %8973 = vmatpush1.msra.mxu0 0.0
  %8974 = vmatprep.subr.mxu0 0.0
  %8975 = vmatpush1.msra.mxu0 0.0
  %8976 = vmatprep.subr.mxu0 0.0
  %8977 = vmatpush1.msra.mxu0 0.0
  %8978 = vmatprep.mubr.f32.mxu0 0.0
  %8979 = vmatmul.mubr.f32.gmra.mrb[0].mxu0 %v8841
  %v8980 = vpop.f32.mrb[0].mxu0
  %v8981 = vadd.f32 %v8837, %v8980
  %v8982 = vpop.f32.mrb[0].mxu0
  %v8983 = vadd.f32 %v8837, %v8982
  %8984 = vdwg.mxu0
  %v8985 = vld [vmem:[%s20] sm:$0x7]
  %v8986 = vld [vmem:[%s21] sm:$0x7]
  %vm8987 = vcmask 1042432
  %v8988 = vsel %vm8987, %v8910, 0.0
  %v8989 = vsel %vm8987, %v8912, 0.0
  %v8990 = vadd.f32 %v8988, %v8989
  %v8991 = vsel %vm8987, %v8981, 0.0
  %v8992 = vadd.f32 %v8990, %v8991
  %v8993 = vsel %vm8987, %v8983, 0.0
  %v8994 = vadd.f32 %v8992, %v8993
  %8995 = vadd.xlane.f32.xlu0 %v8994
  %v8996 = vpop.xlane.xlu0 %8995
  %v8997 = vmul.f32 %v8996, 0.001953125
  %v8998 = vmul.f32 %v8910, %v8910
  %v8999 = vmul.f32 %v8912, %v8912
  %v9000 = vmul.f32 %v8981, %v8981
  %v9001 = vmul.f32 %v8983, %v8983
  %v9002 = vsel %vm8987, %v8998, 0.0
  %v9003 = vsel %vm8987, %v8999, 0.0
  %v9004 = vadd.f32 %v9002, %v9003
  %v9005 = vsel %vm8987, %v9000, 0.0
  %v9006 = vadd.f32 %v9004, %v9005
  %v9007 = vsel %vm8987, %v9001, 0.0
  %v9008 = vadd.f32 %v9006, %v9007
  %9009 = vadd.xlane.f32.xlu0 %v9008
  %v9010 = vpop.xlane.xlu0 %9009
  %v9011 = vmul.f32 %v9010, 0.001953125
  %v9012 = vmul.f32 %v8997, %v8997
  %v9013 = vsub.f32 %v9011, %v9012
  %v9014 = vadd.f32 %v9013, 1e-05
  %v9015 = vrsqrt.pop %v9014
  %v9016 = vmul.f32 %v9015, %v8985
  %9018 = vset.pattern.permute.xlu0 0
  %9019 = vperm.xlu0 %9018, %v9016
  %v9020 = vpop.permute.xlu0 %9019
  %v9022 = vmul.f32 %v8910, %v9020
  %v9023 = vmul.f32 %v8912, %v9020
  %v9024 = vmul.f32 %v8981, %v9020
  %v9025 = vmul.f32 %v8983, %v9020
  %v9026 = vmul.f32 %v8997, %v9016
  %v9027 = vsub.f32 %v8986, %v9026
  %9029 = vset.pattern.permute.xlu0 0
  %9030 = vperm.xlu0 %9029, %v9027
  %v9031 = vpop.permute.xlu0 %9030
  %v9033 = vadd.f32 %v9022, %v9031
  %v9034 = vadd.f32 %v9023, %v9031
  %v9035 = vadd.f32 %v9024, %v9031
  %v9036 = vadd.f32 %v9025, %v9031
  %9037 = vmatprep.subr.mxu0 %v8829
  %9038 = vmatpush1.msra.mxu0 %v8828
  %9039 = vmatprep.subr.mxu0 0.0
  %9040 = vmatpush1.msra.mxu0 0.0
  %9041 = vmatprep.subr.mxu0 0.0
  %9042 = vmatpush1.msra.mxu0 0.0
  %9043 = vmatprep.subr.mxu0 0.0
  %9044 = vmatpush1.msra.mxu0 0.0
  %9045 = vmatprep.subr.mxu0 0.0
  %9046 = vmatpush1.msra.mxu0 0.0
  %9047 = vmatprep.subr.mxu0 0.0
  %9048 = vmatpush1.msra.mxu0 0.0
  %9049 = vmatprep.subr.mxu0 0.0
  %9050 = vmatpush1.msra.mxu0 0.0
  %9051 = vmatprep.subr.mxu0 0.0
  %9052 = vmatpush1.msra.mxu0 0.0
  %9053 = vmatprep.subr.mxu0 0.0
  %9054 = vmatpush1.msra.mxu0 0.0
  %9055 = vmatprep.subr.mxu0 0.0
  %9056 = vmatpush1.msra.mxu0 0.0
  %9057 = vmatprep.subr.mxu0 0.0
  %9058 = vmatpush1.msra.mxu0 0.0
  %9059 = vmatprep.subr.mxu0 0.0
  %9060 = vmatpush1.msra.mxu0 0.0
  %9061 = vmatprep.subr.mxu0 0.0
  %9062 = vmatpush1.msra.mxu0 0.0
  %9063 = vmatprep.subr.mxu0 0.0
  %9064 = vmatpush1.msra.mxu0 0.0
  %9065 = vmatprep.subr.mxu0 0.0
  %9066 = vmatpush1.msra.mxu0 0.0
  %9067 = vmatprep.subr.mxu0 0.0
  %9068 = vmatpush1.msra.mxu0 0.0
  %9069 = vmatprep.subr.mxu0 0.0
  %9070 = vmatpush1.msra.mxu0 0.0
  %9071 = vmatprep.subr.mxu0 0.0
  %9072 = vmatpush1.msra.mxu0 0.0
  %9073 = vmatprep.subr.mxu0 0.0
  %9074 = vmatpush1.msra.mxu0 0.0
  %9075 = vmatprep.subr.mxu0 0.0
  %9076 = vmatpush1.msra.mxu0 0.0
  %9077 = vmatprep.subr.mxu0 0.0
  %9078 = vmatpush1.msra.mxu0 0.0
  %9079 = vmatprep.subr.mxu0 0.0
  %9080 = vmatpush1.msra.mxu0 0.0
  %9081 = vmatprep.subr.mxu0 0.0
  %9082 = vmatpush1.msra.mxu0 0.0
  %9083 = vmatprep.subr.mxu0 0.0
  %9084 = vmatpush1.msra.mxu0 0.0
  %9085 = vmatprep.subr.mxu0 0.0
  %9086 = vmatpush1.msra.mxu0 0.0
  %9087 = vmatprep.subr.mxu0 0.0
  %9088 = vmatpush1.msra.mxu0 0.0
  %9089 = vmatprep.subr.mxu0 0.0
  %9090 = vmatpush1.msra.mxu0 0.0
  %9091 = vmatprep.subr.mxu0 0.0
  %9092 = vmatpush1.msra.mxu0 0.0
  %9093 = vmatprep.subr.mxu0 0.0
  %9094 = vmatpush1.msra.mxu0 0.0
  %9095 = vmatprep.subr.mxu0 0.0
  %9096 = vmatpush1.msra.mxu0 0.0
  %9097 = vmatprep.subr.mxu0 0.0
  %9098 = vmatpush1.msra.mxu0 0.0
  %9099 = vmatprep.subr.mxu0 0.0
  %9100 = vmatpush1.msra.mxu0 0.0
  %9101 = vmatprep.mubr.f32.mxu0 0.0
  %9102 = vmatmul.mubr.f32.gmra.mrb[0].mxu0 %v8841
  %v9103 = vpop.f32.mrb[0].mxu0
  %v9104 = vadd.f32 %v8837, %v9103
  %v9105 = vpop.f32.mrb[0].mxu0
  %v9106 = vadd.f32 %v8837, %v9105
  %9107 = vdwg.mxu0
  %9108 = vmatprep.subr.mxu0 %v8831
  %9109 = vmatpush1.msra.mxu0 %v8830
  %9110 = vmatprep.subr.mxu0 0.0
  %9111 = vmatpush1.msra.mxu0 0.0
  %9112 = vmatprep.subr.mxu0 0.0
  %9113 = vmatpush1.msra.mxu0 0.0
  %9114 = vmatprep.subr.mxu0 0.0
  %9115 = vmatpush1.msra.mxu0 0.0
  %9116 = vmatprep.subr.mxu0 0.0
  %9117 = vmatpush1.msra.mxu0 0.0
  %9118 = vmatprep.subr.mxu0 0.0
  %9119 = vmatpush1.msra.mxu0 0.0
  %9120 = vmatprep.subr.mxu0 0.0
  %9121 = vmatpush1.msra.mxu0 0.0
  %9122 = vmatprep.subr.mxu0 0.0
  %9123 = vmatpush1.msra.mxu0 0.0
  %9124 = vmatprep.subr.mxu0 0.0
  %9125 = vmatpush1.msra.mxu0 0.0
  %9126 = vmatprep.subr.mxu0 0.0
  %9127 = vmatpush1.msra.mxu0 0.0
  %9128 = vmatprep.subr.mxu0 0.0
  %9129 = vmatpush1.msra.mxu0 0.0
  %9130 = vmatprep.subr.mxu0 0.0
  %9131 = vmatpush1.msra.mxu0 0.0
  %9132 = vmatprep.subr.mxu0 0.0
  %9133 = vmatpush1.msra.mxu0 0.0
  %9134 = vmatprep.subr.mxu0 0.0
  %9135 = vmatpush1.msra.mxu0 0.0
  %9136 = vmatprep.subr.mxu0 0.0
  %9137 = vmatpush1.msra.mxu0 0.0
  %9138 = vmatprep.subr.mxu0 0.0
  %9139 = vmatpush1.msra.mxu0 0.0
  %9140 = vmatprep.subr.mxu0 0.0
  %9141 = vmatpush1.msra.mxu0 0.0
  %9142 = vmatprep.subr.mxu0 0.0
  %9143 = vmatpush1.msra.mxu0 0.0
  %9144 = vmatprep.subr.mxu0 0.0
  %9145 = vmatpush1.msra.mxu0 0.0
  %9146 = vmatprep.subr.mxu0 0.0
  %9147 = vmatpush1.msra.mxu0 0.0
  %9148 = vmatprep.subr.mxu0 0.0
  %9149 = vmatpush1.msra.mxu0 0.0
  %9150 = vmatprep.subr.mxu0 0.0
  %9151 = vmatpush1.msra.mxu0 0.0
  %9152 = vmatprep.subr.mxu0 0.0
  %9153 = vmatpush1.msra.mxu0 0.0
  %9154 = vmatprep.subr.mxu0 0.0
  %9155 = vmatpush1.msra.mxu0 0.0
  %9156 = vmatprep.subr.mxu0 0.0
  %9157 = vmatpush1.msra.mxu0 0.0
  %9158 = vmatprep.subr.mxu0 0.0
  %9159 = vmatpush1.msra.mxu0 0.0
  %9160 = vmatprep.subr.mxu0 0.0
  %9161 = vmatpush1.msra.mxu0 0.0
  %9162 = vmatprep.subr.mxu0 0.0
  %9163 = vmatpush1.msra.mxu0 0.0
  %9164 = vmatprep.subr.mxu0 0.0
  %9165 = vmatpush1.msra.mxu0 0.0
  %9166 = vmatprep.subr.mxu0 0.0
  %9167 = vmatpush1.msra.mxu0 0.0
  %9168 = vmatprep.subr.mxu0 0.0
  %9169 = vmatpush1.msra.mxu0 0.0
  %9170 = vmatprep.subr.mxu0 0.0
  %9171 = vmatpush1.msra.mxu0 0.0
  %9172 = vmatprep.mubr.f32.mxu0 0.0
  %9173 = vmatmul.mubr.f32.gmra.mrb[0].mxu0 %v8841
  %v9174 = vpop.f32.mrb[0].mxu0
  %v9175 = vadd.f32 %v8837, %v9174
  %v9176 = vpop.f32.mrb[0].mxu0
  %v9177 = vadd.f32 %v8837, %v9176
  %9178 = vdwg.mxu0
  %v9179 = vsel %vm8987, %v9104, 0.0
  %v9180 = vsel %vm8987, %v9106, 0.0
  %v9181 = vadd.f32 %v9179, %v9180
  %v9182 = vsel %vm8987, %v9175, 0.0
  %v9183 = vadd.f32 %v9181, %v9182
  %v9184 = vsel %vm8987, %v9177, 0.0
  %v9185 = vadd.f32 %v9183, %v9184
  %9186 = vadd.xlane.f32.xlu0 %v9185
  %v9187 = vpop.xlane.xlu0 %9186
  %v9188 = vmul.f32 %v9187, 0.001953125
  %v9189 = vmul.f32 %v9104, %v9104
  %v9190 = vmul.f32 %v9106, %v9106
  %v9191 = vmul.f32 %v9175, %v9175
  %v9192 = vmul.f32 %v9177, %v9177
  %v9193 = vsel %vm8987, %v9189, 0.0
  %v9194 = vsel %vm8987, %v9190, 0.0
  %v9195 = vadd.f32 %v9193, %v9194
  %v9196 = vsel %vm8987, %v9191, 0.0
  %v9197 = vadd.f32 %v9195, %v9196
  %v9198 = vsel %vm8987, %v9192, 0.0
  %v9199 = vadd.f32 %v9197, %v9198
  %9200 = vadd.xlane.f32.xlu0 %v9199
  %v9201 = vpop.xlane.xlu0 %9200
  %v9202 = vmul.f32 %v9201, 0.001953125
  %v9203 = vmul.f32 %v9188, %v9188
  %v9204 = vsub.f32 %v9202, %v9203
  %v9205 = vadd.f32 %v9204, 1e-05
  %v9206 = vrsqrt.pop %v9205
  %v9207 = vmul.f32 %v9206, %v8985
  %9209 = vset.pattern.permute.xlu0 0
  %9210 = vperm.xlu0 %9209, %v9207
  %v9211 = vpop.permute.xlu0 %9210
  %v9213 = vmul.f32 %v9104, %v9211
  %v9214 = vmul.f32 %v9106, %v9211
  %v9215 = vmul.f32 %v9175, %v9211
  %v9216 = vmul.f32 %v9177, %v9211
  %v9217 = vmul.f32 %v9188, %v9207
  %v9218 = vsub.f32 %v8986, %v9217
  %9220 = vset.pattern.permute.xlu0 0
  %9221 = vperm.xlu0 %9220, %v9218
  %v9222 = vpop.permute.xlu0 %9221
  %v9224 = vadd.f32 %v9213, %v9222
  %v9225 = vadd.f32 %v9214, %v9222
  %v9226 = vadd.f32 %v9215, %v9222
  %v9227 = vadd.f32 %v9216, %v9222
  %v9232 = vcombine.low %v9033, %v9034
  %v9233 = vcombine.low %v9035, %v9036
  %9236 = vst [vmem:[%s22] sm:$0x77] %v9232
  %9237 = vst [vmem:[%s22 + $0x8] sm:$0x77] %v9233
  %v9242 = vcombine.low %v9224, %v9225
  %v9243 = vcombine.low %v9226, %v9227
  %s9246 = scalar_lea.vmem %s22, 16
  %9247 = vst [vmem:[%s9246] sm:$0x77] %v9242
  %9248 = vst [vmem:[%s9246 + $0x8] sm:$0x77] %v9243
  // Predicated region
  $region90: #{model_forward.1} parent=0 // pred_check
    _
  $region91: #{model_forward.1} parent=0 // pred_check_branch
    %9250 = sbr.rel (0) target = $region93
  $region92: #{model_forward.1} parent=0 // pred_region
    _
  $region93: #{model_forward.1} parent=0 // pred_fallthru
    _
  // Predicated region
  $region94: #{model_forward.1} parent=0 // pred_check
    _
  $region95: #{model_forward.1} parent=0 // pred_check_branch
    %9252 = sbr.rel (0) target = $region97
  $region96: #{model_forward.1} parent=0 // pred_region
    _
  $region97: #{model_forward.1} parent=0 // pred_fallthru
    _

</llo_original>
